<compile_context>
chip_gen: v7x
topology: tpu7x:2x2x1
jax: 0.10.0
libtpu: 0.0.40
codegen_flags: <defaults>
</compile_context>

<pallas_src>
import functools

import jax
import jax.numpy as jnp
from jax import lax
from jax.experimental import pallas as pl
from jax.experimental.pallas import tpu as pltpu


def _resblock_kernel(x_ref, w1_ref, b1_ref, w2_ref, b2_ref, o_ref,
                     pad1_ref, pad2_ref, *, H, W):
    cmid = w1_ref.shape[-1]
    cout = w2_ref.shape[-1]

    def im2col(p_ref):
        # (H+2, W+2, C) zero-padded buffer -> (H*W, 9*C) patch matrix whose
        # column order matches w.reshape(9*C, Cout) row order (dy, dx, cin).
        c = p_ref.shape[-1]
        cols = []
        for dy in range(3):
            for dx in range(3):
                cols.append(p_ref[dy:dy + H, dx:dx + W, :].reshape(H * W, c))
        return jnp.concatenate(cols, axis=-1)

    # ---- conv1 + bias + ReLU ------------------------------------------------
    pad1_ref[...] = jnp.zeros_like(pad1_ref)            # SAME padding (borders)
    pad1_ref[1:H + 1, 1:W + 1, :] = x_ref[0].astype(pad1_ref.dtype)
    h = jnp.dot(im2col(pad1_ref), w1_ref[...],
                preferred_element_type=jnp.float32) + b1_ref[...]
    h = jnp.maximum(h, 0.0)                              # (H*W, cmid) f32

    # ---- conv2 + bias -------------------------------------------------------
    pad2_ref[...] = jnp.zeros_like(pad2_ref)
    pad2_ref[1:H + 1, 1:W + 1, :] = h.reshape(H, W, cmid).astype(pad2_ref.dtype)
    y = jnp.dot(im2col(pad2_ref), w2_ref[...],
                preferred_element_type=jnp.float32) + b2_ref[...]

    # ---- residual add: output = x + residual (broadcasts if Cin == 1) ------
    o_ref[...] = (x_ref[...].astype(jnp.float32)
                  + y.reshape(1, H, W, cout)).astype(o_ref.dtype)


def res_block(x_nhwc, w1, b1, w2, b2, *, mxu_dtype=jnp.bfloat16):
    """Fused ResBlock forward.  x_nhwc: (N,H,W,Cin); weights HWIO (3,3,Ci,Co)."""
    N, H, W, cin = x_nhwc.shape
    cmid = w1.shape[-1]
    cout = w2.shape[-1]

    # Host-side weight repack: HWIO -> (9*Cin, Cout) in the MXU dtype.
    w1_r = w1.reshape(9 * cin, cmid).astype(mxu_dtype)
    w2_r = w2.reshape(9 * cmid, cout).astype(mxu_dtype)
    b1_r = b1.reshape(1, cmid).astype(jnp.float32)
    b2_r = b2.reshape(1, cout).astype(jnp.float32)

    kern = functools.partial(_resblock_kernel, H=H, W=W)

    return pl.pallas_call(
        kern,
        out_shape=jax.ShapeDtypeStruct((N, H, W, cout), jnp.float32),
        grid=(N,),
        in_specs=[
            pl.BlockSpec((1, H, W, cin), lambda n: (n, 0, 0, 0)),
            pl.BlockSpec((9 * cin, cmid), lambda n: (0, 0)),
            pl.BlockSpec((1, cmid), lambda n: (0, 0)),
            pl.BlockSpec((9 * cmid, cout), lambda n: (0, 0)),
            pl.BlockSpec((1, cout), lambda n: (0, 0)),
        ],
        out_specs=pl.BlockSpec((1, H, W, cout), lambda n: (n, 0, 0, 0)),
        scratch_shapes=[
            pltpu.VMEM((H + 2, W + 2, cin), mxu_dtype),   # padded conv1 input
            pltpu.VMEM((H + 2, W + 2, cmid), mxu_dtype),  # padded conv2 input
        ],
        compiler_params=pltpu.CompilerParams(
            dimension_semantics=("parallel",)),
    )(x_nhwc, w1_r, b1_r, w2_r, b2_r)


# ----------------------------------------------------------------------------
# Pure-JAX f32 reference (== PyTorch ResBlock.forward), for correctness only.
# ----------------------------------------------------------------------------
def _conv_ref(a, w, b):
    y = lax.conv_general_dilated(
        a, w, window_strides=(1, 1), padding="SAME",
        dimension_numbers=("NHWC", "HWIO", "NHWC"))
    return y + b


def res_block_ref(x_nhwc, w1, b1, w2, b2):
    h = jnp.maximum(_conv_ref(x_nhwc, w1, b1), 0.0)
    return x_nhwc + _conv_ref(h, w2, b2)


if __name__ == "__main__":
    key = jax.random.PRNGKey(0)
    k_x, k_w1, k_b1, k_w2, k_b2 = jax.random.split(key, 5)

    # ResBlock(64, 64) on a small NCHW input, like its use in decodeNetwork.
    N, C, H, W = 2, 64, 16, 16
    scale = 0.02
    x_nchw = jax.random.normal(k_x, (N, C, H, W), jnp.float32)
    w1 = scale * jax.random.normal(k_w1, (3, 3, C, C), jnp.float32)
    b1 = scale * jax.random.normal(k_b1, (C,), jnp.float32)
    w2 = scale * jax.random.normal(k_w2, (3, 3, C, C), jnp.float32)
    b2 = scale * jax.random.normal(k_b2, (C,), jnp.float32)

    x = jnp.transpose(x_nchw, (0, 2, 3, 1))             # NCHW -> NHWC
    out = res_block(x, w1, b1, w2, b2)
    out_nchw = jnp.transpose(out, (0, 3, 1, 2))          # NHWC -> NCHW
    out_nchw = jax.block_until_ready(out_nchw)
    assert out_nchw.shape == (N, C, H, W), out_nchw.shape

    ref_nchw = jnp.transpose(res_block_ref(x, w1, b1, w2, b2), (0, 3, 1, 2))
    err = float(jnp.max(jnp.abs(out_nchw - ref_nchw)))
    # bf16 MXU operands with f32 accumulation vs. an f32 reference: tolerance
    # loosened from 1e-4 accordingly (observed error is O(1e-2) worst case).
    assert err < 5e-2, f"max abs error {err}"

    print("KERNEL_OK")
</pallas_src>

<mosaic_0001>
module attributes {stable_mosaic.version = 11 : i64} {
  func.func @_resblock_kernel(%arg0: i32, %arg1: memref<1x16x16x64xf32, #tpu.memory_space<vmem>>, %arg2: memref<576x64xbf16, #tpu.memory_space<vmem>>, %arg3: memref<1x64xf32, #tpu.memory_space<vmem>>, %arg4: memref<576x64xbf16, #tpu.memory_space<vmem>>, %arg5: memref<1x64xf32, #tpu.memory_space<vmem>>, %arg6: memref<1x16x16x64xf32, #tpu.memory_space<vmem>>, %arg7: memref<18x18x64xbf16, #tpu.memory_space<vmem>>, %arg8: memref<18x18x64xbf16, #tpu.memory_space<vmem>>) attributes {dimension_semantics = [#tpu.dimension_semantics<parallel>], iteration_bounds = array<i64: 2>, scalar_prefetch = 0 : i64, scratch_operands = 2 : i64, tpu.core_type = #tpu.core_type<tc>, window_params = [{transform_indices = @transform_0, window_bounds = array<i64: 1, 16, 16, 64>}, {pipeline_mode = #tpu.pipeline_mode<synchronous>, transform_indices = @transform_1, window_bounds = array<i64: 576, 64>}, {pipeline_mode = #tpu.pipeline_mode<synchronous>, transform_indices = @transform_2, window_bounds = array<i64: 1, 64>}, {pipeline_mode = #tpu.pipeline_mode<synchronous>, transform_indices = @transform_3, window_bounds = array<i64: 576, 64>}, {pipeline_mode = #tpu.pipeline_mode<synchronous>, transform_indices = @transform_4, window_bounds = array<i64: 1, 64>}, {transform_indices = @transform_5, window_bounds = array<i64: 1, 16, 16, 64>}]} {
    %cst = arith.constant 0.000000e+00 : bf16
    %0 = vector.broadcast %cst : bf16 to vector<18x18x64xbf16>
    %c0 = arith.constant 0 : index
    %c0_0 = arith.constant 0 : index
    %c0_1 = arith.constant 0 : index
    %1 = vector.load %arg7[%c0, %c0_0, %c0_1] : memref<18x18x64xbf16, #tpu.memory_space<vmem>>, vector<18x18x64xbf16>
    tpu.vector_store %arg7[%c0, %c0_0, %c0_1], %0 {strides = array<i32>} : memref<18x18x64xbf16, #tpu.memory_space<vmem>>, vector<18x18x64xbf16>,
    %c0_2 = arith.constant 0 : index
    %c0_3 = arith.constant 0 : index
    %c0_4 = arith.constant 0 : index
    %c0_5 = arith.constant 0 : index
    %2 = vector.load %arg1[%c0_2, %c0_3, %c0_4, %c0_5] : memref<1x16x16x64xf32, #tpu.memory_space<vmem>>, vector<1x16x16x64xf32>
    %3 = vector.shape_cast %2 : vector<1x16x16x64xf32> to vector<16x16x64xf32>
    %4 = arith.truncf %3 : vector<16x16x64xf32> to vector<16x16x64xbf16>
    %c1 = arith.constant 1 : index
    %c1_6 = arith.constant 1 : index
    %c0_7 = arith.constant 0 : index
    %5 = vector.load %arg7[%c1, %c1_6, %c0_7] : memref<18x18x64xbf16, #tpu.memory_space<vmem>>, vector<16x16x64xbf16>
    tpu.vector_store %arg7[%c1, %c1_6, %c0_7], %4 {strides = array<i32>} : memref<18x18x64xbf16, #tpu.memory_space<vmem>>, vector<16x16x64xbf16>,
    %c0_8 = arith.constant 0 : index
    %c0_9 = arith.constant 0 : index
    %c0_10 = arith.constant 0 : index
    %6 = vector.load %arg7[%c0_8, %c0_9, %c0_10] : memref<18x18x64xbf16, #tpu.memory_space<vmem>>, vector<16x16x64xbf16>
    %7 = vector.shape_cast %6 : vector<16x16x64xbf16> to vector<256x64xbf16>
    %c0_11 = arith.constant 0 : index
    %c1_12 = arith.constant 1 : index
    %c0_13 = arith.constant 0 : index
    %8 = vector.load %arg7[%c0_11, %c1_12, %c0_13] : memref<18x18x64xbf16, #tpu.memory_space<vmem>>, vector<16x16x64xbf16>
    %9 = vector.shape_cast %8 : vector<16x16x64xbf16> to vector<256x64xbf16>
    %c0_14 = arith.constant 0 : index
    %c2 = arith.constant 2 : index
    %c0_15 = arith.constant 0 : index
    %10 = vector.load %arg7[%c0_14, %c2, %c0_15] : memref<18x18x64xbf16, #tpu.memory_space<vmem>>, vector<16x16x64xbf16>
    %11 = vector.shape_cast %10 : vector<16x16x64xbf16> to vector<256x64xbf16>
    %c1_16 = arith.constant 1 : index
    %c0_17 = arith.constant 0 : index
    %c0_18 = arith.constant 0 : index
    %12 = vector.load %arg7[%c1_16, %c0_17, %c0_18] : memref<18x18x64xbf16, #tpu.memory_space<vmem>>, vector<16x16x64xbf16>
    %13 = vector.shape_cast %12 : vector<16x16x64xbf16> to vector<256x64xbf16>
    %c1_19 = arith.constant 1 : index
    %c1_20 = arith.constant 1 : index
    %c0_21 = arith.constant 0 : index
    %14 = vector.load %arg7[%c1_19, %c1_20, %c0_21] : memref<18x18x64xbf16, #tpu.memory_space<vmem>>, vector<16x16x64xbf16>
    %15 = vector.shape_cast %14 : vector<16x16x64xbf16> to vector<256x64xbf16>
    %c1_22 = arith.constant 1 : index
    %c2_23 = arith.constant 2 : index
    %c0_24 = arith.constant 0 : index
    %16 = vector.load %arg7[%c1_22, %c2_23, %c0_24] : memref<18x18x64xbf16, #tpu.memory_space<vmem>>, vector<16x16x64xbf16>
    %17 = vector.shape_cast %16 : vector<16x16x64xbf16> to vector<256x64xbf16>
    %c2_25 = arith.constant 2 : index
    %c0_26 = arith.constant 0 : index
    %c0_27 = arith.constant 0 : index
    %18 = vector.load %arg7[%c2_25, %c0_26, %c0_27] : memref<18x18x64xbf16, #tpu.memory_space<vmem>>, vector<16x16x64xbf16>
    %19 = vector.shape_cast %18 : vector<16x16x64xbf16> to vector<256x64xbf16>
    %c2_28 = arith.constant 2 : index
    %c1_29 = arith.constant 1 : index
    %c0_30 = arith.constant 0 : index
    %20 = vector.load %arg7[%c2_28, %c1_29, %c0_30] : memref<18x18x64xbf16, #tpu.memory_space<vmem>>, vector<16x16x64xbf16>
    %21 = vector.shape_cast %20 : vector<16x16x64xbf16> to vector<256x64xbf16>
    %c2_31 = arith.constant 2 : index
    %c2_32 = arith.constant 2 : index
    %c0_33 = arith.constant 0 : index
    %22 = vector.load %arg7[%c2_31, %c2_32, %c0_33] : memref<18x18x64xbf16, #tpu.memory_space<vmem>>, vector<16x16x64xbf16>
    %23 = vector.shape_cast %22 : vector<16x16x64xbf16> to vector<256x64xbf16>
    %24 = tpu.concatenate %7, %9, %11, %13, %15, %17, %19, %21, %23 in 1 : vector<256x64xbf16>, vector<256x64xbf16>, vector<256x64xbf16>, vector<256x64xbf16>, vector<256x64xbf16>, vector<256x64xbf16>, vector<256x64xbf16>, vector<256x64xbf16>, vector<256x64xbf16> -> vector<256x576xbf16>
    %c0_34 = arith.constant 0 : index
    %c0_35 = arith.constant 0 : index
    %25 = vector.load %arg2[%c0_34, %c0_35] : memref<576x64xbf16, #tpu.memory_space<vmem>>, vector<576x64xbf16>
    %cst_36 = arith.constant dense<0.000000e+00> : vector<256x64xf32>
    %26 = tpu.matmul %24, %25, %cst_36 {dimension_numbers = #tpu.dot_dimension_numbers<[1], [0], [0], [1], [0, 0, 1, 1], [], []>} : vector<256x576xbf16>, vector<576x64xbf16>, vector<256x64xf32> -> vector<256x64xf32>
    %c0_37 = arith.constant 0 : index
    %c0_38 = arith.constant 0 : index
    %27 = vector.load %arg3[%c0_37, %c0_38] : memref<1x64xf32, #tpu.memory_space<vmem>>, vector<1x64xf32>
    %28 = vector.broadcast %27 : vector<1x64xf32> to vector<256x64xf32>
    %29 = arith.addf %26, %28 : vector<256x64xf32>
    %cst_39 = arith.constant 0.000000e+00 : f32
    %30 = vector.broadcast %cst_39 : f32 to vector<256x64xf32>
    %31 = arith.maximumf %29, %30 : vector<256x64xf32>
    %cst_40 = arith.constant 0.000000e+00 : bf16
    %32 = vector.broadcast %cst_40 : bf16 to vector<18x18x64xbf16>
    %c0_41 = arith.constant 0 : index
    %c0_42 = arith.constant 0 : index
    %c0_43 = arith.constant 0 : index
    %33 = vector.load %arg8[%c0_41, %c0_42, %c0_43] : memref<18x18x64xbf16, #tpu.memory_space<vmem>>, vector<18x18x64xbf16>
    tpu.vector_store %arg8[%c0_41, %c0_42, %c0_43], %32 {strides = array<i32>} : memref<18x18x64xbf16, #tpu.memory_space<vmem>>, vector<18x18x64xbf16>,
    %34 = vector.shape_cast %31 : vector<256x64xf32> to vector<16x16x64xf32>
    %35 = arith.truncf %34 : vector<16x16x64xf32> to vector<16x16x64xbf16>
    %c1_44 = arith.constant 1 : index
    %c1_45 = arith.constant 1 : index
    %c0_46 = arith.constant 0 : index
    %36 = vector.load %arg8[%c1_44, %c1_45, %c0_46] : memref<18x18x64xbf16, #tpu.memory_space<vmem>>, vector<16x16x64xbf16>
    tpu.vector_store %arg8[%c1_44, %c1_45, %c0_46], %35 {strides = array<i32>} : memref<18x18x64xbf16, #tpu.memory_space<vmem>>, vector<16x16x64xbf16>,
    %c0_47 = arith.constant 0 : index
    %c0_48 = arith.constant 0 : index
    %c0_49 = arith.constant 0 : index
    %37 = vector.load %arg8[%c0_47, %c0_48, %c0_49] : memref<18x18x64xbf16, #tpu.memory_space<vmem>>, vector<16x16x64xbf16>
    %38 = vector.shape_cast %37 : vector<16x16x64xbf16> to vector<256x64xbf16>
    %c0_50 = arith.constant 0 : index
    %c1_51 = arith.constant 1 : index
    %c0_52 = arith.constant 0 : index
    %39 = vector.load %arg8[%c0_50, %c1_51, %c0_52] : memref<18x18x64xbf16, #tpu.memory_space<vmem>>, vector<16x16x64xbf16>
    %40 = vector.shape_cast %39 : vector<16x16x64xbf16> to vector<256x64xbf16>
    %c0_53 = arith.constant 0 : index
    %c2_54 = arith.constant 2 : index
    %c0_55 = arith.constant 0 : index
    %41 = vector.load %arg8[%c0_53, %c2_54, %c0_55] : memref<18x18x64xbf16, #tpu.memory_space<vmem>>, vector<16x16x64xbf16>
    %42 = vector.shape_cast %41 : vector<16x16x64xbf16> to vector<256x64xbf16>
    %c1_56 = arith.constant 1 : index
    %c0_57 = arith.constant 0 : index
    %c0_58 = arith.constant 0 : index
    %43 = vector.load %arg8[%c1_56, %c0_57, %c0_58] : memref<18x18x64xbf16, #tpu.memory_space<vmem>>, vector<16x16x64xbf16>
    %44 = vector.shape_cast %43 : vector<16x16x64xbf16> to vector<256x64xbf16>
    %c1_59 = arith.constant 1 : index
    %c1_60 = arith.constant 1 : index
    %c0_61 = arith.constant 0 : index
    %45 = vector.load %arg8[%c1_59, %c1_60, %c0_61] : memref<18x18x64xbf16, #tpu.memory_space<vmem>>, vector<16x16x64xbf16>
    %46 = vector.shape_cast %45 : vector<16x16x64xbf16> to vector<256x64xbf16>
    %c1_62 = arith.constant 1 : index
    %c2_63 = arith.constant 2 : index
    %c0_64 = arith.constant 0 : index
    %47 = vector.load %arg8[%c1_62, %c2_63, %c0_64] : memref<18x18x64xbf16, #tpu.memory_space<vmem>>, vector<16x16x64xbf16>
    %48 = vector.shape_cast %47 : vector<16x16x64xbf16> to vector<256x64xbf16>
    %c2_65 = arith.constant 2 : index
    %c0_66 = arith.constant 0 : index
    %c0_67 = arith.constant 0 : index
    %49 = vector.load %arg8[%c2_65, %c0_66, %c0_67] : memref<18x18x64xbf16, #tpu.memory_space<vmem>>, vector<16x16x64xbf16>
    %50 = vector.shape_cast %49 : vector<16x16x64xbf16> to vector<256x64xbf16>
    %c2_68 = arith.constant 2 : index
    %c1_69 = arith.constant 1 : index
    %c0_70 = arith.constant 0 : index
    %51 = vector.load %arg8[%c2_68, %c1_69, %c0_70] : memref<18x18x64xbf16, #tpu.memory_space<vmem>>, vector<16x16x64xbf16>
    %52 = vector.shape_cast %51 : vector<16x16x64xbf16> to vector<256x64xbf16>
    %c2_71 = arith.constant 2 : index
    %c2_72 = arith.constant 2 : index
    %c0_73 = arith.constant 0 : index
    %53 = vector.load %arg8[%c2_71, %c2_72, %c0_73] : memref<18x18x64xbf16, #tpu.memory_space<vmem>>, vector<16x16x64xbf16>
    %54 = vector.shape_cast %53 : vector<16x16x64xbf16> to vector<256x64xbf16>
    %55 = tpu.concatenate %38, %40, %42, %44, %46, %48, %50, %52, %54 in 1 : vector<256x64xbf16>, vector<256x64xbf16>, vector<256x64xbf16>, vector<256x64xbf16>, vector<256x64xbf16>, vector<256x64xbf16>, vector<256x64xbf16>, vector<256x64xbf16>, vector<256x64xbf16> -> vector<256x576xbf16>
    %c0_74 = arith.constant 0 : index
    %c0_75 = arith.constant 0 : index
    %56 = vector.load %arg4[%c0_74, %c0_75] : memref<576x64xbf16, #tpu.memory_space<vmem>>, vector<576x64xbf16>
    %cst_76 = arith.constant dense<0.000000e+00> : vector<256x64xf32>
    %57 = tpu.matmul %55, %56, %cst_76 {dimension_numbers = #tpu.dot_dimension_numbers<[1], [0], [0], [1], [0, 0, 1, 1], [], []>} : vector<256x576xbf16>, vector<576x64xbf16>, vector<256x64xf32> -> vector<256x64xf32>
    %c0_77 = arith.constant 0 : index
    %c0_78 = arith.constant 0 : index
    %58 = vector.load %arg5[%c0_77, %c0_78] : memref<1x64xf32, #tpu.memory_space<vmem>>, vector<1x64xf32>
    %59 = vector.broadcast %58 : vector<1x64xf32> to vector<256x64xf32>
    %60 = arith.addf %57, %59 : vector<256x64xf32>
    %c0_79 = arith.constant 0 : index
    %c0_80 = arith.constant 0 : index
    %c0_81 = arith.constant 0 : index
    %c0_82 = arith.constant 0 : index
    %61 = vector.load %arg1[%c0_79, %c0_80, %c0_81, %c0_82] : memref<1x16x16x64xf32, #tpu.memory_space<vmem>>, vector<1x16x16x64xf32>
    %62 = vector.shape_cast %60 : vector<256x64xf32> to vector<1x16x16x64xf32>
    %63 = arith.addf %61, %62 : vector<1x16x16x64xf32>
    %c0_83 = arith.constant 0 : index
    %c0_84 = arith.constant 0 : index
    %c0_85 = arith.constant 0 : index
    %c0_86 = arith.constant 0 : index
    %64 = vector.load %arg6[%c0_83, %c0_84, %c0_85, %c0_86] : memref<1x16x16x64xf32, #tpu.memory_space<vmem>>, vector<1x16x16x64xf32>
    tpu.vector_store %arg6[%c0_83, %c0_84, %c0_85, %c0_86], %63 {strides = array<i32>} : memref<1x16x16x64xf32, #tpu.memory_space<vmem>>, vector<1x16x16x64xf32>,
    return
  }
  func.func @transform_0(%arg0: i32) -> (i32, i32, i32, i32) {
    %c0_i32 = arith.constant 0 : i32
    %c0_i32_0 = arith.constant 0 : i32
    %c0_i32_1 = arith.constant 0 : i32
    %c0_i32_2 = arith.constant 0 : i32
    return %arg0, %c0_i32, %c0_i32_0, %c0_i32_1 : i32, i32, i32, i32
  }
  func.func @transform_1(%arg0: i32) -> (i32, i32) {
    %c0_i32 = arith.constant 0 : i32
    %c0_i32_0 = arith.constant 0 : i32
    %c0_i32_1 = arith.constant 0 : i32
    return %c0_i32, %c0_i32_0 : i32, i32
  }
  func.func @transform_2(%arg0: i32) -> (i32, i32) {
    %c0_i32 = arith.constant 0 : i32
    %c0_i32_0 = arith.constant 0 : i32
    %c0_i32_1 = arith.constant 0 : i32
    return %c0_i32, %c0_i32_0 : i32, i32
  }
  func.func @transform_3(%arg0: i32) -> (i32, i32) {
    %c0_i32 = arith.constant 0 : i32
    %c0_i32_0 = arith.constant 0 : i32
    %c0_i32_1 = arith.constant 0 : i32
    return %c0_i32, %c0_i32_0 : i32, i32
  }
  func.func @transform_4(%arg0: i32) -> (i32, i32) {
    %c0_i32 = arith.constant 0 : i32
    %c0_i32_0 = arith.constant 0 : i32
    %c0_i32_1 = arith.constant 0 : i32
    return %c0_i32, %c0_i32_0 : i32, i32
  }
  func.func @transform_5(%arg0: i32) -> (i32, i32, i32, i32) {
    %c0_i32 = arith.constant 0 : i32
    %c0_i32_0 = arith.constant 0 : i32
    %c0_i32_1 = arith.constant 0 : i32
    %c0_i32_2 = arith.constant 0 : i32
    return %arg0, %c0_i32, %c0_i32_0, %c0_i32_1 : i32, i32, i32, i32
  }
}

</mosaic_0001>

<llo_original>
// kernel: tpu_custom_call.1
$region0: #{tpu_custom_call.1}
  #allocation0 [shape = 'u32[]', space=smem, size = 0x4, offset = 0x4, fixed_abs, tag = 'smem constant byte address 0x4 - core index']
  #allocation1 [shape = 'u32[144,128]{1,0:T(1,128)}', space=vmem, size = 0x12000, scoped, tag = 'internal scratch']
  #allocation2 [shape = 'bf16[18,18,64]{2,1,0:T(8,128)(2,1)}', space=vmem, size = 0x1b000, scoped, tag = 'scratch operand']
  #allocation3 [shape = 'bf16[18,18,64]{2,1,0:T(8,128)(2,1)}', space=vmem, size = 0x1b000, scoped, tag = 'scratch operand']
  %s0 = inlined_call_operand.vmem [shape: f32[2,16,16,64], index: 0, kind: input, shape index: {}]
  %s1 = inlined_call_operand.vmem [shape: bf16[576,64], index: 1, kind: input, shape index: {}]
  %s2 = inlined_call_operand.vmem [shape: f32[1,64], index: 2, kind: input, shape index: {}]
  %s3 = inlined_call_operand.vmem [shape: bf16[576,64], index: 3, kind: input, shape index: {}]
  %s4 = inlined_call_operand.vmem [shape: f32[1,64], index: 4, kind: input, shape index: {}]
  %s5 = inlined_call_operand.hbm [shape: f32[2,16,16,64], index: 5, kind: output, shape index: {}]
  %s6 = sld [smem:[#allocation0]]
  $region53: #{tpu_custom_call.1} parent=0
    _
  %s8 = ssub.s32 1, %s6
  %s9 = scalar_select 0, %s8, %s6
  $region1: #{tpu_custom_call.1} parent=0
    #allocation4 [shape = 'u8[262144]{0}', space=vmem, size = 0x40000, scoped, tag = 'output window, operand 0']
    #allocation5 [shape = 's32[2]{0}', space=sflag, size = 0x8, scoped, tag = 'scoped memory for tpu_custom_call.1']
    %10 = vsyncpa [#allocation5], 0
    %s11 = scalar_lea.sflag [#allocation5], 1
    %12 = vsyncpa %s11, 0
    loop: start=0, step=1, limit=4
    $region2: #{tpu_custom_call.1} parent=1 // loop_pre_header
      _
    $region3: #{tpu_custom_call.1} parent=1 // loop_header
      %s14 = sphi 0, %s18
      %p15 = scmp.ge.s32.totalorder %s14, 4
      %s24 = sphi 0, %s26
      %s27 = sphi 0, %s24
      %s28 = sphi 0, %s27
      %s44 = sphi 0, %s28
      %s48 = sphi 0, %s48
      %s50 = sphi 0, %s48
      %s51 = sphi 0, %s50
      %s65 = sphi 0, %s51
      %s69 = sphi 0, %s69
      %s71 = sphi 0, %s69
      %s72 = sphi 0, %s71
      %s86 = sphi 0, %s72
      %s90 = sphi 0, %s90
      %s92 = sphi 0, %s90
      %s93 = sphi 0, %s92
      %s107 = sphi 0, %s93
      %s111 = sphi 0, %s111
      %s113 = sphi 0, %s111
      %s114 = sphi 0, %s113
      %s128 = sphi 0, %s114
      %s134 = sphi 0, %s136
      %s137 = sphi 0, %s134
      %s138 = sphi 0, %s137
      %s154 = sphi 0, %s138
    $region4: #{tpu_custom_call.1} parent=1 // loop_header_branch
      %17 = sbr.rel (%p15) target = $region8
    $region5: #{tpu_custom_call.1} parent=1 // loop_body
      %s19 = ssub.s32 %s14, 1
      %s20 = ssub.s32 %s14, 2
      %s21 = sadd.s32 %s14, 1
      %s22 = ssub.s32 %s14, %s21
      %p23 = scmp.eq.s32.totalorder %s22, 0
      %s25 = sadd.s32 %s24, 1
      %s26 = scalar_select %p23, %s24, %s25
      %p29 = pneg %p23
      %p30 = scmp.eq.s32.totalorder %s14, 1
      %p31 = por %p29, %p30
      %p32 = scmp.ne.s32.totalorder %s24, %s27
      %p33 = scmp.eq.s32.totalorder %s14, 0
      %p34 = por %p32, %p33
      %p35 = scmp.ne.s32.totalorder %s24, %s27
      %p36 = scmp.eq.s32.totalorder %s19, 1
      %p37 = por %p35, %p36
      %p38 = scmp.ne.s32.totalorder %s27, %s28
      %p39 = scmp.eq.s32.totalorder %s19, 0
      %p40 = por %p38, %p39
      %p41 = scmp.ne.s32.totalorder %s27, %s28
      %p42 = scmp.eq.s32.totalorder %s20, 1
      %p43 = por %p41, %p42
      %p45 = scmp.ne.s32.totalorder %s28, %s44
      %p46 = scmp.eq.s32.totalorder %s20, 0
      %p47 = por %p45, %p46
      %s49 = sadd.s32 %s48, 1
      %p52 = scmp.eq.s32.totalorder %s14, 1
      %p53 = scmp.ne.s32.totalorder %s48, %s50
      %p54 = scmp.eq.s32.totalorder %s14, 0
      %p55 = por %p53, %p54
      %p56 = scmp.ne.s32.totalorder %s48, %s50
      %p57 = scmp.eq.s32.totalorder %s19, 1
      %p58 = por %p56, %p57
      %p59 = scmp.ne.s32.totalorder %s50, %s51
      %p60 = scmp.eq.s32.totalorder %s19, 0
      %p61 = por %p59, %p60
      %p62 = scmp.ne.s32.totalorder %s50, %s51
      %p63 = scmp.eq.s32.totalorder %s20, 1
      %p64 = por %p62, %p63
      %p66 = scmp.ne.s32.totalorder %s51, %s65
      %p67 = scmp.eq.s32.totalorder %s20, 0
      %p68 = por %p66, %p67
      %s70 = sadd.s32 %s69, 1
      %p73 = scmp.eq.s32.totalorder %s14, 1
      %p74 = scmp.ne.s32.totalorder %s69, %s71
      %p75 = scmp.eq.s32.totalorder %s14, 0
      %p76 = por %p74, %p75
      %p77 = scmp.ne.s32.totalorder %s69, %s71
      %p78 = scmp.eq.s32.totalorder %s19, 1
      %p79 = por %p77, %p78
      %p80 = scmp.ne.s32.totalorder %s71, %s72
      %p81 = scmp.eq.s32.totalorder %s19, 0
      %p82 = por %p80, %p81
      %p83 = scmp.ne.s32.totalorder %s71, %s72
      %p84 = scmp.eq.s32.totalorder %s20, 1
      %p85 = por %p83, %p84
      %p87 = scmp.ne.s32.totalorder %s72, %s86
      %p88 = scmp.eq.s32.totalorder %s20, 0
      %p89 = por %p87, %p88
      %s91 = sadd.s32 %s90, 1
      %p94 = scmp.eq.s32.totalorder %s14, 1
      %p95 = scmp.ne.s32.totalorder %s90, %s92
      %p96 = scmp.eq.s32.totalorder %s14, 0
      %p97 = por %p95, %p96
      %p98 = scmp.ne.s32.totalorder %s90, %s92
      %p99 = scmp.eq.s32.totalorder %s19, 1
      %p100 = por %p98, %p99
      %p101 = scmp.ne.s32.totalorder %s92, %s93
      %p102 = scmp.eq.s32.totalorder %s19, 0
      %p103 = por %p101, %p102
      %p104 = scmp.ne.s32.totalorder %s92, %s93
      %p105 = scmp.eq.s32.totalorder %s20, 1
      %p106 = por %p104, %p105
      %p108 = scmp.ne.s32.totalorder %s93, %s107
      %p109 = scmp.eq.s32.totalorder %s20, 0
      %p110 = por %p108, %p109
      %s112 = sadd.s32 %s111, 1
      %p115 = scmp.eq.s32.totalorder %s14, 1
      %p116 = scmp.ne.s32.totalorder %s111, %s113
      %p117 = scmp.eq.s32.totalorder %s14, 0
      %p118 = por %p116, %p117
      %p119 = scmp.ne.s32.totalorder %s111, %s113
      %p120 = scmp.eq.s32.totalorder %s19, 1
      %p121 = por %p119, %p120
      %p122 = scmp.ne.s32.totalorder %s113, %s114
      %p123 = scmp.eq.s32.totalorder %s19, 0
      %p124 = por %p122, %p123
      %p125 = scmp.ne.s32.totalorder %s113, %s114
      %p126 = scmp.eq.s32.totalorder %s20, 1
      %p127 = por %p125, %p126
      %p129 = scmp.ne.s32.totalorder %s114, %s128
      %p130 = scmp.eq.s32.totalorder %s20, 0
      %p131 = por %p129, %p130
      %s132 = ssub.s32 %s14, %s21
      %p133 = scmp.eq.s32.totalorder %s132, 0
      %s135 = sadd.s32 %s134, 1
      %s136 = scalar_select %p133, %s134, %s135
      %p139 = pneg %p133
      %p140 = scmp.eq.s32.totalorder %s14, 1
      %p141 = por %p139, %p140
      %p142 = scmp.ne.s32.totalorder %s134, %s137
      %p143 = scmp.eq.s32.totalorder %s14, 0
      %p144 = por %p142, %p143
      %p145 = scmp.ne.s32.totalorder %s134, %s137
      %p146 = scmp.eq.s32.totalorder %s19, 1
      %p147 = por %p145, %p146
      %p148 = scmp.ne.s32.totalorder %s137, %s138
      %p149 = scmp.eq.s32.totalorder %s19, 0
      %p150 = por %p148, %p149
      %p151 = scmp.ne.s32.totalorder %s137, %s138
      %p152 = scmp.eq.s32.totalorder %s20, 1
      %p153 = por %p151, %p152
      %p155 = scmp.ne.s32.totalorder %s138, %s154
      %p156 = scmp.eq.s32.totalorder %s20, 0
      %p157 = por %p155, %p156
      %p158 = scmp.le.s32.totalorder 1, %s14
      %p159 = scmp.lt.s32.totalorder %s14, 3
      %p160 = pnand %p158, %p159
      %p161 = pneg %p160
      // Predicated region
      $region9: #{tpu_custom_call.1} parent=5 // pred_check
        _
      $region10: #{tpu_custom_call.1} parent=5 // pred_check_branch
        %163 = sbr.rel (%p160) target = $region12
      $region11: #{tpu_custom_call.1} parent=5 // pred_region
        %s164 = ssub.s32 %s14, 1
        // Predicated region
        $region13: #{tpu_custom_call.1} parent=11 // pred_check
          %p165 = pneg %p61
        $region14: #{tpu_custom_call.1} parent=11 // pred_check_branch
          %167 = sbr.rel (%p165) target = $region16
        $region15: #{tpu_custom_call.1} parent=11 // pred_region
          _
        $region16: #{tpu_custom_call.1} parent=11 // pred_fallthru
          _
        // Predicated region
        $region17: #{tpu_custom_call.1} parent=11 // pred_check
          %p168 = pneg %p82
        $region18: #{tpu_custom_call.1} parent=11 // pred_check_branch
          %170 = sbr.rel (%p168) target = $region20
        $region19: #{tpu_custom_call.1} parent=11 // pred_region
          _
        $region20: #{tpu_custom_call.1} parent=11 // pred_fallthru
          _
        // Predicated region
        $region21: #{tpu_custom_call.1} parent=11 // pred_check
          %p171 = pneg %p103
        $region22: #{tpu_custom_call.1} parent=11 // pred_check_branch
          %173 = sbr.rel (%p171) target = $region24
        $region23: #{tpu_custom_call.1} parent=11 // pred_region
          _
        $region24: #{tpu_custom_call.1} parent=11 // pred_fallthru
          _
        // Predicated region
        $region25: #{tpu_custom_call.1} parent=11 // pred_check
          %p174 = pneg %p124
        $region26: #{tpu_custom_call.1} parent=11 // pred_check_branch
          %176 = sbr.rel (%p174) target = $region28
        $region27: #{tpu_custom_call.1} parent=11 // pred_region
          _
        $region28: #{tpu_custom_call.1} parent=11 // pred_fallthru
          _
      $region12: #{tpu_custom_call.1} parent=5 // pred_fallthru
        _
      %p177 = scmp.lt.s32.totalorder %s14, 2
      // Predicated region
      $region29: #{tpu_custom_call.1} parent=5 // pred_check
        %p178 = pneg %p177
      $region30: #{tpu_custom_call.1} parent=5 // pred_check_branch
        %180 = sbr.rel (%p178) target = $region32
      $region31: #{tpu_custom_call.1} parent=5 // pred_region
        // Predicated region
        $region33: #{tpu_custom_call.1} parent=31 // pred_check
          %p181 = pneg %p34
        $region34: #{tpu_custom_call.1} parent=31 // pred_check_branch
          %183 = sbr.rel (%p181) target = $region36
        $region35: #{tpu_custom_call.1} parent=31 // pred_region
          %p184 = scmp.lt.s32.totalorder %s14, 1
          %s185 = scalar_select %p184, %s14, 1
          %s186 = smul.addr %s185, 32
          %s187 = smul.addr %s186, 8
          %s188 = scalar_lea.vmem %s0, %s187
        $region36: #{tpu_custom_call.1} parent=31 // pred_fallthru
          _
      $region32: #{tpu_custom_call.1} parent=5 // pred_fallthru
        _
      %p189 = scmp.le.s32.totalorder 1, %s14
      %p190 = scmp.lt.s32.totalorder %s14, 3
      %p191 = pnand %p189, %p190
      %p192 = pneg %p191
      // Predicated region
      $region37: #{tpu_custom_call.1} parent=5 // pred_check
        _
      $region38: #{tpu_custom_call.1} parent=5 // pred_check_branch
        %194 = sbr.rel (%p191) target = $region40
      $region39: #{tpu_custom_call.1} parent=5 // pred_region
        %s195 = ssub.s32 %s14, 1
        %p196 = scmp.lt.s32.totalorder %s19, 1
        %s197 = scalar_select %p196, %s19, 1
        %s198 = smul.addr %s197, 32
        %s199 = smul.addr %s198, 8
        %s200 = scalar_lea.vmem %s0, %s199
        %p201 = pneg %p40
        %p202 = pneg %p37
        %p203 = pneg %p61
        %p204 = pneg %p58
        %p205 = pneg %p82
        %p206 = pneg %p79
        %p207 = pneg %p103
        %p208 = pneg %p100
        %p209 = pneg %p124
        %p210 = pneg %p121
        %p211 = pneg %p150
        %p212 = pneg %p147
        %s213 = sand.u32 %s137, 1
        %s214 = scalar_lea.sflag [#allocation5], %s213
        %s215 = sand.u32 %s137, 1
        %s216 = smul.addr %s215, 256
        %s217 = scalar_lea.vmem [#allocation4], %s216
        %p218 = scmp.lt.s32.totalorder %s19, 1
        %s219 = scalar_select %p218, %s19, 1
        %s220 = smul.addr %s219, 32
        %s221 = smul.addr %s220, 8
        %s222 = scalar_lea.vmem %s0, %s221
        %vm224 = vcmask 519168
        %225 = vst.msk [vmem:[#allocation2] sm:$0xf] %vm224, 0
        %226 = vst.msk [vmem:[#allocation2 + $0x4] sm:$0xf] %vm224, 0
        %vm227 = vcmask 516096
        %228 = vst.msk [vmem:[#allocation2 + $0x8] sm:$0x1] %vm227, 0
        %229 = vst.msk [vmem:[#allocation2 + $0xc] sm:$0xf] %vm224, 0
        %230 = vst.msk [vmem:[#allocation2 + $0x10] sm:$0xf] %vm224, 0
        %231 = vst.msk [vmem:[#allocation2 + $0x14] sm:$0x1] %vm227, 0
        %232 = vst.msk [vmem:[#allocation2 + $0x18] sm:$0xf] %vm224, 0
        %233 = vst.msk [vmem:[#allocation2 + $0x1c] sm:$0xf] %vm224, 0
        %234 = vst.msk [vmem:[#allocation2 + $0x20] sm:$0x1] %vm227, 0
        %235 = vst.msk [vmem:[#allocation2 + $0x24] sm:$0xf] %vm224, 0
        %236 = vst.msk [vmem:[#allocation2 + $0x28] sm:$0xf] %vm224, 0
        %237 = vst.msk [vmem:[#allocation2 + $0x2c] sm:$0x1] %vm227, 0
        %238 = vst.msk [vmem:[#allocation2 + $0x30] sm:$0xf] %vm224, 0
        %239 = vst.msk [vmem:[#allocation2 + $0x34] sm:$0xf] %vm224, 0
        %240 = vst.msk [vmem:[#allocation2 + $0x38] sm:$0x1] %vm227, 0
        %241 = vst.msk [vmem:[#allocation2 + $0x3c] sm:$0xf] %vm224, 0
        %242 = vst.msk [vmem:[#allocation2 + $0x40] sm:$0xf] %vm224, 0
        %243 = vst.msk [vmem:[#allocation2 + $0x44] sm:$0x1] %vm227, 0
        %244 = vst.msk [vmem:[#allocation2 + $0x48] sm:$0xf] %vm224, 0
        %245 = vst.msk [vmem:[#allocation2 + $0x4c] sm:$0xf] %vm224, 0
        %246 = vst.msk [vmem:[#allocation2 + $0x50] sm:$0x1] %vm227, 0
        %247 = vst.msk [vmem:[#allocation2 + $0x54] sm:$0xf] %vm224, 0
        %248 = vst.msk [vmem:[#allocation2 + $0x58] sm:$0xf] %vm224, 0
        %249 = vst.msk [vmem:[#allocation2 + $0x5c] sm:$0x1] %vm227, 0
        %250 = vst.msk [vmem:[#allocation2 + $0x60] sm:$0xf] %vm224, 0
        %251 = vst.msk [vmem:[#allocation2 + $0x64] sm:$0xf] %vm224, 0
        %252 = vst.msk [vmem:[#allocation2 + $0x68] sm:$0x1] %vm227, 0
        %253 = vst.msk [vmem:[#allocation2 + $0x6c] sm:$0xf] %vm224, 0
        %254 = vst.msk [vmem:[#allocation2 + $0x70] sm:$0xf] %vm224, 0
        %255 = vst.msk [vmem:[#allocation2 + $0x74] sm:$0x1] %vm227, 0
        %256 = vst.msk [vmem:[#allocation2 + $0x78] sm:$0xf] %vm224, 0
        %257 = vst.msk [vmem:[#allocation2 + $0x7c] sm:$0xf] %vm224, 0
        %258 = vst.msk [vmem:[#allocation2 + $0x80] sm:$0x1] %vm227, 0
        %259 = vst.msk [vmem:[#allocation2 + $0x84] sm:$0xf] %vm224, 0
        %260 = vst.msk [vmem:[#allocation2 + $0x88] sm:$0xf] %vm224, 0
        %261 = vst.msk [vmem:[#allocation2 + $0x8c] sm:$0x1] %vm227, 0
        %262 = vst.msk [vmem:[#allocation2 + $0x90] sm:$0xf] %vm224, 0
        %263 = vst.msk [vmem:[#allocation2 + $0x94] sm:$0xf] %vm224, 0
        %264 = vst.msk [vmem:[#allocation2 + $0x98] sm:$0x1] %vm227, 0
        %265 = vst.msk [vmem:[#allocation2 + $0x9c] sm:$0xf] %vm224, 0
        %266 = vst.msk [vmem:[#allocation2 + $0xa0] sm:$0xf] %vm224, 0
        %267 = vst.msk [vmem:[#allocation2 + $0xa4] sm:$0x1] %vm227, 0
        %268 = vst.msk [vmem:[#allocation2 + $0xa8] sm:$0xf] %vm224, 0
        %269 = vst.msk [vmem:[#allocation2 + $0xac] sm:$0xf] %vm224, 0
        %270 = vst.msk [vmem:[#allocation2 + $0xb0] sm:$0x1] %vm227, 0
        %271 = vst.msk [vmem:[#allocation2 + $0xb4] sm:$0xf] %vm224, 0
        %272 = vst.msk [vmem:[#allocation2 + $0xb8] sm:$0xf] %vm224, 0
        %273 = vst.msk [vmem:[#allocation2 + $0xbc] sm:$0x1] %vm227, 0
        %274 = vst.msk [vmem:[#allocation2 + $0xc0] sm:$0xf] %vm224, 0
        %275 = vst.msk [vmem:[#allocation2 + $0xc4] sm:$0xf] %vm224, 0
        %276 = vst.msk [vmem:[#allocation2 + $0xc8] sm:$0x1] %vm227, 0
        %277 = vst.msk [vmem:[#allocation2 + $0xcc] sm:$0xf] %vm224, 0
        %278 = vst.msk [vmem:[#allocation2 + $0xd0] sm:$0xf] %vm224, 0
        %279 = vst.msk [vmem:[#allocation2 + $0xd4] sm:$0x1] %vm227, 0
        %v280 = vld [vmem:[%s222] sm:$0xff]
        %v281 = vld [vmem:[%s222 + $0x8] sm:$0xff]
        %v282 = vld [vmem:[%s222 + $0x10] sm:$0xff]
        %v283 = vld [vmem:[%s222 + $0x18] sm:$0xff]
        %v284 = vld [vmem:[%s222 + $0x20] sm:$0xff]
        %v285 = vld [vmem:[%s222 + $0x28] sm:$0xff]
        %v286 = vld [vmem:[%s222 + $0x30] sm:$0xff]
        %v287 = vld [vmem:[%s222 + $0x38] sm:$0xff]
        %v288 = vld [vmem:[%s222 + $0x40] sm:$0xff]
        %v289 = vld [vmem:[%s222 + $0x48] sm:$0xff]
        %v290 = vld [vmem:[%s222 + $0x50] sm:$0xff]
        %v291 = vld [vmem:[%s222 + $0x58] sm:$0xff]
        %v292 = vld [vmem:[%s222 + $0x60] sm:$0xff]
        %v293 = vld [vmem:[%s222 + $0x68] sm:$0xff]
        %v294 = vld [vmem:[%s222 + $0x70] sm:$0xff]
        %v295 = vld [vmem:[%s222 + $0x78] sm:$0xff]
        %v296 = vld [vmem:[%s222 + $0x80] sm:$0xff]
        %v297 = vld [vmem:[%s222 + $0x88] sm:$0xff]
        %v298 = vld [vmem:[%s222 + $0x90] sm:$0xff]
        %v299 = vld [vmem:[%s222 + $0x98] sm:$0xff]
        %v300 = vld [vmem:[%s222 + $0xa0] sm:$0xff]
        %v301 = vld [vmem:[%s222 + $0xa8] sm:$0xff]
        %v302 = vld [vmem:[%s222 + $0xb0] sm:$0xff]
        %v303 = vld [vmem:[%s222 + $0xb8] sm:$0xff]
        %v304 = vld [vmem:[%s222 + $0xc0] sm:$0xff]
        %v305 = vld [vmem:[%s222 + $0xc8] sm:$0xff]
        %v306 = vld [vmem:[%s222 + $0xd0] sm:$0xff]
        %v307 = vld [vmem:[%s222 + $0xd8] sm:$0xff]
        %v308 = vld [vmem:[%s222 + $0xe0] sm:$0xff]
        %v309 = vld [vmem:[%s222 + $0xe8] sm:$0xff]
        %v310 = vld [vmem:[%s222 + $0xf0] sm:$0xff]
        %v311 = vld [vmem:[%s222 + $0xf8] sm:$0xff]
        %v312 = vpack.c.bf16 %v281, %v280
        %v313 = vpack.c.bf16 %v283, %v282
        %v314 = vpack.c.bf16 %v285, %v284
        %v315 = vpack.c.bf16 %v287, %v286
        %v316 = vpack.c.bf16 %v289, %v288
        %v317 = vpack.c.bf16 %v291, %v290
        %v318 = vpack.c.bf16 %v293, %v292
        %v319 = vpack.c.bf16 %v295, %v294
        %v320 = vpack.c.bf16 %v297, %v296
        %v321 = vpack.c.bf16 %v299, %v298
        %v322 = vpack.c.bf16 %v301, %v300
        %v323 = vpack.c.bf16 %v303, %v302
        %v324 = vpack.c.bf16 %v305, %v304
        %v325 = vpack.c.bf16 %v307, %v306
        %v326 = vpack.c.bf16 %v309, %v308
        %v327 = vpack.c.bf16 %v311, %v310
        %v344 = vunpack.c.l.b16 %v312
        %v345 = vunpack.c.h.b16 %v312
        %v346 = vunpack.c.l.b16 %v313
        %v347 = vunpack.c.h.b16 %v313
        %v348 = vunpack.c.l.b16 %v314
        %v349 = vunpack.c.h.b16 %v314
        %v350 = vunpack.c.l.b16 %v315
        %v351 = vunpack.c.h.b16 %v315
        %v352 = vunpack.c.l.b16 %v316
        %v353 = vunpack.c.h.b16 %v316
        %v354 = vunpack.c.l.b16 %v317
        %v355 = vunpack.c.h.b16 %v317
        %v356 = vunpack.c.l.b16 %v318
        %v357 = vunpack.c.h.b16 %v318
        %v358 = vunpack.c.l.b16 %v319
        %v359 = vunpack.c.h.b16 %v319
        %v360 = vunpack.c.l.b16 %v320
        %v361 = vunpack.c.h.b16 %v320
        %v362 = vunpack.c.l.b16 %v321
        %v363 = vunpack.c.h.b16 %v321
        %v364 = vunpack.c.l.b16 %v322
        %v365 = vunpack.c.h.b16 %v322
        %v366 = vunpack.c.l.b16 %v323
        %v367 = vunpack.c.h.b16 %v323
        %v368 = vunpack.c.l.b16 %v324
        %v369 = vunpack.c.h.b16 %v324
        %v370 = vunpack.c.l.b16 %v325
        %v371 = vunpack.c.h.b16 %v325
        %v372 = vunpack.c.l.b16 %v326
        %v373 = vunpack.c.h.b16 %v326
        %v374 = vunpack.c.l.b16 %v327
        %v375 = vunpack.c.h.b16 %v327
        %v376 = vpack.c.b16 %v344, %v344
        %v377 = vpack.c.b16 %v345, %v345
        %v378 = vpack.c.b16 %v346, %v346
        %v379 = vpack.c.b16 %v347, %v347
        %v380 = vpack.c.b16 %v348, %v348
        %v381 = vpack.c.b16 %v349, %v349
        %v382 = vpack.c.b16 %v350, %v350
        %v383 = vpack.c.b16 %v351, %v351
        %v384 = vpack.c.b16 %v352, %v352
        %v385 = vpack.c.b16 %v353, %v353
        %v386 = vpack.c.b16 %v354, %v354
        %v387 = vpack.c.b16 %v355, %v355
        %v388 = vpack.c.b16 %v356, %v356
        %v389 = vpack.c.b16 %v357, %v357
        %v390 = vpack.c.b16 %v358, %v358
        %v391 = vpack.c.b16 %v359, %v359
        %v392 = vpack.c.b16 %v360, %v360
        %v393 = vpack.c.b16 %v361, %v361
        %v394 = vpack.c.b16 %v362, %v362
        %v395 = vpack.c.b16 %v363, %v363
        %v396 = vpack.c.b16 %v364, %v364
        %v397 = vpack.c.b16 %v365, %v365
        %v398 = vpack.c.b16 %v366, %v366
        %v399 = vpack.c.b16 %v367, %v367
        %v400 = vpack.c.b16 %v368, %v368
        %v401 = vpack.c.b16 %v369, %v369
        %v402 = vpack.c.b16 %v370, %v370
        %v403 = vpack.c.b16 %v371, %v371
        %v404 = vpack.c.b16 %v372, %v372
        %v405 = vpack.c.b16 %v373, %v373
        %v406 = vpack.c.b16 %v374, %v374
        %v407 = vpack.c.b16 %v375, %v375
        %vm408 = vsmask.f32 256
        %vm409 = vsmask.f32 4368
        %vm410 = vmor %vm408, %vm409
        %v412 = vshrl.u32 %v376, 16
        %v414 = vrot.slane %v412, 7
        %v415 = vshll.u32 %v376, 16
        %v417 = vor.u32 %v414, %v415
        %v418 = vrot.slane %v414, 4
        %v420 = vshrl.u32 %v377, 16
        %v422 = vrot.slane %v420, 7
        %v423 = vshll.u32 %v377, 16
        %v425 = vor.u32 %v422, %v423
        %v426 = vsel %vm410, %v418, %v425
        %v427 = vrot.slane %v422, 4
        %v429 = vshrl.u32 %v378, 16
        %v431 = vrot.slane %v429, 7
        %v432 = vshll.u32 %v378, 16
        %v434 = vor.u32 %v431, %v432
        %v435 = vrot.slane %v431, 4
        %v437 = vshrl.u32 %v379, 16
        %v439 = vrot.slane %v437, 7
        %v440 = vshll.u32 %v379, 16
        %v442 = vor.u32 %v439, %v440
        %v443 = vsel %vm410, %v435, %v442
        %v444 = vrot.slane %v439, 4
        %v446 = vshrl.u32 %v380, 16
        %v448 = vrot.slane %v446, 7
        %v449 = vshll.u32 %v380, 16
        %v451 = vor.u32 %v448, %v449
        %v452 = vrot.slane %v448, 4
        %v454 = vshrl.u32 %v381, 16
        %v456 = vrot.slane %v454, 7
        %v457 = vshll.u32 %v381, 16
        %v459 = vor.u32 %v456, %v457
        %v460 = vsel %vm410, %v452, %v459
        %v461 = vrot.slane %v456, 4
        %v463 = vshrl.u32 %v382, 16
        %v465 = vrot.slane %v463, 7
        %v466 = vshll.u32 %v382, 16
        %v468 = vor.u32 %v465, %v466
        %v469 = vrot.slane %v465, 4
        %v471 = vshrl.u32 %v383, 16
        %v473 = vrot.slane %v471, 7
        %v474 = vshll.u32 %v383, 16
        %v476 = vor.u32 %v473, %v474
        %v477 = vsel %vm410, %v469, %v476
        %v478 = vrot.slane %v473, 4
        %v480 = vshrl.u32 %v384, 16
        %v482 = vrot.slane %v480, 7
        %v483 = vshll.u32 %v384, 16
        %v485 = vor.u32 %v482, %v483
        %v486 = vrot.slane %v482, 4
        %v488 = vshrl.u32 %v385, 16
        %v490 = vrot.slane %v488, 7
        %v491 = vshll.u32 %v385, 16
        %v493 = vor.u32 %v490, %v491
        %v494 = vsel %vm410, %v486, %v493
        %v495 = vrot.slane %v490, 4
        %v497 = vshrl.u32 %v386, 16
        %v499 = vrot.slane %v497, 7
        %v500 = vshll.u32 %v386, 16
        %v502 = vor.u32 %v499, %v500
        %v503 = vrot.slane %v499, 4
        %v505 = vshrl.u32 %v387, 16
        %v507 = vrot.slane %v505, 7
        %v508 = vshll.u32 %v387, 16
        %v510 = vor.u32 %v507, %v508
        %v511 = vsel %vm410, %v503, %v510
        %v512 = vrot.slane %v507, 4
        %v514 = vshrl.u32 %v388, 16
        %v516 = vrot.slane %v514, 7
        %v517 = vshll.u32 %v388, 16
        %v519 = vor.u32 %v516, %v517
        %v520 = vrot.slane %v516, 4
        %v522 = vshrl.u32 %v389, 16
        %v524 = vrot.slane %v522, 7
        %v525 = vshll.u32 %v389, 16
        %v527 = vor.u32 %v524, %v525
        %v528 = vsel %vm410, %v520, %v527
        %v529 = vrot.slane %v524, 4
        %v531 = vshrl.u32 %v390, 16
        %v533 = vrot.slane %v531, 7
        %v534 = vshll.u32 %v390, 16
        %v536 = vor.u32 %v533, %v534
        %v537 = vrot.slane %v533, 4
        %v539 = vshrl.u32 %v391, 16
        %v541 = vrot.slane %v539, 7
        %v542 = vshll.u32 %v391, 16
        %v544 = vor.u32 %v541, %v542
        %v545 = vsel %vm410, %v537, %v544
        %v546 = vrot.slane %v541, 4
        %v548 = vshrl.u32 %v392, 16
        %v550 = vrot.slane %v548, 7
        %v551 = vshll.u32 %v392, 16
        %v553 = vor.u32 %v550, %v551
        %v554 = vrot.slane %v550, 4
        %v556 = vshrl.u32 %v393, 16
        %v558 = vrot.slane %v556, 7
        %v559 = vshll.u32 %v393, 16
        %v561 = vor.u32 %v558, %v559
        %v562 = vsel %vm410, %v554, %v561
        %v563 = vrot.slane %v558, 4
        %v565 = vshrl.u32 %v394, 16
        %v567 = vrot.slane %v565, 7
        %v568 = vshll.u32 %v394, 16
        %v570 = vor.u32 %v567, %v568
        %v571 = vrot.slane %v567, 4
        %v573 = vshrl.u32 %v395, 16
        %v575 = vrot.slane %v573, 7
        %v576 = vshll.u32 %v395, 16
        %v578 = vor.u32 %v575, %v576
        %v579 = vsel %vm410, %v571, %v578
        %v580 = vrot.slane %v575, 4
        %v582 = vshrl.u32 %v396, 16
        %v584 = vrot.slane %v582, 7
        %v585 = vshll.u32 %v396, 16
        %v587 = vor.u32 %v584, %v585
        %v588 = vrot.slane %v584, 4
        %v590 = vshrl.u32 %v397, 16
        %v592 = vrot.slane %v590, 7
        %v593 = vshll.u32 %v397, 16
        %v595 = vor.u32 %v592, %v593
        %v596 = vsel %vm410, %v588, %v595
        %v597 = vrot.slane %v592, 4
        %v599 = vshrl.u32 %v398, 16
        %v601 = vrot.slane %v599, 7
        %v602 = vshll.u32 %v398, 16
        %v604 = vor.u32 %v601, %v602
        %v605 = vrot.slane %v601, 4
        %v607 = vshrl.u32 %v399, 16
        %v609 = vrot.slane %v607, 7
        %v610 = vshll.u32 %v399, 16
        %v612 = vor.u32 %v609, %v610
        %v613 = vsel %vm410, %v605, %v612
        %v614 = vrot.slane %v609, 4
        %v616 = vshrl.u32 %v400, 16
        %v618 = vrot.slane %v616, 7
        %v619 = vshll.u32 %v400, 16
        %v621 = vor.u32 %v618, %v619
        %v622 = vrot.slane %v618, 4
        %v624 = vshrl.u32 %v401, 16
        %v626 = vrot.slane %v624, 7
        %v627 = vshll.u32 %v401, 16
        %v629 = vor.u32 %v626, %v627
        %v630 = vsel %vm410, %v622, %v629
        %v631 = vrot.slane %v626, 4
        %v633 = vshrl.u32 %v402, 16
        %v635 = vrot.slane %v633, 7
        %v636 = vshll.u32 %v402, 16
        %v638 = vor.u32 %v635, %v636
        %v639 = vrot.slane %v635, 4
        %v641 = vshrl.u32 %v403, 16
        %v643 = vrot.slane %v641, 7
        %v644 = vshll.u32 %v403, 16
        %v646 = vor.u32 %v643, %v644
        %v647 = vsel %vm410, %v639, %v646
        %v648 = vrot.slane %v643, 4
        %v650 = vshrl.u32 %v404, 16
        %v652 = vrot.slane %v650, 7
        %v653 = vshll.u32 %v404, 16
        %v655 = vor.u32 %v652, %v653
        %v656 = vrot.slane %v652, 4
        %v658 = vshrl.u32 %v405, 16
        %v660 = vrot.slane %v658, 7
        %v661 = vshll.u32 %v405, 16
        %v663 = vor.u32 %v660, %v661
        %v664 = vsel %vm410, %v656, %v663
        %v665 = vrot.slane %v660, 4
        %v667 = vshrl.u32 %v406, 16
        %v669 = vrot.slane %v667, 7
        %v670 = vshll.u32 %v406, 16
        %v672 = vor.u32 %v669, %v670
        %v673 = vrot.slane %v669, 4
        %v675 = vshrl.u32 %v407, 16
        %v677 = vrot.slane %v675, 7
        %v678 = vshll.u32 %v407, 16
        %v680 = vor.u32 %v677, %v678
        %v681 = vsel %vm410, %v673, %v680
        %v682 = vrot.slane %v677, 4
        %s731 = scalar_lea.vmem [#allocation2], 12
        %vm732 = vcmask 519168
        %vm733 = vsmask.f32 7938
        %vm734 = vmand %vm732, %vm733
        %v735 = vld [vmem:[%s731] sm:$0xf]
        %v736 = vsel %vm734, %v417, %v735
        %737 = vst [vmem:[%s731] sm:$0xf] %v736
        %738 = vst.msk [vmem:[%s731 + $0x4] sm:$0xf] %vm224, %v426
        %vm739 = vcmask 516096
        %vm740 = vmand %vm739, %vm408
        %v741 = vld [vmem:[%s731 + $0x8] sm:$0x1]
        %v742 = vsel %vm740, %v427, %v741
        %743 = vst [vmem:[%s731 + $0x8] sm:$0x1] %v742
        %v744 = vld [vmem:[%s731 + $0xc] sm:$0xf]
        %v745 = vsel %vm734, %v434, %v744
        %746 = vst [vmem:[%s731 + $0xc] sm:$0xf] %v745
        %747 = vst.msk [vmem:[%s731 + $0x10] sm:$0xf] %vm224, %v443
        %v748 = vld [vmem:[%s731 + $0x14] sm:$0x1]
        %v749 = vsel %vm740, %v444, %v748
        %750 = vst [vmem:[%s731 + $0x14] sm:$0x1] %v749
        %v751 = vld [vmem:[%s731 + $0x18] sm:$0xf]
        %v752 = vsel %vm734, %v451, %v751
        %753 = vst [vmem:[%s731 + $0x18] sm:$0xf] %v752
        %754 = vst.msk [vmem:[%s731 + $0x1c] sm:$0xf] %vm224, %v460
        %v755 = vld [vmem:[%s731 + $0x20] sm:$0x1]
        %v756 = vsel %vm740, %v461, %v755
        %757 = vst [vmem:[%s731 + $0x20] sm:$0x1] %v756
        %v758 = vld [vmem:[%s731 + $0x24] sm:$0xf]
        %v759 = vsel %vm734, %v468, %v758
        %760 = vst [vmem:[%s731 + $0x24] sm:$0xf] %v759
        %761 = vst.msk [vmem:[%s731 + $0x28] sm:$0xf] %vm224, %v477
        %v762 = vld [vmem:[%s731 + $0x2c] sm:$0x1]
        %v763 = vsel %vm740, %v478, %v762
        %764 = vst [vmem:[%s731 + $0x2c] sm:$0x1] %v763
        %v765 = vld [vmem:[%s731 + $0x30] sm:$0xf]
        %v766 = vsel %vm734, %v485, %v765
        %767 = vst [vmem:[%s731 + $0x30] sm:$0xf] %v766
        %768 = vst.msk [vmem:[%s731 + $0x34] sm:$0xf] %vm224, %v494
        %v769 = vld [vmem:[%s731 + $0x38] sm:$0x1]
        %v770 = vsel %vm740, %v495, %v769
        %771 = vst [vmem:[%s731 + $0x38] sm:$0x1] %v770
        %v772 = vld [vmem:[%s731 + $0x3c] sm:$0xf]
        %v773 = vsel %vm734, %v502, %v772
        %774 = vst [vmem:[%s731 + $0x3c] sm:$0xf] %v773
        %775 = vst.msk [vmem:[%s731 + $0x40] sm:$0xf] %vm224, %v511
        %v776 = vld [vmem:[%s731 + $0x44] sm:$0x1]
        %v777 = vsel %vm740, %v512, %v776
        %778 = vst [vmem:[%s731 + $0x44] sm:$0x1] %v777
        %v779 = vld [vmem:[%s731 + $0x48] sm:$0xf]
        %v780 = vsel %vm734, %v519, %v779
        %781 = vst [vmem:[%s731 + $0x48] sm:$0xf] %v780
        %782 = vst.msk [vmem:[%s731 + $0x4c] sm:$0xf] %vm224, %v528
        %v783 = vld [vmem:[%s731 + $0x50] sm:$0x1]
        %v784 = vsel %vm740, %v529, %v783
        %785 = vst [vmem:[%s731 + $0x50] sm:$0x1] %v784
        %v786 = vld [vmem:[%s731 + $0x54] sm:$0xf]
        %v787 = vsel %vm734, %v536, %v786
        %788 = vst [vmem:[%s731 + $0x54] sm:$0xf] %v787
        %789 = vst.msk [vmem:[%s731 + $0x58] sm:$0xf] %vm224, %v545
        %v790 = vld [vmem:[%s731 + $0x5c] sm:$0x1]
        %v791 = vsel %vm740, %v546, %v790
        %792 = vst [vmem:[%s731 + $0x5c] sm:$0x1] %v791
        %v793 = vld [vmem:[%s731 + $0x60] sm:$0xf]
        %v794 = vsel %vm734, %v553, %v793
        %795 = vst [vmem:[%s731 + $0x60] sm:$0xf] %v794
        %796 = vst.msk [vmem:[%s731 + $0x64] sm:$0xf] %vm224, %v562
        %v797 = vld [vmem:[%s731 + $0x68] sm:$0x1]
        %v798 = vsel %vm740, %v563, %v797
        %799 = vst [vmem:[%s731 + $0x68] sm:$0x1] %v798
        %v800 = vld [vmem:[%s731 + $0x6c] sm:$0xf]
        %v801 = vsel %vm734, %v570, %v800
        %802 = vst [vmem:[%s731 + $0x6c] sm:$0xf] %v801
        %803 = vst.msk [vmem:[%s731 + $0x70] sm:$0xf] %vm224, %v579
        %v804 = vld [vmem:[%s731 + $0x74] sm:$0x1]
        %v805 = vsel %vm740, %v580, %v804
        %806 = vst [vmem:[%s731 + $0x74] sm:$0x1] %v805
        %v807 = vld [vmem:[%s731 + $0x78] sm:$0xf]
        %v808 = vsel %vm734, %v587, %v807
        %809 = vst [vmem:[%s731 + $0x78] sm:$0xf] %v808
        %810 = vst.msk [vmem:[%s731 + $0x7c] sm:$0xf] %vm224, %v596
        %v811 = vld [vmem:[%s731 + $0x80] sm:$0x1]
        %v812 = vsel %vm740, %v597, %v811
        %813 = vst [vmem:[%s731 + $0x80] sm:$0x1] %v812
        %v814 = vld [vmem:[%s731 + $0x84] sm:$0xf]
        %v815 = vsel %vm734, %v604, %v814
        %816 = vst [vmem:[%s731 + $0x84] sm:$0xf] %v815
        %817 = vst.msk [vmem:[%s731 + $0x88] sm:$0xf] %vm224, %v613
        %v818 = vld [vmem:[%s731 + $0x8c] sm:$0x1]
        %v819 = vsel %vm740, %v614, %v818
        %820 = vst [vmem:[%s731 + $0x8c] sm:$0x1] %v819
        %v821 = vld [vmem:[%s731 + $0x90] sm:$0xf]
        %v822 = vsel %vm734, %v621, %v821
        %823 = vst [vmem:[%s731 + $0x90] sm:$0xf] %v822
        %824 = vst.msk [vmem:[%s731 + $0x94] sm:$0xf] %vm224, %v630
        %v825 = vld [vmem:[%s731 + $0x98] sm:$0x1]
        %v826 = vsel %vm740, %v631, %v825
        %827 = vst [vmem:[%s731 + $0x98] sm:$0x1] %v826
        %v828 = vld [vmem:[%s731 + $0x9c] sm:$0xf]
        %v829 = vsel %vm734, %v638, %v828
        %830 = vst [vmem:[%s731 + $0x9c] sm:$0xf] %v829
        %831 = vst.msk [vmem:[%s731 + $0xa0] sm:$0xf] %vm224, %v647
        %v832 = vld [vmem:[%s731 + $0xa4] sm:$0x1]
        %v833 = vsel %vm740, %v648, %v832
        %834 = vst [vmem:[%s731 + $0xa4] sm:$0x1] %v833
        %v835 = vld [vmem:[%s731 + $0xa8] sm:$0xf]
        %v836 = vsel %vm734, %v655, %v835
        %837 = vst [vmem:[%s731 + $0xa8] sm:$0xf] %v836
        %838 = vst.msk [vmem:[%s731 + $0xac] sm:$0xf] %vm224, %v664
        %v839 = vld [vmem:[%s731 + $0xb0] sm:$0x1]
        %v840 = vsel %vm740, %v665, %v839
        %841 = vst [vmem:[%s731 + $0xb0] sm:$0x1] %v840
        %v842 = vld [vmem:[%s731 + $0xb4] sm:$0xf]
        %v843 = vsel %vm734, %v672, %v842
        %844 = vst [vmem:[%s731 + $0xb4] sm:$0xf] %v843
        %845 = vst.msk [vmem:[%s731 + $0xb8] sm:$0xf] %vm224, %v681
        %v846 = vld [vmem:[%s731 + $0xbc] sm:$0x1]
        %v847 = vsel %vm740, %v682, %v846
        %848 = vst [vmem:[%s731 + $0xbc] sm:$0x1] %v847
        %v849 = vld [vmem:[#allocation2] sm:$0xf]
        %v850 = vld [vmem:[#allocation2 + $0x4] sm:$0xf]
        %v851 = vld [vmem:[#allocation2 + $0xc] sm:$0xf]
        %v852 = vld [vmem:[#allocation2 + $0x10] sm:$0xf]
        %v853 = vld [vmem:[#allocation2 + $0x18] sm:$0xf]
        %v854 = vld [vmem:[#allocation2 + $0x1c] sm:$0xf]
        %v855 = vld [vmem:[#allocation2 + $0x24] sm:$0xf]
        %v856 = vld [vmem:[#allocation2 + $0x28] sm:$0xf]
        %v857 = vld [vmem:[#allocation2 + $0x30] sm:$0xf]
        %v858 = vld [vmem:[#allocation2 + $0x34] sm:$0xf]
        %v859 = vld [vmem:[#allocation2 + $0x3c] sm:$0xf]
        %v860 = vld [vmem:[#allocation2 + $0x40] sm:$0xf]
        %v861 = vld [vmem:[#allocation2 + $0x48] sm:$0xf]
        %v862 = vld [vmem:[#allocation2 + $0x4c] sm:$0xf]
        %v863 = vld [vmem:[#allocation2 + $0x54] sm:$0xf]
        %v864 = vld [vmem:[#allocation2 + $0x58] sm:$0xf]
        %v865 = vld [vmem:[#allocation2 + $0x60] sm:$0xf]
        %v866 = vld [vmem:[#allocation2 + $0x64] sm:$0xf]
        %v867 = vld [vmem:[#allocation2 + $0x6c] sm:$0xf]
        %v868 = vld [vmem:[#allocation2 + $0x70] sm:$0xf]
        %v869 = vld [vmem:[#allocation2 + $0x78] sm:$0xf]
        %v870 = vld [vmem:[#allocation2 + $0x7c] sm:$0xf]
        %v871 = vld [vmem:[#allocation2 + $0x84] sm:$0xf]
        %v872 = vld [vmem:[#allocation2 + $0x88] sm:$0xf]
        %v873 = vld [vmem:[#allocation2 + $0x90] sm:$0xf]
        %v874 = vld [vmem:[#allocation2 + $0x94] sm:$0xf]
        %v875 = vld [vmem:[#allocation2 + $0x9c] sm:$0xf]
        %v876 = vld [vmem:[#allocation2 + $0xa0] sm:$0xf]
        %v877 = vld [vmem:[#allocation2 + $0xa8] sm:$0xf]
        %v878 = vld [vmem:[#allocation2 + $0xac] sm:$0xf]
        %v879 = vld [vmem:[#allocation2 + $0xb4] sm:$0xf]
        %v880 = vld [vmem:[#allocation2 + $0xb8] sm:$0xf]
        %v881 = vld [vmem:[#allocation2 + $0x8] sm:$0x1]
        %v882 = vld [vmem:[#allocation2 + $0x14] sm:$0x1]
        %v883 = vld [vmem:[#allocation2 + $0x20] sm:$0x1]
        %v884 = vld [vmem:[#allocation2 + $0x2c] sm:$0x1]
        %v885 = vld [vmem:[#allocation2 + $0x38] sm:$0x1]
        %v886 = vld [vmem:[#allocation2 + $0x44] sm:$0x1]
        %v887 = vld [vmem:[#allocation2 + $0x50] sm:$0x1]
        %v888 = vld [vmem:[#allocation2 + $0x5c] sm:$0x1]
        %v889 = vld [vmem:[#allocation2 + $0x68] sm:$0x1]
        %v890 = vld [vmem:[#allocation2 + $0x74] sm:$0x1]
        %v891 = vld [vmem:[#allocation2 + $0x80] sm:$0x1]
        %v892 = vld [vmem:[#allocation2 + $0x8c] sm:$0x1]
        %v893 = vld [vmem:[#allocation2 + $0x98] sm:$0x1]
        %v894 = vld [vmem:[#allocation2 + $0xa4] sm:$0x1]
        %v895 = vld [vmem:[#allocation2 + $0xb0] sm:$0x1]
        %v896 = vld [vmem:[#allocation2 + $0xbc] sm:$0x1]
        %vm897 = vsmask.f32 3328
        %vm898 = vsmask.f32 7440
        %vm899 = vmor %vm897, %vm898
        %v901 = vshrl.u32 %v849, 16
        %v903 = vrot.slane %v901, 4
        %v904 = vshll.u32 %v849, 16
        %v906 = vrot.slane %v904, 5
        %v907 = vor.u32 %v903, %v906
        %v908 = vrot.slane %v907, 4
        %v910 = vshll.u32 %v850, 16
        %v912 = vrot.slane %v910, 5
        %v913 = vsel %vm899, %v908, %v912
        %v914 = vshrl.u32 %v850, 16
        %v916 = vrot.slane %v914, 4
        %v917 = vor.u32 %v916, %v912
        %v918 = vrot.slane %v917, 4
        %v920 = vshll.u32 %v881, 16
        %v922 = vrot.slane %v920, 5
        %v923 = vsel %vm899, %v918, %v922
        %v925 = vshrl.u32 %v851, 16
        %v927 = vrot.slane %v925, 4
        %v928 = vshll.u32 %v851, 16
        %v930 = vrot.slane %v928, 5
        %v931 = vor.u32 %v927, %v930
        %v932 = vrot.slane %v931, 4
        %v934 = vshll.u32 %v852, 16
        %v936 = vrot.slane %v934, 5
        %v937 = vsel %vm899, %v932, %v936
        %v938 = vshrl.u32 %v852, 16
        %v940 = vrot.slane %v938, 4
        %v941 = vor.u32 %v940, %v936
        %v942 = vrot.slane %v941, 4
        %v944 = vshll.u32 %v882, 16
        %v946 = vrot.slane %v944, 5
        %v947 = vsel %vm899, %v942, %v946
        %v949 = vshrl.u32 %v853, 16
        %v951 = vrot.slane %v949, 4
        %v952 = vshll.u32 %v853, 16
        %v954 = vrot.slane %v952, 5
        %v955 = vor.u32 %v951, %v954
        %v956 = vrot.slane %v955, 4
        %v958 = vshll.u32 %v854, 16
        %v960 = vrot.slane %v958, 5
        %v961 = vsel %vm899, %v956, %v960
        %v962 = vshrl.u32 %v854, 16
        %v964 = vrot.slane %v962, 4
        %v965 = vor.u32 %v964, %v960
        %v966 = vrot.slane %v965, 4
        %v968 = vshll.u32 %v883, 16
        %v970 = vrot.slane %v968, 5
        %v971 = vsel %vm899, %v966, %v970
        %v973 = vshrl.u32 %v855, 16
        %v975 = vrot.slane %v973, 4
        %v976 = vshll.u32 %v855, 16
        %v978 = vrot.slane %v976, 5
        %v979 = vor.u32 %v975, %v978
        %v980 = vrot.slane %v979, 4
        %v982 = vshll.u32 %v856, 16
        %v984 = vrot.slane %v982, 5
        %v985 = vsel %vm899, %v980, %v984
        %v986 = vshrl.u32 %v856, 16
        %v988 = vrot.slane %v986, 4
        %v989 = vor.u32 %v988, %v984
        %v990 = vrot.slane %v989, 4
        %v992 = vshll.u32 %v884, 16
        %v994 = vrot.slane %v992, 5
        %v995 = vsel %vm899, %v990, %v994
        %v997 = vshrl.u32 %v857, 16
        %v999 = vrot.slane %v997, 4
        %v1000 = vshll.u32 %v857, 16
        %v1002 = vrot.slane %v1000, 5
        %v1003 = vor.u32 %v999, %v1002
        %v1004 = vrot.slane %v1003, 4
        %v1006 = vshll.u32 %v858, 16
        %v1008 = vrot.slane %v1006, 5
        %v1009 = vsel %vm899, %v1004, %v1008
        %v1010 = vshrl.u32 %v858, 16
        %v1012 = vrot.slane %v1010, 4
        %v1013 = vor.u32 %v1012, %v1008
        %v1014 = vrot.slane %v1013, 4
        %v1016 = vshll.u32 %v885, 16
        %v1018 = vrot.slane %v1016, 5
        %v1019 = vsel %vm899, %v1014, %v1018
        %v1021 = vshrl.u32 %v859, 16
        %v1023 = vrot.slane %v1021, 4
        %v1024 = vshll.u32 %v859, 16
        %v1026 = vrot.slane %v1024, 5
        %v1027 = vor.u32 %v1023, %v1026
        %v1028 = vrot.slane %v1027, 4
        %v1030 = vshll.u32 %v860, 16
        %v1032 = vrot.slane %v1030, 5
        %v1033 = vsel %vm899, %v1028, %v1032
        %v1034 = vshrl.u32 %v860, 16
        %v1036 = vrot.slane %v1034, 4
        %v1037 = vor.u32 %v1036, %v1032
        %v1038 = vrot.slane %v1037, 4
        %v1040 = vshll.u32 %v886, 16
        %v1042 = vrot.slane %v1040, 5
        %v1043 = vsel %vm899, %v1038, %v1042
        %v1045 = vshrl.u32 %v861, 16
        %v1047 = vrot.slane %v1045, 4
        %v1048 = vshll.u32 %v861, 16
        %v1050 = vrot.slane %v1048, 5
        %v1051 = vor.u32 %v1047, %v1050
        %v1052 = vrot.slane %v1051, 4
        %v1054 = vshll.u32 %v862, 16
        %v1056 = vrot.slane %v1054, 5
        %v1057 = vsel %vm899, %v1052, %v1056
        %v1058 = vshrl.u32 %v862, 16
        %v1060 = vrot.slane %v1058, 4
        %v1061 = vor.u32 %v1060, %v1056
        %v1062 = vrot.slane %v1061, 4
        %v1064 = vshll.u32 %v887, 16
        %v1066 = vrot.slane %v1064, 5
        %v1067 = vsel %vm899, %v1062, %v1066
        %v1069 = vshrl.u32 %v863, 16
        %v1071 = vrot.slane %v1069, 4
        %v1072 = vshll.u32 %v863, 16
        %v1074 = vrot.slane %v1072, 5
        %v1075 = vor.u32 %v1071, %v1074
        %v1076 = vrot.slane %v1075, 4
        %v1078 = vshll.u32 %v864, 16
        %v1080 = vrot.slane %v1078, 5
        %v1081 = vsel %vm899, %v1076, %v1080
        %v1082 = vshrl.u32 %v864, 16
        %v1084 = vrot.slane %v1082, 4
        %v1085 = vor.u32 %v1084, %v1080
        %v1086 = vrot.slane %v1085, 4
        %v1088 = vshll.u32 %v888, 16
        %v1090 = vrot.slane %v1088, 5
        %v1091 = vsel %vm899, %v1086, %v1090
        %v1093 = vshrl.u32 %v865, 16
        %v1095 = vrot.slane %v1093, 4
        %v1096 = vshll.u32 %v865, 16
        %v1098 = vrot.slane %v1096, 5
        %v1099 = vor.u32 %v1095, %v1098
        %v1100 = vrot.slane %v1099, 4
        %v1102 = vshll.u32 %v866, 16
        %v1104 = vrot.slane %v1102, 5
        %v1105 = vsel %vm899, %v1100, %v1104
        %v1106 = vshrl.u32 %v866, 16
        %v1108 = vrot.slane %v1106, 4
        %v1109 = vor.u32 %v1108, %v1104
        %v1110 = vrot.slane %v1109, 4
        %v1112 = vshll.u32 %v889, 16
        %v1114 = vrot.slane %v1112, 5
        %v1115 = vsel %vm899, %v1110, %v1114
        %v1117 = vshrl.u32 %v867, 16
        %v1119 = vrot.slane %v1117, 4
        %v1120 = vshll.u32 %v867, 16
        %v1122 = vrot.slane %v1120, 5
        %v1123 = vor.u32 %v1119, %v1122
        %v1124 = vrot.slane %v1123, 4
        %v1126 = vshll.u32 %v868, 16
        %v1128 = vrot.slane %v1126, 5
        %v1129 = vsel %vm899, %v1124, %v1128
        %v1130 = vshrl.u32 %v868, 16
        %v1132 = vrot.slane %v1130, 4
        %v1133 = vor.u32 %v1132, %v1128
        %v1134 = vrot.slane %v1133, 4
        %v1136 = vshll.u32 %v890, 16
        %v1138 = vrot.slane %v1136, 5
        %v1139 = vsel %vm899, %v1134, %v1138
        %v1141 = vshrl.u32 %v869, 16
        %v1143 = vrot.slane %v1141, 4
        %v1144 = vshll.u32 %v869, 16
        %v1146 = vrot.slane %v1144, 5
        %v1147 = vor.u32 %v1143, %v1146
        %v1148 = vrot.slane %v1147, 4
        %v1150 = vshll.u32 %v870, 16
        %v1152 = vrot.slane %v1150, 5
        %v1153 = vsel %vm899, %v1148, %v1152
        %v1154 = vshrl.u32 %v870, 16
        %v1156 = vrot.slane %v1154, 4
        %v1157 = vor.u32 %v1156, %v1152
        %v1158 = vrot.slane %v1157, 4
        %v1160 = vshll.u32 %v891, 16
        %v1162 = vrot.slane %v1160, 5
        %v1163 = vsel %vm899, %v1158, %v1162
        %v1165 = vshrl.u32 %v871, 16
        %v1167 = vrot.slane %v1165, 4
        %v1168 = vshll.u32 %v871, 16
        %v1170 = vrot.slane %v1168, 5
        %v1171 = vor.u32 %v1167, %v1170
        %v1172 = vrot.slane %v1171, 4
        %v1174 = vshll.u32 %v872, 16
        %v1176 = vrot.slane %v1174, 5
        %v1177 = vsel %vm899, %v1172, %v1176
        %v1178 = vshrl.u32 %v872, 16
        %v1180 = vrot.slane %v1178, 4
        %v1181 = vor.u32 %v1180, %v1176
        %v1182 = vrot.slane %v1181, 4
        %v1184 = vshll.u32 %v892, 16
        %v1186 = vrot.slane %v1184, 5
        %v1187 = vsel %vm899, %v1182, %v1186
        %v1189 = vshrl.u32 %v873, 16
        %v1191 = vrot.slane %v1189, 4
        %v1192 = vshll.u32 %v873, 16
        %v1194 = vrot.slane %v1192, 5
        %v1195 = vor.u32 %v1191, %v1194
        %v1196 = vrot.slane %v1195, 4
        %v1198 = vshll.u32 %v874, 16
        %v1200 = vrot.slane %v1198, 5
        %v1201 = vsel %vm899, %v1196, %v1200
        %v1202 = vshrl.u32 %v874, 16
        %v1204 = vrot.slane %v1202, 4
        %v1205 = vor.u32 %v1204, %v1200
        %v1206 = vrot.slane %v1205, 4
        %v1208 = vshll.u32 %v893, 16
        %v1210 = vrot.slane %v1208, 5
        %v1211 = vsel %vm899, %v1206, %v1210
        %v1213 = vshrl.u32 %v875, 16
        %v1215 = vrot.slane %v1213, 4
        %v1216 = vshll.u32 %v875, 16
        %v1218 = vrot.slane %v1216, 5
        %v1219 = vor.u32 %v1215, %v1218
        %v1220 = vrot.slane %v1219, 4
        %v1222 = vshll.u32 %v876, 16
        %v1224 = vrot.slane %v1222, 5
        %v1225 = vsel %vm899, %v1220, %v1224
        %v1226 = vshrl.u32 %v876, 16
        %v1228 = vrot.slane %v1226, 4
        %v1229 = vor.u32 %v1228, %v1224
        %v1230 = vrot.slane %v1229, 4
        %v1232 = vshll.u32 %v894, 16
        %v1234 = vrot.slane %v1232, 5
        %v1235 = vsel %vm899, %v1230, %v1234
        %v1237 = vshrl.u32 %v877, 16
        %v1239 = vrot.slane %v1237, 4
        %v1240 = vshll.u32 %v877, 16
        %v1242 = vrot.slane %v1240, 5
        %v1243 = vor.u32 %v1239, %v1242
        %v1244 = vrot.slane %v1243, 4
        %v1246 = vshll.u32 %v878, 16
        %v1248 = vrot.slane %v1246, 5
        %v1249 = vsel %vm899, %v1244, %v1248
        %v1250 = vshrl.u32 %v878, 16
        %v1252 = vrot.slane %v1250, 4
        %v1253 = vor.u32 %v1252, %v1248
        %v1254 = vrot.slane %v1253, 4
        %v1256 = vshll.u32 %v895, 16
        %v1258 = vrot.slane %v1256, 5
        %v1259 = vsel %vm899, %v1254, %v1258
        %v1261 = vshrl.u32 %v879, 16
        %v1263 = vrot.slane %v1261, 4
        %v1264 = vshll.u32 %v879, 16
        %v1266 = vrot.slane %v1264, 5
        %v1267 = vor.u32 %v1263, %v1266
        %v1268 = vrot.slane %v1267, 4
        %v1270 = vshll.u32 %v880, 16
        %v1272 = vrot.slane %v1270, 5
        %v1273 = vsel %vm899, %v1268, %v1272
        %v1274 = vshrl.u32 %v880, 16
        %v1276 = vrot.slane %v1274, 4
        %v1277 = vor.u32 %v1276, %v1272
        %v1278 = vrot.slane %v1277, 4
        %v1280 = vshll.u32 %v896, 16
        %v1282 = vrot.slane %v1280, 5
        %v1283 = vsel %vm899, %v1278, %v1282
        %v1284 = vld [vmem:[#allocation2] sm:$0xe]
        %v1285 = vld [vmem:[#allocation2 + $0xc] sm:$0xe]
        %v1286 = vld [vmem:[#allocation2 + $0x18] sm:$0xe]
        %v1287 = vld [vmem:[#allocation2 + $0x24] sm:$0xe]
        %v1288 = vld [vmem:[#allocation2 + $0x30] sm:$0xe]
        %v1289 = vld [vmem:[#allocation2 + $0x3c] sm:$0xe]
        %v1290 = vld [vmem:[#allocation2 + $0x48] sm:$0xe]
        %v1291 = vld [vmem:[#allocation2 + $0x54] sm:$0xe]
        %v1292 = vld [vmem:[#allocation2 + $0x60] sm:$0xe]
        %v1293 = vld [vmem:[#allocation2 + $0x6c] sm:$0xe]
        %v1294 = vld [vmem:[#allocation2 + $0x78] sm:$0xe]
        %v1295 = vld [vmem:[#allocation2 + $0x84] sm:$0xe]
        %v1296 = vld [vmem:[#allocation2 + $0x90] sm:$0xe]
        %v1297 = vld [vmem:[#allocation2 + $0x9c] sm:$0xe]
        %v1298 = vld [vmem:[#allocation2 + $0xa8] sm:$0xe]
        %v1299 = vld [vmem:[#allocation2 + $0xb4] sm:$0xe]
        %vm1348 = vcmask 1042432
        %vm1349 = vcmask 1046532
        %vm1350 = vmor %vm1348, %vm1349
        %v1351 = vrot.slane %v1284, 5
        %v1352 = vrot.slane %v1351, 4
        %v1353 = vrot.slane %v850, 5
        %v1354 = vsel %vm1350, %v1352, %v1353
        %v1355 = vrot.slane %v1353, 4
        %v1356 = vrot.slane %v881, 5
        %v1357 = vsel %vm1350, %v1355, %v1356
        %v1358 = vrot.slane %v1285, 5
        %v1359 = vrot.slane %v1358, 4
        %v1360 = vrot.slane %v852, 5
        %v1361 = vsel %vm1350, %v1359, %v1360
        %v1362 = vrot.slane %v1360, 4
        %v1363 = vrot.slane %v882, 5
        %v1364 = vsel %vm1350, %v1362, %v1363
        %v1365 = vrot.slane %v1286, 5
        %v1366 = vrot.slane %v1365, 4
        %v1367 = vrot.slane %v854, 5
        %v1368 = vsel %vm1350, %v1366, %v1367
        %v1369 = vrot.slane %v1367, 4
        %v1370 = vrot.slane %v883, 5
        %v1371 = vsel %vm1350, %v1369, %v1370
        %v1372 = vrot.slane %v1287, 5
        %v1373 = vrot.slane %v1372, 4
        %v1374 = vrot.slane %v856, 5
        %v1375 = vsel %vm1350, %v1373, %v1374
        %v1376 = vrot.slane %v1374, 4
        %v1377 = vrot.slane %v884, 5
        %v1378 = vsel %vm1350, %v1376, %v1377
        %v1379 = vrot.slane %v1288, 5
        %v1380 = vrot.slane %v1379, 4
        %v1381 = vrot.slane %v858, 5
        %v1382 = vsel %vm1350, %v1380, %v1381
        %v1383 = vrot.slane %v1381, 4
        %v1384 = vrot.slane %v885, 5
        %v1385 = vsel %vm1350, %v1383, %v1384
        %v1386 = vrot.slane %v1289, 5
        %v1387 = vrot.slane %v1386, 4
        %v1388 = vrot.slane %v860, 5
        %v1389 = vsel %vm1350, %v1387, %v1388
        %v1390 = vrot.slane %v1388, 4
        %v1391 = vrot.slane %v886, 5
        %v1392 = vsel %vm1350, %v1390, %v1391
        %v1393 = vrot.slane %v1290, 5
        %v1394 = vrot.slane %v1393, 4
        %v1395 = vrot.slane %v862, 5
        %v1396 = vsel %vm1350, %v1394, %v1395
        %v1397 = vrot.slane %v1395, 4
        %v1398 = vrot.slane %v887, 5
        %v1399 = vsel %vm1350, %v1397, %v1398
        %v1400 = vrot.slane %v1291, 5
        %v1401 = vrot.slane %v1400, 4
        %v1402 = vrot.slane %v864, 5
        %v1403 = vsel %vm1350, %v1401, %v1402
        %v1404 = vrot.slane %v1402, 4
        %v1405 = vrot.slane %v888, 5
        %v1406 = vsel %vm1350, %v1404, %v1405
        %v1407 = vrot.slane %v1292, 5
        %v1408 = vrot.slane %v1407, 4
        %v1409 = vrot.slane %v866, 5
        %v1410 = vsel %vm1350, %v1408, %v1409
        %v1411 = vrot.slane %v1409, 4
        %v1412 = vrot.slane %v889, 5
        %v1413 = vsel %vm1350, %v1411, %v1412
        %v1414 = vrot.slane %v1293, 5
        %v1415 = vrot.slane %v1414, 4
        %v1416 = vrot.slane %v868, 5
        %v1417 = vsel %vm1350, %v1415, %v1416
        %v1418 = vrot.slane %v1416, 4
        %v1419 = vrot.slane %v890, 5
        %v1420 = vsel %vm1350, %v1418, %v1419
        %v1421 = vrot.slane %v1294, 5
        %v1422 = vrot.slane %v1421, 4
        %v1423 = vrot.slane %v870, 5
        %v1424 = vsel %vm1350, %v1422, %v1423
        %v1425 = vrot.slane %v1423, 4
        %v1426 = vrot.slane %v891, 5
        %v1427 = vsel %vm1350, %v1425, %v1426
        %v1428 = vrot.slane %v1295, 5
        %v1429 = vrot.slane %v1428, 4
        %v1430 = vrot.slane %v872, 5
        %v1431 = vsel %vm1350, %v1429, %v1430
        %v1432 = vrot.slane %v1430, 4
        %v1433 = vrot.slane %v892, 5
        %v1434 = vsel %vm1350, %v1432, %v1433
        %v1435 = vrot.slane %v1296, 5
        %v1436 = vrot.slane %v1435, 4
        %v1437 = vrot.slane %v874, 5
        %v1438 = vsel %vm1350, %v1436, %v1437
        %v1439 = vrot.slane %v1437, 4
        %v1440 = vrot.slane %v893, 5
        %v1441 = vsel %vm1350, %v1439, %v1440
        %v1442 = vrot.slane %v1297, 5
        %v1443 = vrot.slane %v1442, 4
        %v1444 = vrot.slane %v876, 5
        %v1445 = vsel %vm1350, %v1443, %v1444
        %v1446 = vrot.slane %v1444, 4
        %v1447 = vrot.slane %v894, 5
        %v1448 = vsel %vm1350, %v1446, %v1447
        %v1449 = vrot.slane %v1298, 5
        %v1450 = vrot.slane %v1449, 4
        %v1451 = vrot.slane %v878, 5
        %v1452 = vsel %vm1350, %v1450, %v1451
        %v1453 = vrot.slane %v1451, 4
        %v1454 = vrot.slane %v895, 5
        %v1455 = vsel %vm1350, %v1453, %v1454
        %v1456 = vrot.slane %v1299, 5
        %v1457 = vrot.slane %v1456, 4
        %v1458 = vrot.slane %v880, 5
        %v1459 = vsel %vm1350, %v1457, %v1458
        %v1460 = vrot.slane %v1458, 4
        %v1461 = vrot.slane %v896, 5
        %v1462 = vsel %vm1350, %v1460, %v1461
        %v1463 = vld [vmem:[%s731] sm:$0xf]
        %v1464 = vld [vmem:[%s731 + $0x4] sm:$0xf]
        %v1465 = vld [vmem:[%s731 + $0xc] sm:$0xf]
        %v1466 = vld [vmem:[%s731 + $0x10] sm:$0xf]
        %v1467 = vld [vmem:[%s731 + $0x18] sm:$0xf]
        %v1468 = vld [vmem:[%s731 + $0x1c] sm:$0xf]
        %v1469 = vld [vmem:[%s731 + $0x24] sm:$0xf]
        %v1470 = vld [vmem:[%s731 + $0x28] sm:$0xf]
        %v1471 = vld [vmem:[%s731 + $0x30] sm:$0xf]
        %v1472 = vld [vmem:[%s731 + $0x34] sm:$0xf]
        %v1473 = vld [vmem:[%s731 + $0x3c] sm:$0xf]
        %v1474 = vld [vmem:[%s731 + $0x40] sm:$0xf]
        %v1475 = vld [vmem:[%s731 + $0x48] sm:$0xf]
        %v1476 = vld [vmem:[%s731 + $0x4c] sm:$0xf]
        %v1477 = vld [vmem:[%s731 + $0x54] sm:$0xf]
        %v1478 = vld [vmem:[%s731 + $0x58] sm:$0xf]
        %v1479 = vld [vmem:[%s731 + $0x60] sm:$0xf]
        %v1480 = vld [vmem:[%s731 + $0x64] sm:$0xf]
        %v1481 = vld [vmem:[%s731 + $0x6c] sm:$0xf]
        %v1482 = vld [vmem:[%s731 + $0x70] sm:$0xf]
        %v1483 = vld [vmem:[%s731 + $0x78] sm:$0xf]
        %v1484 = vld [vmem:[%s731 + $0x7c] sm:$0xf]
        %v1485 = vld [vmem:[%s731 + $0x84] sm:$0xf]
        %v1486 = vld [vmem:[%s731 + $0x88] sm:$0xf]
        %v1487 = vld [vmem:[%s731 + $0x90] sm:$0xf]
        %v1488 = vld [vmem:[%s731 + $0x94] sm:$0xf]
        %v1489 = vld [vmem:[%s731 + $0x9c] sm:$0xf]
        %v1490 = vld [vmem:[%s731 + $0xa0] sm:$0xf]
        %v1491 = vld [vmem:[%s731 + $0xa8] sm:$0xf]
        %v1492 = vld [vmem:[%s731 + $0xac] sm:$0xf]
        %v1493 = vld [vmem:[%s731 + $0xb4] sm:$0xf]
        %v1494 = vld [vmem:[%s731 + $0xb8] sm:$0xf]
        %v1495 = vld [vmem:[%s731 + $0x8] sm:$0x1]
        %v1496 = vld [vmem:[%s731 + $0x14] sm:$0x1]
        %v1497 = vld [vmem:[%s731 + $0x20] sm:$0x1]
        %v1498 = vld [vmem:[%s731 + $0x2c] sm:$0x1]
        %v1499 = vld [vmem:[%s731 + $0x38] sm:$0x1]
        %v1500 = vld [vmem:[%s731 + $0x44] sm:$0x1]
        %v1501 = vld [vmem:[%s731 + $0x50] sm:$0x1]
        %v1502 = vld [vmem:[%s731 + $0x5c] sm:$0x1]
        %v1503 = vld [vmem:[%s731 + $0x68] sm:$0x1]
        %v1504 = vld [vmem:[%s731 + $0x74] sm:$0x1]
        %v1505 = vld [vmem:[%s731 + $0x80] sm:$0x1]
        %v1506 = vld [vmem:[%s731 + $0x8c] sm:$0x1]
        %v1507 = vld [vmem:[%s731 + $0x98] sm:$0x1]
        %v1508 = vld [vmem:[%s731 + $0xa4] sm:$0x1]
        %v1509 = vld [vmem:[%s731 + $0xb0] sm:$0x1]
        %v1510 = vld [vmem:[%s731 + $0xbc] sm:$0x1]
        %v1512 = vshrl.u32 %v1463, 16
        %v1514 = vrot.slane %v1512, 4
        %v1515 = vshll.u32 %v1463, 16
        %v1517 = vrot.slane %v1515, 5
        %v1518 = vor.u32 %v1514, %v1517
        %v1519 = vrot.slane %v1518, 4
        %v1521 = vshll.u32 %v1464, 16
        %v1523 = vrot.slane %v1521, 5
        %v1524 = vsel %vm899, %v1519, %v1523
        %v1525 = vshrl.u32 %v1464, 16
        %v1527 = vrot.slane %v1525, 4
        %v1528 = vor.u32 %v1527, %v1523
        %v1529 = vrot.slane %v1528, 4
        %v1531 = vshll.u32 %v1495, 16
        %v1533 = vrot.slane %v1531, 5
        %v1534 = vsel %vm899, %v1529, %v1533
        %v1536 = vshrl.u32 %v1465, 16
        %v1538 = vrot.slane %v1536, 4
        %v1539 = vshll.u32 %v1465, 16
        %v1541 = vrot.slane %v1539, 5
        %v1542 = vor.u32 %v1538, %v1541
        %v1543 = vrot.slane %v1542, 4
        %v1545 = vshll.u32 %v1466, 16
        %v1547 = vrot.slane %v1545, 5
        %v1548 = vsel %vm899, %v1543, %v1547
        %v1549 = vshrl.u32 %v1466, 16
        %v1551 = vrot.slane %v1549, 4
        %v1552 = vor.u32 %v1551, %v1547
        %v1553 = vrot.slane %v1552, 4
        %v1555 = vshll.u32 %v1496, 16
        %v1557 = vrot.slane %v1555, 5
        %v1558 = vsel %vm899, %v1553, %v1557
        %v1560 = vshrl.u32 %v1467, 16
        %v1562 = vrot.slane %v1560, 4
        %v1563 = vshll.u32 %v1467, 16
        %v1565 = vrot.slane %v1563, 5
        %v1566 = vor.u32 %v1562, %v1565
        %v1567 = vrot.slane %v1566, 4
        %v1569 = vshll.u32 %v1468, 16
        %v1571 = vrot.slane %v1569, 5
        %v1572 = vsel %vm899, %v1567, %v1571
        %v1573 = vshrl.u32 %v1468, 16
        %v1575 = vrot.slane %v1573, 4
        %v1576 = vor.u32 %v1575, %v1571
        %v1577 = vrot.slane %v1576, 4
        %v1579 = vshll.u32 %v1497, 16
        %v1581 = vrot.slane %v1579, 5
        %v1582 = vsel %vm899, %v1577, %v1581
        %v1584 = vshrl.u32 %v1469, 16
        %v1586 = vrot.slane %v1584, 4
        %v1587 = vshll.u32 %v1469, 16
        %v1589 = vrot.slane %v1587, 5
        %v1590 = vor.u32 %v1586, %v1589
        %v1591 = vrot.slane %v1590, 4
        %v1593 = vshll.u32 %v1470, 16
        %v1595 = vrot.slane %v1593, 5
        %v1596 = vsel %vm899, %v1591, %v1595
        %v1597 = vshrl.u32 %v1470, 16
        %v1599 = vrot.slane %v1597, 4
        %v1600 = vor.u32 %v1599, %v1595
        %v1601 = vrot.slane %v1600, 4
        %v1603 = vshll.u32 %v1498, 16
        %v1605 = vrot.slane %v1603, 5
        %v1606 = vsel %vm899, %v1601, %v1605
        %v1608 = vshrl.u32 %v1471, 16
        %v1610 = vrot.slane %v1608, 4
        %v1611 = vshll.u32 %v1471, 16
        %v1613 = vrot.slane %v1611, 5
        %v1614 = vor.u32 %v1610, %v1613
        %v1615 = vrot.slane %v1614, 4
        %v1617 = vshll.u32 %v1472, 16
        %v1619 = vrot.slane %v1617, 5
        %v1620 = vsel %vm899, %v1615, %v1619
        %v1621 = vshrl.u32 %v1472, 16
        %v1623 = vrot.slane %v1621, 4
        %v1624 = vor.u32 %v1623, %v1619
        %v1625 = vrot.slane %v1624, 4
        %v1627 = vshll.u32 %v1499, 16
        %v1629 = vrot.slane %v1627, 5
        %v1630 = vsel %vm899, %v1625, %v1629
        %v1632 = vshrl.u32 %v1473, 16
        %v1634 = vrot.slane %v1632, 4
        %v1635 = vshll.u32 %v1473, 16
        %v1637 = vrot.slane %v1635, 5
        %v1638 = vor.u32 %v1634, %v1637
        %v1639 = vrot.slane %v1638, 4
        %v1641 = vshll.u32 %v1474, 16
        %v1643 = vrot.slane %v1641, 5
        %v1644 = vsel %vm899, %v1639, %v1643
        %v1645 = vshrl.u32 %v1474, 16
        %v1647 = vrot.slane %v1645, 4
        %v1648 = vor.u32 %v1647, %v1643
        %v1649 = vrot.slane %v1648, 4
        %v1651 = vshll.u32 %v1500, 16
        %v1653 = vrot.slane %v1651, 5
        %v1654 = vsel %vm899, %v1649, %v1653
        %v1656 = vshrl.u32 %v1475, 16
        %v1658 = vrot.slane %v1656, 4
        %v1659 = vshll.u32 %v1475, 16
        %v1661 = vrot.slane %v1659, 5
        %v1662 = vor.u32 %v1658, %v1661
        %v1663 = vrot.slane %v1662, 4
        %v1665 = vshll.u32 %v1476, 16
        %v1667 = vrot.slane %v1665, 5
        %v1668 = vsel %vm899, %v1663, %v1667
        %v1669 = vshrl.u32 %v1476, 16
        %v1671 = vrot.slane %v1669, 4
        %v1672 = vor.u32 %v1671, %v1667
        %v1673 = vrot.slane %v1672, 4
        %v1675 = vshll.u32 %v1501, 16
        %v1677 = vrot.slane %v1675, 5
        %v1678 = vsel %vm899, %v1673, %v1677
        %v1680 = vshrl.u32 %v1477, 16
        %v1682 = vrot.slane %v1680, 4
        %v1683 = vshll.u32 %v1477, 16
        %v1685 = vrot.slane %v1683, 5
        %v1686 = vor.u32 %v1682, %v1685
        %v1687 = vrot.slane %v1686, 4
        %v1689 = vshll.u32 %v1478, 16
        %v1691 = vrot.slane %v1689, 5
        %v1692 = vsel %vm899, %v1687, %v1691
        %v1693 = vshrl.u32 %v1478, 16
        %v1695 = vrot.slane %v1693, 4
        %v1696 = vor.u32 %v1695, %v1691
        %v1697 = vrot.slane %v1696, 4
        %v1699 = vshll.u32 %v1502, 16
        %v1701 = vrot.slane %v1699, 5
        %v1702 = vsel %vm899, %v1697, %v1701
        %v1704 = vshrl.u32 %v1479, 16
        %v1706 = vrot.slane %v1704, 4
        %v1707 = vshll.u32 %v1479, 16
        %v1709 = vrot.slane %v1707, 5
        %v1710 = vor.u32 %v1706, %v1709
        %v1711 = vrot.slane %v1710, 4
        %v1713 = vshll.u32 %v1480, 16
        %v1715 = vrot.slane %v1713, 5
        %v1716 = vsel %vm899, %v1711, %v1715
        %v1717 = vshrl.u32 %v1480, 16
        %v1719 = vrot.slane %v1717, 4
        %v1720 = vor.u32 %v1719, %v1715
        %v1721 = vrot.slane %v1720, 4
        %v1723 = vshll.u32 %v1503, 16
        %v1725 = vrot.slane %v1723, 5
        %v1726 = vsel %vm899, %v1721, %v1725
        %v1728 = vshrl.u32 %v1481, 16
        %v1730 = vrot.slane %v1728, 4
        %v1731 = vshll.u32 %v1481, 16
        %v1733 = vrot.slane %v1731, 5
        %v1734 = vor.u32 %v1730, %v1733
        %v1735 = vrot.slane %v1734, 4
        %v1737 = vshll.u32 %v1482, 16
        %v1739 = vrot.slane %v1737, 5
        %v1740 = vsel %vm899, %v1735, %v1739
        %v1741 = vshrl.u32 %v1482, 16
        %v1743 = vrot.slane %v1741, 4
        %v1744 = vor.u32 %v1743, %v1739
        %v1745 = vrot.slane %v1744, 4
        %v1747 = vshll.u32 %v1504, 16
        %v1749 = vrot.slane %v1747, 5
        %v1750 = vsel %vm899, %v1745, %v1749
        %v1752 = vshrl.u32 %v1483, 16
        %v1754 = vrot.slane %v1752, 4
        %v1755 = vshll.u32 %v1483, 16
        %v1757 = vrot.slane %v1755, 5
        %v1758 = vor.u32 %v1754, %v1757
        %v1759 = vrot.slane %v1758, 4
        %v1761 = vshll.u32 %v1484, 16
        %v1763 = vrot.slane %v1761, 5
        %v1764 = vsel %vm899, %v1759, %v1763
        %v1765 = vshrl.u32 %v1484, 16
        %v1767 = vrot.slane %v1765, 4
        %v1768 = vor.u32 %v1767, %v1763
        %v1769 = vrot.slane %v1768, 4
        %v1771 = vshll.u32 %v1505, 16
        %v1773 = vrot.slane %v1771, 5
        %v1774 = vsel %vm899, %v1769, %v1773
        %v1776 = vshrl.u32 %v1485, 16
        %v1778 = vrot.slane %v1776, 4
        %v1779 = vshll.u32 %v1485, 16
        %v1781 = vrot.slane %v1779, 5
        %v1782 = vor.u32 %v1778, %v1781
        %v1783 = vrot.slane %v1782, 4
        %v1785 = vshll.u32 %v1486, 16
        %v1787 = vrot.slane %v1785, 5
        %v1788 = vsel %vm899, %v1783, %v1787
        %v1789 = vshrl.u32 %v1486, 16
        %v1791 = vrot.slane %v1789, 4
        %v1792 = vor.u32 %v1791, %v1787
        %v1793 = vrot.slane %v1792, 4
        %v1795 = vshll.u32 %v1506, 16
        %v1797 = vrot.slane %v1795, 5
        %v1798 = vsel %vm899, %v1793, %v1797
        %v1800 = vshrl.u32 %v1487, 16
        %v1802 = vrot.slane %v1800, 4
        %v1803 = vshll.u32 %v1487, 16
        %v1805 = vrot.slane %v1803, 5
        %v1806 = vor.u32 %v1802, %v1805
        %v1807 = vrot.slane %v1806, 4
        %v1809 = vshll.u32 %v1488, 16
        %v1811 = vrot.slane %v1809, 5
        %v1812 = vsel %vm899, %v1807, %v1811
        %v1813 = vshrl.u32 %v1488, 16
        %v1815 = vrot.slane %v1813, 4
        %v1816 = vor.u32 %v1815, %v1811
        %v1817 = vrot.slane %v1816, 4
        %v1819 = vshll.u32 %v1507, 16
        %v1821 = vrot.slane %v1819, 5
        %v1822 = vsel %vm899, %v1817, %v1821
        %v1824 = vshrl.u32 %v1489, 16
        %v1826 = vrot.slane %v1824, 4
        %v1827 = vshll.u32 %v1489, 16
        %v1829 = vrot.slane %v1827, 5
        %v1830 = vor.u32 %v1826, %v1829
        %v1831 = vrot.slane %v1830, 4
        %v1833 = vshll.u32 %v1490, 16
        %v1835 = vrot.slane %v1833, 5
        %v1836 = vsel %vm899, %v1831, %v1835
        %v1837 = vshrl.u32 %v1490, 16
        %v1839 = vrot.slane %v1837, 4
        %v1840 = vor.u32 %v1839, %v1835
        %v1841 = vrot.slane %v1840, 4
        %v1843 = vshll.u32 %v1508, 16
        %v1845 = vrot.slane %v1843, 5
        %v1846 = vsel %vm899, %v1841, %v1845
        %v1848 = vshrl.u32 %v1491, 16
        %v1850 = vrot.slane %v1848, 4
        %v1851 = vshll.u32 %v1491, 16
        %v1853 = vrot.slane %v1851, 5
        %v1854 = vor.u32 %v1850, %v1853
        %v1855 = vrot.slane %v1854, 4
        %v1857 = vshll.u32 %v1492, 16
        %v1859 = vrot.slane %v1857, 5
        %v1860 = vsel %vm899, %v1855, %v1859
        %v1861 = vshrl.u32 %v1492, 16
        %v1863 = vrot.slane %v1861, 4
        %v1864 = vor.u32 %v1863, %v1859
        %v1865 = vrot.slane %v1864, 4
        %v1867 = vshll.u32 %v1509, 16
        %v1869 = vrot.slane %v1867, 5
        %v1870 = vsel %vm899, %v1865, %v1869
        %v1872 = vshrl.u32 %v1493, 16
        %v1874 = vrot.slane %v1872, 4
        %v1875 = vshll.u32 %v1493, 16
        %v1877 = vrot.slane %v1875, 5
        %v1878 = vor.u32 %v1874, %v1877
        %v1879 = vrot.slane %v1878, 4
        %v1881 = vshll.u32 %v1494, 16
        %v1883 = vrot.slane %v1881, 5
        %v1884 = vsel %vm899, %v1879, %v1883
        %v1885 = vshrl.u32 %v1494, 16
        %v1887 = vrot.slane %v1885, 4
        %v1888 = vor.u32 %v1887, %v1883
        %v1889 = vrot.slane %v1888, 4
        %v1891 = vshll.u32 %v1510, 16
        %v1893 = vrot.slane %v1891, 5
        %v1894 = vsel %vm899, %v1889, %v1893
        %v1895 = vld [vmem:[%s731] sm:$0xe]
        %v1896 = vld [vmem:[%s731 + $0xc] sm:$0xe]
        %v1897 = vld [vmem:[%s731 + $0x18] sm:$0xe]
        %v1898 = vld [vmem:[%s731 + $0x24] sm:$0xe]
        %v1899 = vld [vmem:[%s731 + $0x30] sm:$0xe]
        %v1900 = vld [vmem:[%s731 + $0x3c] sm:$0xe]
        %v1901 = vld [vmem:[%s731 + $0x48] sm:$0xe]
        %v1902 = vld [vmem:[%s731 + $0x54] sm:$0xe]
        %v1903 = vld [vmem:[%s731 + $0x60] sm:$0xe]
        %v1904 = vld [vmem:[%s731 + $0x6c] sm:$0xe]
        %v1905 = vld [vmem:[%s731 + $0x78] sm:$0xe]
        %v1906 = vld [vmem:[%s731 + $0x84] sm:$0xe]
        %v1907 = vld [vmem:[%s731 + $0x90] sm:$0xe]
        %v1908 = vld [vmem:[%s731 + $0x9c] sm:$0xe]
        %v1909 = vld [vmem:[%s731 + $0xa8] sm:$0xe]
        %v1910 = vld [vmem:[%s731 + $0xb4] sm:$0xe]
        %v1959 = vrot.slane %v1895, 5
        %v1960 = vrot.slane %v1959, 4
        %v1961 = vrot.slane %v1464, 5
        %v1962 = vsel %vm1350, %v1960, %v1961
        %v1963 = vrot.slane %v1961, 4
        %v1964 = vrot.slane %v1495, 5
        %v1965 = vsel %vm1350, %v1963, %v1964
        %v1966 = vrot.slane %v1896, 5
        %v1967 = vrot.slane %v1966, 4
        %v1968 = vrot.slane %v1466, 5
        %v1969 = vsel %vm1350, %v1967, %v1968
        %v1970 = vrot.slane %v1968, 4
        %v1971 = vrot.slane %v1496, 5
        %v1972 = vsel %vm1350, %v1970, %v1971
        %v1973 = vrot.slane %v1897, 5
        %v1974 = vrot.slane %v1973, 4
        %v1975 = vrot.slane %v1468, 5
        %v1976 = vsel %vm1350, %v1974, %v1975
        %v1977 = vrot.slane %v1975, 4
        %v1978 = vrot.slane %v1497, 5
        %v1979 = vsel %vm1350, %v1977, %v1978
        %v1980 = vrot.slane %v1898, 5
        %v1981 = vrot.slane %v1980, 4
        %v1982 = vrot.slane %v1470, 5
        %v1983 = vsel %vm1350, %v1981, %v1982
        %v1984 = vrot.slane %v1982, 4
        %v1985 = vrot.slane %v1498, 5
        %v1986 = vsel %vm1350, %v1984, %v1985
        %v1987 = vrot.slane %v1899, 5
        %v1988 = vrot.slane %v1987, 4
        %v1989 = vrot.slane %v1472, 5
        %v1990 = vsel %vm1350, %v1988, %v1989
        %v1991 = vrot.slane %v1989, 4
        %v1992 = vrot.slane %v1499, 5
        %v1993 = vsel %vm1350, %v1991, %v1992
        %v1994 = vrot.slane %v1900, 5
        %v1995 = vrot.slane %v1994, 4
        %v1996 = vrot.slane %v1474, 5
        %v1997 = vsel %vm1350, %v1995, %v1996
        %v1998 = vrot.slane %v1996, 4
        %v1999 = vrot.slane %v1500, 5
        %v2000 = vsel %vm1350, %v1998, %v1999
        %v2001 = vrot.slane %v1901, 5
        %v2002 = vrot.slane %v2001, 4
        %v2003 = vrot.slane %v1476, 5
        %v2004 = vsel %vm1350, %v2002, %v2003
        %v2005 = vrot.slane %v2003, 4
        %v2006 = vrot.slane %v1501, 5
        %v2007 = vsel %vm1350, %v2005, %v2006
        %v2008 = vrot.slane %v1902, 5
        %v2009 = vrot.slane %v2008, 4
        %v2010 = vrot.slane %v1478, 5
        %v2011 = vsel %vm1350, %v2009, %v2010
        %v2012 = vrot.slane %v2010, 4
        %v2013 = vrot.slane %v1502, 5
        %v2014 = vsel %vm1350, %v2012, %v2013
        %v2015 = vrot.slane %v1903, 5
        %v2016 = vrot.slane %v2015, 4
        %v2017 = vrot.slane %v1480, 5
        %v2018 = vsel %vm1350, %v2016, %v2017
        %v2019 = vrot.slane %v2017, 4
        %v2020 = vrot.slane %v1503, 5
        %v2021 = vsel %vm1350, %v2019, %v2020
        %v2022 = vrot.slane %v1904, 5
        %v2023 = vrot.slane %v2022, 4
        %v2024 = vrot.slane %v1482, 5
        %v2025 = vsel %vm1350, %v2023, %v2024
        %v2026 = vrot.slane %v2024, 4
        %v2027 = vrot.slane %v1504, 5
        %v2028 = vsel %vm1350, %v2026, %v2027
        %v2029 = vrot.slane %v1905, 5
        %v2030 = vrot.slane %v2029, 4
        %v2031 = vrot.slane %v1484, 5
        %v2032 = vsel %vm1350, %v2030, %v2031
        %v2033 = vrot.slane %v2031, 4
        %v2034 = vrot.slane %v1505, 5
        %v2035 = vsel %vm1350, %v2033, %v2034
        %v2036 = vrot.slane %v1906, 5
        %v2037 = vrot.slane %v2036, 4
        %v2038 = vrot.slane %v1486, 5
        %v2039 = vsel %vm1350, %v2037, %v2038
        %v2040 = vrot.slane %v2038, 4
        %v2041 = vrot.slane %v1506, 5
        %v2042 = vsel %vm1350, %v2040, %v2041
        %v2043 = vrot.slane %v1907, 5
        %v2044 = vrot.slane %v2043, 4
        %v2045 = vrot.slane %v1488, 5
        %v2046 = vsel %vm1350, %v2044, %v2045
        %v2047 = vrot.slane %v2045, 4
        %v2048 = vrot.slane %v1507, 5
        %v2049 = vsel %vm1350, %v2047, %v2048
        %v2050 = vrot.slane %v1908, 5
        %v2051 = vrot.slane %v2050, 4
        %v2052 = vrot.slane %v1490, 5
        %v2053 = vsel %vm1350, %v2051, %v2052
        %v2054 = vrot.slane %v2052, 4
        %v2055 = vrot.slane %v1508, 5
        %v2056 = vsel %vm1350, %v2054, %v2055
        %v2057 = vrot.slane %v1909, 5
        %v2058 = vrot.slane %v2057, 4
        %v2059 = vrot.slane %v1492, 5
        %v2060 = vsel %vm1350, %v2058, %v2059
        %v2061 = vrot.slane %v2059, 4
        %v2062 = vrot.slane %v1509, 5
        %v2063 = vsel %vm1350, %v2061, %v2062
        %v2064 = vrot.slane %v1910, 5
        %v2065 = vrot.slane %v2064, 4
        %v2066 = vrot.slane %v1494, 5
        %v2067 = vsel %vm1350, %v2065, %v2066
        %v2068 = vrot.slane %v2066, 4
        %v2069 = vrot.slane %v1510, 5
        %v2070 = vsel %vm1350, %v2068, %v2069
        %s2071 = scalar_lea.vmem [#allocation2], 24
        %v2072 = vld [vmem:[%s2071] sm:$0xf]
        %v2073 = vld [vmem:[%s2071 + $0x4] sm:$0xf]
        %v2074 = vld [vmem:[%s2071 + $0xc] sm:$0xf]
        %v2075 = vld [vmem:[%s2071 + $0x10] sm:$0xf]
        %v2076 = vld [vmem:[%s2071 + $0x18] sm:$0xf]
        %v2077 = vld [vmem:[%s2071 + $0x1c] sm:$0xf]
        %v2078 = vld [vmem:[%s2071 + $0x24] sm:$0xf]
        %v2079 = vld [vmem:[%s2071 + $0x28] sm:$0xf]
        %v2080 = vld [vmem:[%s2071 + $0x30] sm:$0xf]
        %v2081 = vld [vmem:[%s2071 + $0x34] sm:$0xf]
        %v2082 = vld [vmem:[%s2071 + $0x3c] sm:$0xf]
        %v2083 = vld [vmem:[%s2071 + $0x40] sm:$0xf]
        %v2084 = vld [vmem:[%s2071 + $0x48] sm:$0xf]
        %v2085 = vld [vmem:[%s2071 + $0x4c] sm:$0xf]
        %v2086 = vld [vmem:[%s2071 + $0x54] sm:$0xf]
        %v2087 = vld [vmem:[%s2071 + $0x58] sm:$0xf]
        %v2088 = vld [vmem:[%s2071 + $0x60] sm:$0xf]
        %v2089 = vld [vmem:[%s2071 + $0x64] sm:$0xf]
        %v2090 = vld [vmem:[%s2071 + $0x6c] sm:$0xf]
        %v2091 = vld [vmem:[%s2071 + $0x70] sm:$0xf]
        %v2092 = vld [vmem:[%s2071 + $0x78] sm:$0xf]
        %v2093 = vld [vmem:[%s2071 + $0x7c] sm:$0xf]
        %v2094 = vld [vmem:[%s2071 + $0x84] sm:$0xf]
        %v2095 = vld [vmem:[%s2071 + $0x88] sm:$0xf]
        %v2096 = vld [vmem:[%s2071 + $0x90] sm:$0xf]
        %v2097 = vld [vmem:[%s2071 + $0x94] sm:$0xf]
        %v2098 = vld [vmem:[%s2071 + $0x9c] sm:$0xf]
        %v2099 = vld [vmem:[%s2071 + $0xa0] sm:$0xf]
        %v2100 = vld [vmem:[%s2071 + $0xa8] sm:$0xf]
        %v2101 = vld [vmem:[%s2071 + $0xac] sm:$0xf]
        %v2102 = vld [vmem:[%s2071 + $0xb4] sm:$0xf]
        %v2103 = vld [vmem:[%s2071 + $0xb8] sm:$0xf]
        %v2104 = vld [vmem:[%s2071 + $0x8] sm:$0x1]
        %v2105 = vld [vmem:[%s2071 + $0x14] sm:$0x1]
        %v2106 = vld [vmem:[%s2071 + $0x20] sm:$0x1]
        %v2107 = vld [vmem:[%s2071 + $0x2c] sm:$0x1]
        %v2108 = vld [vmem:[%s2071 + $0x38] sm:$0x1]
        %v2109 = vld [vmem:[%s2071 + $0x44] sm:$0x1]
        %v2110 = vld [vmem:[%s2071 + $0x50] sm:$0x1]
        %v2111 = vld [vmem:[%s2071 + $0x5c] sm:$0x1]
        %v2112 = vld [vmem:[%s2071 + $0x68] sm:$0x1]
        %v2113 = vld [vmem:[%s2071 + $0x74] sm:$0x1]
        %v2114 = vld [vmem:[%s2071 + $0x80] sm:$0x1]
        %v2115 = vld [vmem:[%s2071 + $0x8c] sm:$0x1]
        %v2116 = vld [vmem:[%s2071 + $0x98] sm:$0x1]
        %v2117 = vld [vmem:[%s2071 + $0xa4] sm:$0x1]
        %v2118 = vld [vmem:[%s2071 + $0xb0] sm:$0x1]
        %v2119 = vld [vmem:[%s2071 + $0xbc] sm:$0x1]
        %v2121 = vshrl.u32 %v2072, 16
        %v2123 = vrot.slane %v2121, 4
        %v2124 = vshll.u32 %v2072, 16
        %v2126 = vrot.slane %v2124, 5
        %v2127 = vor.u32 %v2123, %v2126
        %v2128 = vrot.slane %v2127, 4
        %v2130 = vshll.u32 %v2073, 16
        %v2132 = vrot.slane %v2130, 5
        %v2133 = vsel %vm899, %v2128, %v2132
        %v2134 = vshrl.u32 %v2073, 16
        %v2136 = vrot.slane %v2134, 4
        %v2137 = vor.u32 %v2136, %v2132
        %v2138 = vrot.slane %v2137, 4
        %v2140 = vshll.u32 %v2104, 16
        %v2142 = vrot.slane %v2140, 5
        %v2143 = vsel %vm899, %v2138, %v2142
        %v2145 = vshrl.u32 %v2074, 16
        %v2147 = vrot.slane %v2145, 4
        %v2148 = vshll.u32 %v2074, 16
        %v2150 = vrot.slane %v2148, 5
        %v2151 = vor.u32 %v2147, %v2150
        %v2152 = vrot.slane %v2151, 4
        %v2154 = vshll.u32 %v2075, 16
        %v2156 = vrot.slane %v2154, 5
        %v2157 = vsel %vm899, %v2152, %v2156
        %v2158 = vshrl.u32 %v2075, 16
        %v2160 = vrot.slane %v2158, 4
        %v2161 = vor.u32 %v2160, %v2156
        %v2162 = vrot.slane %v2161, 4
        %v2164 = vshll.u32 %v2105, 16
        %v2166 = vrot.slane %v2164, 5
        %v2167 = vsel %vm899, %v2162, %v2166
        %v2169 = vshrl.u32 %v2076, 16
        %v2171 = vrot.slane %v2169, 4
        %v2172 = vshll.u32 %v2076, 16
        %v2174 = vrot.slane %v2172, 5
        %v2175 = vor.u32 %v2171, %v2174
        %v2176 = vrot.slane %v2175, 4
        %v2178 = vshll.u32 %v2077, 16
        %v2180 = vrot.slane %v2178, 5
        %v2181 = vsel %vm899, %v2176, %v2180
        %v2182 = vshrl.u32 %v2077, 16
        %v2184 = vrot.slane %v2182, 4
        %v2185 = vor.u32 %v2184, %v2180
        %v2186 = vrot.slane %v2185, 4
        %v2188 = vshll.u32 %v2106, 16
        %v2190 = vrot.slane %v2188, 5
        %v2191 = vsel %vm899, %v2186, %v2190
        %v2193 = vshrl.u32 %v2078, 16
        %v2195 = vrot.slane %v2193, 4
        %v2196 = vshll.u32 %v2078, 16
        %v2198 = vrot.slane %v2196, 5
        %v2199 = vor.u32 %v2195, %v2198
        %v2200 = vrot.slane %v2199, 4
        %v2202 = vshll.u32 %v2079, 16
        %v2204 = vrot.slane %v2202, 5
        %v2205 = vsel %vm899, %v2200, %v2204
        %v2206 = vshrl.u32 %v2079, 16
        %v2208 = vrot.slane %v2206, 4
        %v2209 = vor.u32 %v2208, %v2204
        %v2210 = vrot.slane %v2209, 4
        %v2212 = vshll.u32 %v2107, 16
        %v2214 = vrot.slane %v2212, 5
        %v2215 = vsel %vm899, %v2210, %v2214
        %v2217 = vshrl.u32 %v2080, 16
        %v2219 = vrot.slane %v2217, 4
        %v2220 = vshll.u32 %v2080, 16
        %v2222 = vrot.slane %v2220, 5
        %v2223 = vor.u32 %v2219, %v2222
        %v2224 = vrot.slane %v2223, 4
        %v2226 = vshll.u32 %v2081, 16
        %v2228 = vrot.slane %v2226, 5
        %v2229 = vsel %vm899, %v2224, %v2228
        %v2230 = vshrl.u32 %v2081, 16
        %v2232 = vrot.slane %v2230, 4
        %v2233 = vor.u32 %v2232, %v2228
        %v2234 = vrot.slane %v2233, 4
        %v2236 = vshll.u32 %v2108, 16
        %v2238 = vrot.slane %v2236, 5
        %v2239 = vsel %vm899, %v2234, %v2238
        %v2241 = vshrl.u32 %v2082, 16
        %v2243 = vrot.slane %v2241, 4
        %v2244 = vshll.u32 %v2082, 16
        %v2246 = vrot.slane %v2244, 5
        %v2247 = vor.u32 %v2243, %v2246
        %v2248 = vrot.slane %v2247, 4
        %v2250 = vshll.u32 %v2083, 16
        %v2252 = vrot.slane %v2250, 5
        %v2253 = vsel %vm899, %v2248, %v2252
        %v2254 = vshrl.u32 %v2083, 16
        %v2256 = vrot.slane %v2254, 4
        %v2257 = vor.u32 %v2256, %v2252
        %v2258 = vrot.slane %v2257, 4
        %v2260 = vshll.u32 %v2109, 16
        %v2262 = vrot.slane %v2260, 5
        %v2263 = vsel %vm899, %v2258, %v2262
        %v2265 = vshrl.u32 %v2084, 16
        %v2267 = vrot.slane %v2265, 4
        %v2268 = vshll.u32 %v2084, 16
        %v2270 = vrot.slane %v2268, 5
        %v2271 = vor.u32 %v2267, %v2270
        %v2272 = vrot.slane %v2271, 4
        %v2274 = vshll.u32 %v2085, 16
        %v2276 = vrot.slane %v2274, 5
        %v2277 = vsel %vm899, %v2272, %v2276
        %v2278 = vshrl.u32 %v2085, 16
        %v2280 = vrot.slane %v2278, 4
        %v2281 = vor.u32 %v2280, %v2276
        %v2282 = vrot.slane %v2281, 4
        %v2284 = vshll.u32 %v2110, 16
        %v2286 = vrot.slane %v2284, 5
        %v2287 = vsel %vm899, %v2282, %v2286
        %v2289 = vshrl.u32 %v2086, 16
        %v2291 = vrot.slane %v2289, 4
        %v2292 = vshll.u32 %v2086, 16
        %v2294 = vrot.slane %v2292, 5
        %v2295 = vor.u32 %v2291, %v2294
        %v2296 = vrot.slane %v2295, 4
        %v2298 = vshll.u32 %v2087, 16
        %v2300 = vrot.slane %v2298, 5
        %v2301 = vsel %vm899, %v2296, %v2300
        %v2302 = vshrl.u32 %v2087, 16
        %v2304 = vrot.slane %v2302, 4
        %v2305 = vor.u32 %v2304, %v2300
        %v2306 = vrot.slane %v2305, 4
        %v2308 = vshll.u32 %v2111, 16
        %v2310 = vrot.slane %v2308, 5
        %v2311 = vsel %vm899, %v2306, %v2310
        %v2313 = vshrl.u32 %v2088, 16
        %v2315 = vrot.slane %v2313, 4
        %v2316 = vshll.u32 %v2088, 16
        %v2318 = vrot.slane %v2316, 5
        %v2319 = vor.u32 %v2315, %v2318
        %v2320 = vrot.slane %v2319, 4
        %v2322 = vshll.u32 %v2089, 16
        %v2324 = vrot.slane %v2322, 5
        %v2325 = vsel %vm899, %v2320, %v2324
        %v2326 = vshrl.u32 %v2089, 16
        %v2328 = vrot.slane %v2326, 4
        %v2329 = vor.u32 %v2328, %v2324
        %v2330 = vrot.slane %v2329, 4
        %v2332 = vshll.u32 %v2112, 16
        %v2334 = vrot.slane %v2332, 5
        %v2335 = vsel %vm899, %v2330, %v2334
        %v2337 = vshrl.u32 %v2090, 16
        %v2339 = vrot.slane %v2337, 4
        %v2340 = vshll.u32 %v2090, 16
        %v2342 = vrot.slane %v2340, 5
        %v2343 = vor.u32 %v2339, %v2342
        %v2344 = vrot.slane %v2343, 4
        %v2346 = vshll.u32 %v2091, 16
        %v2348 = vrot.slane %v2346, 5
        %v2349 = vsel %vm899, %v2344, %v2348
        %v2350 = vshrl.u32 %v2091, 16
        %v2352 = vrot.slane %v2350, 4
        %v2353 = vor.u32 %v2352, %v2348
        %v2354 = vrot.slane %v2353, 4
        %v2356 = vshll.u32 %v2113, 16
        %v2358 = vrot.slane %v2356, 5
        %v2359 = vsel %vm899, %v2354, %v2358
        %v2361 = vshrl.u32 %v2092, 16
        %v2363 = vrot.slane %v2361, 4
        %v2364 = vshll.u32 %v2092, 16
        %v2366 = vrot.slane %v2364, 5
        %v2367 = vor.u32 %v2363, %v2366
        %v2368 = vrot.slane %v2367, 4
        %v2370 = vshll.u32 %v2093, 16
        %v2372 = vrot.slane %v2370, 5
        %v2373 = vsel %vm899, %v2368, %v2372
        %v2374 = vshrl.u32 %v2093, 16
        %v2376 = vrot.slane %v2374, 4
        %v2377 = vor.u32 %v2376, %v2372
        %v2378 = vrot.slane %v2377, 4
        %v2380 = vshll.u32 %v2114, 16
        %v2382 = vrot.slane %v2380, 5
        %v2383 = vsel %vm899, %v2378, %v2382
        %v2385 = vshrl.u32 %v2094, 16
        %v2387 = vrot.slane %v2385, 4
        %v2388 = vshll.u32 %v2094, 16
        %v2390 = vrot.slane %v2388, 5
        %v2391 = vor.u32 %v2387, %v2390
        %v2392 = vrot.slane %v2391, 4
        %v2394 = vshll.u32 %v2095, 16
        %v2396 = vrot.slane %v2394, 5
        %v2397 = vsel %vm899, %v2392, %v2396
        %v2398 = vshrl.u32 %v2095, 16
        %v2400 = vrot.slane %v2398, 4
        %v2401 = vor.u32 %v2400, %v2396
        %v2402 = vrot.slane %v2401, 4
        %v2404 = vshll.u32 %v2115, 16
        %v2406 = vrot.slane %v2404, 5
        %v2407 = vsel %vm899, %v2402, %v2406
        %v2409 = vshrl.u32 %v2096, 16
        %v2411 = vrot.slane %v2409, 4
        %v2412 = vshll.u32 %v2096, 16
        %v2414 = vrot.slane %v2412, 5
        %v2415 = vor.u32 %v2411, %v2414
        %v2416 = vrot.slane %v2415, 4
        %v2418 = vshll.u32 %v2097, 16
        %v2420 = vrot.slane %v2418, 5
        %v2421 = vsel %vm899, %v2416, %v2420
        %v2422 = vshrl.u32 %v2097, 16
        %v2424 = vrot.slane %v2422, 4
        %v2425 = vor.u32 %v2424, %v2420
        %v2426 = vrot.slane %v2425, 4
        %v2428 = vshll.u32 %v2116, 16
        %v2430 = vrot.slane %v2428, 5
        %v2431 = vsel %vm899, %v2426, %v2430
        %v2433 = vshrl.u32 %v2098, 16
        %v2435 = vrot.slane %v2433, 4
        %v2436 = vshll.u32 %v2098, 16
        %v2438 = vrot.slane %v2436, 5
        %v2439 = vor.u32 %v2435, %v2438
        %v2440 = vrot.slane %v2439, 4
        %v2442 = vshll.u32 %v2099, 16
        %v2444 = vrot.slane %v2442, 5
        %v2445 = vsel %vm899, %v2440, %v2444
        %v2446 = vshrl.u32 %v2099, 16
        %v2448 = vrot.slane %v2446, 4
        %v2449 = vor.u32 %v2448, %v2444
        %v2450 = vrot.slane %v2449, 4
        %v2452 = vshll.u32 %v2117, 16
        %v2454 = vrot.slane %v2452, 5
        %v2455 = vsel %vm899, %v2450, %v2454
        %v2457 = vshrl.u32 %v2100, 16
        %v2459 = vrot.slane %v2457, 4
        %v2460 = vshll.u32 %v2100, 16
        %v2462 = vrot.slane %v2460, 5
        %v2463 = vor.u32 %v2459, %v2462
        %v2464 = vrot.slane %v2463, 4
        %v2466 = vshll.u32 %v2101, 16
        %v2468 = vrot.slane %v2466, 5
        %v2469 = vsel %vm899, %v2464, %v2468
        %v2470 = vshrl.u32 %v2101, 16
        %v2472 = vrot.slane %v2470, 4
        %v2473 = vor.u32 %v2472, %v2468
        %v2474 = vrot.slane %v2473, 4
        %v2476 = vshll.u32 %v2118, 16
        %v2478 = vrot.slane %v2476, 5
        %v2479 = vsel %vm899, %v2474, %v2478
        %v2481 = vshrl.u32 %v2102, 16
        %v2483 = vrot.slane %v2481, 4
        %v2484 = vshll.u32 %v2102, 16
        %v2486 = vrot.slane %v2484, 5
        %v2487 = vor.u32 %v2483, %v2486
        %v2488 = vrot.slane %v2487, 4
        %v2490 = vshll.u32 %v2103, 16
        %v2492 = vrot.slane %v2490, 5
        %v2493 = vsel %vm899, %v2488, %v2492
        %v2494 = vshrl.u32 %v2103, 16
        %v2496 = vrot.slane %v2494, 4
        %v2497 = vor.u32 %v2496, %v2492
        %v2498 = vrot.slane %v2497, 4
        %v2500 = vshll.u32 %v2119, 16
        %v2502 = vrot.slane %v2500, 5
        %v2503 = vsel %vm899, %v2498, %v2502
        %v2504 = vld [vmem:[%s2071] sm:$0xe]
        %v2505 = vld [vmem:[%s2071 + $0xc] sm:$0xe]
        %v2506 = vld [vmem:[%s2071 + $0x18] sm:$0xe]
        %v2507 = vld [vmem:[%s2071 + $0x24] sm:$0xe]
        %v2508 = vld [vmem:[%s2071 + $0x30] sm:$0xe]
        %v2509 = vld [vmem:[%s2071 + $0x3c] sm:$0xe]
        %v2510 = vld [vmem:[%s2071 + $0x48] sm:$0xe]
        %v2511 = vld [vmem:[%s2071 + $0x54] sm:$0xe]
        %v2512 = vld [vmem:[%s2071 + $0x60] sm:$0xe]
        %v2513 = vld [vmem:[%s2071 + $0x6c] sm:$0xe]
        %v2514 = vld [vmem:[%s2071 + $0x78] sm:$0xe]
        %v2515 = vld [vmem:[%s2071 + $0x84] sm:$0xe]
        %v2516 = vld [vmem:[%s2071 + $0x90] sm:$0xe]
        %v2517 = vld [vmem:[%s2071 + $0x9c] sm:$0xe]
        %v2518 = vld [vmem:[%s2071 + $0xa8] sm:$0xe]
        %v2519 = vld [vmem:[%s2071 + $0xb4] sm:$0xe]
        %v2568 = vrot.slane %v2504, 5
        %v2569 = vrot.slane %v2568, 4
        %v2570 = vrot.slane %v2073, 5
        %v2571 = vsel %vm1350, %v2569, %v2570
        %v2572 = vrot.slane %v2570, 4
        %v2573 = vrot.slane %v2104, 5
        %v2574 = vsel %vm1350, %v2572, %v2573
        %v2575 = vrot.slane %v2505, 5
        %v2576 = vrot.slane %v2575, 4
        %v2577 = vrot.slane %v2075, 5
        %v2578 = vsel %vm1350, %v2576, %v2577
        %v2579 = vrot.slane %v2577, 4
        %v2580 = vrot.slane %v2105, 5
        %v2581 = vsel %vm1350, %v2579, %v2580
        %v2582 = vrot.slane %v2506, 5
        %v2583 = vrot.slane %v2582, 4
        %v2584 = vrot.slane %v2077, 5
        %v2585 = vsel %vm1350, %v2583, %v2584
        %v2586 = vrot.slane %v2584, 4
        %v2587 = vrot.slane %v2106, 5
        %v2588 = vsel %vm1350, %v2586, %v2587
        %v2589 = vrot.slane %v2507, 5
        %v2590 = vrot.slane %v2589, 4
        %v2591 = vrot.slane %v2079, 5
        %v2592 = vsel %vm1350, %v2590, %v2591
        %v2593 = vrot.slane %v2591, 4
        %v2594 = vrot.slane %v2107, 5
        %v2595 = vsel %vm1350, %v2593, %v2594
        %v2596 = vrot.slane %v2508, 5
        %v2597 = vrot.slane %v2596, 4
        %v2598 = vrot.slane %v2081, 5
        %v2599 = vsel %vm1350, %v2597, %v2598
        %v2600 = vrot.slane %v2598, 4
        %v2601 = vrot.slane %v2108, 5
        %v2602 = vsel %vm1350, %v2600, %v2601
        %v2603 = vrot.slane %v2509, 5
        %v2604 = vrot.slane %v2603, 4
        %v2605 = vrot.slane %v2083, 5
        %v2606 = vsel %vm1350, %v2604, %v2605
        %v2607 = vrot.slane %v2605, 4
        %v2608 = vrot.slane %v2109, 5
        %v2609 = vsel %vm1350, %v2607, %v2608
        %v2610 = vrot.slane %v2510, 5
        %v2611 = vrot.slane %v2610, 4
        %v2612 = vrot.slane %v2085, 5
        %v2613 = vsel %vm1350, %v2611, %v2612
        %v2614 = vrot.slane %v2612, 4
        %v2615 = vrot.slane %v2110, 5
        %v2616 = vsel %vm1350, %v2614, %v2615
        %v2617 = vrot.slane %v2511, 5
        %v2618 = vrot.slane %v2617, 4
        %v2619 = vrot.slane %v2087, 5
        %v2620 = vsel %vm1350, %v2618, %v2619
        %v2621 = vrot.slane %v2619, 4
        %v2622 = vrot.slane %v2111, 5
        %v2623 = vsel %vm1350, %v2621, %v2622
        %v2624 = vrot.slane %v2512, 5
        %v2625 = vrot.slane %v2624, 4
        %v2626 = vrot.slane %v2089, 5
        %v2627 = vsel %vm1350, %v2625, %v2626
        %v2628 = vrot.slane %v2626, 4
        %v2629 = vrot.slane %v2112, 5
        %v2630 = vsel %vm1350, %v2628, %v2629
        %v2631 = vrot.slane %v2513, 5
        %v2632 = vrot.slane %v2631, 4
        %v2633 = vrot.slane %v2091, 5
        %v2634 = vsel %vm1350, %v2632, %v2633
        %v2635 = vrot.slane %v2633, 4
        %v2636 = vrot.slane %v2113, 5
        %v2637 = vsel %vm1350, %v2635, %v2636
        %v2638 = vrot.slane %v2514, 5
        %v2639 = vrot.slane %v2638, 4
        %v2640 = vrot.slane %v2093, 5
        %v2641 = vsel %vm1350, %v2639, %v2640
        %v2642 = vrot.slane %v2640, 4
        %v2643 = vrot.slane %v2114, 5
        %v2644 = vsel %vm1350, %v2642, %v2643
        %v2645 = vrot.slane %v2515, 5
        %v2646 = vrot.slane %v2645, 4
        %v2647 = vrot.slane %v2095, 5
        %v2648 = vsel %vm1350, %v2646, %v2647
        %v2649 = vrot.slane %v2647, 4
        %v2650 = vrot.slane %v2115, 5
        %v2651 = vsel %vm1350, %v2649, %v2650
        %v2652 = vrot.slane %v2516, 5
        %v2653 = vrot.slane %v2652, 4
        %v2654 = vrot.slane %v2097, 5
        %v2655 = vsel %vm1350, %v2653, %v2654
        %v2656 = vrot.slane %v2654, 4
        %v2657 = vrot.slane %v2116, 5
        %v2658 = vsel %vm1350, %v2656, %v2657
        %v2659 = vrot.slane %v2517, 5
        %v2660 = vrot.slane %v2659, 4
        %v2661 = vrot.slane %v2099, 5
        %v2662 = vsel %vm1350, %v2660, %v2661
        %v2663 = vrot.slane %v2661, 4
        %v2664 = vrot.slane %v2117, 5
        %v2665 = vsel %vm1350, %v2663, %v2664
        %v2666 = vrot.slane %v2518, 5
        %v2667 = vrot.slane %v2666, 4
        %v2668 = vrot.slane %v2101, 5
        %v2669 = vsel %vm1350, %v2667, %v2668
        %v2670 = vrot.slane %v2668, 4
        %v2671 = vrot.slane %v2118, 5
        %v2672 = vsel %vm1350, %v2670, %v2671
        %v2673 = vrot.slane %v2519, 5
        %v2674 = vrot.slane %v2673, 4
        %v2675 = vrot.slane %v2103, 5
        %v2676 = vsel %vm1350, %v2674, %v2675
        %v2677 = vrot.slane %v2675, 4
        %v2678 = vrot.slane %v2119, 5
        %v2679 = vsel %vm1350, %v2677, %v2678
        %v2696 = vunpack.c.l.b16 %v849
        %v2697 = vunpack.c.l.b16 %v850
        %v2698 = vunpack.c.l.b16 %v851
        %v2699 = vunpack.c.l.b16 %v852
        %v2700 = vunpack.c.l.b16 %v853
        %v2701 = vunpack.c.l.b16 %v854
        %v2702 = vunpack.c.l.b16 %v855
        %v2703 = vunpack.c.l.b16 %v856
        %v2704 = vunpack.c.l.b16 %v857
        %v2705 = vunpack.c.l.b16 %v858
        %v2706 = vunpack.c.l.b16 %v859
        %v2707 = vunpack.c.l.b16 %v860
        %v2708 = vunpack.c.l.b16 %v861
        %v2709 = vunpack.c.l.b16 %v862
        %v2710 = vunpack.c.l.b16 %v863
        %v2711 = vunpack.c.l.b16 %v864
        %v2712 = vunpack.c.l.b16 %v865
        %v2713 = vunpack.c.l.b16 %v866
        %v2714 = vunpack.c.l.b16 %v867
        %v2715 = vunpack.c.l.b16 %v868
        %v2716 = vunpack.c.l.b16 %v869
        %v2717 = vunpack.c.l.b16 %v870
        %v2718 = vunpack.c.l.b16 %v871
        %v2719 = vunpack.c.l.b16 %v872
        %v2720 = vunpack.c.l.b16 %v873
        %v2721 = vunpack.c.l.b16 %v874
        %v2722 = vunpack.c.l.b16 %v875
        %v2723 = vunpack.c.l.b16 %v876
        %v2724 = vunpack.c.l.b16 %v877
        %v2725 = vunpack.c.l.b16 %v878
        %v2726 = vunpack.c.l.b16 %v879
        %v2727 = vunpack.c.l.b16 %v880
        %v2728 = vpack.c.b16 %v2697, %v2696
        %v2729 = vpack.c.b16 %v2699, %v2698
        %v2730 = vpack.c.b16 %v2701, %v2700
        %v2731 = vpack.c.b16 %v2703, %v2702
        %v2732 = vpack.c.b16 %v2705, %v2704
        %v2733 = vpack.c.b16 %v2707, %v2706
        %v2734 = vpack.c.b16 %v2709, %v2708
        %v2735 = vpack.c.b16 %v2711, %v2710
        %v2736 = vpack.c.b16 %v2713, %v2712
        %v2737 = vpack.c.b16 %v2715, %v2714
        %v2738 = vpack.c.b16 %v2717, %v2716
        %v2739 = vpack.c.b16 %v2719, %v2718
        %v2740 = vpack.c.b16 %v2721, %v2720
        %v2741 = vpack.c.b16 %v2723, %v2722
        %v2742 = vpack.c.b16 %v2725, %v2724
        %v2743 = vpack.c.b16 %v2727, %v2726
        %v2744 = vunpack.c.l.b16 %v913
        %v2745 = vunpack.c.l.b16 %v923
        %v2746 = vunpack.c.l.b16 %v937
        %v2747 = vunpack.c.l.b16 %v947
        %v2748 = vunpack.c.l.b16 %v961
        %v2749 = vunpack.c.l.b16 %v971
        %v2750 = vunpack.c.l.b16 %v985
        %v2751 = vunpack.c.l.b16 %v995
        %v2752 = vunpack.c.l.b16 %v1009
        %v2753 = vunpack.c.l.b16 %v1019
        %v2754 = vunpack.c.l.b16 %v1033
        %v2755 = vunpack.c.l.b16 %v1043
        %v2756 = vunpack.c.l.b16 %v1057
        %v2757 = vunpack.c.l.b16 %v1067
        %v2758 = vunpack.c.l.b16 %v1081
        %v2759 = vunpack.c.l.b16 %v1091
        %v2760 = vunpack.c.l.b16 %v1105
        %v2761 = vunpack.c.l.b16 %v1115
        %v2762 = vunpack.c.l.b16 %v1129
        %v2763 = vunpack.c.l.b16 %v1139
        %v2764 = vunpack.c.l.b16 %v1153
        %v2765 = vunpack.c.l.b16 %v1163
        %v2766 = vunpack.c.l.b16 %v1177
        %v2767 = vunpack.c.l.b16 %v1187
        %v2768 = vunpack.c.l.b16 %v1201
        %v2769 = vunpack.c.l.b16 %v1211
        %v2770 = vunpack.c.l.b16 %v1225
        %v2771 = vunpack.c.l.b16 %v1235
        %v2772 = vunpack.c.l.b16 %v1249
        %v2773 = vunpack.c.l.b16 %v1259
        %v2774 = vunpack.c.l.b16 %v1273
        %v2775 = vunpack.c.l.b16 %v1283
        %v2776 = vpack.c.b16 %v2745, %v2744
        %v2777 = vpack.c.b16 %v2747, %v2746
        %v2778 = vpack.c.b16 %v2749, %v2748
        %v2779 = vpack.c.b16 %v2751, %v2750
        %v2780 = vpack.c.b16 %v2753, %v2752
        %v2781 = vpack.c.b16 %v2755, %v2754
        %v2782 = vpack.c.b16 %v2757, %v2756
        %v2783 = vpack.c.b16 %v2759, %v2758
        %v2784 = vpack.c.b16 %v2761, %v2760
        %v2785 = vpack.c.b16 %v2763, %v2762
        %v2786 = vpack.c.b16 %v2765, %v2764
        %v2787 = vpack.c.b16 %v2767, %v2766
        %v2788 = vpack.c.b16 %v2769, %v2768
        %v2789 = vpack.c.b16 %v2771, %v2770
        %v2790 = vpack.c.b16 %v2773, %v2772
        %v2791 = vpack.c.b16 %v2775, %v2774
        %2792 = vrot.lane.b32.xlu0 %v2776, 64
        %v2793 = vpop.permute.xlu0 %2792
        %2794 = vrot.lane.b32.xlu0 %v2777, 64
        %v2795 = vpop.permute.xlu0 %2794
        %2796 = vrot.lane.b32.xlu0 %v2778, 64
        %v2797 = vpop.permute.xlu0 %2796
        %2798 = vrot.lane.b32.xlu0 %v2779, 64
        %v2799 = vpop.permute.xlu0 %2798
        %2800 = vrot.lane.b32.xlu0 %v2780, 64
        %v2801 = vpop.permute.xlu0 %2800
        %2802 = vrot.lane.b32.xlu0 %v2781, 64
        %v2803 = vpop.permute.xlu0 %2802
        %2804 = vrot.lane.b32.xlu0 %v2782, 64
        %v2805 = vpop.permute.xlu0 %2804
        %2806 = vrot.lane.b32.xlu0 %v2783, 64
        %v2807 = vpop.permute.xlu0 %2806
        %2808 = vrot.lane.b32.xlu0 %v2784, 64
        %v2809 = vpop.permute.xlu0 %2808
        %2810 = vrot.lane.b32.xlu0 %v2785, 64
        %v2811 = vpop.permute.xlu0 %2810
        %2812 = vrot.lane.b32.xlu0 %v2786, 64
        %v2813 = vpop.permute.xlu0 %2812
        %2814 = vrot.lane.b32.xlu0 %v2787, 64
        %v2815 = vpop.permute.xlu0 %2814
        %2816 = vrot.lane.b32.xlu0 %v2788, 64
        %v2817 = vpop.permute.xlu0 %2816
        %2818 = vrot.lane.b32.xlu0 %v2789, 64
        %v2819 = vpop.permute.xlu0 %2818
        %2820 = vrot.lane.b32.xlu0 %v2790, 64
        %v2821 = vpop.permute.xlu0 %2820
        %2822 = vrot.lane.b32.xlu0 %v2791, 64
        %v2823 = vpop.permute.xlu0 %2822
        %v2824 = vunpack.c.l.b16 %v1354
        %v2825 = vunpack.c.l.b16 %v1357
        %v2826 = vunpack.c.l.b16 %v1361
        %v2827 = vunpack.c.l.b16 %v1364
        %v2828 = vunpack.c.l.b16 %v1368
        %v2829 = vunpack.c.l.b16 %v1371
        %v2830 = vunpack.c.l.b16 %v1375
        %v2831 = vunpack.c.l.b16 %v1378
        %v2832 = vunpack.c.l.b16 %v1382
        %v2833 = vunpack.c.l.b16 %v1385
        %v2834 = vunpack.c.l.b16 %v1389
        %v2835 = vunpack.c.l.b16 %v1392
        %v2836 = vunpack.c.l.b16 %v1396
        %v2837 = vunpack.c.l.b16 %v1399
        %v2838 = vunpack.c.l.b16 %v1403
        %v2839 = vunpack.c.l.b16 %v1406
        %v2840 = vunpack.c.l.b16 %v1410
        %v2841 = vunpack.c.l.b16 %v1413
        %v2842 = vunpack.c.l.b16 %v1417
        %v2843 = vunpack.c.l.b16 %v1420
        %v2844 = vunpack.c.l.b16 %v1424
        %v2845 = vunpack.c.l.b16 %v1427
        %v2846 = vunpack.c.l.b16 %v1431
        %v2847 = vunpack.c.l.b16 %v1434
        %v2848 = vunpack.c.l.b16 %v1438
        %v2849 = vunpack.c.l.b16 %v1441
        %v2850 = vunpack.c.l.b16 %v1445
        %v2851 = vunpack.c.l.b16 %v1448
        %v2852 = vunpack.c.l.b16 %v1452
        %v2853 = vunpack.c.l.b16 %v1455
        %v2854 = vunpack.c.l.b16 %v1459
        %v2855 = vunpack.c.l.b16 %v1462
        %v2856 = vpack.c.b16 %v2825, %v2824
        %v2857 = vpack.c.b16 %v2827, %v2826
        %v2858 = vpack.c.b16 %v2829, %v2828
        %v2859 = vpack.c.b16 %v2831, %v2830
        %v2860 = vpack.c.b16 %v2833, %v2832
        %v2861 = vpack.c.b16 %v2835, %v2834
        %v2862 = vpack.c.b16 %v2837, %v2836
        %v2863 = vpack.c.b16 %v2839, %v2838
        %v2864 = vpack.c.b16 %v2841, %v2840
        %v2865 = vpack.c.b16 %v2843, %v2842
        %v2866 = vpack.c.b16 %v2845, %v2844
        %v2867 = vpack.c.b16 %v2847, %v2846
        %v2868 = vpack.c.b16 %v2849, %v2848
        %v2869 = vpack.c.b16 %v2851, %v2850
        %v2870 = vpack.c.b16 %v2853, %v2852
        %v2871 = vpack.c.b16 %v2855, %v2854
        %v2888 = vunpack.c.l.b16 %v1463
        %v2889 = vunpack.c.l.b16 %v1464
        %v2890 = vunpack.c.l.b16 %v1465
        %v2891 = vunpack.c.l.b16 %v1466
        %v2892 = vunpack.c.l.b16 %v1467
        %v2893 = vunpack.c.l.b16 %v1468
        %v2894 = vunpack.c.l.b16 %v1469
        %v2895 = vunpack.c.l.b16 %v1470
        %v2896 = vunpack.c.l.b16 %v1471
        %v2897 = vunpack.c.l.b16 %v1472
        %v2898 = vunpack.c.l.b16 %v1473
        %v2899 = vunpack.c.l.b16 %v1474
        %v2900 = vunpack.c.l.b16 %v1475
        %v2901 = vunpack.c.l.b16 %v1476
        %v2902 = vunpack.c.l.b16 %v1477
        %v2903 = vunpack.c.l.b16 %v1478
        %v2904 = vunpack.c.l.b16 %v1479
        %v2905 = vunpack.c.l.b16 %v1480
        %v2906 = vunpack.c.l.b16 %v1481
        %v2907 = vunpack.c.l.b16 %v1482
        %v2908 = vunpack.c.l.b16 %v1483
        %v2909 = vunpack.c.l.b16 %v1484
        %v2910 = vunpack.c.l.b16 %v1485
        %v2911 = vunpack.c.l.b16 %v1486
        %v2912 = vunpack.c.l.b16 %v1487
        %v2913 = vunpack.c.l.b16 %v1488
        %v2914 = vunpack.c.l.b16 %v1489
        %v2915 = vunpack.c.l.b16 %v1490
        %v2916 = vunpack.c.l.b16 %v1491
        %v2917 = vunpack.c.l.b16 %v1492
        %v2918 = vunpack.c.l.b16 %v1493
        %v2919 = vunpack.c.l.b16 %v1494
        %v2920 = vpack.c.b16 %v2889, %v2888
        %v2921 = vpack.c.b16 %v2891, %v2890
        %v2922 = vpack.c.b16 %v2893, %v2892
        %v2923 = vpack.c.b16 %v2895, %v2894
        %v2924 = vpack.c.b16 %v2897, %v2896
        %v2925 = vpack.c.b16 %v2899, %v2898
        %v2926 = vpack.c.b16 %v2901, %v2900
        %v2927 = vpack.c.b16 %v2903, %v2902
        %v2928 = vpack.c.b16 %v2905, %v2904
        %v2929 = vpack.c.b16 %v2907, %v2906
        %v2930 = vpack.c.b16 %v2909, %v2908
        %v2931 = vpack.c.b16 %v2911, %v2910
        %v2932 = vpack.c.b16 %v2913, %v2912
        %v2933 = vpack.c.b16 %v2915, %v2914
        %v2934 = vpack.c.b16 %v2917, %v2916
        %v2935 = vpack.c.b16 %v2919, %v2918
        %2936 = vrot.lane.b32.xlu0 %v2920, 64
        %v2937 = vpop.permute.xlu0 %2936
        %2938 = vrot.lane.b32.xlu0 %v2921, 64
        %v2939 = vpop.permute.xlu0 %2938
        %2940 = vrot.lane.b32.xlu0 %v2922, 64
        %v2941 = vpop.permute.xlu0 %2940
        %2942 = vrot.lane.b32.xlu0 %v2923, 64
        %v2943 = vpop.permute.xlu0 %2942
        %2944 = vrot.lane.b32.xlu0 %v2924, 64
        %v2945 = vpop.permute.xlu0 %2944
        %2946 = vrot.lane.b32.xlu0 %v2925, 64
        %v2947 = vpop.permute.xlu0 %2946
        %2948 = vrot.lane.b32.xlu0 %v2926, 64
        %v2949 = vpop.permute.xlu0 %2948
        %2950 = vrot.lane.b32.xlu0 %v2927, 64
        %v2951 = vpop.permute.xlu0 %2950
        %2952 = vrot.lane.b32.xlu0 %v2928, 64
        %v2953 = vpop.permute.xlu0 %2952
        %2954 = vrot.lane.b32.xlu0 %v2929, 64
        %v2955 = vpop.permute.xlu0 %2954
        %2956 = vrot.lane.b32.xlu0 %v2930, 64
        %v2957 = vpop.permute.xlu0 %2956
        %2958 = vrot.lane.b32.xlu0 %v2931, 64
        %v2959 = vpop.permute.xlu0 %2958
        %2960 = vrot.lane.b32.xlu0 %v2932, 64
        %v2961 = vpop.permute.xlu0 %2960
        %2962 = vrot.lane.b32.xlu0 %v2933, 64
        %v2963 = vpop.permute.xlu0 %2962
        %2964 = vrot.lane.b32.xlu0 %v2934, 64
        %v2965 = vpop.permute.xlu0 %2964
        %2966 = vrot.lane.b32.xlu0 %v2935, 64
        %v2967 = vpop.permute.xlu0 %2966
        %v2968 = vunpack.c.l.b16 %v1524
        %v2969 = vunpack.c.l.b16 %v1534
        %v2970 = vunpack.c.l.b16 %v1548
        %v2971 = vunpack.c.l.b16 %v1558
        %v2972 = vunpack.c.l.b16 %v1572
        %v2973 = vunpack.c.l.b16 %v1582
        %v2974 = vunpack.c.l.b16 %v1596
        %v2975 = vunpack.c.l.b16 %v1606
        %v2976 = vunpack.c.l.b16 %v1620
        %v2977 = vunpack.c.l.b16 %v1630
        %v2978 = vunpack.c.l.b16 %v1644
        %v2979 = vunpack.c.l.b16 %v1654
        %v2980 = vunpack.c.l.b16 %v1668
        %v2981 = vunpack.c.l.b16 %v1678
        %v2982 = vunpack.c.l.b16 %v1692
        %v2983 = vunpack.c.l.b16 %v1702
        %v2984 = vunpack.c.l.b16 %v1716
        %v2985 = vunpack.c.l.b16 %v1726
        %v2986 = vunpack.c.l.b16 %v1740
        %v2987 = vunpack.c.l.b16 %v1750
        %v2988 = vunpack.c.l.b16 %v1764
        %v2989 = vunpack.c.l.b16 %v1774
        %v2990 = vunpack.c.l.b16 %v1788
        %v2991 = vunpack.c.l.b16 %v1798
        %v2992 = vunpack.c.l.b16 %v1812
        %v2993 = vunpack.c.l.b16 %v1822
        %v2994 = vunpack.c.l.b16 %v1836
        %v2995 = vunpack.c.l.b16 %v1846
        %v2996 = vunpack.c.l.b16 %v1860
        %v2997 = vunpack.c.l.b16 %v1870
        %v2998 = vunpack.c.l.b16 %v1884
        %v2999 = vunpack.c.l.b16 %v1894
        %v3000 = vpack.c.b16 %v2969, %v2968
        %v3001 = vpack.c.b16 %v2971, %v2970
        %v3002 = vpack.c.b16 %v2973, %v2972
        %v3003 = vpack.c.b16 %v2975, %v2974
        %v3004 = vpack.c.b16 %v2977, %v2976
        %v3005 = vpack.c.b16 %v2979, %v2978
        %v3006 = vpack.c.b16 %v2981, %v2980
        %v3007 = vpack.c.b16 %v2983, %v2982
        %v3008 = vpack.c.b16 %v2985, %v2984
        %v3009 = vpack.c.b16 %v2987, %v2986
        %v3010 = vpack.c.b16 %v2989, %v2988
        %v3011 = vpack.c.b16 %v2991, %v2990
        %v3012 = vpack.c.b16 %v2993, %v2992
        %v3013 = vpack.c.b16 %v2995, %v2994
        %v3014 = vpack.c.b16 %v2997, %v2996
        %v3015 = vpack.c.b16 %v2999, %v2998
        %v3016 = vunpack.c.l.b16 %v1962
        %v3017 = vunpack.c.l.b16 %v1965
        %v3018 = vunpack.c.l.b16 %v1969
        %v3019 = vunpack.c.l.b16 %v1972
        %v3020 = vunpack.c.l.b16 %v1976
        %v3021 = vunpack.c.l.b16 %v1979
        %v3022 = vunpack.c.l.b16 %v1983
        %v3023 = vunpack.c.l.b16 %v1986
        %v3024 = vunpack.c.l.b16 %v1990
        %v3025 = vunpack.c.l.b16 %v1993
        %v3026 = vunpack.c.l.b16 %v1997
        %v3027 = vunpack.c.l.b16 %v2000
        %v3028 = vunpack.c.l.b16 %v2004
        %v3029 = vunpack.c.l.b16 %v2007
        %v3030 = vunpack.c.l.b16 %v2011
        %v3031 = vunpack.c.l.b16 %v2014
        %v3032 = vunpack.c.l.b16 %v2018
        %v3033 = vunpack.c.l.b16 %v2021
        %v3034 = vunpack.c.l.b16 %v2025
        %v3035 = vunpack.c.l.b16 %v2028
        %v3036 = vunpack.c.l.b16 %v2032
        %v3037 = vunpack.c.l.b16 %v2035
        %v3038 = vunpack.c.l.b16 %v2039
        %v3039 = vunpack.c.l.b16 %v2042
        %v3040 = vunpack.c.l.b16 %v2046
        %v3041 = vunpack.c.l.b16 %v2049
        %v3042 = vunpack.c.l.b16 %v2053
        %v3043 = vunpack.c.l.b16 %v2056
        %v3044 = vunpack.c.l.b16 %v2060
        %v3045 = vunpack.c.l.b16 %v2063
        %v3046 = vunpack.c.l.b16 %v2067
        %v3047 = vunpack.c.l.b16 %v2070
        %v3048 = vpack.c.b16 %v3017, %v3016
        %v3049 = vpack.c.b16 %v3019, %v3018
        %v3050 = vpack.c.b16 %v3021, %v3020
        %v3051 = vpack.c.b16 %v3023, %v3022
        %v3052 = vpack.c.b16 %v3025, %v3024
        %v3053 = vpack.c.b16 %v3027, %v3026
        %v3054 = vpack.c.b16 %v3029, %v3028
        %v3055 = vpack.c.b16 %v3031, %v3030
        %v3056 = vpack.c.b16 %v3033, %v3032
        %v3057 = vpack.c.b16 %v3035, %v3034
        %v3058 = vpack.c.b16 %v3037, %v3036
        %v3059 = vpack.c.b16 %v3039, %v3038
        %v3060 = vpack.c.b16 %v3041, %v3040
        %v3061 = vpack.c.b16 %v3043, %v3042
        %v3062 = vpack.c.b16 %v3045, %v3044
        %v3063 = vpack.c.b16 %v3047, %v3046
        %3064 = vrot.lane.b32.xlu0 %v3048, 64
        %v3065 = vpop.permute.xlu0 %3064
        %3066 = vrot.lane.b32.xlu0 %v3049, 64
        %v3067 = vpop.permute.xlu0 %3066
        %3068 = vrot.lane.b32.xlu0 %v3050, 64
        %v3069 = vpop.permute.xlu0 %3068
        %3070 = vrot.lane.b32.xlu0 %v3051, 64
        %v3071 = vpop.permute.xlu0 %3070
        %3072 = vrot.lane.b32.xlu0 %v3052, 64
        %v3073 = vpop.permute.xlu0 %3072
        %3074 = vrot.lane.b32.xlu0 %v3053, 64
        %v3075 = vpop.permute.xlu0 %3074
        %3076 = vrot.lane.b32.xlu0 %v3054, 64
        %v3077 = vpop.permute.xlu0 %3076
        %3078 = vrot.lane.b32.xlu0 %v3055, 64
        %v3079 = vpop.permute.xlu0 %3078
        %3080 = vrot.lane.b32.xlu0 %v3056, 64
        %v3081 = vpop.permute.xlu0 %3080
        %3082 = vrot.lane.b32.xlu0 %v3057, 64
        %v3083 = vpop.permute.xlu0 %3082
        %3084 = vrot.lane.b32.xlu0 %v3058, 64
        %v3085 = vpop.permute.xlu0 %3084
        %3086 = vrot.lane.b32.xlu0 %v3059, 64
        %v3087 = vpop.permute.xlu0 %3086
        %3088 = vrot.lane.b32.xlu0 %v3060, 64
        %v3089 = vpop.permute.xlu0 %3088
        %3090 = vrot.lane.b32.xlu0 %v3061, 64
        %v3091 = vpop.permute.xlu0 %3090
        %3092 = vrot.lane.b32.xlu0 %v3062, 64
        %v3093 = vpop.permute.xlu0 %3092
        %3094 = vrot.lane.b32.xlu0 %v3063, 64
        %v3095 = vpop.permute.xlu0 %3094
        %v3112 = vunpack.c.l.b16 %v2072
        %v3113 = vunpack.c.l.b16 %v2073
        %v3114 = vunpack.c.l.b16 %v2074
        %v3115 = vunpack.c.l.b16 %v2075
        %v3116 = vunpack.c.l.b16 %v2076
        %v3117 = vunpack.c.l.b16 %v2077
        %v3118 = vunpack.c.l.b16 %v2078
        %v3119 = vunpack.c.l.b16 %v2079
        %v3120 = vunpack.c.l.b16 %v2080
        %v3121 = vunpack.c.l.b16 %v2081
        %v3122 = vunpack.c.l.b16 %v2082
        %v3123 = vunpack.c.l.b16 %v2083
        %v3124 = vunpack.c.l.b16 %v2084
        %v3125 = vunpack.c.l.b16 %v2085
        %v3126 = vunpack.c.l.b16 %v2086
        %v3127 = vunpack.c.l.b16 %v2087
        %v3128 = vunpack.c.l.b16 %v2088
        %v3129 = vunpack.c.l.b16 %v2089
        %v3130 = vunpack.c.l.b16 %v2090
        %v3131 = vunpack.c.l.b16 %v2091
        %v3132 = vunpack.c.l.b16 %v2092
        %v3133 = vunpack.c.l.b16 %v2093
        %v3134 = vunpack.c.l.b16 %v2094
        %v3135 = vunpack.c.l.b16 %v2095
        %v3136 = vunpack.c.l.b16 %v2096
        %v3137 = vunpack.c.l.b16 %v2097
        %v3138 = vunpack.c.l.b16 %v2098
        %v3139 = vunpack.c.l.b16 %v2099
        %v3140 = vunpack.c.l.b16 %v2100
        %v3141 = vunpack.c.l.b16 %v2101
        %v3142 = vunpack.c.l.b16 %v2102
        %v3143 = vunpack.c.l.b16 %v2103
        %v3144 = vpack.c.b16 %v3113, %v3112
        %v3145 = vpack.c.b16 %v3115, %v3114
        %v3146 = vpack.c.b16 %v3117, %v3116
        %v3147 = vpack.c.b16 %v3119, %v3118
        %v3148 = vpack.c.b16 %v3121, %v3120
        %v3149 = vpack.c.b16 %v3123, %v3122
        %v3150 = vpack.c.b16 %v3125, %v3124
        %v3151 = vpack.c.b16 %v3127, %v3126
        %v3152 = vpack.c.b16 %v3129, %v3128
        %v3153 = vpack.c.b16 %v3131, %v3130
        %v3154 = vpack.c.b16 %v3133, %v3132
        %v3155 = vpack.c.b16 %v3135, %v3134
        %v3156 = vpack.c.b16 %v3137, %v3136
        %v3157 = vpack.c.b16 %v3139, %v3138
        %v3158 = vpack.c.b16 %v3141, %v3140
        %v3159 = vpack.c.b16 %v3143, %v3142
        %v3160 = vunpack.c.l.b16 %v2133
        %v3161 = vunpack.c.l.b16 %v2143
        %v3162 = vunpack.c.l.b16 %v2157
        %v3163 = vunpack.c.l.b16 %v2167
        %v3164 = vunpack.c.l.b16 %v2181
        %v3165 = vunpack.c.l.b16 %v2191
        %v3166 = vunpack.c.l.b16 %v2205
        %v3167 = vunpack.c.l.b16 %v2215
        %v3168 = vunpack.c.l.b16 %v2229
        %v3169 = vunpack.c.l.b16 %v2239
        %v3170 = vunpack.c.l.b16 %v2253
        %v3171 = vunpack.c.l.b16 %v2263
        %v3172 = vunpack.c.l.b16 %v2277
        %v3173 = vunpack.c.l.b16 %v2287
        %v3174 = vunpack.c.l.b16 %v2301
        %v3175 = vunpack.c.l.b16 %v2311
        %v3176 = vunpack.c.l.b16 %v2325
        %v3177 = vunpack.c.l.b16 %v2335
        %v3178 = vunpack.c.l.b16 %v2349
        %v3179 = vunpack.c.l.b16 %v2359
        %v3180 = vunpack.c.l.b16 %v2373
        %v3181 = vunpack.c.l.b16 %v2383
        %v3182 = vunpack.c.l.b16 %v2397
        %v3183 = vunpack.c.l.b16 %v2407
        %v3184 = vunpack.c.l.b16 %v2421
        %v3185 = vunpack.c.l.b16 %v2431
        %v3186 = vunpack.c.l.b16 %v2445
        %v3187 = vunpack.c.l.b16 %v2455
        %v3188 = vunpack.c.l.b16 %v2469
        %v3189 = vunpack.c.l.b16 %v2479
        %v3190 = vunpack.c.l.b16 %v2493
        %v3191 = vunpack.c.l.b16 %v2503
        %v3192 = vpack.c.b16 %v3161, %v3160
        %v3193 = vpack.c.b16 %v3163, %v3162
        %v3194 = vpack.c.b16 %v3165, %v3164
        %v3195 = vpack.c.b16 %v3167, %v3166
        %v3196 = vpack.c.b16 %v3169, %v3168
        %v3197 = vpack.c.b16 %v3171, %v3170
        %v3198 = vpack.c.b16 %v3173, %v3172
        %v3199 = vpack.c.b16 %v3175, %v3174
        %v3200 = vpack.c.b16 %v3177, %v3176
        %v3201 = vpack.c.b16 %v3179, %v3178
        %v3202 = vpack.c.b16 %v3181, %v3180
        %v3203 = vpack.c.b16 %v3183, %v3182
        %v3204 = vpack.c.b16 %v3185, %v3184
        %v3205 = vpack.c.b16 %v3187, %v3186
        %v3206 = vpack.c.b16 %v3189, %v3188
        %v3207 = vpack.c.b16 %v3191, %v3190
        %3208 = vrot.lane.b32.xlu0 %v3192, 64
        %v3209 = vpop.permute.xlu0 %3208
        %3210 = vrot.lane.b32.xlu0 %v3193, 64
        %v3211 = vpop.permute.xlu0 %3210
        %3212 = vrot.lane.b32.xlu0 %v3194, 64
        %v3213 = vpop.permute.xlu0 %3212
        %3214 = vrot.lane.b32.xlu0 %v3195, 64
        %v3215 = vpop.permute.xlu0 %3214
        %3216 = vrot.lane.b32.xlu0 %v3196, 64
        %v3217 = vpop.permute.xlu0 %3216
        %3218 = vrot.lane.b32.xlu0 %v3197, 64
        %v3219 = vpop.permute.xlu0 %3218
        %3220 = vrot.lane.b32.xlu0 %v3198, 64
        %v3221 = vpop.permute.xlu0 %3220
        %3222 = vrot.lane.b32.xlu0 %v3199, 64
        %v3223 = vpop.permute.xlu0 %3222
        %3224 = vrot.lane.b32.xlu0 %v3200, 64
        %v3225 = vpop.permute.xlu0 %3224
        %3226 = vrot.lane.b32.xlu0 %v3201, 64
        %v3227 = vpop.permute.xlu0 %3226
        %3228 = vrot.lane.b32.xlu0 %v3202, 64
        %v3229 = vpop.permute.xlu0 %3228
        %3230 = vrot.lane.b32.xlu0 %v3203, 64
        %v3231 = vpop.permute.xlu0 %3230
        %3232 = vrot.lane.b32.xlu0 %v3204, 64
        %v3233 = vpop.permute.xlu0 %3232
        %3234 = vrot.lane.b32.xlu0 %v3205, 64
        %v3235 = vpop.permute.xlu0 %3234
        %3236 = vrot.lane.b32.xlu0 %v3206, 64
        %v3237 = vpop.permute.xlu0 %3236
        %3238 = vrot.lane.b32.xlu0 %v3207, 64
        %v3239 = vpop.permute.xlu0 %3238
        %v3240 = vunpack.c.l.b16 %v2571
        %v3241 = vunpack.c.l.b16 %v2574
        %v3242 = vunpack.c.l.b16 %v2578
        %v3243 = vunpack.c.l.b16 %v2581
        %v3244 = vunpack.c.l.b16 %v2585
        %v3245 = vunpack.c.l.b16 %v2588
        %v3246 = vunpack.c.l.b16 %v2592
        %v3247 = vunpack.c.l.b16 %v2595
        %v3248 = vunpack.c.l.b16 %v2599
        %v3249 = vunpack.c.l.b16 %v2602
        %v3250 = vunpack.c.l.b16 %v2606
        %v3251 = vunpack.c.l.b16 %v2609
        %v3252 = vunpack.c.l.b16 %v2613
        %v3253 = vunpack.c.l.b16 %v2616
        %v3254 = vunpack.c.l.b16 %v2620
        %v3255 = vunpack.c.l.b16 %v2623
        %v3256 = vunpack.c.l.b16 %v2627
        %v3257 = vunpack.c.l.b16 %v2630
        %v3258 = vunpack.c.l.b16 %v2634
        %v3259 = vunpack.c.l.b16 %v2637
        %v3260 = vunpack.c.l.b16 %v2641
        %v3261 = vunpack.c.l.b16 %v2644
        %v3262 = vunpack.c.l.b16 %v2648
        %v3263 = vunpack.c.l.b16 %v2651
        %v3264 = vunpack.c.l.b16 %v2655
        %v3265 = vunpack.c.l.b16 %v2658
        %v3266 = vunpack.c.l.b16 %v2662
        %v3267 = vunpack.c.l.b16 %v2665
        %v3268 = vunpack.c.l.b16 %v2669
        %v3269 = vunpack.c.l.b16 %v2672
        %v3270 = vunpack.c.l.b16 %v2676
        %v3271 = vunpack.c.l.b16 %v2679
        %v3272 = vpack.c.b16 %v3241, %v3240
        %v3273 = vpack.c.b16 %v3243, %v3242
        %v3274 = vpack.c.b16 %v3245, %v3244
        %v3275 = vpack.c.b16 %v3247, %v3246
        %v3276 = vpack.c.b16 %v3249, %v3248
        %v3277 = vpack.c.b16 %v3251, %v3250
        %v3278 = vpack.c.b16 %v3253, %v3252
        %v3279 = vpack.c.b16 %v3255, %v3254
        %v3280 = vpack.c.b16 %v3257, %v3256
        %v3281 = vpack.c.b16 %v3259, %v3258
        %v3282 = vpack.c.b16 %v3261, %v3260
        %v3283 = vpack.c.b16 %v3263, %v3262
        %v3284 = vpack.c.b16 %v3265, %v3264
        %v3285 = vpack.c.b16 %v3267, %v3266
        %v3286 = vpack.c.b16 %v3269, %v3268
        %v3287 = vpack.c.b16 %v3271, %v3270
        %vm3288 = vcmask 523264
        %v3291 = vsel %vm3288, %v2728, %v2793
        %v3295 = vsel %vm3288, %v2729, %v2795
        %v3299 = vsel %vm3288, %v2730, %v2797
        %v3303 = vsel %vm3288, %v2731, %v2799
        %v3307 = vsel %vm3288, %v2732, %v2801
        %v3311 = vsel %vm3288, %v2733, %v2803
        %v3315 = vsel %vm3288, %v2734, %v2805
        %v3319 = vsel %vm3288, %v2735, %v2807
        %v3323 = vsel %vm3288, %v2736, %v2809
        %v3327 = vsel %vm3288, %v2737, %v2811
        %v3331 = vsel %vm3288, %v2738, %v2813
        %v3335 = vsel %vm3288, %v2739, %v2815
        %v3339 = vsel %vm3288, %v2740, %v2817
        %v3343 = vsel %vm3288, %v2741, %v2819
        %v3347 = vsel %vm3288, %v2742, %v2821
        %v3351 = vsel %vm3288, %v2743, %v2823
        %v3355 = vsel %vm3288, %v2856, %v2937
        %v3359 = vsel %vm3288, %v2857, %v2939
        %v3363 = vsel %vm3288, %v2858, %v2941
        %v3367 = vsel %vm3288, %v2859, %v2943
        %v3371 = vsel %vm3288, %v2860, %v2945
        %v3375 = vsel %vm3288, %v2861, %v2947
        %v3379 = vsel %vm3288, %v2862, %v2949
        %v3383 = vsel %vm3288, %v2863, %v2951
        %v3387 = vsel %vm3288, %v2864, %v2953
        %v3391 = vsel %vm3288, %v2865, %v2955
        %v3395 = vsel %vm3288, %v2866, %v2957
        %v3399 = vsel %vm3288, %v2867, %v2959
        %v3403 = vsel %vm3288, %v2868, %v2961
        %v3407 = vsel %vm3288, %v2869, %v2963
        %v3411 = vsel %vm3288, %v2870, %v2965
        %v3415 = vsel %vm3288, %v2871, %v2967
        %v3419 = vsel %vm3288, %v3000, %v3065
        %v3423 = vsel %vm3288, %v3001, %v3067
        %v3427 = vsel %vm3288, %v3002, %v3069
        %v3431 = vsel %vm3288, %v3003, %v3071
        %v3435 = vsel %vm3288, %v3004, %v3073
        %v3439 = vsel %vm3288, %v3005, %v3075
        %v3443 = vsel %vm3288, %v3006, %v3077
        %v3447 = vsel %vm3288, %v3007, %v3079
        %v3451 = vsel %vm3288, %v3008, %v3081
        %v3455 = vsel %vm3288, %v3009, %v3083
        %v3459 = vsel %vm3288, %v3010, %v3085
        %v3463 = vsel %vm3288, %v3011, %v3087
        %v3467 = vsel %vm3288, %v3012, %v3089
        %v3471 = vsel %vm3288, %v3013, %v3091
        %v3475 = vsel %vm3288, %v3014, %v3093
        %v3479 = vsel %vm3288, %v3015, %v3095
        %v3483 = vsel %vm3288, %v3144, %v3209
        %v3487 = vsel %vm3288, %v3145, %v3211
        %v3491 = vsel %vm3288, %v3146, %v3213
        %v3495 = vsel %vm3288, %v3147, %v3215
        %v3499 = vsel %vm3288, %v3148, %v3217
        %v3503 = vsel %vm3288, %v3149, %v3219
        %v3507 = vsel %vm3288, %v3150, %v3221
        %v3511 = vsel %vm3288, %v3151, %v3223
        %v3515 = vsel %vm3288, %v3152, %v3225
        %v3519 = vsel %vm3288, %v3153, %v3227
        %v3523 = vsel %vm3288, %v3154, %v3229
        %v3527 = vsel %vm3288, %v3155, %v3231
        %v3531 = vsel %vm3288, %v3156, %v3233
        %v3535 = vsel %vm3288, %v3157, %v3235
        %v3539 = vsel %vm3288, %v3158, %v3237
        %v3543 = vsel %vm3288, %v3159, %v3239
        %v3545 = vld [vmem:[%s1] sm:$0xf]
        %v3546 = vld [vmem:[%s1 + $0x4] sm:$0xf]
        %v3547 = vld [vmem:[%s1 + $0x8] sm:$0xf]
        %v3548 = vld [vmem:[%s1 + $0xc] sm:$0xf]
        %v3549 = vld [vmem:[%s1 + $0x10] sm:$0xf]
        %v3550 = vld [vmem:[%s1 + $0x14] sm:$0xf]
        %v3551 = vld [vmem:[%s1 + $0x18] sm:$0xf]
        %v3552 = vld [vmem:[%s1 + $0x1c] sm:$0xf]
        %v3553 = vld [vmem:[%s1 + $0x20] sm:$0xf]
        %v3554 = vld [vmem:[%s1 + $0x24] sm:$0xf]
        %v3555 = vld [vmem:[%s1 + $0x28] sm:$0xf]
        %v3556 = vld [vmem:[%s1 + $0x2c] sm:$0xf]
        %v3557 = vld [vmem:[%s1 + $0x30] sm:$0xf]
        %v3558 = vld [vmem:[%s1 + $0x34] sm:$0xf]
        %v3559 = vld [vmem:[%s1 + $0x38] sm:$0xf]
        %v3560 = vld [vmem:[%s1 + $0x3c] sm:$0xf]
        %v3561 = vld [vmem:[%s1 + $0x40] sm:$0xf]
        %v3562 = vld [vmem:[%s1 + $0x44] sm:$0xf]
        %v3563 = vld [vmem:[%s1 + $0x48] sm:$0xf]
        %v3564 = vld [vmem:[%s1 + $0x4c] sm:$0xf]
        %v3565 = vld [vmem:[%s1 + $0x50] sm:$0xf]
        %v3566 = vld [vmem:[%s1 + $0x54] sm:$0xf]
        %v3567 = vld [vmem:[%s1 + $0x58] sm:$0xf]
        %v3568 = vld [vmem:[%s1 + $0x5c] sm:$0xf]
        %v3569 = vld [vmem:[%s1 + $0x60] sm:$0xf]
        %v3570 = vld [vmem:[%s1 + $0x64] sm:$0xf]
        %v3571 = vld [vmem:[%s1 + $0x68] sm:$0xf]
        %v3572 = vld [vmem:[%s1 + $0x6c] sm:$0xf]
        %v3573 = vld [vmem:[%s1 + $0x70] sm:$0xf]
        %v3574 = vld [vmem:[%s1 + $0x74] sm:$0xf]
        %v3575 = vld [vmem:[%s1 + $0x78] sm:$0xf]
        %v3576 = vld [vmem:[%s1 + $0x7c] sm:$0xf]
        %v3577 = vld [vmem:[%s1 + $0x80] sm:$0xf]
        %v3578 = vld [vmem:[%s1 + $0x84] sm:$0xf]
        %v3579 = vld [vmem:[%s1 + $0x88] sm:$0xf]
        %v3580 = vld [vmem:[%s1 + $0x8c] sm:$0xf]
        %v3581 = vld [vmem:[%s1 + $0x90] sm:$0xf]
        %v3582 = vld [vmem:[%s1 + $0x94] sm:$0xf]
        %v3583 = vld [vmem:[%s1 + $0x98] sm:$0xf]
        %v3584 = vld [vmem:[%s1 + $0x9c] sm:$0xf]
        %v3585 = vld [vmem:[%s1 + $0xa0] sm:$0xf]
        %v3586 = vld [vmem:[%s1 + $0xa4] sm:$0xf]
        %v3587 = vld [vmem:[%s1 + $0xa8] sm:$0xf]
        %v3588 = vld [vmem:[%s1 + $0xac] sm:$0xf]
        %v3589 = vld [vmem:[%s1 + $0xb0] sm:$0xf]
        %v3590 = vld [vmem:[%s1 + $0xb4] sm:$0xf]
        %v3591 = vld [vmem:[%s1 + $0xb8] sm:$0xf]
        %v3592 = vld [vmem:[%s1 + $0xbc] sm:$0xf]
        %v3593 = vld [vmem:[%s1 + $0xc0] sm:$0xf]
        %v3594 = vld [vmem:[%s1 + $0xc4] sm:$0xf]
        %v3595 = vld [vmem:[%s1 + $0xc8] sm:$0xf]
        %v3596 = vld [vmem:[%s1 + $0xcc] sm:$0xf]
        %v3597 = vld [vmem:[%s1 + $0xd0] sm:$0xf]
        %v3598 = vld [vmem:[%s1 + $0xd4] sm:$0xf]
        %v3599 = vld [vmem:[%s1 + $0xd8] sm:$0xf]
        %v3600 = vld [vmem:[%s1 + $0xdc] sm:$0xf]
        %v3601 = vld [vmem:[%s1 + $0xe0] sm:$0xf]
        %v3602 = vld [vmem:[%s1 + $0xe4] sm:$0xf]
        %v3603 = vld [vmem:[%s1 + $0xe8] sm:$0xf]
        %v3604 = vld [vmem:[%s1 + $0xec] sm:$0xf]
        %v3605 = vld [vmem:[%s1 + $0xf0] sm:$0xf]
        %v3606 = vld [vmem:[%s1 + $0xf4] sm:$0xf]
        %v3607 = vld [vmem:[%s1 + $0xf8] sm:$0xf]
        %v3608 = vld [vmem:[%s1 + $0xfc] sm:$0xf]
        %v3609 = vld [vmem:[%s1 + $0x100] sm:$0xf]
        %v3610 = vld [vmem:[%s1 + $0x104] sm:$0xf]
        %v3611 = vld [vmem:[%s1 + $0x108] sm:$0xf]
        %v3612 = vld [vmem:[%s1 + $0x10c] sm:$0xf]
        %v3613 = vld [vmem:[%s1 + $0x110] sm:$0xf]
        %v3614 = vld [vmem:[%s1 + $0x114] sm:$0xf]
        %v3615 = vld [vmem:[%s1 + $0x118] sm:$0xf]
        %v3616 = vld [vmem:[%s1 + $0x11c] sm:$0xf]
        %v3617 = vld [vmem:[%s2] sm:$0x1]
        %v3619 = vlaneseq
        %v3620 = vshrl.u32 %v3619, 7
        %v3621 = vsub.s32 0, %v3620
        %v3622 = vrot.slane %v3617, %v3621
        %v3696 = vunpack.c.l.b16 %v3545
        %v3697 = vunpack.c.l.b16 %v3546
        %v3698 = vunpack.c.l.b16 %v3547
        %v3699 = vunpack.c.l.b16 %v3548
        %v3700 = vunpack.c.l.b16 %v3549
        %v3701 = vunpack.c.l.b16 %v3550
        %v3702 = vunpack.c.l.b16 %v3551
        %v3703 = vunpack.c.l.b16 %v3552
        %v3704 = vunpack.c.l.b16 %v3553
        %v3705 = vunpack.c.l.b16 %v3554
        %v3706 = vunpack.c.l.b16 %v3555
        %v3707 = vunpack.c.l.b16 %v3556
        %v3708 = vunpack.c.l.b16 %v3557
        %v3709 = vunpack.c.l.b16 %v3558
        %v3710 = vunpack.c.l.b16 %v3559
        %v3711 = vunpack.c.l.b16 %v3560
        %v3712 = vunpack.c.l.b16 %v3561
        %v3713 = vunpack.c.l.b16 %v3562
        %v3714 = vunpack.c.l.b16 %v3563
        %v3715 = vunpack.c.l.b16 %v3564
        %v3716 = vunpack.c.l.b16 %v3565
        %v3717 = vunpack.c.l.b16 %v3566
        %v3718 = vunpack.c.l.b16 %v3567
        %v3719 = vunpack.c.l.b16 %v3568
        %v3720 = vunpack.c.l.b16 %v3569
        %v3721 = vunpack.c.l.b16 %v3570
        %v3722 = vunpack.c.l.b16 %v3571
        %v3723 = vunpack.c.l.b16 %v3572
        %v3724 = vunpack.c.l.b16 %v3573
        %v3725 = vunpack.c.l.b16 %v3574
        %v3726 = vunpack.c.l.b16 %v3575
        %v3727 = vunpack.c.l.b16 %v3576
        %v3728 = vunpack.c.l.b16 %v3577
        %v3729 = vunpack.c.l.b16 %v3578
        %v3730 = vunpack.c.l.b16 %v3579
        %v3731 = vunpack.c.l.b16 %v3580
        %v3732 = vunpack.c.l.b16 %v3581
        %v3733 = vunpack.c.l.b16 %v3582
        %v3734 = vunpack.c.l.b16 %v3583
        %v3735 = vunpack.c.l.b16 %v3584
        %v3736 = vunpack.c.l.b16 %v3585
        %v3737 = vunpack.c.l.b16 %v3586
        %v3738 = vunpack.c.l.b16 %v3587
        %v3739 = vunpack.c.l.b16 %v3588
        %v3740 = vunpack.c.l.b16 %v3589
        %v3741 = vunpack.c.l.b16 %v3590
        %v3742 = vunpack.c.l.b16 %v3591
        %v3743 = vunpack.c.l.b16 %v3592
        %v3744 = vunpack.c.l.b16 %v3593
        %v3745 = vunpack.c.l.b16 %v3594
        %v3746 = vunpack.c.l.b16 %v3595
        %v3747 = vunpack.c.l.b16 %v3596
        %v3748 = vunpack.c.l.b16 %v3597
        %v3749 = vunpack.c.l.b16 %v3598
        %v3750 = vunpack.c.l.b16 %v3599
        %v3751 = vunpack.c.l.b16 %v3600
        %v3752 = vunpack.c.l.b16 %v3601
        %v3753 = vunpack.c.l.b16 %v3602
        %v3754 = vunpack.c.l.b16 %v3603
        %v3755 = vunpack.c.l.b16 %v3604
        %v3756 = vunpack.c.l.b16 %v3605
        %v3757 = vunpack.c.l.b16 %v3606
        %v3758 = vunpack.c.l.b16 %v3607
        %v3759 = vunpack.c.l.b16 %v3608
        %v3760 = vunpack.c.l.b16 %v3609
        %v3761 = vunpack.c.l.b16 %v3610
        %v3762 = vunpack.c.l.b16 %v3611
        %v3763 = vunpack.c.l.b16 %v3612
        %v3764 = vunpack.c.l.b16 %v3613
        %v3765 = vunpack.c.l.b16 %v3614
        %v3766 = vunpack.c.l.b16 %v3615
        %v3767 = vunpack.c.l.b16 %v3616
        %v3768 = vpack.c.b16 %v3697, %v3696
        %v3769 = vpack.c.b16 %v3699, %v3698
        %v3770 = vpack.c.b16 %v3701, %v3700
        %v3771 = vpack.c.b16 %v3703, %v3702
        %v3772 = vpack.c.b16 %v3705, %v3704
        %v3773 = vpack.c.b16 %v3707, %v3706
        %v3774 = vpack.c.b16 %v3709, %v3708
        %v3775 = vpack.c.b16 %v3711, %v3710
        %v3776 = vpack.c.b16 %v3713, %v3712
        %v3777 = vpack.c.b16 %v3715, %v3714
        %v3778 = vpack.c.b16 %v3717, %v3716
        %v3779 = vpack.c.b16 %v3719, %v3718
        %v3780 = vpack.c.b16 %v3721, %v3720
        %v3781 = vpack.c.b16 %v3723, %v3722
        %v3782 = vpack.c.b16 %v3725, %v3724
        %v3783 = vpack.c.b16 %v3727, %v3726
        %v3784 = vpack.c.b16 %v3729, %v3728
        %v3785 = vpack.c.b16 %v3731, %v3730
        %v3786 = vpack.c.b16 %v3733, %v3732
        %v3787 = vpack.c.b16 %v3735, %v3734
        %v3788 = vpack.c.b16 %v3737, %v3736
        %v3789 = vpack.c.b16 %v3739, %v3738
        %v3790 = vpack.c.b16 %v3741, %v3740
        %v3791 = vpack.c.b16 %v3743, %v3742
        %v3792 = vpack.c.b16 %v3745, %v3744
        %v3793 = vpack.c.b16 %v3747, %v3746
        %v3794 = vpack.c.b16 %v3749, %v3748
        %v3795 = vpack.c.b16 %v3751, %v3750
        %v3796 = vpack.c.b16 %v3753, %v3752
        %v3797 = vpack.c.b16 %v3755, %v3754
        %v3798 = vpack.c.b16 %v3757, %v3756
        %v3799 = vpack.c.b16 %v3759, %v3758
        %v3800 = vpack.c.b16 %v3761, %v3760
        %v3801 = vpack.c.b16 %v3763, %v3762
        %v3802 = vpack.c.b16 %v3765, %v3764
        %v3803 = vpack.c.b16 %v3767, %v3766
        %v3841 = vsel %vm3288, %v3272, 0
        %v3844 = vsel %vm3288, %v3273, 0
        %v3847 = vsel %vm3288, %v3274, 0
        %v3850 = vsel %vm3288, %v3275, 0
        %v3853 = vsel %vm3288, %v3276, 0
        %v3856 = vsel %vm3288, %v3277, 0
        %v3859 = vsel %vm3288, %v3278, 0
        %v3862 = vsel %vm3288, %v3279, 0
        %v3865 = vsel %vm3288, %v3280, 0
        %v3868 = vsel %vm3288, %v3281, 0
        %v3871 = vsel %vm3288, %v3282, 0
        %v3874 = vsel %vm3288, %v3283, 0
        %v3877 = vsel %vm3288, %v3284, 0
        %v3880 = vsel %vm3288, %v3285, 0
        %v3883 = vsel %vm3288, %v3286, 0
        %v3886 = vsel %vm3288, %v3287, 0
        %3888 = vmatprep.subr.bf16.mxu0 0
        %3889 = vmatpush1.bf16.msra.mxu0 %v3768
        %3890 = vmatprep.subr.bf16.mxu0 0
        %3891 = vmatpush1.bf16.msra.mxu0 %v3769
        %3892 = vmatprep.subr.bf16.mxu0 0
        %3893 = vmatpush1.bf16.msra.mxu0 %v3770
        %3894 = vmatprep.subr.bf16.mxu0 0
        %3895 = vmatpush1.bf16.msra.mxu0 %v3771
        %3896 = vmatprep.subr.bf16.mxu0 0
        %3897 = vmatpush1.bf16.msra.mxu0 %v3772
        %3898 = vmatprep.subr.bf16.mxu0 0
        %3899 = vmatpush1.bf16.msra.mxu0 %v3773
        %3900 = vmatprep.subr.bf16.mxu0 0
        %3901 = vmatpush1.bf16.msra.mxu0 %v3774
        %3902 = vmatprep.subr.bf16.mxu0 0
        %3903 = vmatpush1.bf16.msra.mxu0 %v3775
        %3904 = vmatprep.subr.bf16.mxu0 0
        %3905 = vmatpush1.bf16.msra.mxu0 %v3776
        %3906 = vmatprep.subr.bf16.mxu0 0
        %3907 = vmatpush1.bf16.msra.mxu0 %v3777
        %3908 = vmatprep.subr.bf16.mxu0 0
        %3909 = vmatpush1.bf16.msra.mxu0 %v3778
        %3910 = vmatprep.subr.bf16.mxu0 0
        %3911 = vmatpush1.bf16.msra.mxu0 %v3779
        %3912 = vmatprep.subr.bf16.mxu0 0
        %3913 = vmatpush1.bf16.msra.mxu0 %v3780
        %3914 = vmatprep.subr.bf16.mxu0 0
        %3915 = vmatpush1.bf16.msra.mxu0 %v3781
        %3916 = vmatprep.subr.bf16.mxu0 0
        %3917 = vmatpush1.bf16.msra.mxu0 %v3782
        %3918 = vmatprep.subr.bf16.mxu0 0
        %3919 = vmatpush1.bf16.msra.mxu0 %v3783
        %3920 = vmatprep.mubr.bf16.mxu0 %v3355
        %3921 = vmatmul.mubr.bf16.gmra.mrb[0].mxu0 %v3291
        %v3922 = vpop.f32.mrb[0].mxu0
        %v3923 = vadd.f32 %v3622, %v3922
        %v3924 = vpop.f32.mrb[0].mxu0
        %v3925 = vpop.f32.mrb[0].mxu0
        %v3926 = vadd.f32 %v3622, %v3925
        %v3927 = vpop.f32.mrb[0].mxu0
        %3928 = vmatprep.mubr.bf16.mxu0 %v3359
        %3929 = vmatmul.mubr.bf16.gmra.mrb[0].mxu0 %v3295
        %v3930 = vpop.f32.mrb[0].mxu0
        %v3931 = vadd.f32 %v3622, %v3930
        %v3932 = vpop.f32.mrb[0].mxu0
        %v3933 = vpop.f32.mrb[0].mxu0
        %v3934 = vadd.f32 %v3622, %v3933
        %v3935 = vpop.f32.mrb[0].mxu0
        %3936 = vmatprep.mubr.bf16.mxu0 %v3363
        %3937 = vmatmul.mubr.bf16.gmra.mrb[0].mxu0 %v3299
        %v3938 = vpop.f32.mrb[0].mxu0
        %v3939 = vadd.f32 %v3622, %v3938
        %v3940 = vpop.f32.mrb[0].mxu0
        %v3941 = vpop.f32.mrb[0].mxu0
        %v3942 = vadd.f32 %v3622, %v3941
        %v3943 = vpop.f32.mrb[0].mxu0
        %3944 = vmatprep.mubr.bf16.mxu0 %v3367
        %3945 = vmatmul.mubr.bf16.gmra.mrb[0].mxu0 %v3303
        %v3946 = vpop.f32.mrb[0].mxu0
        %v3947 = vadd.f32 %v3622, %v3946
        %v3948 = vpop.f32.mrb[0].mxu0
        %v3949 = vpop.f32.mrb[0].mxu0
        %v3950 = vadd.f32 %v3622, %v3949
        %v3951 = vpop.f32.mrb[0].mxu0
        %3952 = vmatprep.mubr.bf16.mxu0 %v3371
        %3953 = vmatmul.mubr.bf16.gmra.mrb[0].mxu0 %v3307
        %v3954 = vpop.f32.mrb[0].mxu0
        %v3955 = vadd.f32 %v3622, %v3954
        %v3956 = vpop.f32.mrb[0].mxu0
        %v3957 = vpop.f32.mrb[0].mxu0
        %v3958 = vadd.f32 %v3622, %v3957
        %v3959 = vpop.f32.mrb[0].mxu0
        %3960 = vmatprep.mubr.bf16.mxu0 %v3375
        %3961 = vmatmul.mubr.bf16.gmra.mrb[0].mxu0 %v3311
        %v3962 = vpop.f32.mrb[0].mxu0
        %v3963 = vadd.f32 %v3622, %v3962
        %v3964 = vpop.f32.mrb[0].mxu0
        %v3965 = vpop.f32.mrb[0].mxu0
        %v3966 = vadd.f32 %v3622, %v3965
        %v3967 = vpop.f32.mrb[0].mxu0
        %3968 = vmatprep.mubr.bf16.mxu0 %v3379
        %3969 = vmatmul.mubr.bf16.gmra.mrb[0].mxu0 %v3315
        %v3970 = vpop.f32.mrb[0].mxu0
        %v3971 = vadd.f32 %v3622, %v3970
        %v3972 = vpop.f32.mrb[0].mxu0
        %v3973 = vpop.f32.mrb[0].mxu0
        %v3974 = vadd.f32 %v3622, %v3973
        %v3975 = vpop.f32.mrb[0].mxu0
        %3976 = vmatprep.mubr.bf16.mxu0 %v3383
        %3977 = vmatmul.mubr.bf16.gmra.mrb[0].mxu0 %v3319
        %v3978 = vpop.f32.mrb[0].mxu0
        %v3979 = vadd.f32 %v3622, %v3978
        %v3980 = vpop.f32.mrb[0].mxu0
        %v3981 = vpop.f32.mrb[0].mxu0
        %v3982 = vadd.f32 %v3622, %v3981
        %v3983 = vpop.f32.mrb[0].mxu0
        %3984 = vmatprep.mubr.bf16.mxu0 %v3387
        %3985 = vmatmul.mubr.bf16.gmra.mrb[0].mxu0 %v3323
        %v3986 = vpop.f32.mrb[0].mxu0
        %v3987 = vadd.f32 %v3622, %v3986
        %v3988 = vpop.f32.mrb[0].mxu0
        %v3989 = vpop.f32.mrb[0].mxu0
        %v3990 = vadd.f32 %v3622, %v3989
        %v3991 = vpop.f32.mrb[0].mxu0
        %3992 = vmatprep.mubr.bf16.mxu0 %v3391
        %3993 = vmatmul.mubr.bf16.gmra.mrb[0].mxu0 %v3327
        %v3994 = vpop.f32.mrb[0].mxu0
        %v3995 = vadd.f32 %v3622, %v3994
        %v3996 = vpop.f32.mrb[0].mxu0
        %v3997 = vpop.f32.mrb[0].mxu0
        %v3998 = vadd.f32 %v3622, %v3997
        %v3999 = vpop.f32.mrb[0].mxu0
        %4000 = vmatprep.mubr.bf16.mxu0 %v3395
        %4001 = vmatmul.mubr.bf16.gmra.mrb[0].mxu0 %v3331
        %v4002 = vpop.f32.mrb[0].mxu0
        %v4003 = vadd.f32 %v3622, %v4002
        %v4004 = vpop.f32.mrb[0].mxu0
        %v4005 = vpop.f32.mrb[0].mxu0
        %v4006 = vadd.f32 %v3622, %v4005
        %v4007 = vpop.f32.mrb[0].mxu0
        %4008 = vmatprep.mubr.bf16.mxu0 %v3399
        %4009 = vmatmul.mubr.bf16.gmra.mrb[0].mxu0 %v3335
        %v4010 = vpop.f32.mrb[0].mxu0
        %v4011 = vadd.f32 %v3622, %v4010
        %v4012 = vpop.f32.mrb[0].mxu0
        %v4013 = vpop.f32.mrb[0].mxu0
        %v4014 = vadd.f32 %v3622, %v4013
        %v4015 = vpop.f32.mrb[0].mxu0
        %4016 = vmatprep.mubr.bf16.mxu0 %v3403
        %4017 = vmatmul.mubr.bf16.gmra.mrb[0].mxu0 %v3339
        %v4018 = vpop.f32.mrb[0].mxu0
        %v4019 = vadd.f32 %v3622, %v4018
        %v4020 = vpop.f32.mrb[0].mxu0
        %v4021 = vpop.f32.mrb[0].mxu0
        %v4022 = vadd.f32 %v3622, %v4021
        %v4023 = vpop.f32.mrb[0].mxu0
        %4024 = vmatprep.mubr.bf16.mxu0 %v3407
        %4025 = vmatmul.mubr.bf16.gmra.mrb[0].mxu0 %v3343
        %v4026 = vpop.f32.mrb[0].mxu0
        %v4027 = vadd.f32 %v3622, %v4026
        %v4028 = vpop.f32.mrb[0].mxu0
        %v4029 = vpop.f32.mrb[0].mxu0
        %v4030 = vadd.f32 %v3622, %v4029
        %v4031 = vpop.f32.mrb[0].mxu0
        %4032 = vmatprep.mubr.bf16.mxu0 %v3411
        %4033 = vmatmul.mubr.bf16.gmra.mrb[0].mxu0 %v3347
        %v4034 = vpop.f32.mrb[0].mxu0
        %v4035 = vadd.f32 %v3622, %v4034
        %v4036 = vpop.f32.mrb[0].mxu0
        %v4037 = vpop.f32.mrb[0].mxu0
        %v4038 = vadd.f32 %v3622, %v4037
        %v4039 = vpop.f32.mrb[0].mxu0
        %4040 = vmatprep.mubr.bf16.mxu0 %v3415
        %4041 = vmatmul.mubr.bf16.gmra.mrb[0].mxu0 %v3351
        %v4042 = vpop.f32.mrb[0].mxu0
        %v4043 = vadd.f32 %v3622, %v4042
        %v4044 = vpop.f32.mrb[0].mxu0
        %v4045 = vpop.f32.mrb[0].mxu0
        %v4046 = vadd.f32 %v3622, %v4045
        %v4047 = vpop.f32.mrb[0].mxu0
        %4048 = vdwg.mxu0
        %4049 = vmatprep.subr.bf16.mxu0 0
        %4050 = vmatpush1.bf16.msra.mxu0 %v3784
        %4051 = vmatprep.subr.bf16.mxu0 0
        %4052 = vmatpush1.bf16.msra.mxu0 %v3785
        %4053 = vmatprep.subr.bf16.mxu0 0
        %4054 = vmatpush1.bf16.msra.mxu0 %v3786
        %4055 = vmatprep.subr.bf16.mxu0 0
        %4056 = vmatpush1.bf16.msra.mxu0 %v3787
        %4057 = vmatprep.subr.bf16.mxu0 0
        %4058 = vmatpush1.bf16.msra.mxu0 %v3788
        %4059 = vmatprep.subr.bf16.mxu0 0
        %4060 = vmatpush1.bf16.msra.mxu0 %v3789
        %4061 = vmatprep.subr.bf16.mxu0 0
        %4062 = vmatpush1.bf16.msra.mxu0 %v3790
        %4063 = vmatprep.subr.bf16.mxu0 0
        %4064 = vmatpush1.bf16.msra.mxu0 %v3791
        %4065 = vmatprep.subr.bf16.mxu0 0
        %4066 = vmatpush1.bf16.msra.mxu0 %v3792
        %4067 = vmatprep.subr.bf16.mxu0 0
        %4068 = vmatpush1.bf16.msra.mxu0 %v3793
        %4069 = vmatprep.subr.bf16.mxu0 0
        %4070 = vmatpush1.bf16.msra.mxu0 %v3794
        %4071 = vmatprep.subr.bf16.mxu0 0
        %4072 = vmatpush1.bf16.msra.mxu0 %v3795
        %4073 = vmatprep.subr.bf16.mxu0 0
        %4074 = vmatpush1.bf16.msra.mxu0 %v3796
        %4075 = vmatprep.subr.bf16.mxu0 0
        %4076 = vmatpush1.bf16.msra.mxu0 %v3797
        %4077 = vmatprep.subr.bf16.mxu0 0
        %4078 = vmatpush1.bf16.msra.mxu0 %v3798
        %4079 = vmatprep.subr.bf16.mxu0 0
        %4080 = vmatpush1.bf16.msra.mxu0 %v3799
        %4081 = vmatprep.mubr.bf16.mxu0 %v3483
        %4082 = vmatmul.mubr.bf16.gmra.mrb[0].mxu0 %v3419
        %v4083 = vpop.f32.mrb[0].mxu0
        %v4084 = vadd.f32 %v3923, %v4083
        %v4085 = vpop.f32.mrb[0].mxu0
        %v4086 = vpop.f32.mrb[0].mxu0
        %v4087 = vadd.f32 %v3926, %v4086
        %v4088 = vpop.f32.mrb[0].mxu0
        %4089 = vmatprep.mubr.bf16.mxu0 %v3487
        %4090 = vmatmul.mubr.bf16.gmra.mrb[0].mxu0 %v3423
        %v4091 = vpop.f32.mrb[0].mxu0
        %v4092 = vadd.f32 %v3931, %v4091
        %v4093 = vpop.f32.mrb[0].mxu0
        %v4094 = vpop.f32.mrb[0].mxu0
        %v4095 = vadd.f32 %v3934, %v4094
        %v4096 = vpop.f32.mrb[0].mxu0
        %4097 = vmatprep.mubr.bf16.mxu0 %v3491
        %4098 = vmatmul.mubr.bf16.gmra.mrb[0].mxu0 %v3427
        %v4099 = vpop.f32.mrb[0].mxu0
        %v4100 = vadd.f32 %v3939, %v4099
        %v4101 = vpop.f32.mrb[0].mxu0
        %v4102 = vpop.f32.mrb[0].mxu0
        %v4103 = vadd.f32 %v3942, %v4102
        %v4104 = vpop.f32.mrb[0].mxu0
        %4105 = vmatprep.mubr.bf16.mxu0 %v3495
        %4106 = vmatmul.mubr.bf16.gmra.mrb[0].mxu0 %v3431
        %v4107 = vpop.f32.mrb[0].mxu0
        %v4108 = vadd.f32 %v3947, %v4107
        %v4109 = vpop.f32.mrb[0].mxu0
        %v4110 = vpop.f32.mrb[0].mxu0
        %v4111 = vadd.f32 %v3950, %v4110
        %v4112 = vpop.f32.mrb[0].mxu0
        %4113 = vmatprep.mubr.bf16.mxu0 %v3499
        %4114 = vmatmul.mubr.bf16.gmra.mrb[0].mxu0 %v3435
        %v4115 = vpop.f32.mrb[0].mxu0
        %v4116 = vadd.f32 %v3955, %v4115
        %v4117 = vpop.f32.mrb[0].mxu0
        %v4118 = vpop.f32.mrb[0].mxu0
        %v4119 = vadd.f32 %v3958, %v4118
        %v4120 = vpop.f32.mrb[0].mxu0
        %4121 = vmatprep.mubr.bf16.mxu0 %v3503
        %4122 = vmatmul.mubr.bf16.gmra.mrb[0].mxu0 %v3439
        %v4123 = vpop.f32.mrb[0].mxu0
        %v4124 = vadd.f32 %v3963, %v4123
        %v4125 = vpop.f32.mrb[0].mxu0
        %v4126 = vpop.f32.mrb[0].mxu0
        %v4127 = vadd.f32 %v3966, %v4126
        %v4128 = vpop.f32.mrb[0].mxu0
        %4129 = vmatprep.mubr.bf16.mxu0 %v3507
        %4130 = vmatmul.mubr.bf16.gmra.mrb[0].mxu0 %v3443
        %v4131 = vpop.f32.mrb[0].mxu0
        %v4132 = vadd.f32 %v3971, %v4131
        %v4133 = vpop.f32.mrb[0].mxu0
        %v4134 = vpop.f32.mrb[0].mxu0
        %v4135 = vadd.f32 %v3974, %v4134
        %v4136 = vpop.f32.mrb[0].mxu0
        %4137 = vmatprep.mubr.bf16.mxu0 %v3511
        %4138 = vmatmul.mubr.bf16.gmra.mrb[0].mxu0 %v3447
        %v4139 = vpop.f32.mrb[0].mxu0
        %v4140 = vadd.f32 %v3979, %v4139
        %v4141 = vpop.f32.mrb[0].mxu0
        %v4142 = vpop.f32.mrb[0].mxu0
        %v4143 = vadd.f32 %v3982, %v4142
        %v4144 = vpop.f32.mrb[0].mxu0
        %4145 = vmatprep.mubr.bf16.mxu0 %v3515
        %4146 = vmatmul.mubr.bf16.gmra.mrb[0].mxu0 %v3451
        %v4147 = vpop.f32.mrb[0].mxu0
        %v4148 = vadd.f32 %v3987, %v4147
        %v4149 = vpop.f32.mrb[0].mxu0
        %v4150 = vpop.f32.mrb[0].mxu0
        %v4151 = vadd.f32 %v3990, %v4150
        %v4152 = vpop.f32.mrb[0].mxu0
        %4153 = vmatprep.mubr.bf16.mxu0 %v3519
        %4154 = vmatmul.mubr.bf16.gmra.mrb[0].mxu0 %v3455
        %v4155 = vpop.f32.mrb[0].mxu0
        %v4156 = vadd.f32 %v3995, %v4155
        %v4157 = vpop.f32.mrb[0].mxu0
        %v4158 = vpop.f32.mrb[0].mxu0
        %v4159 = vadd.f32 %v3998, %v4158
        %v4160 = vpop.f32.mrb[0].mxu0
        %4161 = vmatprep.mubr.bf16.mxu0 %v3523
        %4162 = vmatmul.mubr.bf16.gmra.mrb[0].mxu0 %v3459
        %v4163 = vpop.f32.mrb[0].mxu0
        %v4164 = vadd.f32 %v4003, %v4163
        %v4165 = vpop.f32.mrb[0].mxu0
        %v4166 = vpop.f32.mrb[0].mxu0
        %v4167 = vadd.f32 %v4006, %v4166
        %v4168 = vpop.f32.mrb[0].mxu0
        %4169 = vmatprep.mubr.bf16.mxu0 %v3527
        %4170 = vmatmul.mubr.bf16.gmra.mrb[0].mxu0 %v3463
        %v4171 = vpop.f32.mrb[0].mxu0
        %v4172 = vadd.f32 %v4011, %v4171
        %v4173 = vpop.f32.mrb[0].mxu0
        %v4174 = vpop.f32.mrb[0].mxu0
        %v4175 = vadd.f32 %v4014, %v4174
        %v4176 = vpop.f32.mrb[0].mxu0
        %4177 = vmatprep.mubr.bf16.mxu0 %v3531
        %4178 = vmatmul.mubr.bf16.gmra.mrb[0].mxu0 %v3467
        %v4179 = vpop.f32.mrb[0].mxu0
        %v4180 = vadd.f32 %v4019, %v4179
        %v4181 = vpop.f32.mrb[0].mxu0
        %v4182 = vpop.f32.mrb[0].mxu0
        %v4183 = vadd.f32 %v4022, %v4182
        %v4184 = vpop.f32.mrb[0].mxu0
        %4185 = vmatprep.mubr.bf16.mxu0 %v3535
        %4186 = vmatmul.mubr.bf16.gmra.mrb[0].mxu0 %v3471
        %v4187 = vpop.f32.mrb[0].mxu0
        %v4188 = vadd.f32 %v4027, %v4187
        %v4189 = vpop.f32.mrb[0].mxu0
        %v4190 = vpop.f32.mrb[0].mxu0
        %v4191 = vadd.f32 %v4030, %v4190
        %v4192 = vpop.f32.mrb[0].mxu0
        %4193 = vmatprep.mubr.bf16.mxu0 %v3539
        %4194 = vmatmul.mubr.bf16.gmra.mrb[0].mxu0 %v3475
        %v4195 = vpop.f32.mrb[0].mxu0
        %v4196 = vadd.f32 %v4035, %v4195
        %v4197 = vpop.f32.mrb[0].mxu0
        %v4198 = vpop.f32.mrb[0].mxu0
        %v4199 = vadd.f32 %v4038, %v4198
        %v4200 = vpop.f32.mrb[0].mxu0
        %4201 = vmatprep.mubr.bf16.mxu0 %v3543
        %4202 = vmatmul.mubr.bf16.gmra.mrb[0].mxu0 %v3479
        %v4203 = vpop.f32.mrb[0].mxu0
        %v4204 = vadd.f32 %v4043, %v4203
        %v4205 = vpop.f32.mrb[0].mxu0
        %v4206 = vpop.f32.mrb[0].mxu0
        %v4207 = vadd.f32 %v4046, %v4206
        %v4208 = vpop.f32.mrb[0].mxu0
        %4209 = vdwg.mxu0
        %4210 = vmatprep.subr.bf16.mxu0 0
        %4211 = vmatpush1.bf16.msra.mxu0 %v3800
        %4212 = vmatprep.subr.bf16.mxu0 0
        %4213 = vmatpush1.bf16.msra.mxu0 %v3801
        %4214 = vmatprep.subr.bf16.mxu0 0
        %4215 = vmatpush1.bf16.msra.mxu0 %v3802
        %4216 = vmatprep.subr.bf16.mxu0 0
        %4217 = vmatpush1.bf16.msra.mxu0 %v3803
        %4218 = vmatprep.subr.bf16.mxu0 0
        %4219 = vmatpush1.bf16.msra.mxu0 0
        %4220 = vmatprep.subr.bf16.mxu0 0
        %4221 = vmatpush1.bf16.msra.mxu0 0
        %4222 = vmatprep.subr.bf16.mxu0 0
        %4223 = vmatpush1.bf16.msra.mxu0 0
        %4224 = vmatprep.subr.bf16.mxu0 0
        %4225 = vmatpush1.bf16.msra.mxu0 0
        %4226 = vmatprep.subr.bf16.mxu0 0
        %4227 = vmatpush1.bf16.msra.mxu0 0
        %4228 = vmatprep.subr.bf16.mxu0 0
        %4229 = vmatpush1.bf16.msra.mxu0 0
        %4230 = vmatprep.subr.bf16.mxu0 0
        %4231 = vmatpush1.bf16.msra.mxu0 0
        %4232 = vmatprep.subr.bf16.mxu0 0
        %4233 = vmatpush1.bf16.msra.mxu0 0
        %4234 = vmatprep.subr.bf16.mxu0 0
        %4235 = vmatpush1.bf16.msra.mxu0 0
        %4236 = vmatprep.subr.bf16.mxu0 0
        %4237 = vmatpush1.bf16.msra.mxu0 0
        %4238 = vmatprep.subr.bf16.mxu0 0
        %4239 = vmatpush1.bf16.msra.mxu0 0
        %4240 = vmatprep.subr.bf16.mxu0 0
        %4241 = vmatpush1.bf16.msra.mxu0 0
        %4242 = vmatprep.mubr.bf16.mxu0 0
        %4243 = vmatmul.mubr.bf16.gmra.mrb[0].mxu0 %v3841
        %v4244 = vpop.f32.mrb[0].mxu0
        %v4245 = vadd.f32 %v4084, %v4244
        %v4246 = vpop.f32.mrb[0].mxu0
        %v4247 = vpop.f32.mrb[0].mxu0
        %v4248 = vadd.f32 %v4087, %v4247
        %v4249 = vpop.f32.mrb[0].mxu0
        %4250 = vmatprep.mubr.bf16.mxu0 0
        %4251 = vmatmul.mubr.bf16.gmra.mrb[0].mxu0 %v3844
        %v4252 = vpop.f32.mrb[0].mxu0
        %v4253 = vadd.f32 %v4092, %v4252
        %v4254 = vpop.f32.mrb[0].mxu0
        %v4255 = vpop.f32.mrb[0].mxu0
        %v4256 = vadd.f32 %v4095, %v4255
        %v4257 = vpop.f32.mrb[0].mxu0
        %4258 = vmatprep.mubr.bf16.mxu0 0
        %4259 = vmatmul.mubr.bf16.gmra.mrb[0].mxu0 %v3847
        %v4260 = vpop.f32.mrb[0].mxu0
        %v4261 = vadd.f32 %v4100, %v4260
        %v4262 = vpop.f32.mrb[0].mxu0
        %v4263 = vpop.f32.mrb[0].mxu0
        %v4264 = vadd.f32 %v4103, %v4263
        %v4265 = vpop.f32.mrb[0].mxu0
        %4266 = vmatprep.mubr.bf16.mxu0 0
        %4267 = vmatmul.mubr.bf16.gmra.mrb[0].mxu0 %v3850
        %v4268 = vpop.f32.mrb[0].mxu0
        %v4269 = vadd.f32 %v4108, %v4268
        %v4270 = vpop.f32.mrb[0].mxu0
        %v4271 = vpop.f32.mrb[0].mxu0
        %v4272 = vadd.f32 %v4111, %v4271
        %v4273 = vpop.f32.mrb[0].mxu0
        %4274 = vmatprep.mubr.bf16.mxu0 0
        %4275 = vmatmul.mubr.bf16.gmra.mrb[0].mxu0 %v3853
        %v4276 = vpop.f32.mrb[0].mxu0
        %v4277 = vadd.f32 %v4116, %v4276
        %v4278 = vpop.f32.mrb[0].mxu0
        %v4279 = vpop.f32.mrb[0].mxu0
        %v4280 = vadd.f32 %v4119, %v4279
        %v4281 = vpop.f32.mrb[0].mxu0
        %4282 = vmatprep.mubr.bf16.mxu0 0
        %4283 = vmatmul.mubr.bf16.gmra.mrb[0].mxu0 %v3856
        %v4284 = vpop.f32.mrb[0].mxu0
        %v4285 = vadd.f32 %v4124, %v4284
        %v4286 = vpop.f32.mrb[0].mxu0
        %v4287 = vpop.f32.mrb[0].mxu0
        %v4288 = vadd.f32 %v4127, %v4287
        %v4289 = vpop.f32.mrb[0].mxu0
        %4290 = vmatprep.mubr.bf16.mxu0 0
        %4291 = vmatmul.mubr.bf16.gmra.mrb[0].mxu0 %v3859
        %v4292 = vpop.f32.mrb[0].mxu0
        %v4293 = vadd.f32 %v4132, %v4292
        %v4294 = vpop.f32.mrb[0].mxu0
        %v4295 = vpop.f32.mrb[0].mxu0
        %v4296 = vadd.f32 %v4135, %v4295
        %v4297 = vpop.f32.mrb[0].mxu0
        %4298 = vmatprep.mubr.bf16.mxu0 0
        %4299 = vmatmul.mubr.bf16.gmra.mrb[0].mxu0 %v3862
        %v4300 = vpop.f32.mrb[0].mxu0
        %v4301 = vadd.f32 %v4140, %v4300
        %v4302 = vpop.f32.mrb[0].mxu0
        %v4303 = vpop.f32.mrb[0].mxu0
        %v4304 = vadd.f32 %v4143, %v4303
        %v4305 = vpop.f32.mrb[0].mxu0
        %4306 = vmatprep.mubr.bf16.mxu0 0
        %4307 = vmatmul.mubr.bf16.gmra.mrb[0].mxu0 %v3865
        %v4308 = vpop.f32.mrb[0].mxu0
        %v4309 = vadd.f32 %v4148, %v4308
        %v4310 = vpop.f32.mrb[0].mxu0
        %v4311 = vpop.f32.mrb[0].mxu0
        %v4312 = vadd.f32 %v4151, %v4311
        %v4313 = vpop.f32.mrb[0].mxu0
        %4314 = vmatprep.mubr.bf16.mxu0 0
        %4315 = vmatmul.mubr.bf16.gmra.mrb[0].mxu0 %v3868
        %v4316 = vpop.f32.mrb[0].mxu0
        %v4317 = vadd.f32 %v4156, %v4316
        %v4318 = vpop.f32.mrb[0].mxu0
        %v4319 = vpop.f32.mrb[0].mxu0
        %v4320 = vadd.f32 %v4159, %v4319
        %v4321 = vpop.f32.mrb[0].mxu0
        %4322 = vmatprep.mubr.bf16.mxu0 0
        %4323 = vmatmul.mubr.bf16.gmra.mrb[0].mxu0 %v3871
        %v4324 = vpop.f32.mrb[0].mxu0
        %v4325 = vadd.f32 %v4164, %v4324
        %v4326 = vpop.f32.mrb[0].mxu0
        %v4327 = vpop.f32.mrb[0].mxu0
        %v4328 = vadd.f32 %v4167, %v4327
        %v4329 = vpop.f32.mrb[0].mxu0
        %4330 = vmatprep.mubr.bf16.mxu0 0
        %4331 = vmatmul.mubr.bf16.gmra.mrb[0].mxu0 %v3874
        %v4332 = vpop.f32.mrb[0].mxu0
        %v4333 = vadd.f32 %v4172, %v4332
        %v4334 = vpop.f32.mrb[0].mxu0
        %v4335 = vpop.f32.mrb[0].mxu0
        %v4336 = vadd.f32 %v4175, %v4335
        %v4337 = vpop.f32.mrb[0].mxu0
        %4338 = vmatprep.mubr.bf16.mxu0 0
        %4339 = vmatmul.mubr.bf16.gmra.mrb[0].mxu0 %v3877
        %v4340 = vpop.f32.mrb[0].mxu0
        %v4341 = vadd.f32 %v4180, %v4340
        %v4342 = vpop.f32.mrb[0].mxu0
        %v4343 = vpop.f32.mrb[0].mxu0
        %v4344 = vadd.f32 %v4183, %v4343
        %v4345 = vpop.f32.mrb[0].mxu0
        %4346 = vmatprep.mubr.bf16.mxu0 0
        %4347 = vmatmul.mubr.bf16.gmra.mrb[0].mxu0 %v3880
        %v4348 = vpop.f32.mrb[0].mxu0
        %v4349 = vadd.f32 %v4188, %v4348
        %v4350 = vpop.f32.mrb[0].mxu0
        %v4351 = vpop.f32.mrb[0].mxu0
        %v4352 = vadd.f32 %v4191, %v4351
        %v4353 = vpop.f32.mrb[0].mxu0
        %4354 = vmatprep.mubr.bf16.mxu0 0
        %4355 = vmatmul.mubr.bf16.gmra.mrb[0].mxu0 %v3883
        %v4356 = vpop.f32.mrb[0].mxu0
        %v4357 = vadd.f32 %v4196, %v4356
        %v4358 = vpop.f32.mrb[0].mxu0
        %v4359 = vpop.f32.mrb[0].mxu0
        %v4360 = vadd.f32 %v4199, %v4359
        %v4361 = vpop.f32.mrb[0].mxu0
        %4362 = vmatprep.mubr.bf16.mxu0 0
        %4363 = vmatmul.mubr.bf16.gmra.mrb[0].mxu0 %v3886
        %v4364 = vpop.f32.mrb[0].mxu0
        %v4365 = vadd.f32 %v4204, %v4364
        %v4366 = vpop.f32.mrb[0].mxu0
        %v4367 = vpop.f32.mrb[0].mxu0
        %v4368 = vadd.f32 %v4207, %v4367
        %v4369 = vpop.f32.mrb[0].mxu0
        %4370 = vdwg.mxu0
        %v4371 = vmax.f32 %v4245, 0.0
        %v4372 = vmax.f32 %v4248, 0.0
        %v4373 = vmax.f32 %v4253, 0.0
        %v4374 = vmax.f32 %v4256, 0.0
        %v4375 = vmax.f32 %v4261, 0.0
        %v4376 = vmax.f32 %v4264, 0.0
        %v4377 = vmax.f32 %v4269, 0.0
        %v4378 = vmax.f32 %v4272, 0.0
        %v4379 = vmax.f32 %v4277, 0.0
        %v4380 = vmax.f32 %v4280, 0.0
        %v4381 = vmax.f32 %v4285, 0.0
        %v4382 = vmax.f32 %v4288, 0.0
        %v4383 = vmax.f32 %v4293, 0.0
        %v4384 = vmax.f32 %v4296, 0.0
        %v4385 = vmax.f32 %v4301, 0.0
        %v4386 = vmax.f32 %v4304, 0.0
        %v4387 = vmax.f32 %v4309, 0.0
        %v4388 = vmax.f32 %v4312, 0.0
        %v4389 = vmax.f32 %v4317, 0.0
        %v4390 = vmax.f32 %v4320, 0.0
        %v4391 = vmax.f32 %v4325, 0.0
        %v4392 = vmax.f32 %v4328, 0.0
        %v4393 = vmax.f32 %v4333, 0.0
        %v4394 = vmax.f32 %v4336, 0.0
        %v4395 = vmax.f32 %v4341, 0.0
        %v4396 = vmax.f32 %v4344, 0.0
        %v4397 = vmax.f32 %v4349, 0.0
        %v4398 = vmax.f32 %v4352, 0.0
        %v4399 = vmax.f32 %v4357, 0.0
        %v4400 = vmax.f32 %v4360, 0.0
        %v4401 = vmax.f32 %v4365, 0.0
        %v4402 = vmax.f32 %v4368, 0.0
        %4403 = vst.msk [vmem:[#allocation3] sm:$0xf] %vm224, 0
        %4404 = vst.msk [vmem:[#allocation3 + $0x4] sm:$0xf] %vm224, 0
        %4405 = vst.msk [vmem:[#allocation3 + $0x8] sm:$0x1] %vm227, 0
        %4406 = vst.msk [vmem:[#allocation3 + $0xc] sm:$0xf] %vm224, 0
        %4407 = vst.msk [vmem:[#allocation3 + $0x10] sm:$0xf] %vm224, 0
        %4408 = vst.msk [vmem:[#allocation3 + $0x14] sm:$0x1] %vm227, 0
        %4409 = vst.msk [vmem:[#allocation3 + $0x18] sm:$0xf] %vm224, 0
        %4410 = vst.msk [vmem:[#allocation3 + $0x1c] sm:$0xf] %vm224, 0
        %4411 = vst.msk [vmem:[#allocation3 + $0x20] sm:$0x1] %vm227, 0
        %4412 = vst.msk [vmem:[#allocation3 + $0x24] sm:$0xf] %vm224, 0
        %4413 = vst.msk [vmem:[#allocation3 + $0x28] sm:$0xf] %vm224, 0
        %4414 = vst.msk [vmem:[#allocation3 + $0x2c] sm:$0x1] %vm227, 0
        %4415 = vst.msk [vmem:[#allocation3 + $0x30] sm:$0xf] %vm224, 0
        %4416 = vst.msk [vmem:[#allocation3 + $0x34] sm:$0xf] %vm224, 0
        %4417 = vst.msk [vmem:[#allocation3 + $0x38] sm:$0x1] %vm227, 0
        %4418 = vst.msk [vmem:[#allocation3 + $0x3c] sm:$0xf] %vm224, 0
        %4419 = vst.msk [vmem:[#allocation3 + $0x40] sm:$0xf] %vm224, 0
        %4420 = vst.msk [vmem:[#allocation3 + $0x44] sm:$0x1] %vm227, 0
        %4421 = vst.msk [vmem:[#allocation3 + $0x48] sm:$0xf] %vm224, 0
        %4422 = vst.msk [vmem:[#allocation3 + $0x4c] sm:$0xf] %vm224, 0
        %4423 = vst.msk [vmem:[#allocation3 + $0x50] sm:$0x1] %vm227, 0
        %4424 = vst.msk [vmem:[#allocation3 + $0x54] sm:$0xf] %vm224, 0
        %4425 = vst.msk [vmem:[#allocation3 + $0x58] sm:$0xf] %vm224, 0
        %4426 = vst.msk [vmem:[#allocation3 + $0x5c] sm:$0x1] %vm227, 0
        %4427 = vst.msk [vmem:[#allocation3 + $0x60] sm:$0xf] %vm224, 0
        %4428 = vst.msk [vmem:[#allocation3 + $0x64] sm:$0xf] %vm224, 0
        %4429 = vst.msk [vmem:[#allocation3 + $0x68] sm:$0x1] %vm227, 0
        %4430 = vst.msk [vmem:[#allocation3 + $0x6c] sm:$0xf] %vm224, 0
        %4431 = vst.msk [vmem:[#allocation3 + $0x70] sm:$0xf] %vm224, 0
        %4432 = vst.msk [vmem:[#allocation3 + $0x74] sm:$0x1] %vm227, 0
        %4433 = vst.msk [vmem:[#allocation3 + $0x78] sm:$0xf] %vm224, 0
        %4434 = vst.msk [vmem:[#allocation3 + $0x7c] sm:$0xf] %vm224, 0
        %4435 = vst.msk [vmem:[#allocation3 + $0x80] sm:$0x1] %vm227, 0
        %4436 = vst.msk [vmem:[#allocation3 + $0x84] sm:$0xf] %vm224, 0
        %4437 = vst.msk [vmem:[#allocation3 + $0x88] sm:$0xf] %vm224, 0
        %4438 = vst.msk [vmem:[#allocation3 + $0x8c] sm:$0x1] %vm227, 0
        %4439 = vst.msk [vmem:[#allocation3 + $0x90] sm:$0xf] %vm224, 0
        %4440 = vst.msk [vmem:[#allocation3 + $0x94] sm:$0xf] %vm224, 0
        %4441 = vst.msk [vmem:[#allocation3 + $0x98] sm:$0x1] %vm227, 0
        %4442 = vst.msk [vmem:[#allocation3 + $0x9c] sm:$0xf] %vm224, 0
        %4443 = vst.msk [vmem:[#allocation3 + $0xa0] sm:$0xf] %vm224, 0
        %4444 = vst.msk [vmem:[#allocation3 + $0xa4] sm:$0x1] %vm227, 0
        %4445 = vst.msk [vmem:[#allocation3 + $0xa8] sm:$0xf] %vm224, 0
        %4446 = vst.msk [vmem:[#allocation3 + $0xac] sm:$0xf] %vm224, 0
        %4447 = vst.msk [vmem:[#allocation3 + $0xb0] sm:$0x1] %vm227, 0
        %4448 = vst.msk [vmem:[#allocation3 + $0xb4] sm:$0xf] %vm224, 0
        %4449 = vst.msk [vmem:[#allocation3 + $0xb8] sm:$0xf] %vm224, 0
        %4450 = vst.msk [vmem:[#allocation3 + $0xbc] sm:$0x1] %vm227, 0
        %4451 = vst.msk [vmem:[#allocation3 + $0xc0] sm:$0xf] %vm224, 0
        %4452 = vst.msk [vmem:[#allocation3 + $0xc4] sm:$0xf] %vm224, 0
        %4453 = vst.msk [vmem:[#allocation3 + $0xc8] sm:$0x1] %vm227, 0
        %4454 = vst.msk [vmem:[#allocation3 + $0xcc] sm:$0xf] %vm224, 0
        %4455 = vst.msk [vmem:[#allocation3 + $0xd0] sm:$0xf] %vm224, 0
        %4456 = vst.msk [vmem:[#allocation3 + $0xd4] sm:$0x1] %vm227, 0
        %v4457 = vpack.c.bf16 %v4372, %v4371
        %v4458 = vpack.c.bf16 %v4374, %v4373
        %v4459 = vpack.c.bf16 %v4376, %v4375
        %v4460 = vpack.c.bf16 %v4378, %v4377
        %v4461 = vpack.c.bf16 %v4380, %v4379
        %v4462 = vpack.c.bf16 %v4382, %v4381
        %v4463 = vpack.c.bf16 %v4384, %v4383
        %v4464 = vpack.c.bf16 %v4386, %v4385
        %v4465 = vpack.c.bf16 %v4388, %v4387
        %v4466 = vpack.c.bf16 %v4390, %v4389
        %v4467 = vpack.c.bf16 %v4392, %v4391
        %v4468 = vpack.c.bf16 %v4394, %v4393
        %v4469 = vpack.c.bf16 %v4396, %v4395
        %v4470 = vpack.c.bf16 %v4398, %v4397
        %v4471 = vpack.c.bf16 %v4400, %v4399
        %v4472 = vpack.c.bf16 %v4402, %v4401
        %v4489 = vunpack.c.l.b16 %v4457
        %v4490 = vunpack.c.h.b16 %v4457
        %v4491 = vunpack.c.l.b16 %v4458
        %v4492 = vunpack.c.h.b16 %v4458
        %v4493 = vunpack.c.l.b16 %v4459
        %v4494 = vunpack.c.h.b16 %v4459
        %v4495 = vunpack.c.l.b16 %v4460
        %v4496 = vunpack.c.h.b16 %v4460
        %v4497 = vunpack.c.l.b16 %v4461
        %v4498 = vunpack.c.h.b16 %v4461
        %v4499 = vunpack.c.l.b16 %v4462
        %v4500 = vunpack.c.h.b16 %v4462
        %v4501 = vunpack.c.l.b16 %v4463
        %v4502 = vunpack.c.h.b16 %v4463
        %v4503 = vunpack.c.l.b16 %v4464
        %v4504 = vunpack.c.h.b16 %v4464
        %v4505 = vunpack.c.l.b16 %v4465
        %v4506 = vunpack.c.h.b16 %v4465
        %v4507 = vunpack.c.l.b16 %v4466
        %v4508 = vunpack.c.h.b16 %v4466
        %v4509 = vunpack.c.l.b16 %v4467
        %v4510 = vunpack.c.h.b16 %v4467
        %v4511 = vunpack.c.l.b16 %v4468
        %v4512 = vunpack.c.h.b16 %v4468
        %v4513 = vunpack.c.l.b16 %v4469
        %v4514 = vunpack.c.h.b16 %v4469
        %v4515 = vunpack.c.l.b16 %v4470
        %v4516 = vunpack.c.h.b16 %v4470
        %v4517 = vunpack.c.l.b16 %v4471
        %v4518 = vunpack.c.h.b16 %v4471
        %v4519 = vunpack.c.l.b16 %v4472
        %v4520 = vunpack.c.h.b16 %v4472
        %v4521 = vpack.c.b16 %v4489, %v4489
        %v4522 = vpack.c.b16 %v4490, %v4490
        %v4523 = vpack.c.b16 %v4491, %v4491
        %v4524 = vpack.c.b16 %v4492, %v4492
        %v4525 = vpack.c.b16 %v4493, %v4493
        %v4526 = vpack.c.b16 %v4494, %v4494
        %v4527 = vpack.c.b16 %v4495, %v4495
        %v4528 = vpack.c.b16 %v4496, %v4496
        %v4529 = vpack.c.b16 %v4497, %v4497
        %v4530 = vpack.c.b16 %v4498, %v4498
        %v4531 = vpack.c.b16 %v4499, %v4499
        %v4532 = vpack.c.b16 %v4500, %v4500
        %v4533 = vpack.c.b16 %v4501, %v4501
        %v4534 = vpack.c.b16 %v4502, %v4502
        %v4535 = vpack.c.b16 %v4503, %v4503
        %v4536 = vpack.c.b16 %v4504, %v4504
        %v4537 = vpack.c.b16 %v4505, %v4505
        %v4538 = vpack.c.b16 %v4506, %v4506
        %v4539 = vpack.c.b16 %v4507, %v4507
        %v4540 = vpack.c.b16 %v4508, %v4508
        %v4541 = vpack.c.b16 %v4509, %v4509
        %v4542 = vpack.c.b16 %v4510, %v4510
        %v4543 = vpack.c.b16 %v4511, %v4511
        %v4544 = vpack.c.b16 %v4512, %v4512
        %v4545 = vpack.c.b16 %v4513, %v4513
        %v4546 = vpack.c.b16 %v4514, %v4514
        %v4547 = vpack.c.b16 %v4515, %v4515
        %v4548 = vpack.c.b16 %v4516, %v4516
        %v4549 = vpack.c.b16 %v4517, %v4517
        %v4550 = vpack.c.b16 %v4518, %v4518
        %v4551 = vpack.c.b16 %v4519, %v4519
        %v4552 = vpack.c.b16 %v4520, %v4520
        %v4554 = vshrl.u32 %v4521, 16
        %v4556 = vrot.slane %v4554, 7
        %v4557 = vshll.u32 %v4521, 16
        %v4559 = vor.u32 %v4556, %v4557
        %v4560 = vrot.slane %v4556, 4
        %v4562 = vshrl.u32 %v4522, 16
        %v4564 = vrot.slane %v4562, 7
        %v4565 = vshll.u32 %v4522, 16
        %v4567 = vor.u32 %v4564, %v4565
        %v4568 = vsel %vm410, %v4560, %v4567
        %v4569 = vrot.slane %v4564, 4
        %v4571 = vshrl.u32 %v4523, 16
        %v4573 = vrot.slane %v4571, 7
        %v4574 = vshll.u32 %v4523, 16
        %v4576 = vor.u32 %v4573, %v4574
        %v4577 = vrot.slane %v4573, 4
        %v4579 = vshrl.u32 %v4524, 16
        %v4581 = vrot.slane %v4579, 7
        %v4582 = vshll.u32 %v4524, 16
        %v4584 = vor.u32 %v4581, %v4582
        %v4585 = vsel %vm410, %v4577, %v4584
        %v4586 = vrot.slane %v4581, 4
        %v4588 = vshrl.u32 %v4525, 16
        %v4590 = vrot.slane %v4588, 7
        %v4591 = vshll.u32 %v4525, 16
        %v4593 = vor.u32 %v4590, %v4591
        %v4594 = vrot.slane %v4590, 4
        %v4596 = vshrl.u32 %v4526, 16
        %v4598 = vrot.slane %v4596, 7
        %v4599 = vshll.u32 %v4526, 16
        %v4601 = vor.u32 %v4598, %v4599
        %v4602 = vsel %vm410, %v4594, %v4601
        %v4603 = vrot.slane %v4598, 4
        %v4605 = vshrl.u32 %v4527, 16
        %v4607 = vrot.slane %v4605, 7
        %v4608 = vshll.u32 %v4527, 16
        %v4610 = vor.u32 %v4607, %v4608
        %v4611 = vrot.slane %v4607, 4
        %v4613 = vshrl.u32 %v4528, 16
        %v4615 = vrot.slane %v4613, 7
        %v4616 = vshll.u32 %v4528, 16
        %v4618 = vor.u32 %v4615, %v4616
        %v4619 = vsel %vm410, %v4611, %v4618
        %v4620 = vrot.slane %v4615, 4
        %v4622 = vshrl.u32 %v4529, 16
        %v4624 = vrot.slane %v4622, 7
        %v4625 = vshll.u32 %v4529, 16
        %v4627 = vor.u32 %v4624, %v4625
        %v4628 = vrot.slane %v4624, 4
        %v4630 = vshrl.u32 %v4530, 16
        %v4632 = vrot.slane %v4630, 7
        %v4633 = vshll.u32 %v4530, 16
        %v4635 = vor.u32 %v4632, %v4633
        %v4636 = vsel %vm410, %v4628, %v4635
        %v4637 = vrot.slane %v4632, 4
        %v4639 = vshrl.u32 %v4531, 16
        %v4641 = vrot.slane %v4639, 7
        %v4642 = vshll.u32 %v4531, 16
        %v4644 = vor.u32 %v4641, %v4642
        %v4645 = vrot.slane %v4641, 4
        %v4647 = vshrl.u32 %v4532, 16
        %v4649 = vrot.slane %v4647, 7
        %v4650 = vshll.u32 %v4532, 16
        %v4652 = vor.u32 %v4649, %v4650
        %v4653 = vsel %vm410, %v4645, %v4652
        %v4654 = vrot.slane %v4649, 4
        %v4656 = vshrl.u32 %v4533, 16
        %v4658 = vrot.slane %v4656, 7
        %v4659 = vshll.u32 %v4533, 16
        %v4661 = vor.u32 %v4658, %v4659
        %v4662 = vrot.slane %v4658, 4
        %v4664 = vshrl.u32 %v4534, 16
        %v4666 = vrot.slane %v4664, 7
        %v4667 = vshll.u32 %v4534, 16
        %v4669 = vor.u32 %v4666, %v4667
        %v4670 = vsel %vm410, %v4662, %v4669
        %v4671 = vrot.slane %v4666, 4
        %v4673 = vshrl.u32 %v4535, 16
        %v4675 = vrot.slane %v4673, 7
        %v4676 = vshll.u32 %v4535, 16
        %v4678 = vor.u32 %v4675, %v4676
        %v4679 = vrot.slane %v4675, 4
        %v4681 = vshrl.u32 %v4536, 16
        %v4683 = vrot.slane %v4681, 7
        %v4684 = vshll.u32 %v4536, 16
        %v4686 = vor.u32 %v4683, %v4684
        %v4687 = vsel %vm410, %v4679, %v4686
        %v4688 = vrot.slane %v4683, 4
        %v4690 = vshrl.u32 %v4537, 16
        %v4692 = vrot.slane %v4690, 7
        %v4693 = vshll.u32 %v4537, 16
        %v4695 = vor.u32 %v4692, %v4693
        %v4696 = vrot.slane %v4692, 4
        %v4698 = vshrl.u32 %v4538, 16
        %v4700 = vrot.slane %v4698, 7
        %v4701 = vshll.u32 %v4538, 16
        %v4703 = vor.u32 %v4700, %v4701
        %v4704 = vsel %vm410, %v4696, %v4703
        %v4705 = vrot.slane %v4700, 4
        %v4707 = vshrl.u32 %v4539, 16
        %v4709 = vrot.slane %v4707, 7
        %v4710 = vshll.u32 %v4539, 16
        %v4712 = vor.u32 %v4709, %v4710
        %v4713 = vrot.slane %v4709, 4
        %v4715 = vshrl.u32 %v4540, 16
        %v4717 = vrot.slane %v4715, 7
        %v4718 = vshll.u32 %v4540, 16
        %v4720 = vor.u32 %v4717, %v4718
        %v4721 = vsel %vm410, %v4713, %v4720
        %v4722 = vrot.slane %v4717, 4
        %v4724 = vshrl.u32 %v4541, 16
        %v4726 = vrot.slane %v4724, 7
        %v4727 = vshll.u32 %v4541, 16
        %v4729 = vor.u32 %v4726, %v4727
        %v4730 = vrot.slane %v4726, 4
        %v4732 = vshrl.u32 %v4542, 16
        %v4734 = vrot.slane %v4732, 7
        %v4735 = vshll.u32 %v4542, 16
        %v4737 = vor.u32 %v4734, %v4735
        %v4738 = vsel %vm410, %v4730, %v4737
        %v4739 = vrot.slane %v4734, 4
        %v4741 = vshrl.u32 %v4543, 16
        %v4743 = vrot.slane %v4741, 7
        %v4744 = vshll.u32 %v4543, 16
        %v4746 = vor.u32 %v4743, %v4744
        %v4747 = vrot.slane %v4743, 4
        %v4749 = vshrl.u32 %v4544, 16
        %v4751 = vrot.slane %v4749, 7
        %v4752 = vshll.u32 %v4544, 16
        %v4754 = vor.u32 %v4751, %v4752
        %v4755 = vsel %vm410, %v4747, %v4754
        %v4756 = vrot.slane %v4751, 4
        %v4758 = vshrl.u32 %v4545, 16
        %v4760 = vrot.slane %v4758, 7
        %v4761 = vshll.u32 %v4545, 16
        %v4763 = vor.u32 %v4760, %v4761
        %v4764 = vrot.slane %v4760, 4
        %v4766 = vshrl.u32 %v4546, 16
        %v4768 = vrot.slane %v4766, 7
        %v4769 = vshll.u32 %v4546, 16
        %v4771 = vor.u32 %v4768, %v4769
        %v4772 = vsel %vm410, %v4764, %v4771
        %v4773 = vrot.slane %v4768, 4
        %v4775 = vshrl.u32 %v4547, 16
        %v4777 = vrot.slane %v4775, 7
        %v4778 = vshll.u32 %v4547, 16
        %v4780 = vor.u32 %v4777, %v4778
        %v4781 = vrot.slane %v4777, 4
        %v4783 = vshrl.u32 %v4548, 16
        %v4785 = vrot.slane %v4783, 7
        %v4786 = vshll.u32 %v4548, 16
        %v4788 = vor.u32 %v4785, %v4786
        %v4789 = vsel %vm410, %v4781, %v4788
        %v4790 = vrot.slane %v4785, 4
        %v4792 = vshrl.u32 %v4549, 16
        %v4794 = vrot.slane %v4792, 7
        %v4795 = vshll.u32 %v4549, 16
        %v4797 = vor.u32 %v4794, %v4795
        %v4798 = vrot.slane %v4794, 4
        %v4800 = vshrl.u32 %v4550, 16
        %v4802 = vrot.slane %v4800, 7
        %v4803 = vshll.u32 %v4550, 16
        %v4805 = vor.u32 %v4802, %v4803
        %v4806 = vsel %vm410, %v4798, %v4805
        %v4807 = vrot.slane %v4802, 4
        %v4809 = vshrl.u32 %v4551, 16
        %v4811 = vrot.slane %v4809, 7
        %v4812 = vshll.u32 %v4551, 16
        %v4814 = vor.u32 %v4811, %v4812
        %v4815 = vrot.slane %v4811, 4
        %v4817 = vshrl.u32 %v4552, 16
        %v4819 = vrot.slane %v4817, 7
        %v4820 = vshll.u32 %v4552, 16
        %v4822 = vor.u32 %v4819, %v4820
        %v4823 = vsel %vm410, %v4815, %v4822
        %v4824 = vrot.slane %v4819, 4
        %s4873 = scalar_lea.vmem [#allocation3], 12
        %v4874 = vld [vmem:[%s4873] sm:$0xf]
        %v4875 = vsel %vm734, %v4559, %v4874
        %4876 = vst [vmem:[%s4873] sm:$0xf] %v4875
        %4877 = vst.msk [vmem:[%s4873 + $0x4] sm:$0xf] %vm224, %v4568
        %v4878 = vld [vmem:[%s4873 + $0x8] sm:$0x1]
        %v4879 = vsel %vm740, %v4569, %v4878
        %4880 = vst [vmem:[%s4873 + $0x8] sm:$0x1] %v4879
        %v4881 = vld [vmem:[%s4873 + $0xc] sm:$0xf]
        %v4882 = vsel %vm734, %v4576, %v4881
        %4883 = vst [vmem:[%s4873 + $0xc] sm:$0xf] %v4882
        %4884 = vst.msk [vmem:[%s4873 + $0x10] sm:$0xf] %vm224, %v4585
        %v4885 = vld [vmem:[%s4873 + $0x14] sm:$0x1]
        %v4886 = vsel %vm740, %v4586, %v4885
        %4887 = vst [vmem:[%s4873 + $0x14] sm:$0x1] %v4886
        %v4888 = vld [vmem:[%s4873 + $0x18] sm:$0xf]
        %v4889 = vsel %vm734, %v4593, %v4888
        %4890 = vst [vmem:[%s4873 + $0x18] sm:$0xf] %v4889
        %4891 = vst.msk [vmem:[%s4873 + $0x1c] sm:$0xf] %vm224, %v4602
        %v4892 = vld [vmem:[%s4873 + $0x20] sm:$0x1]
        %v4893 = vsel %vm740, %v4603, %v4892
        %4894 = vst [vmem:[%s4873 + $0x20] sm:$0x1] %v4893
        %v4895 = vld [vmem:[%s4873 + $0x24] sm:$0xf]
        %v4896 = vsel %vm734, %v4610, %v4895
        %4897 = vst [vmem:[%s4873 + $0x24] sm:$0xf] %v4896
        %4898 = vst.msk [vmem:[%s4873 + $0x28] sm:$0xf] %vm224, %v4619
        %v4899 = vld [vmem:[%s4873 + $0x2c] sm:$0x1]
        %v4900 = vsel %vm740, %v4620, %v4899
        %4901 = vst [vmem:[%s4873 + $0x2c] sm:$0x1] %v4900
        %v4902 = vld [vmem:[%s4873 + $0x30] sm:$0xf]
        %v4903 = vsel %vm734, %v4627, %v4902
        %4904 = vst [vmem:[%s4873 + $0x30] sm:$0xf] %v4903
        %4905 = vst.msk [vmem:[%s4873 + $0x34] sm:$0xf] %vm224, %v4636
        %v4906 = vld [vmem:[%s4873 + $0x38] sm:$0x1]
        %v4907 = vsel %vm740, %v4637, %v4906
        %4908 = vst [vmem:[%s4873 + $0x38] sm:$0x1] %v4907
        %v4909 = vld [vmem:[%s4873 + $0x3c] sm:$0xf]
        %v4910 = vsel %vm734, %v4644, %v4909
        %4911 = vst [vmem:[%s4873 + $0x3c] sm:$0xf] %v4910
        %4912 = vst.msk [vmem:[%s4873 + $0x40] sm:$0xf] %vm224, %v4653
        %v4913 = vld [vmem:[%s4873 + $0x44] sm:$0x1]
        %v4914 = vsel %vm740, %v4654, %v4913
        %4915 = vst [vmem:[%s4873 + $0x44] sm:$0x1] %v4914
        %v4916 = vld [vmem:[%s4873 + $0x48] sm:$0xf]
        %v4917 = vsel %vm734, %v4661, %v4916
        %4918 = vst [vmem:[%s4873 + $0x48] sm:$0xf] %v4917
        %4919 = vst.msk [vmem:[%s4873 + $0x4c] sm:$0xf] %vm224, %v4670
        %v4920 = vld [vmem:[%s4873 + $0x50] sm:$0x1]
        %v4921 = vsel %vm740, %v4671, %v4920
        %4922 = vst [vmem:[%s4873 + $0x50] sm:$0x1] %v4921
        %v4923 = vld [vmem:[%s4873 + $0x54] sm:$0xf]
        %v4924 = vsel %vm734, %v4678, %v4923
        %4925 = vst [vmem:[%s4873 + $0x54] sm:$0xf] %v4924
        %4926 = vst.msk [vmem:[%s4873 + $0x58] sm:$0xf] %vm224, %v4687
        %v4927 = vld [vmem:[%s4873 + $0x5c] sm:$0x1]
        %v4928 = vsel %vm740, %v4688, %v4927
        %4929 = vst [vmem:[%s4873 + $0x5c] sm:$0x1] %v4928
        %v4930 = vld [vmem:[%s4873 + $0x60] sm:$0xf]
        %v4931 = vsel %vm734, %v4695, %v4930
        %4932 = vst [vmem:[%s4873 + $0x60] sm:$0xf] %v4931
        %4933 = vst.msk [vmem:[%s4873 + $0x64] sm:$0xf] %vm224, %v4704
        %v4934 = vld [vmem:[%s4873 + $0x68] sm:$0x1]
        %v4935 = vsel %vm740, %v4705, %v4934
        %4936 = vst [vmem:[%s4873 + $0x68] sm:$0x1] %v4935
        %v4937 = vld [vmem:[%s4873 + $0x6c] sm:$0xf]
        %v4938 = vsel %vm734, %v4712, %v4937
        %4939 = vst [vmem:[%s4873 + $0x6c] sm:$0xf] %v4938
        %4940 = vst.msk [vmem:[%s4873 + $0x70] sm:$0xf] %vm224, %v4721
        %v4941 = vld [vmem:[%s4873 + $0x74] sm:$0x1]
        %v4942 = vsel %vm740, %v4722, %v4941
        %4943 = vst [vmem:[%s4873 + $0x74] sm:$0x1] %v4942
        %v4944 = vld [vmem:[%s4873 + $0x78] sm:$0xf]
        %v4945 = vsel %vm734, %v4729, %v4944
        %4946 = vst [vmem:[%s4873 + $0x78] sm:$0xf] %v4945
        %4947 = vst.msk [vmem:[%s4873 + $0x7c] sm:$0xf] %vm224, %v4738
        %v4948 = vld [vmem:[%s4873 + $0x80] sm:$0x1]
        %v4949 = vsel %vm740, %v4739, %v4948
        %4950 = vst [vmem:[%s4873 + $0x80] sm:$0x1] %v4949
        %v4951 = vld [vmem:[%s4873 + $0x84] sm:$0xf]
        %v4952 = vsel %vm734, %v4746, %v4951
        %4953 = vst [vmem:[%s4873 + $0x84] sm:$0xf] %v4952
        %4954 = vst.msk [vmem:[%s4873 + $0x88] sm:$0xf] %vm224, %v4755
        %v4955 = vld [vmem:[%s4873 + $0x8c] sm:$0x1]
        %v4956 = vsel %vm740, %v4756, %v4955
        %4957 = vst [vmem:[%s4873 + $0x8c] sm:$0x1] %v4956
        %v4958 = vld [vmem:[%s4873 + $0x90] sm:$0xf]
        %v4959 = vsel %vm734, %v4763, %v4958
        %4960 = vst [vmem:[%s4873 + $0x90] sm:$0xf] %v4959
        %4961 = vst.msk [vmem:[%s4873 + $0x94] sm:$0xf] %vm224, %v4772
        %v4962 = vld [vmem:[%s4873 + $0x98] sm:$0x1]
        %v4963 = vsel %vm740, %v4773, %v4962
        %4964 = vst [vmem:[%s4873 + $0x98] sm:$0x1] %v4963
        %v4965 = vld [vmem:[%s4873 + $0x9c] sm:$0xf]
        %v4966 = vsel %vm734, %v4780, %v4965
        %4967 = vst [vmem:[%s4873 + $0x9c] sm:$0xf] %v4966
        %4968 = vst.msk [vmem:[%s4873 + $0xa0] sm:$0xf] %vm224, %v4789
        %v4969 = vld [vmem:[%s4873 + $0xa4] sm:$0x1]
        %v4970 = vsel %vm740, %v4790, %v4969
        %4971 = vst [vmem:[%s4873 + $0xa4] sm:$0x1] %v4970
        %v4972 = vld [vmem:[%s4873 + $0xa8] sm:$0xf]
        %v4973 = vsel %vm734, %v4797, %v4972
        %4974 = vst [vmem:[%s4873 + $0xa8] sm:$0xf] %v4973
        %4975 = vst.msk [vmem:[%s4873 + $0xac] sm:$0xf] %vm224, %v4806
        %v4976 = vld [vmem:[%s4873 + $0xb0] sm:$0x1]
        %v4977 = vsel %vm740, %v4807, %v4976
        %4978 = vst [vmem:[%s4873 + $0xb0] sm:$0x1] %v4977
        %v4979 = vld [vmem:[%s4873 + $0xb4] sm:$0xf]
        %v4980 = vsel %vm734, %v4814, %v4979
        %4981 = vst [vmem:[%s4873 + $0xb4] sm:$0xf] %v4980
        %4982 = vst.msk [vmem:[%s4873 + $0xb8] sm:$0xf] %vm224, %v4823
        %v4983 = vld [vmem:[%s4873 + $0xbc] sm:$0x1]
        %v4984 = vsel %vm740, %v4824, %v4983
        %4985 = vst [vmem:[%s4873 + $0xbc] sm:$0x1] %v4984
        %v4986 = vld [vmem:[#allocation3] sm:$0xf]
        %v4987 = vld [vmem:[#allocation3 + $0x4] sm:$0xf]
        %v4988 = vld [vmem:[#allocation3 + $0xc] sm:$0xf]
        %v4989 = vld [vmem:[#allocation3 + $0x10] sm:$0xf]
        %v4990 = vld [vmem:[#allocation3 + $0x18] sm:$0xf]
        %v4991 = vld [vmem:[#allocation3 + $0x1c] sm:$0xf]
        %v4992 = vld [vmem:[#allocation3 + $0x24] sm:$0xf]
        %v4993 = vld [vmem:[#allocation3 + $0x28] sm:$0xf]
        %v4994 = vld [vmem:[#allocation3 + $0x30] sm:$0xf]
        %v4995 = vld [vmem:[#allocation3 + $0x34] sm:$0xf]
        %v4996 = vld [vmem:[#allocation3 + $0x3c] sm:$0xf]
        %v4997 = vld [vmem:[#allocation3 + $0x40] sm:$0xf]
        %v4998 = vld [vmem:[#allocation3 + $0x48] sm:$0xf]
        %v4999 = vld [vmem:[#allocation3 + $0x4c] sm:$0xf]
        %v5000 = vld [vmem:[#allocation3 + $0x54] sm:$0xf]
        %v5001 = vld [vmem:[#allocation3 + $0x58] sm:$0xf]
        %v5002 = vld [vmem:[#allocation3 + $0x60] sm:$0xf]
        %v5003 = vld [vmem:[#allocation3 + $0x64] sm:$0xf]
        %v5004 = vld [vmem:[#allocation3 + $0x6c] sm:$0xf]
        %v5005 = vld [vmem:[#allocation3 + $0x70] sm:$0xf]
        %v5006 = vld [vmem:[#allocation3 + $0x78] sm:$0xf]
        %v5007 = vld [vmem:[#allocation3 + $0x7c] sm:$0xf]
        %v5008 = vld [vmem:[#allocation3 + $0x84] sm:$0xf]
        %v5009 = vld [vmem:[#allocation3 + $0x88] sm:$0xf]
        %v5010 = vld [vmem:[#allocation3 + $0x90] sm:$0xf]
        %v5011 = vld [vmem:[#allocation3 + $0x94] sm:$0xf]
        %v5012 = vld [vmem:[#allocation3 + $0x9c] sm:$0xf]
        %v5013 = vld [vmem:[#allocation3 + $0xa0] sm:$0xf]
        %v5014 = vld [vmem:[#allocation3 + $0xa8] sm:$0xf]
        %v5015 = vld [vmem:[#allocation3 + $0xac] sm:$0xf]
        %v5016 = vld [vmem:[#allocation3 + $0xb4] sm:$0xf]
        %v5017 = vld [vmem:[#allocation3 + $0xb8] sm:$0xf]
        %v5018 = vld [vmem:[#allocation3 + $0x8] sm:$0x1]
        %v5019 = vld [vmem:[#allocation3 + $0x14] sm:$0x1]
        %v5020 = vld [vmem:[#allocation3 + $0x20] sm:$0x1]
        %v5021 = vld [vmem:[#allocation3 + $0x2c] sm:$0x1]
        %v5022 = vld [vmem:[#allocation3 + $0x38] sm:$0x1]
        %v5023 = vld [vmem:[#allocation3 + $0x44] sm:$0x1]
        %v5024 = vld [vmem:[#allocation3 + $0x50] sm:$0x1]
        %v5025 = vld [vmem:[#allocation3 + $0x5c] sm:$0x1]
        %v5026 = vld [vmem:[#allocation3 + $0x68] sm:$0x1]
        %v5027 = vld [vmem:[#allocation3 + $0x74] sm:$0x1]
        %v5028 = vld [vmem:[#allocation3 + $0x80] sm:$0x1]
        %v5029 = vld [vmem:[#allocation3 + $0x8c] sm:$0x1]
        %v5030 = vld [vmem:[#allocation3 + $0x98] sm:$0x1]
        %v5031 = vld [vmem:[#allocation3 + $0xa4] sm:$0x1]
        %v5032 = vld [vmem:[#allocation3 + $0xb0] sm:$0x1]
        %v5033 = vld [vmem:[#allocation3 + $0xbc] sm:$0x1]
        %v5035 = vshrl.u32 %v4986, 16
        %v5037 = vrot.slane %v5035, 4
        %v5038 = vshll.u32 %v4986, 16
        %v5040 = vrot.slane %v5038, 5
        %v5041 = vor.u32 %v5037, %v5040
        %v5042 = vrot.slane %v5041, 4
        %v5044 = vshll.u32 %v4987, 16
        %v5046 = vrot.slane %v5044, 5
        %v5047 = vsel %vm899, %v5042, %v5046
        %v5048 = vshrl.u32 %v4987, 16
        %v5050 = vrot.slane %v5048, 4
        %v5051 = vor.u32 %v5050, %v5046
        %v5052 = vrot.slane %v5051, 4
        %v5054 = vshll.u32 %v5018, 16
        %v5056 = vrot.slane %v5054, 5
        %v5057 = vsel %vm899, %v5052, %v5056
        %v5059 = vshrl.u32 %v4988, 16
        %v5061 = vrot.slane %v5059, 4
        %v5062 = vshll.u32 %v4988, 16
        %v5064 = vrot.slane %v5062, 5
        %v5065 = vor.u32 %v5061, %v5064
        %v5066 = vrot.slane %v5065, 4
        %v5068 = vshll.u32 %v4989, 16
        %v5070 = vrot.slane %v5068, 5
        %v5071 = vsel %vm899, %v5066, %v5070
        %v5072 = vshrl.u32 %v4989, 16
        %v5074 = vrot.slane %v5072, 4
        %v5075 = vor.u32 %v5074, %v5070
        %v5076 = vrot.slane %v5075, 4
        %v5078 = vshll.u32 %v5019, 16
        %v5080 = vrot.slane %v5078, 5
        %v5081 = vsel %vm899, %v5076, %v5080
        %v5083 = vshrl.u32 %v4990, 16
        %v5085 = vrot.slane %v5083, 4
        %v5086 = vshll.u32 %v4990, 16
        %v5088 = vrot.slane %v5086, 5
        %v5089 = vor.u32 %v5085, %v5088
        %v5090 = vrot.slane %v5089, 4
        %v5092 = vshll.u32 %v4991, 16
        %v5094 = vrot.slane %v5092, 5
        %v5095 = vsel %vm899, %v5090, %v5094
        %v5096 = vshrl.u32 %v4991, 16
        %v5098 = vrot.slane %v5096, 4
        %v5099 = vor.u32 %v5098, %v5094
        %v5100 = vrot.slane %v5099, 4
        %v5102 = vshll.u32 %v5020, 16
        %v5104 = vrot.slane %v5102, 5
        %v5105 = vsel %vm899, %v5100, %v5104
        %v5107 = vshrl.u32 %v4992, 16
        %v5109 = vrot.slane %v5107, 4
        %v5110 = vshll.u32 %v4992, 16
        %v5112 = vrot.slane %v5110, 5
        %v5113 = vor.u32 %v5109, %v5112
        %v5114 = vrot.slane %v5113, 4
        %v5116 = vshll.u32 %v4993, 16
        %v5118 = vrot.slane %v5116, 5
        %v5119 = vsel %vm899, %v5114, %v5118
        %v5120 = vshrl.u32 %v4993, 16
        %v5122 = vrot.slane %v5120, 4
        %v5123 = vor.u32 %v5122, %v5118
        %v5124 = vrot.slane %v5123, 4
        %v5126 = vshll.u32 %v5021, 16
        %v5128 = vrot.slane %v5126, 5
        %v5129 = vsel %vm899, %v5124, %v5128
        %v5131 = vshrl.u32 %v4994, 16
        %v5133 = vrot.slane %v5131, 4
        %v5134 = vshll.u32 %v4994, 16
        %v5136 = vrot.slane %v5134, 5
        %v5137 = vor.u32 %v5133, %v5136
        %v5138 = vrot.slane %v5137, 4
        %v5140 = vshll.u32 %v4995, 16
        %v5142 = vrot.slane %v5140, 5
        %v5143 = vsel %vm899, %v5138, %v5142
        %v5144 = vshrl.u32 %v4995, 16
        %v5146 = vrot.slane %v5144, 4
        %v5147 = vor.u32 %v5146, %v5142
        %v5148 = vrot.slane %v5147, 4
        %v5150 = vshll.u32 %v5022, 16
        %v5152 = vrot.slane %v5150, 5
        %v5153 = vsel %vm899, %v5148, %v5152
        %v5155 = vshrl.u32 %v4996, 16
        %v5157 = vrot.slane %v5155, 4
        %v5158 = vshll.u32 %v4996, 16
        %v5160 = vrot.slane %v5158, 5
        %v5161 = vor.u32 %v5157, %v5160
        %v5162 = vrot.slane %v5161, 4
        %v5164 = vshll.u32 %v4997, 16
        %v5166 = vrot.slane %v5164, 5
        %v5167 = vsel %vm899, %v5162, %v5166
        %v5168 = vshrl.u32 %v4997, 16
        %v5170 = vrot.slane %v5168, 4
        %v5171 = vor.u32 %v5170, %v5166
        %v5172 = vrot.slane %v5171, 4
        %v5174 = vshll.u32 %v5023, 16
        %v5176 = vrot.slane %v5174, 5
        %v5177 = vsel %vm899, %v5172, %v5176
        %v5179 = vshrl.u32 %v4998, 16
        %v5181 = vrot.slane %v5179, 4
        %v5182 = vshll.u32 %v4998, 16
        %v5184 = vrot.slane %v5182, 5
        %v5185 = vor.u32 %v5181, %v5184
        %v5186 = vrot.slane %v5185, 4
        %v5188 = vshll.u32 %v4999, 16
        %v5190 = vrot.slane %v5188, 5
        %v5191 = vsel %vm899, %v5186, %v5190
        %v5192 = vshrl.u32 %v4999, 16
        %v5194 = vrot.slane %v5192, 4
        %v5195 = vor.u32 %v5194, %v5190
        %v5196 = vrot.slane %v5195, 4
        %v5198 = vshll.u32 %v5024, 16
        %v5200 = vrot.slane %v5198, 5
        %v5201 = vsel %vm899, %v5196, %v5200
        %v5203 = vshrl.u32 %v5000, 16
        %v5205 = vrot.slane %v5203, 4
        %v5206 = vshll.u32 %v5000, 16
        %v5208 = vrot.slane %v5206, 5
        %v5209 = vor.u32 %v5205, %v5208
        %v5210 = vrot.slane %v5209, 4
        %v5212 = vshll.u32 %v5001, 16
        %v5214 = vrot.slane %v5212, 5
        %v5215 = vsel %vm899, %v5210, %v5214
        %v5216 = vshrl.u32 %v5001, 16
        %v5218 = vrot.slane %v5216, 4
        %v5219 = vor.u32 %v5218, %v5214
        %v5220 = vrot.slane %v5219, 4
        %v5222 = vshll.u32 %v5025, 16
        %v5224 = vrot.slane %v5222, 5
        %v5225 = vsel %vm899, %v5220, %v5224
        %v5227 = vshrl.u32 %v5002, 16
        %v5229 = vrot.slane %v5227, 4
        %v5230 = vshll.u32 %v5002, 16
        %v5232 = vrot.slane %v5230, 5
        %v5233 = vor.u32 %v5229, %v5232
        %v5234 = vrot.slane %v5233, 4
        %v5236 = vshll.u32 %v5003, 16
        %v5238 = vrot.slane %v5236, 5
        %v5239 = vsel %vm899, %v5234, %v5238
        %v5240 = vshrl.u32 %v5003, 16
        %v5242 = vrot.slane %v5240, 4
        %v5243 = vor.u32 %v5242, %v5238
        %v5244 = vrot.slane %v5243, 4
        %v5246 = vshll.u32 %v5026, 16
        %v5248 = vrot.slane %v5246, 5
        %v5249 = vsel %vm899, %v5244, %v5248
        %v5251 = vshrl.u32 %v5004, 16
        %v5253 = vrot.slane %v5251, 4
        %v5254 = vshll.u32 %v5004, 16
        %v5256 = vrot.slane %v5254, 5
        %v5257 = vor.u32 %v5253, %v5256
        %v5258 = vrot.slane %v5257, 4
        %v5260 = vshll.u32 %v5005, 16
        %v5262 = vrot.slane %v5260, 5
        %v5263 = vsel %vm899, %v5258, %v5262
        %v5264 = vshrl.u32 %v5005, 16
        %v5266 = vrot.slane %v5264, 4
        %v5267 = vor.u32 %v5266, %v5262
        %v5268 = vrot.slane %v5267, 4
        %v5270 = vshll.u32 %v5027, 16
        %v5272 = vrot.slane %v5270, 5
        %v5273 = vsel %vm899, %v5268, %v5272
        %v5275 = vshrl.u32 %v5006, 16
        %v5277 = vrot.slane %v5275, 4
        %v5278 = vshll.u32 %v5006, 16
        %v5280 = vrot.slane %v5278, 5
        %v5281 = vor.u32 %v5277, %v5280
        %v5282 = vrot.slane %v5281, 4
        %v5284 = vshll.u32 %v5007, 16
        %v5286 = vrot.slane %v5284, 5
        %v5287 = vsel %vm899, %v5282, %v5286
        %v5288 = vshrl.u32 %v5007, 16
        %v5290 = vrot.slane %v5288, 4
        %v5291 = vor.u32 %v5290, %v5286
        %v5292 = vrot.slane %v5291, 4
        %v5294 = vshll.u32 %v5028, 16
        %v5296 = vrot.slane %v5294, 5
        %v5297 = vsel %vm899, %v5292, %v5296
        %v5299 = vshrl.u32 %v5008, 16
        %v5301 = vrot.slane %v5299, 4
        %v5302 = vshll.u32 %v5008, 16
        %v5304 = vrot.slane %v5302, 5
        %v5305 = vor.u32 %v5301, %v5304
        %v5306 = vrot.slane %v5305, 4
        %v5308 = vshll.u32 %v5009, 16
        %v5310 = vrot.slane %v5308, 5
        %v5311 = vsel %vm899, %v5306, %v5310
        %v5312 = vshrl.u32 %v5009, 16
        %v5314 = vrot.slane %v5312, 4
        %v5315 = vor.u32 %v5314, %v5310
        %v5316 = vrot.slane %v5315, 4
        %v5318 = vshll.u32 %v5029, 16
        %v5320 = vrot.slane %v5318, 5
        %v5321 = vsel %vm899, %v5316, %v5320
        %v5323 = vshrl.u32 %v5010, 16
        %v5325 = vrot.slane %v5323, 4
        %v5326 = vshll.u32 %v5010, 16
        %v5328 = vrot.slane %v5326, 5
        %v5329 = vor.u32 %v5325, %v5328
        %v5330 = vrot.slane %v5329, 4
        %v5332 = vshll.u32 %v5011, 16
        %v5334 = vrot.slane %v5332, 5
        %v5335 = vsel %vm899, %v5330, %v5334
        %v5336 = vshrl.u32 %v5011, 16
        %v5338 = vrot.slane %v5336, 4
        %v5339 = vor.u32 %v5338, %v5334
        %v5340 = vrot.slane %v5339, 4
        %v5342 = vshll.u32 %v5030, 16
        %v5344 = vrot.slane %v5342, 5
        %v5345 = vsel %vm899, %v5340, %v5344
        %v5347 = vshrl.u32 %v5012, 16
        %v5349 = vrot.slane %v5347, 4
        %v5350 = vshll.u32 %v5012, 16
        %v5352 = vrot.slane %v5350, 5
        %v5353 = vor.u32 %v5349, %v5352
        %v5354 = vrot.slane %v5353, 4
        %v5356 = vshll.u32 %v5013, 16
        %v5358 = vrot.slane %v5356, 5
        %v5359 = vsel %vm899, %v5354, %v5358
        %v5360 = vshrl.u32 %v5013, 16
        %v5362 = vrot.slane %v5360, 4
        %v5363 = vor.u32 %v5362, %v5358
        %v5364 = vrot.slane %v5363, 4
        %v5366 = vshll.u32 %v5031, 16
        %v5368 = vrot.slane %v5366, 5
        %v5369 = vsel %vm899, %v5364, %v5368
        %v5371 = vshrl.u32 %v5014, 16
        %v5373 = vrot.slane %v5371, 4
        %v5374 = vshll.u32 %v5014, 16
        %v5376 = vrot.slane %v5374, 5
        %v5377 = vor.u32 %v5373, %v5376
        %v5378 = vrot.slane %v5377, 4
        %v5380 = vshll.u32 %v5015, 16
        %v5382 = vrot.slane %v5380, 5
        %v5383 = vsel %vm899, %v5378, %v5382
        %v5384 = vshrl.u32 %v5015, 16
        %v5386 = vrot.slane %v5384, 4
        %v5387 = vor.u32 %v5386, %v5382
        %v5388 = vrot.slane %v5387, 4
        %v5390 = vshll.u32 %v5032, 16
        %v5392 = vrot.slane %v5390, 5
        %v5393 = vsel %vm899, %v5388, %v5392
        %v5395 = vshrl.u32 %v5016, 16
        %v5397 = vrot.slane %v5395, 4
        %v5398 = vshll.u32 %v5016, 16
        %v5400 = vrot.slane %v5398, 5
        %v5401 = vor.u32 %v5397, %v5400
        %v5402 = vrot.slane %v5401, 4
        %v5404 = vshll.u32 %v5017, 16
        %v5406 = vrot.slane %v5404, 5
        %v5407 = vsel %vm899, %v5402, %v5406
        %v5408 = vshrl.u32 %v5017, 16
        %v5410 = vrot.slane %v5408, 4
        %v5411 = vor.u32 %v5410, %v5406
        %v5412 = vrot.slane %v5411, 4
        %v5414 = vshll.u32 %v5033, 16
        %v5416 = vrot.slane %v5414, 5
        %v5417 = vsel %vm899, %v5412, %v5416
        %v5418 = vld [vmem:[#allocation3] sm:$0xe]
        %v5419 = vld [vmem:[#allocation3 + $0xc] sm:$0xe]
        %v5420 = vld [vmem:[#allocation3 + $0x18] sm:$0xe]
        %v5421 = vld [vmem:[#allocation3 + $0x24] sm:$0xe]
        %v5422 = vld [vmem:[#allocation3 + $0x30] sm:$0xe]
        %v5423 = vld [vmem:[#allocation3 + $0x3c] sm:$0xe]
        %v5424 = vld [vmem:[#allocation3 + $0x48] sm:$0xe]
        %v5425 = vld [vmem:[#allocation3 + $0x54] sm:$0xe]
        %v5426 = vld [vmem:[#allocation3 + $0x60] sm:$0xe]
        %v5427 = vld [vmem:[#allocation3 + $0x6c] sm:$0xe]
        %v5428 = vld [vmem:[#allocation3 + $0x78] sm:$0xe]
        %v5429 = vld [vmem:[#allocation3 + $0x84] sm:$0xe]
        %v5430 = vld [vmem:[#allocation3 + $0x90] sm:$0xe]
        %v5431 = vld [vmem:[#allocation3 + $0x9c] sm:$0xe]
        %v5432 = vld [vmem:[#allocation3 + $0xa8] sm:$0xe]
        %v5433 = vld [vmem:[#allocation3 + $0xb4] sm:$0xe]
        %v5482 = vrot.slane %v5418, 5
        %v5483 = vrot.slane %v5482, 4
        %v5484 = vrot.slane %v4987, 5
        %v5485 = vsel %vm1350, %v5483, %v5484
        %v5486 = vrot.slane %v5484, 4
        %v5487 = vrot.slane %v5018, 5
        %v5488 = vsel %vm1350, %v5486, %v5487
        %v5489 = vrot.slane %v5419, 5
        %v5490 = vrot.slane %v5489, 4
        %v5491 = vrot.slane %v4989, 5
        %v5492 = vsel %vm1350, %v5490, %v5491
        %v5493 = vrot.slane %v5491, 4
        %v5494 = vrot.slane %v5019, 5
        %v5495 = vsel %vm1350, %v5493, %v5494
        %v5496 = vrot.slane %v5420, 5
        %v5497 = vrot.slane %v5496, 4
        %v5498 = vrot.slane %v4991, 5
        %v5499 = vsel %vm1350, %v5497, %v5498
        %v5500 = vrot.slane %v5498, 4
        %v5501 = vrot.slane %v5020, 5
        %v5502 = vsel %vm1350, %v5500, %v5501
        %v5503 = vrot.slane %v5421, 5
        %v5504 = vrot.slane %v5503, 4
        %v5505 = vrot.slane %v4993, 5
        %v5506 = vsel %vm1350, %v5504, %v5505
        %v5507 = vrot.slane %v5505, 4
        %v5508 = vrot.slane %v5021, 5
        %v5509 = vsel %vm1350, %v5507, %v5508
        %v5510 = vrot.slane %v5422, 5
        %v5511 = vrot.slane %v5510, 4
        %v5512 = vrot.slane %v4995, 5
        %v5513 = vsel %vm1350, %v5511, %v5512
        %v5514 = vrot.slane %v5512, 4
        %v5515 = vrot.slane %v5022, 5
        %v5516 = vsel %vm1350, %v5514, %v5515
        %v5517 = vrot.slane %v5423, 5
        %v5518 = vrot.slane %v5517, 4
        %v5519 = vrot.slane %v4997, 5
        %v5520 = vsel %vm1350, %v5518, %v5519
        %v5521 = vrot.slane %v5519, 4
        %v5522 = vrot.slane %v5023, 5
        %v5523 = vsel %vm1350, %v5521, %v5522
        %v5524 = vrot.slane %v5424, 5
        %v5525 = vrot.slane %v5524, 4
        %v5526 = vrot.slane %v4999, 5
        %v5527 = vsel %vm1350, %v5525, %v5526
        %v5528 = vrot.slane %v5526, 4
        %v5529 = vrot.slane %v5024, 5
        %v5530 = vsel %vm1350, %v5528, %v5529
        %v5531 = vrot.slane %v5425, 5
        %v5532 = vrot.slane %v5531, 4
        %v5533 = vrot.slane %v5001, 5
        %v5534 = vsel %vm1350, %v5532, %v5533
        %v5535 = vrot.slane %v5533, 4
        %v5536 = vrot.slane %v5025, 5
        %v5537 = vsel %vm1350, %v5535, %v5536
        %v5538 = vrot.slane %v5426, 5
        %v5539 = vrot.slane %v5538, 4
        %v5540 = vrot.slane %v5003, 5
        %v5541 = vsel %vm1350, %v5539, %v5540
        %v5542 = vrot.slane %v5540, 4
        %v5543 = vrot.slane %v5026, 5
        %v5544 = vsel %vm1350, %v5542, %v5543
        %v5545 = vrot.slane %v5427, 5
        %v5546 = vrot.slane %v5545, 4
        %v5547 = vrot.slane %v5005, 5
        %v5548 = vsel %vm1350, %v5546, %v5547
        %v5549 = vrot.slane %v5547, 4
        %v5550 = vrot.slane %v5027, 5
        %v5551 = vsel %vm1350, %v5549, %v5550
        %v5552 = vrot.slane %v5428, 5
        %v5553 = vrot.slane %v5552, 4
        %v5554 = vrot.slane %v5007, 5
        %v5555 = vsel %vm1350, %v5553, %v5554
        %v5556 = vrot.slane %v5554, 4
        %v5557 = vrot.slane %v5028, 5
        %v5558 = vsel %vm1350, %v5556, %v5557
        %v5559 = vrot.slane %v5429, 5
        %v5560 = vrot.slane %v5559, 4
        %v5561 = vrot.slane %v5009, 5
        %v5562 = vsel %vm1350, %v5560, %v5561
        %v5563 = vrot.slane %v5561, 4
        %v5564 = vrot.slane %v5029, 5
        %v5565 = vsel %vm1350, %v5563, %v5564
        %v5566 = vrot.slane %v5430, 5
        %v5567 = vrot.slane %v5566, 4
        %v5568 = vrot.slane %v5011, 5
        %v5569 = vsel %vm1350, %v5567, %v5568
        %v5570 = vrot.slane %v5568, 4
        %v5571 = vrot.slane %v5030, 5
        %v5572 = vsel %vm1350, %v5570, %v5571
        %v5573 = vrot.slane %v5431, 5
        %v5574 = vrot.slane %v5573, 4
        %v5575 = vrot.slane %v5013, 5
        %v5576 = vsel %vm1350, %v5574, %v5575
        %v5577 = vrot.slane %v5575, 4
        %v5578 = vrot.slane %v5031, 5
        %v5579 = vsel %vm1350, %v5577, %v5578
        %v5580 = vrot.slane %v5432, 5
        %v5581 = vrot.slane %v5580, 4
        %v5582 = vrot.slane %v5015, 5
        %v5583 = vsel %vm1350, %v5581, %v5582
        %v5584 = vrot.slane %v5582, 4
        %v5585 = vrot.slane %v5032, 5
        %v5586 = vsel %vm1350, %v5584, %v5585
        %v5587 = vrot.slane %v5433, 5
        %v5588 = vrot.slane %v5587, 4
        %v5589 = vrot.slane %v5017, 5
        %v5590 = vsel %vm1350, %v5588, %v5589
        %v5591 = vrot.slane %v5589, 4
        %v5592 = vrot.slane %v5033, 5
        %v5593 = vsel %vm1350, %v5591, %v5592
        %v5594 = vld [vmem:[%s4873] sm:$0xf]
        %v5595 = vld [vmem:[%s4873 + $0x4] sm:$0xf]
        %v5596 = vld [vmem:[%s4873 + $0xc] sm:$0xf]
        %v5597 = vld [vmem:[%s4873 + $0x10] sm:$0xf]
        %v5598 = vld [vmem:[%s4873 + $0x18] sm:$0xf]
        %v5599 = vld [vmem:[%s4873 + $0x1c] sm:$0xf]
        %v5600 = vld [vmem:[%s4873 + $0x24] sm:$0xf]
        %v5601 = vld [vmem:[%s4873 + $0x28] sm:$0xf]
        %v5602 = vld [vmem:[%s4873 + $0x30] sm:$0xf]
        %v5603 = vld [vmem:[%s4873 + $0x34] sm:$0xf]
        %v5604 = vld [vmem:[%s4873 + $0x3c] sm:$0xf]
        %v5605 = vld [vmem:[%s4873 + $0x40] sm:$0xf]
        %v5606 = vld [vmem:[%s4873 + $0x48] sm:$0xf]
        %v5607 = vld [vmem:[%s4873 + $0x4c] sm:$0xf]
        %v5608 = vld [vmem:[%s4873 + $0x54] sm:$0xf]
        %v5609 = vld [vmem:[%s4873 + $0x58] sm:$0xf]
        %v5610 = vld [vmem:[%s4873 + $0x60] sm:$0xf]
        %v5611 = vld [vmem:[%s4873 + $0x64] sm:$0xf]
        %v5612 = vld [vmem:[%s4873 + $0x6c] sm:$0xf]
        %v5613 = vld [vmem:[%s4873 + $0x70] sm:$0xf]
        %v5614 = vld [vmem:[%s4873 + $0x78] sm:$0xf]
        %v5615 = vld [vmem:[%s4873 + $0x7c] sm:$0xf]
        %v5616 = vld [vmem:[%s4873 + $0x84] sm:$0xf]
        %v5617 = vld [vmem:[%s4873 + $0x88] sm:$0xf]
        %v5618 = vld [vmem:[%s4873 + $0x90] sm:$0xf]
        %v5619 = vld [vmem:[%s4873 + $0x94] sm:$0xf]
        %v5620 = vld [vmem:[%s4873 + $0x9c] sm:$0xf]
        %v5621 = vld [vmem:[%s4873 + $0xa0] sm:$0xf]
        %v5622 = vld [vmem:[%s4873 + $0xa8] sm:$0xf]
        %v5623 = vld [vmem:[%s4873 + $0xac] sm:$0xf]
        %v5624 = vld [vmem:[%s4873 + $0xb4] sm:$0xf]
        %v5625 = vld [vmem:[%s4873 + $0xb8] sm:$0xf]
        %v5626 = vld [vmem:[%s4873 + $0x8] sm:$0x1]
        %v5627 = vld [vmem:[%s4873 + $0x14] sm:$0x1]
        %v5628 = vld [vmem:[%s4873 + $0x20] sm:$0x1]
        %v5629 = vld [vmem:[%s4873 + $0x2c] sm:$0x1]
        %v5630 = vld [vmem:[%s4873 + $0x38] sm:$0x1]
        %v5631 = vld [vmem:[%s4873 + $0x44] sm:$0x1]
        %v5632 = vld [vmem:[%s4873 + $0x50] sm:$0x1]
        %v5633 = vld [vmem:[%s4873 + $0x5c] sm:$0x1]
        %v5634 = vld [vmem:[%s4873 + $0x68] sm:$0x1]
        %v5635 = vld [vmem:[%s4873 + $0x74] sm:$0x1]
        %v5636 = vld [vmem:[%s4873 + $0x80] sm:$0x1]
        %v5637 = vld [vmem:[%s4873 + $0x8c] sm:$0x1]
        %v5638 = vld [vmem:[%s4873 + $0x98] sm:$0x1]
        %v5639 = vld [vmem:[%s4873 + $0xa4] sm:$0x1]
        %v5640 = vld [vmem:[%s4873 + $0xb0] sm:$0x1]
        %v5641 = vld [vmem:[%s4873 + $0xbc] sm:$0x1]
        %v5643 = vshrl.u32 %v5594, 16
        %v5645 = vrot.slane %v5643, 4
        %v5646 = vshll.u32 %v5594, 16
        %v5648 = vrot.slane %v5646, 5
        %v5649 = vor.u32 %v5645, %v5648
        %v5650 = vrot.slane %v5649, 4
        %v5652 = vshll.u32 %v5595, 16
        %v5654 = vrot.slane %v5652, 5
        %v5655 = vsel %vm899, %v5650, %v5654
        %v5656 = vshrl.u32 %v5595, 16
        %v5658 = vrot.slane %v5656, 4
        %v5659 = vor.u32 %v5658, %v5654
        %v5660 = vrot.slane %v5659, 4
        %v5662 = vshll.u32 %v5626, 16
        %v5664 = vrot.slane %v5662, 5
        %v5665 = vsel %vm899, %v5660, %v5664
        %v5667 = vshrl.u32 %v5596, 16
        %v5669 = vrot.slane %v5667, 4
        %v5670 = vshll.u32 %v5596, 16
        %v5672 = vrot.slane %v5670, 5
        %v5673 = vor.u32 %v5669, %v5672
        %v5674 = vrot.slane %v5673, 4
        %v5676 = vshll.u32 %v5597, 16
        %v5678 = vrot.slane %v5676, 5
        %v5679 = vsel %vm899, %v5674, %v5678
        %v5680 = vshrl.u32 %v5597, 16
        %v5682 = vrot.slane %v5680, 4
        %v5683 = vor.u32 %v5682, %v5678
        %v5684 = vrot.slane %v5683, 4
        %v5686 = vshll.u32 %v5627, 16
        %v5688 = vrot.slane %v5686, 5
        %v5689 = vsel %vm899, %v5684, %v5688
        %v5691 = vshrl.u32 %v5598, 16
        %v5693 = vrot.slane %v5691, 4
        %v5694 = vshll.u32 %v5598, 16
        %v5696 = vrot.slane %v5694, 5
        %v5697 = vor.u32 %v5693, %v5696
        %v5698 = vrot.slane %v5697, 4
        %v5700 = vshll.u32 %v5599, 16
        %v5702 = vrot.slane %v5700, 5
        %v5703 = vsel %vm899, %v5698, %v5702
        %v5704 = vshrl.u32 %v5599, 16
        %v5706 = vrot.slane %v5704, 4
        %v5707 = vor.u32 %v5706, %v5702
        %v5708 = vrot.slane %v5707, 4
        %v5710 = vshll.u32 %v5628, 16
        %v5712 = vrot.slane %v5710, 5
        %v5713 = vsel %vm899, %v5708, %v5712
        %v5715 = vshrl.u32 %v5600, 16
        %v5717 = vrot.slane %v5715, 4
        %v5718 = vshll.u32 %v5600, 16
        %v5720 = vrot.slane %v5718, 5
        %v5721 = vor.u32 %v5717, %v5720
        %v5722 = vrot.slane %v5721, 4
        %v5724 = vshll.u32 %v5601, 16
        %v5726 = vrot.slane %v5724, 5
        %v5727 = vsel %vm899, %v5722, %v5726
        %v5728 = vshrl.u32 %v5601, 16
        %v5730 = vrot.slane %v5728, 4
        %v5731 = vor.u32 %v5730, %v5726
        %v5732 = vrot.slane %v5731, 4
        %v5734 = vshll.u32 %v5629, 16
        %v5736 = vrot.slane %v5734, 5
        %v5737 = vsel %vm899, %v5732, %v5736
        %v5739 = vshrl.u32 %v5602, 16
        %v5741 = vrot.slane %v5739, 4
        %v5742 = vshll.u32 %v5602, 16
        %v5744 = vrot.slane %v5742, 5
        %v5745 = vor.u32 %v5741, %v5744
        %v5746 = vrot.slane %v5745, 4
        %v5748 = vshll.u32 %v5603, 16
        %v5750 = vrot.slane %v5748, 5
        %v5751 = vsel %vm899, %v5746, %v5750
        %v5752 = vshrl.u32 %v5603, 16
        %v5754 = vrot.slane %v5752, 4
        %v5755 = vor.u32 %v5754, %v5750
        %v5756 = vrot.slane %v5755, 4
        %v5758 = vshll.u32 %v5630, 16
        %v5760 = vrot.slane %v5758, 5
        %v5761 = vsel %vm899, %v5756, %v5760
        %v5763 = vshrl.u32 %v5604, 16
        %v5765 = vrot.slane %v5763, 4
        %v5766 = vshll.u32 %v5604, 16
        %v5768 = vrot.slane %v5766, 5
        %v5769 = vor.u32 %v5765, %v5768
        %v5770 = vrot.slane %v5769, 4
        %v5772 = vshll.u32 %v5605, 16
        %v5774 = vrot.slane %v5772, 5
        %v5775 = vsel %vm899, %v5770, %v5774
        %v5776 = vshrl.u32 %v5605, 16
        %v5778 = vrot.slane %v5776, 4
        %v5779 = vor.u32 %v5778, %v5774
        %v5780 = vrot.slane %v5779, 4
        %v5782 = vshll.u32 %v5631, 16
        %v5784 = vrot.slane %v5782, 5
        %v5785 = vsel %vm899, %v5780, %v5784
        %v5787 = vshrl.u32 %v5606, 16
        %v5789 = vrot.slane %v5787, 4
        %v5790 = vshll.u32 %v5606, 16
        %v5792 = vrot.slane %v5790, 5
        %v5793 = vor.u32 %v5789, %v5792
        %v5794 = vrot.slane %v5793, 4
        %v5796 = vshll.u32 %v5607, 16
        %v5798 = vrot.slane %v5796, 5
        %v5799 = vsel %vm899, %v5794, %v5798
        %v5800 = vshrl.u32 %v5607, 16
        %v5802 = vrot.slane %v5800, 4
        %v5803 = vor.u32 %v5802, %v5798
        %v5804 = vrot.slane %v5803, 4
        %v5806 = vshll.u32 %v5632, 16
        %v5808 = vrot.slane %v5806, 5
        %v5809 = vsel %vm899, %v5804, %v5808
        %v5811 = vshrl.u32 %v5608, 16
        %v5813 = vrot.slane %v5811, 4
        %v5814 = vshll.u32 %v5608, 16
        %v5816 = vrot.slane %v5814, 5
        %v5817 = vor.u32 %v5813, %v5816
        %v5818 = vrot.slane %v5817, 4
        %v5820 = vshll.u32 %v5609, 16
        %v5822 = vrot.slane %v5820, 5
        %v5823 = vsel %vm899, %v5818, %v5822
        %v5824 = vshrl.u32 %v5609, 16
        %v5826 = vrot.slane %v5824, 4
        %v5827 = vor.u32 %v5826, %v5822
        %v5828 = vrot.slane %v5827, 4
        %v5830 = vshll.u32 %v5633, 16
        %v5832 = vrot.slane %v5830, 5
        %v5833 = vsel %vm899, %v5828, %v5832
        %v5835 = vshrl.u32 %v5610, 16
        %v5837 = vrot.slane %v5835, 4
        %v5838 = vshll.u32 %v5610, 16
        %v5840 = vrot.slane %v5838, 5
        %v5841 = vor.u32 %v5837, %v5840
        %v5842 = vrot.slane %v5841, 4
        %v5844 = vshll.u32 %v5611, 16
        %v5846 = vrot.slane %v5844, 5
        %v5847 = vsel %vm899, %v5842, %v5846
        %v5848 = vshrl.u32 %v5611, 16
        %v5850 = vrot.slane %v5848, 4
        %v5851 = vor.u32 %v5850, %v5846
        %v5852 = vrot.slane %v5851, 4
        %v5854 = vshll.u32 %v5634, 16
        %v5856 = vrot.slane %v5854, 5
        %v5857 = vsel %vm899, %v5852, %v5856
        %v5859 = vshrl.u32 %v5612, 16
        %v5861 = vrot.slane %v5859, 4
        %v5862 = vshll.u32 %v5612, 16
        %v5864 = vrot.slane %v5862, 5
        %v5865 = vor.u32 %v5861, %v5864
        %v5866 = vrot.slane %v5865, 4
        %v5868 = vshll.u32 %v5613, 16
        %v5870 = vrot.slane %v5868, 5
        %v5871 = vsel %vm899, %v5866, %v5870
        %v5872 = vshrl.u32 %v5613, 16
        %v5874 = vrot.slane %v5872, 4
        %v5875 = vor.u32 %v5874, %v5870
        %v5876 = vrot.slane %v5875, 4
        %v5878 = vshll.u32 %v5635, 16
        %v5880 = vrot.slane %v5878, 5
        %v5881 = vsel %vm899, %v5876, %v5880
        %v5883 = vshrl.u32 %v5614, 16
        %v5885 = vrot.slane %v5883, 4
        %v5886 = vshll.u32 %v5614, 16
        %v5888 = vrot.slane %v5886, 5
        %v5889 = vor.u32 %v5885, %v5888
        %v5890 = vrot.slane %v5889, 4
        %v5892 = vshll.u32 %v5615, 16
        %v5894 = vrot.slane %v5892, 5
        %v5895 = vsel %vm899, %v5890, %v5894
        %v5896 = vshrl.u32 %v5615, 16
        %v5898 = vrot.slane %v5896, 4
        %v5899 = vor.u32 %v5898, %v5894
        %v5900 = vrot.slane %v5899, 4
        %v5902 = vshll.u32 %v5636, 16
        %v5904 = vrot.slane %v5902, 5
        %v5905 = vsel %vm899, %v5900, %v5904
        %v5907 = vshrl.u32 %v5616, 16
        %v5909 = vrot.slane %v5907, 4
        %v5910 = vshll.u32 %v5616, 16
        %v5912 = vrot.slane %v5910, 5
        %v5913 = vor.u32 %v5909, %v5912
        %v5914 = vrot.slane %v5913, 4
        %v5916 = vshll.u32 %v5617, 16
        %v5918 = vrot.slane %v5916, 5
        %v5919 = vsel %vm899, %v5914, %v5918
        %v5920 = vshrl.u32 %v5617, 16
        %v5922 = vrot.slane %v5920, 4
        %v5923 = vor.u32 %v5922, %v5918
        %v5924 = vrot.slane %v5923, 4
        %v5926 = vshll.u32 %v5637, 16
        %v5928 = vrot.slane %v5926, 5
        %v5929 = vsel %vm899, %v5924, %v5928
        %v5931 = vshrl.u32 %v5618, 16
        %v5933 = vrot.slane %v5931, 4
        %v5934 = vshll.u32 %v5618, 16
        %v5936 = vrot.slane %v5934, 5
        %v5937 = vor.u32 %v5933, %v5936
        %v5938 = vrot.slane %v5937, 4
        %v5940 = vshll.u32 %v5619, 16
        %v5942 = vrot.slane %v5940, 5
        %v5943 = vsel %vm899, %v5938, %v5942
        %v5944 = vshrl.u32 %v5619, 16
        %v5946 = vrot.slane %v5944, 4
        %v5947 = vor.u32 %v5946, %v5942
        %v5948 = vrot.slane %v5947, 4
        %v5950 = vshll.u32 %v5638, 16
        %v5952 = vrot.slane %v5950, 5
        %v5953 = vsel %vm899, %v5948, %v5952
        %v5955 = vshrl.u32 %v5620, 16
        %v5957 = vrot.slane %v5955, 4
        %v5958 = vshll.u32 %v5620, 16
        %v5960 = vrot.slane %v5958, 5
        %v5961 = vor.u32 %v5957, %v5960
        %v5962 = vrot.slane %v5961, 4
        %v5964 = vshll.u32 %v5621, 16
        %v5966 = vrot.slane %v5964, 5
        %v5967 = vsel %vm899, %v5962, %v5966
        %v5968 = vshrl.u32 %v5621, 16
        %v5970 = vrot.slane %v5968, 4
        %v5971 = vor.u32 %v5970, %v5966
        %v5972 = vrot.slane %v5971, 4
        %v5974 = vshll.u32 %v5639, 16
        %v5976 = vrot.slane %v5974, 5
        %v5977 = vsel %vm899, %v5972, %v5976
        %v5979 = vshrl.u32 %v5622, 16
        %v5981 = vrot.slane %v5979, 4
        %v5982 = vshll.u32 %v5622, 16
        %v5984 = vrot.slane %v5982, 5
        %v5985 = vor.u32 %v5981, %v5984
        %v5986 = vrot.slane %v5985, 4
        %v5988 = vshll.u32 %v5623, 16
        %v5990 = vrot.slane %v5988, 5
        %v5991 = vsel %vm899, %v5986, %v5990
        %v5992 = vshrl.u32 %v5623, 16
        %v5994 = vrot.slane %v5992, 4
        %v5995 = vor.u32 %v5994, %v5990
        %v5996 = vrot.slane %v5995, 4
        %v5998 = vshll.u32 %v5640, 16
        %v6000 = vrot.slane %v5998, 5
        %v6001 = vsel %vm899, %v5996, %v6000
        %v6003 = vshrl.u32 %v5624, 16
        %v6005 = vrot.slane %v6003, 4
        %v6006 = vshll.u32 %v5624, 16
        %v6008 = vrot.slane %v6006, 5
        %v6009 = vor.u32 %v6005, %v6008
        %v6010 = vrot.slane %v6009, 4
        %v6012 = vshll.u32 %v5625, 16
        %v6014 = vrot.slane %v6012, 5
        %v6015 = vsel %vm899, %v6010, %v6014
        %v6016 = vshrl.u32 %v5625, 16
        %v6018 = vrot.slane %v6016, 4
        %v6019 = vor.u32 %v6018, %v6014
        %v6020 = vrot.slane %v6019, 4
        %v6022 = vshll.u32 %v5641, 16
        %v6024 = vrot.slane %v6022, 5
        %v6025 = vsel %vm899, %v6020, %v6024
        %v6026 = vld [vmem:[%s4873] sm:$0xe]
        %v6027 = vld [vmem:[%s4873 + $0xc] sm:$0xe]
        %v6028 = vld [vmem:[%s4873 + $0x18] sm:$0xe]
        %v6029 = vld [vmem:[%s4873 + $0x24] sm:$0xe]
        %v6030 = vld [vmem:[%s4873 + $0x30] sm:$0xe]
        %v6031 = vld [vmem:[%s4873 + $0x3c] sm:$0xe]
        %v6032 = vld [vmem:[%s4873 + $0x48] sm:$0xe]
        %v6033 = vld [vmem:[%s4873 + $0x54] sm:$0xe]
        %v6034 = vld [vmem:[%s4873 + $0x60] sm:$0xe]
        %v6035 = vld [vmem:[%s4873 + $0x6c] sm:$0xe]
        %v6036 = vld [vmem:[%s4873 + $0x78] sm:$0xe]
        %v6037 = vld [vmem:[%s4873 + $0x84] sm:$0xe]
        %v6038 = vld [vmem:[%s4873 + $0x90] sm:$0xe]
        %v6039 = vld [vmem:[%s4873 + $0x9c] sm:$0xe]
        %v6040 = vld [vmem:[%s4873 + $0xa8] sm:$0xe]
        %v6041 = vld [vmem:[%s4873 + $0xb4] sm:$0xe]
        %v6090 = vrot.slane %v6026, 5
        %v6091 = vrot.slane %v6090, 4
        %v6092 = vrot.slane %v5595, 5
        %v6093 = vsel %vm1350, %v6091, %v6092
        %v6094 = vrot.slane %v6092, 4
        %v6095 = vrot.slane %v5626, 5
        %v6096 = vsel %vm1350, %v6094, %v6095
        %v6097 = vrot.slane %v6027, 5
        %v6098 = vrot.slane %v6097, 4
        %v6099 = vrot.slane %v5597, 5
        %v6100 = vsel %vm1350, %v6098, %v6099
        %v6101 = vrot.slane %v6099, 4
        %v6102 = vrot.slane %v5627, 5
        %v6103 = vsel %vm1350, %v6101, %v6102
        %v6104 = vrot.slane %v6028, 5
        %v6105 = vrot.slane %v6104, 4
        %v6106 = vrot.slane %v5599, 5
        %v6107 = vsel %vm1350, %v6105, %v6106
        %v6108 = vrot.slane %v6106, 4
        %v6109 = vrot.slane %v5628, 5
        %v6110 = vsel %vm1350, %v6108, %v6109
        %v6111 = vrot.slane %v6029, 5
        %v6112 = vrot.slane %v6111, 4
        %v6113 = vrot.slane %v5601, 5
        %v6114 = vsel %vm1350, %v6112, %v6113
        %v6115 = vrot.slane %v6113, 4
        %v6116 = vrot.slane %v5629, 5
        %v6117 = vsel %vm1350, %v6115, %v6116
        %v6118 = vrot.slane %v6030, 5
        %v6119 = vrot.slane %v6118, 4
        %v6120 = vrot.slane %v5603, 5
        %v6121 = vsel %vm1350, %v6119, %v6120
        %v6122 = vrot.slane %v6120, 4
        %v6123 = vrot.slane %v5630, 5
        %v6124 = vsel %vm1350, %v6122, %v6123
        %v6125 = vrot.slane %v6031, 5
        %v6126 = vrot.slane %v6125, 4
        %v6127 = vrot.slane %v5605, 5
        %v6128 = vsel %vm1350, %v6126, %v6127
        %v6129 = vrot.slane %v6127, 4
        %v6130 = vrot.slane %v5631, 5
        %v6131 = vsel %vm1350, %v6129, %v6130
        %v6132 = vrot.slane %v6032, 5
        %v6133 = vrot.slane %v6132, 4
        %v6134 = vrot.slane %v5607, 5
        %v6135 = vsel %vm1350, %v6133, %v6134
        %v6136 = vrot.slane %v6134, 4
        %v6137 = vrot.slane %v5632, 5
        %v6138 = vsel %vm1350, %v6136, %v6137
        %v6139 = vrot.slane %v6033, 5
        %v6140 = vrot.slane %v6139, 4
        %v6141 = vrot.slane %v5609, 5
        %v6142 = vsel %vm1350, %v6140, %v6141
        %v6143 = vrot.slane %v6141, 4
        %v6144 = vrot.slane %v5633, 5
        %v6145 = vsel %vm1350, %v6143, %v6144
        %v6146 = vrot.slane %v6034, 5
        %v6147 = vrot.slane %v6146, 4
        %v6148 = vrot.slane %v5611, 5
        %v6149 = vsel %vm1350, %v6147, %v6148
        %v6150 = vrot.slane %v6148, 4
        %v6151 = vrot.slane %v5634, 5
        %v6152 = vsel %vm1350, %v6150, %v6151
        %v6153 = vrot.slane %v6035, 5
        %v6154 = vrot.slane %v6153, 4
        %v6155 = vrot.slane %v5613, 5
        %v6156 = vsel %vm1350, %v6154, %v6155
        %v6157 = vrot.slane %v6155, 4
        %v6158 = vrot.slane %v5635, 5
        %v6159 = vsel %vm1350, %v6157, %v6158
        %v6160 = vrot.slane %v6036, 5
        %v6161 = vrot.slane %v6160, 4
        %v6162 = vrot.slane %v5615, 5
        %v6163 = vsel %vm1350, %v6161, %v6162
        %v6164 = vrot.slane %v6162, 4
        %v6165 = vrot.slane %v5636, 5
        %v6166 = vsel %vm1350, %v6164, %v6165
        %v6167 = vrot.slane %v6037, 5
        %v6168 = vrot.slane %v6167, 4
        %v6169 = vrot.slane %v5617, 5
        %v6170 = vsel %vm1350, %v6168, %v6169
        %v6171 = vrot.slane %v6169, 4
        %v6172 = vrot.slane %v5637, 5
        %v6173 = vsel %vm1350, %v6171, %v6172
        %v6174 = vrot.slane %v6038, 5
        %v6175 = vrot.slane %v6174, 4
        %v6176 = vrot.slane %v5619, 5
        %v6177 = vsel %vm1350, %v6175, %v6176
        %v6178 = vrot.slane %v6176, 4
        %v6179 = vrot.slane %v5638, 5
        %v6180 = vsel %vm1350, %v6178, %v6179
        %v6181 = vrot.slane %v6039, 5
        %v6182 = vrot.slane %v6181, 4
        %v6183 = vrot.slane %v5621, 5
        %v6184 = vsel %vm1350, %v6182, %v6183
        %v6185 = vrot.slane %v6183, 4
        %v6186 = vrot.slane %v5639, 5
        %v6187 = vsel %vm1350, %v6185, %v6186
        %v6188 = vrot.slane %v6040, 5
        %v6189 = vrot.slane %v6188, 4
        %v6190 = vrot.slane %v5623, 5
        %v6191 = vsel %vm1350, %v6189, %v6190
        %v6192 = vrot.slane %v6190, 4
        %v6193 = vrot.slane %v5640, 5
        %v6194 = vsel %vm1350, %v6192, %v6193
        %v6195 = vrot.slane %v6041, 5
        %v6196 = vrot.slane %v6195, 4
        %v6197 = vrot.slane %v5625, 5
        %v6198 = vsel %vm1350, %v6196, %v6197
        %v6199 = vrot.slane %v6197, 4
        %v6200 = vrot.slane %v5641, 5
        %v6201 = vsel %vm1350, %v6199, %v6200
        %s6202 = scalar_lea.vmem [#allocation3], 24
        %v6203 = vld [vmem:[%s6202] sm:$0xf]
        %v6204 = vld [vmem:[%s6202 + $0x4] sm:$0xf]
        %v6205 = vld [vmem:[%s6202 + $0xc] sm:$0xf]
        %v6206 = vld [vmem:[%s6202 + $0x10] sm:$0xf]
        %v6207 = vld [vmem:[%s6202 + $0x18] sm:$0xf]
        %v6208 = vld [vmem:[%s6202 + $0x1c] sm:$0xf]
        %v6209 = vld [vmem:[%s6202 + $0x24] sm:$0xf]
        %v6210 = vld [vmem:[%s6202 + $0x28] sm:$0xf]
        %v6211 = vld [vmem:[%s6202 + $0x30] sm:$0xf]
        %v6212 = vld [vmem:[%s6202 + $0x34] sm:$0xf]
        %v6213 = vld [vmem:[%s6202 + $0x3c] sm:$0xf]
        %v6214 = vld [vmem:[%s6202 + $0x40] sm:$0xf]
        %v6215 = vld [vmem:[%s6202 + $0x48] sm:$0xf]
        %v6216 = vld [vmem:[%s6202 + $0x4c] sm:$0xf]
        %v6217 = vld [vmem:[%s6202 + $0x54] sm:$0xf]
        %v6218 = vld [vmem:[%s6202 + $0x58] sm:$0xf]
        %v6219 = vld [vmem:[%s6202 + $0x60] sm:$0xf]
        %v6220 = vld [vmem:[%s6202 + $0x64] sm:$0xf]
        %v6221 = vld [vmem:[%s6202 + $0x6c] sm:$0xf]
        %v6222 = vld [vmem:[%s6202 + $0x70] sm:$0xf]
        %v6223 = vld [vmem:[%s6202 + $0x78] sm:$0xf]
        %v6224 = vld [vmem:[%s6202 + $0x7c] sm:$0xf]
        %v6225 = vld [vmem:[%s6202 + $0x84] sm:$0xf]
        %v6226 = vld [vmem:[%s6202 + $0x88] sm:$0xf]
        %v6227 = vld [vmem:[%s6202 + $0x90] sm:$0xf]
        %v6228 = vld [vmem:[%s6202 + $0x94] sm:$0xf]
        %v6229 = vld [vmem:[%s6202 + $0x9c] sm:$0xf]
        %v6230 = vld [vmem:[%s6202 + $0xa0] sm:$0xf]
        %v6231 = vld [vmem:[%s6202 + $0xa8] sm:$0xf]
        %v6232 = vld [vmem:[%s6202 + $0xac] sm:$0xf]
        %v6233 = vld [vmem:[%s6202 + $0xb4] sm:$0xf]
        %v6234 = vld [vmem:[%s6202 + $0xb8] sm:$0xf]
        %v6235 = vld [vmem:[%s6202 + $0x8] sm:$0x1]
        %v6236 = vld [vmem:[%s6202 + $0x14] sm:$0x1]
        %v6237 = vld [vmem:[%s6202 + $0x20] sm:$0x1]
        %v6238 = vld [vmem:[%s6202 + $0x2c] sm:$0x1]
        %v6239 = vld [vmem:[%s6202 + $0x38] sm:$0x1]
        %v6240 = vld [vmem:[%s6202 + $0x44] sm:$0x1]
        %v6241 = vld [vmem:[%s6202 + $0x50] sm:$0x1]
        %v6242 = vld [vmem:[%s6202 + $0x5c] sm:$0x1]
        %v6243 = vld [vmem:[%s6202 + $0x68] sm:$0x1]
        %v6244 = vld [vmem:[%s6202 + $0x74] sm:$0x1]
        %v6245 = vld [vmem:[%s6202 + $0x80] sm:$0x1]
        %v6246 = vld [vmem:[%s6202 + $0x8c] sm:$0x1]
        %v6247 = vld [vmem:[%s6202 + $0x98] sm:$0x1]
        %v6248 = vld [vmem:[%s6202 + $0xa4] sm:$0x1]
        %v6249 = vld [vmem:[%s6202 + $0xb0] sm:$0x1]
        %v6250 = vld [vmem:[%s6202 + $0xbc] sm:$0x1]
        %v6252 = vshrl.u32 %v6203, 16
        %v6254 = vrot.slane %v6252, 4
        %v6255 = vshll.u32 %v6203, 16
        %v6257 = vrot.slane %v6255, 5
        %v6258 = vor.u32 %v6254, %v6257
        %v6259 = vrot.slane %v6258, 4
        %v6261 = vshll.u32 %v6204, 16
        %v6263 = vrot.slane %v6261, 5
        %v6264 = vsel %vm899, %v6259, %v6263
        %v6265 = vshrl.u32 %v6204, 16
        %v6267 = vrot.slane %v6265, 4
        %v6268 = vor.u32 %v6267, %v6263
        %v6269 = vrot.slane %v6268, 4
        %v6271 = vshll.u32 %v6235, 16
        %v6273 = vrot.slane %v6271, 5
        %v6274 = vsel %vm899, %v6269, %v6273
        %v6276 = vshrl.u32 %v6205, 16
        %v6278 = vrot.slane %v6276, 4
        %v6279 = vshll.u32 %v6205, 16
        %v6281 = vrot.slane %v6279, 5
        %v6282 = vor.u32 %v6278, %v6281
        %v6283 = vrot.slane %v6282, 4
        %v6285 = vshll.u32 %v6206, 16
        %v6287 = vrot.slane %v6285, 5
        %v6288 = vsel %vm899, %v6283, %v6287
        %v6289 = vshrl.u32 %v6206, 16
        %v6291 = vrot.slane %v6289, 4
        %v6292 = vor.u32 %v6291, %v6287
        %v6293 = vrot.slane %v6292, 4
        %v6295 = vshll.u32 %v6236, 16
        %v6297 = vrot.slane %v6295, 5
        %v6298 = vsel %vm899, %v6293, %v6297
        %v6300 = vshrl.u32 %v6207, 16
        %v6302 = vrot.slane %v6300, 4
        %v6303 = vshll.u32 %v6207, 16
        %v6305 = vrot.slane %v6303, 5
        %v6306 = vor.u32 %v6302, %v6305
        %v6307 = vrot.slane %v6306, 4
        %v6309 = vshll.u32 %v6208, 16
        %v6311 = vrot.slane %v6309, 5
        %v6312 = vsel %vm899, %v6307, %v6311
        %v6313 = vshrl.u32 %v6208, 16
        %v6315 = vrot.slane %v6313, 4
        %v6316 = vor.u32 %v6315, %v6311
        %v6317 = vrot.slane %v6316, 4
        %v6319 = vshll.u32 %v6237, 16
        %v6321 = vrot.slane %v6319, 5
        %v6322 = vsel %vm899, %v6317, %v6321
        %v6324 = vshrl.u32 %v6209, 16
        %v6326 = vrot.slane %v6324, 4
        %v6327 = vshll.u32 %v6209, 16
        %v6329 = vrot.slane %v6327, 5
        %v6330 = vor.u32 %v6326, %v6329
        %v6331 = vrot.slane %v6330, 4
        %v6333 = vshll.u32 %v6210, 16
        %v6335 = vrot.slane %v6333, 5
        %v6336 = vsel %vm899, %v6331, %v6335
        %v6337 = vshrl.u32 %v6210, 16
        %v6339 = vrot.slane %v6337, 4
        %v6340 = vor.u32 %v6339, %v6335
        %v6341 = vrot.slane %v6340, 4
        %v6343 = vshll.u32 %v6238, 16
        %v6345 = vrot.slane %v6343, 5
        %v6346 = vsel %vm899, %v6341, %v6345
        %v6348 = vshrl.u32 %v6211, 16
        %v6350 = vrot.slane %v6348, 4
        %v6351 = vshll.u32 %v6211, 16
        %v6353 = vrot.slane %v6351, 5
        %v6354 = vor.u32 %v6350, %v6353
        %v6355 = vrot.slane %v6354, 4
        %v6357 = vshll.u32 %v6212, 16
        %v6359 = vrot.slane %v6357, 5
        %v6360 = vsel %vm899, %v6355, %v6359
        %v6361 = vshrl.u32 %v6212, 16
        %v6363 = vrot.slane %v6361, 4
        %v6364 = vor.u32 %v6363, %v6359
        %v6365 = vrot.slane %v6364, 4
        %v6367 = vshll.u32 %v6239, 16
        %v6369 = vrot.slane %v6367, 5
        %v6370 = vsel %vm899, %v6365, %v6369
        %v6372 = vshrl.u32 %v6213, 16
        %v6374 = vrot.slane %v6372, 4
        %v6375 = vshll.u32 %v6213, 16
        %v6377 = vrot.slane %v6375, 5
        %v6378 = vor.u32 %v6374, %v6377
        %v6379 = vrot.slane %v6378, 4
        %v6381 = vshll.u32 %v6214, 16
        %v6383 = vrot.slane %v6381, 5
        %v6384 = vsel %vm899, %v6379, %v6383
        %v6385 = vshrl.u32 %v6214, 16
        %v6387 = vrot.slane %v6385, 4
        %v6388 = vor.u32 %v6387, %v6383
        %v6389 = vrot.slane %v6388, 4
        %v6391 = vshll.u32 %v6240, 16
        %v6393 = vrot.slane %v6391, 5
        %v6394 = vsel %vm899, %v6389, %v6393
        %v6396 = vshrl.u32 %v6215, 16
        %v6398 = vrot.slane %v6396, 4
        %v6399 = vshll.u32 %v6215, 16
        %v6401 = vrot.slane %v6399, 5
        %v6402 = vor.u32 %v6398, %v6401
        %v6403 = vrot.slane %v6402, 4
        %v6405 = vshll.u32 %v6216, 16
        %v6407 = vrot.slane %v6405, 5
        %v6408 = vsel %vm899, %v6403, %v6407
        %v6409 = vshrl.u32 %v6216, 16
        %v6411 = vrot.slane %v6409, 4
        %v6412 = vor.u32 %v6411, %v6407
        %v6413 = vrot.slane %v6412, 4
        %v6415 = vshll.u32 %v6241, 16
        %v6417 = vrot.slane %v6415, 5
        %v6418 = vsel %vm899, %v6413, %v6417
        %v6420 = vshrl.u32 %v6217, 16
        %v6422 = vrot.slane %v6420, 4
        %v6423 = vshll.u32 %v6217, 16
        %v6425 = vrot.slane %v6423, 5
        %v6426 = vor.u32 %v6422, %v6425
        %v6427 = vrot.slane %v6426, 4
        %v6429 = vshll.u32 %v6218, 16
        %v6431 = vrot.slane %v6429, 5
        %v6432 = vsel %vm899, %v6427, %v6431
        %v6433 = vshrl.u32 %v6218, 16
        %v6435 = vrot.slane %v6433, 4
        %v6436 = vor.u32 %v6435, %v6431
        %v6437 = vrot.slane %v6436, 4
        %v6439 = vshll.u32 %v6242, 16
        %v6441 = vrot.slane %v6439, 5
        %v6442 = vsel %vm899, %v6437, %v6441
        %v6444 = vshrl.u32 %v6219, 16
        %v6446 = vrot.slane %v6444, 4
        %v6447 = vshll.u32 %v6219, 16
        %v6449 = vrot.slane %v6447, 5
        %v6450 = vor.u32 %v6446, %v6449
        %v6451 = vrot.slane %v6450, 4
        %v6453 = vshll.u32 %v6220, 16
        %v6455 = vrot.slane %v6453, 5
        %v6456 = vsel %vm899, %v6451, %v6455
        %v6457 = vshrl.u32 %v6220, 16
        %v6459 = vrot.slane %v6457, 4
        %v6460 = vor.u32 %v6459, %v6455
        %v6461 = vrot.slane %v6460, 4
        %v6463 = vshll.u32 %v6243, 16
        %v6465 = vrot.slane %v6463, 5
        %v6466 = vsel %vm899, %v6461, %v6465
        %v6468 = vshrl.u32 %v6221, 16
        %v6470 = vrot.slane %v6468, 4
        %v6471 = vshll.u32 %v6221, 16
        %v6473 = vrot.slane %v6471, 5
        %v6474 = vor.u32 %v6470, %v6473
        %v6475 = vrot.slane %v6474, 4
        %v6477 = vshll.u32 %v6222, 16
        %v6479 = vrot.slane %v6477, 5
        %v6480 = vsel %vm899, %v6475, %v6479
        %v6481 = vshrl.u32 %v6222, 16
        %v6483 = vrot.slane %v6481, 4
        %v6484 = vor.u32 %v6483, %v6479
        %v6485 = vrot.slane %v6484, 4
        %v6487 = vshll.u32 %v6244, 16
        %v6489 = vrot.slane %v6487, 5
        %v6490 = vsel %vm899, %v6485, %v6489
        %v6492 = vshrl.u32 %v6223, 16
        %v6494 = vrot.slane %v6492, 4
        %v6495 = vshll.u32 %v6223, 16
        %v6497 = vrot.slane %v6495, 5
        %v6498 = vor.u32 %v6494, %v6497
        %v6499 = vrot.slane %v6498, 4
        %v6501 = vshll.u32 %v6224, 16
        %v6503 = vrot.slane %v6501, 5
        %v6504 = vsel %vm899, %v6499, %v6503
        %v6505 = vshrl.u32 %v6224, 16
        %v6507 = vrot.slane %v6505, 4
        %v6508 = vor.u32 %v6507, %v6503
        %v6509 = vrot.slane %v6508, 4
        %v6511 = vshll.u32 %v6245, 16
        %v6513 = vrot.slane %v6511, 5
        %v6514 = vsel %vm899, %v6509, %v6513
        %v6516 = vshrl.u32 %v6225, 16
        %v6518 = vrot.slane %v6516, 4
        %v6519 = vshll.u32 %v6225, 16
        %v6521 = vrot.slane %v6519, 5
        %v6522 = vor.u32 %v6518, %v6521
        %v6523 = vrot.slane %v6522, 4
        %v6525 = vshll.u32 %v6226, 16
        %v6527 = vrot.slane %v6525, 5
        %v6528 = vsel %vm899, %v6523, %v6527
        %v6529 = vshrl.u32 %v6226, 16
        %v6531 = vrot.slane %v6529, 4
        %v6532 = vor.u32 %v6531, %v6527
        %v6533 = vrot.slane %v6532, 4
        %v6535 = vshll.u32 %v6246, 16
        %v6537 = vrot.slane %v6535, 5
        %v6538 = vsel %vm899, %v6533, %v6537
        %v6540 = vshrl.u32 %v6227, 16
        %v6542 = vrot.slane %v6540, 4
        %v6543 = vshll.u32 %v6227, 16
        %v6545 = vrot.slane %v6543, 5
        %v6546 = vor.u32 %v6542, %v6545
        %v6547 = vrot.slane %v6546, 4
        %v6549 = vshll.u32 %v6228, 16
        %v6551 = vrot.slane %v6549, 5
        %v6552 = vsel %vm899, %v6547, %v6551
        %v6553 = vshrl.u32 %v6228, 16
        %v6555 = vrot.slane %v6553, 4
        %v6556 = vor.u32 %v6555, %v6551
        %v6557 = vrot.slane %v6556, 4
        %v6559 = vshll.u32 %v6247, 16
        %v6561 = vrot.slane %v6559, 5
        %v6562 = vsel %vm899, %v6557, %v6561
        %v6564 = vshrl.u32 %v6229, 16
        %v6566 = vrot.slane %v6564, 4
        %v6567 = vshll.u32 %v6229, 16
        %v6569 = vrot.slane %v6567, 5
        %v6570 = vor.u32 %v6566, %v6569
        %v6571 = vrot.slane %v6570, 4
        %v6573 = vshll.u32 %v6230, 16
        %v6575 = vrot.slane %v6573, 5
        %v6576 = vsel %vm899, %v6571, %v6575
        %v6577 = vshrl.u32 %v6230, 16
        %v6579 = vrot.slane %v6577, 4
        %v6580 = vor.u32 %v6579, %v6575
        %v6581 = vrot.slane %v6580, 4
        %v6583 = vshll.u32 %v6248, 16
        %v6585 = vrot.slane %v6583, 5
        %v6586 = vsel %vm899, %v6581, %v6585
        %v6588 = vshrl.u32 %v6231, 16
        %v6590 = vrot.slane %v6588, 4
        %v6591 = vshll.u32 %v6231, 16
        %v6593 = vrot.slane %v6591, 5
        %v6594 = vor.u32 %v6590, %v6593
        %v6595 = vrot.slane %v6594, 4
        %v6597 = vshll.u32 %v6232, 16
        %v6599 = vrot.slane %v6597, 5
        %v6600 = vsel %vm899, %v6595, %v6599
        %v6601 = vshrl.u32 %v6232, 16
        %v6603 = vrot.slane %v6601, 4
        %v6604 = vor.u32 %v6603, %v6599
        %v6605 = vrot.slane %v6604, 4
        %v6607 = vshll.u32 %v6249, 16
        %v6609 = vrot.slane %v6607, 5
        %v6610 = vsel %vm899, %v6605, %v6609
        %v6612 = vshrl.u32 %v6233, 16
        %v6614 = vrot.slane %v6612, 4
        %v6615 = vshll.u32 %v6233, 16
        %v6617 = vrot.slane %v6615, 5
        %v6618 = vor.u32 %v6614, %v6617
        %v6619 = vrot.slane %v6618, 4
        %v6621 = vshll.u32 %v6234, 16
        %v6623 = vrot.slane %v6621, 5
        %v6624 = vsel %vm899, %v6619, %v6623
        %v6625 = vshrl.u32 %v6234, 16
        %v6627 = vrot.slane %v6625, 4
        %v6628 = vor.u32 %v6627, %v6623
        %v6629 = vrot.slane %v6628, 4
        %v6631 = vshll.u32 %v6250, 16
        %v6633 = vrot.slane %v6631, 5
        %v6634 = vsel %vm899, %v6629, %v6633
        %v6635 = vld [vmem:[%s6202] sm:$0xe]
        %v6636 = vld [vmem:[%s6202 + $0xc] sm:$0xe]
        %v6637 = vld [vmem:[%s6202 + $0x18] sm:$0xe]
        %v6638 = vld [vmem:[%s6202 + $0x24] sm:$0xe]
        %v6639 = vld [vmem:[%s6202 + $0x30] sm:$0xe]
        %v6640 = vld [vmem:[%s6202 + $0x3c] sm:$0xe]
        %v6641 = vld [vmem:[%s6202 + $0x48] sm:$0xe]
        %v6642 = vld [vmem:[%s6202 + $0x54] sm:$0xe]
        %v6643 = vld [vmem:[%s6202 + $0x60] sm:$0xe]
        %v6644 = vld [vmem:[%s6202 + $0x6c] sm:$0xe]
        %v6645 = vld [vmem:[%s6202 + $0x78] sm:$0xe]
        %v6646 = vld [vmem:[%s6202 + $0x84] sm:$0xe]
        %v6647 = vld [vmem:[%s6202 + $0x90] sm:$0xe]
        %v6648 = vld [vmem:[%s6202 + $0x9c] sm:$0xe]
        %v6649 = vld [vmem:[%s6202 + $0xa8] sm:$0xe]
        %v6650 = vld [vmem:[%s6202 + $0xb4] sm:$0xe]
        %v6699 = vrot.slane %v6635, 5
        %v6700 = vrot.slane %v6699, 4
        %v6701 = vrot.slane %v6204, 5
        %v6702 = vsel %vm1350, %v6700, %v6701
        %v6703 = vrot.slane %v6701, 4
        %v6704 = vrot.slane %v6235, 5
        %v6705 = vsel %vm1350, %v6703, %v6704
        %v6706 = vrot.slane %v6636, 5
        %v6707 = vrot.slane %v6706, 4
        %v6708 = vrot.slane %v6206, 5
        %v6709 = vsel %vm1350, %v6707, %v6708
        %v6710 = vrot.slane %v6708, 4
        %v6711 = vrot.slane %v6236, 5
        %v6712 = vsel %vm1350, %v6710, %v6711
        %v6713 = vrot.slane %v6637, 5
        %v6714 = vrot.slane %v6713, 4
        %v6715 = vrot.slane %v6208, 5
        %v6716 = vsel %vm1350, %v6714, %v6715
        %v6717 = vrot.slane %v6715, 4
        %v6718 = vrot.slane %v6237, 5
        %v6719 = vsel %vm1350, %v6717, %v6718
        %v6720 = vrot.slane %v6638, 5
        %v6721 = vrot.slane %v6720, 4
        %v6722 = vrot.slane %v6210, 5
        %v6723 = vsel %vm1350, %v6721, %v6722
        %v6724 = vrot.slane %v6722, 4
        %v6725 = vrot.slane %v6238, 5
        %v6726 = vsel %vm1350, %v6724, %v6725
        %v6727 = vrot.slane %v6639, 5
        %v6728 = vrot.slane %v6727, 4
        %v6729 = vrot.slane %v6212, 5
        %v6730 = vsel %vm1350, %v6728, %v6729
        %v6731 = vrot.slane %v6729, 4
        %v6732 = vrot.slane %v6239, 5
        %v6733 = vsel %vm1350, %v6731, %v6732
        %v6734 = vrot.slane %v6640, 5
        %v6735 = vrot.slane %v6734, 4
        %v6736 = vrot.slane %v6214, 5
        %v6737 = vsel %vm1350, %v6735, %v6736
        %v6738 = vrot.slane %v6736, 4
        %v6739 = vrot.slane %v6240, 5
        %v6740 = vsel %vm1350, %v6738, %v6739
        %v6741 = vrot.slane %v6641, 5
        %v6742 = vrot.slane %v6741, 4
        %v6743 = vrot.slane %v6216, 5
        %v6744 = vsel %vm1350, %v6742, %v6743
        %v6745 = vrot.slane %v6743, 4
        %v6746 = vrot.slane %v6241, 5
        %v6747 = vsel %vm1350, %v6745, %v6746
        %v6748 = vrot.slane %v6642, 5
        %v6749 = vrot.slane %v6748, 4
        %v6750 = vrot.slane %v6218, 5
        %v6751 = vsel %vm1350, %v6749, %v6750
        %v6752 = vrot.slane %v6750, 4
        %v6753 = vrot.slane %v6242, 5
        %v6754 = vsel %vm1350, %v6752, %v6753
        %v6755 = vrot.slane %v6643, 5
        %v6756 = vrot.slane %v6755, 4
        %v6757 = vrot.slane %v6220, 5
        %v6758 = vsel %vm1350, %v6756, %v6757
        %v6759 = vrot.slane %v6757, 4
        %v6760 = vrot.slane %v6243, 5
        %v6761 = vsel %vm1350, %v6759, %v6760
        %v6762 = vrot.slane %v6644, 5
        %v6763 = vrot.slane %v6762, 4
        %v6764 = vrot.slane %v6222, 5
        %v6765 = vsel %vm1350, %v6763, %v6764
        %v6766 = vrot.slane %v6764, 4
        %v6767 = vrot.slane %v6244, 5
        %v6768 = vsel %vm1350, %v6766, %v6767
        %v6769 = vrot.slane %v6645, 5
        %v6770 = vrot.slane %v6769, 4
        %v6771 = vrot.slane %v6224, 5
        %v6772 = vsel %vm1350, %v6770, %v6771
        %v6773 = vrot.slane %v6771, 4
        %v6774 = vrot.slane %v6245, 5
        %v6775 = vsel %vm1350, %v6773, %v6774
        %v6776 = vrot.slane %v6646, 5
        %v6777 = vrot.slane %v6776, 4
        %v6778 = vrot.slane %v6226, 5
        %v6779 = vsel %vm1350, %v6777, %v6778
        %v6780 = vrot.slane %v6778, 4
        %v6781 = vrot.slane %v6246, 5
        %v6782 = vsel %vm1350, %v6780, %v6781
        %v6783 = vrot.slane %v6647, 5
        %v6784 = vrot.slane %v6783, 4
        %v6785 = vrot.slane %v6228, 5
        %v6786 = vsel %vm1350, %v6784, %v6785
        %v6787 = vrot.slane %v6785, 4
        %v6788 = vrot.slane %v6247, 5
        %v6789 = vsel %vm1350, %v6787, %v6788
        %v6790 = vrot.slane %v6648, 5
        %v6791 = vrot.slane %v6790, 4
        %v6792 = vrot.slane %v6230, 5
        %v6793 = vsel %vm1350, %v6791, %v6792
        %v6794 = vrot.slane %v6792, 4
        %v6795 = vrot.slane %v6248, 5
        %v6796 = vsel %vm1350, %v6794, %v6795
        %v6797 = vrot.slane %v6649, 5
        %v6798 = vrot.slane %v6797, 4
        %v6799 = vrot.slane %v6232, 5
        %v6800 = vsel %vm1350, %v6798, %v6799
        %v6801 = vrot.slane %v6799, 4
        %v6802 = vrot.slane %v6249, 5
        %v6803 = vsel %vm1350, %v6801, %v6802
        %v6804 = vrot.slane %v6650, 5
        %v6805 = vrot.slane %v6804, 4
        %v6806 = vrot.slane %v6234, 5
        %v6807 = vsel %vm1350, %v6805, %v6806
        %v6808 = vrot.slane %v6806, 4
        %v6809 = vrot.slane %v6250, 5
        %v6810 = vsel %vm1350, %v6808, %v6809
        %v6827 = vunpack.c.l.b16 %v4986
        %v6828 = vunpack.c.l.b16 %v4987
        %v6829 = vunpack.c.l.b16 %v4988
        %v6830 = vunpack.c.l.b16 %v4989
        %v6831 = vunpack.c.l.b16 %v4990
        %v6832 = vunpack.c.l.b16 %v4991
        %v6833 = vunpack.c.l.b16 %v4992
        %v6834 = vunpack.c.l.b16 %v4993
        %v6835 = vunpack.c.l.b16 %v4994
        %v6836 = vunpack.c.l.b16 %v4995
        %v6837 = vunpack.c.l.b16 %v4996
        %v6838 = vunpack.c.l.b16 %v4997
        %v6839 = vunpack.c.l.b16 %v4998
        %v6840 = vunpack.c.l.b16 %v4999
        %v6841 = vunpack.c.l.b16 %v5000
        %v6842 = vunpack.c.l.b16 %v5001
        %v6843 = vunpack.c.l.b16 %v5002
        %v6844 = vunpack.c.l.b16 %v5003
        %v6845 = vunpack.c.l.b16 %v5004
        %v6846 = vunpack.c.l.b16 %v5005
        %v6847 = vunpack.c.l.b16 %v5006
        %v6848 = vunpack.c.l.b16 %v5007
        %v6849 = vunpack.c.l.b16 %v5008
        %v6850 = vunpack.c.l.b16 %v5009
        %v6851 = vunpack.c.l.b16 %v5010
        %v6852 = vunpack.c.l.b16 %v5011
        %v6853 = vunpack.c.l.b16 %v5012
        %v6854 = vunpack.c.l.b16 %v5013
        %v6855 = vunpack.c.l.b16 %v5014
        %v6856 = vunpack.c.l.b16 %v5015
        %v6857 = vunpack.c.l.b16 %v5016
        %v6858 = vunpack.c.l.b16 %v5017
        %v6859 = vpack.c.b16 %v6828, %v6827
        %v6860 = vpack.c.b16 %v6830, %v6829
        %v6861 = vpack.c.b16 %v6832, %v6831
        %v6862 = vpack.c.b16 %v6834, %v6833
        %v6863 = vpack.c.b16 %v6836, %v6835
        %v6864 = vpack.c.b16 %v6838, %v6837
        %v6865 = vpack.c.b16 %v6840, %v6839
        %v6866 = vpack.c.b16 %v6842, %v6841
        %v6867 = vpack.c.b16 %v6844, %v6843
        %v6868 = vpack.c.b16 %v6846, %v6845
        %v6869 = vpack.c.b16 %v6848, %v6847
        %v6870 = vpack.c.b16 %v6850, %v6849
        %v6871 = vpack.c.b16 %v6852, %v6851
        %v6872 = vpack.c.b16 %v6854, %v6853
        %v6873 = vpack.c.b16 %v6856, %v6855
        %v6874 = vpack.c.b16 %v6858, %v6857
        %v6875 = vunpack.c.l.b16 %v5047
        %v6876 = vunpack.c.l.b16 %v5057
        %v6877 = vunpack.c.l.b16 %v5071
        %v6878 = vunpack.c.l.b16 %v5081
        %v6879 = vunpack.c.l.b16 %v5095
        %v6880 = vunpack.c.l.b16 %v5105
        %v6881 = vunpack.c.l.b16 %v5119
        %v6882 = vunpack.c.l.b16 %v5129
        %v6883 = vunpack.c.l.b16 %v5143
        %v6884 = vunpack.c.l.b16 %v5153
        %v6885 = vunpack.c.l.b16 %v5167
        %v6886 = vunpack.c.l.b16 %v5177
        %v6887 = vunpack.c.l.b16 %v5191
        %v6888 = vunpack.c.l.b16 %v5201
        %v6889 = vunpack.c.l.b16 %v5215
        %v6890 = vunpack.c.l.b16 %v5225
        %v6891 = vunpack.c.l.b16 %v5239
        %v6892 = vunpack.c.l.b16 %v5249
        %v6893 = vunpack.c.l.b16 %v5263
        %v6894 = vunpack.c.l.b16 %v5273
        %v6895 = vunpack.c.l.b16 %v5287
        %v6896 = vunpack.c.l.b16 %v5297
        %v6897 = vunpack.c.l.b16 %v5311
        %v6898 = vunpack.c.l.b16 %v5321
        %v6899 = vunpack.c.l.b16 %v5335
        %v6900 = vunpack.c.l.b16 %v5345
        %v6901 = vunpack.c.l.b16 %v5359
        %v6902 = vunpack.c.l.b16 %v5369
        %v6903 = vunpack.c.l.b16 %v5383
        %v6904 = vunpack.c.l.b16 %v5393
        %v6905 = vunpack.c.l.b16 %v5407
        %v6906 = vunpack.c.l.b16 %v5417
        %v6907 = vpack.c.b16 %v6876, %v6875
        %v6908 = vpack.c.b16 %v6878, %v6877
        %v6909 = vpack.c.b16 %v6880, %v6879
        %v6910 = vpack.c.b16 %v6882, %v6881
        %v6911 = vpack.c.b16 %v6884, %v6883
        %v6912 = vpack.c.b16 %v6886, %v6885
        %v6913 = vpack.c.b16 %v6888, %v6887
        %v6914 = vpack.c.b16 %v6890, %v6889
        %v6915 = vpack.c.b16 %v6892, %v6891
        %v6916 = vpack.c.b16 %v6894, %v6893
        %v6917 = vpack.c.b16 %v6896, %v6895
        %v6918 = vpack.c.b16 %v6898, %v6897
        %v6919 = vpack.c.b16 %v6900, %v6899
        %v6920 = vpack.c.b16 %v6902, %v6901
        %v6921 = vpack.c.b16 %v6904, %v6903
        %v6922 = vpack.c.b16 %v6906, %v6905
        %6923 = vrot.lane.b32.xlu0 %v6907, 64
        %v6924 = vpop.permute.xlu0 %6923
        %6925 = vrot.lane.b32.xlu0 %v6908, 64
        %v6926 = vpop.permute.xlu0 %6925
        %6927 = vrot.lane.b32.xlu0 %v6909, 64
        %v6928 = vpop.permute.xlu0 %6927
        %6929 = vrot.lane.b32.xlu0 %v6910, 64
        %v6930 = vpop.permute.xlu0 %6929
        %6931 = vrot.lane.b32.xlu0 %v6911, 64
        %v6932 = vpop.permute.xlu0 %6931
        %6933 = vrot.lane.b32.xlu0 %v6912, 64
        %v6934 = vpop.permute.xlu0 %6933
        %6935 = vrot.lane.b32.xlu0 %v6913, 64
        %v6936 = vpop.permute.xlu0 %6935
        %6937 = vrot.lane.b32.xlu0 %v6914, 64
        %v6938 = vpop.permute.xlu0 %6937
        %6939 = vrot.lane.b32.xlu0 %v6915, 64
        %v6940 = vpop.permute.xlu0 %6939
        %6941 = vrot.lane.b32.xlu0 %v6916, 64
        %v6942 = vpop.permute.xlu0 %6941
        %6943 = vrot.lane.b32.xlu0 %v6917, 64
        %v6944 = vpop.permute.xlu0 %6943
        %6945 = vrot.lane.b32.xlu0 %v6918, 64
        %v6946 = vpop.permute.xlu0 %6945
        %6947 = vrot.lane.b32.xlu0 %v6919, 64
        %v6948 = vpop.permute.xlu0 %6947
        %6949 = vrot.lane.b32.xlu0 %v6920, 64
        %v6950 = vpop.permute.xlu0 %6949
        %6951 = vrot.lane.b32.xlu0 %v6921, 64
        %v6952 = vpop.permute.xlu0 %6951
        %6953 = vrot.lane.b32.xlu0 %v6922, 64
        %v6954 = vpop.permute.xlu0 %6953
        %v6955 = vunpack.c.l.b16 %v5485
        %v6956 = vunpack.c.l.b16 %v5488
        %v6957 = vunpack.c.l.b16 %v5492
        %v6958 = vunpack.c.l.b16 %v5495
        %v6959 = vunpack.c.l.b16 %v5499
        %v6960 = vunpack.c.l.b16 %v5502
        %v6961 = vunpack.c.l.b16 %v5506
        %v6962 = vunpack.c.l.b16 %v5509
        %v6963 = vunpack.c.l.b16 %v5513
        %v6964 = vunpack.c.l.b16 %v5516
        %v6965 = vunpack.c.l.b16 %v5520
        %v6966 = vunpack.c.l.b16 %v5523
        %v6967 = vunpack.c.l.b16 %v5527
        %v6968 = vunpack.c.l.b16 %v5530
        %v6969 = vunpack.c.l.b16 %v5534
        %v6970 = vunpack.c.l.b16 %v5537
        %v6971 = vunpack.c.l.b16 %v5541
        %v6972 = vunpack.c.l.b16 %v5544
        %v6973 = vunpack.c.l.b16 %v5548
        %v6974 = vunpack.c.l.b16 %v5551
        %v6975 = vunpack.c.l.b16 %v5555
        %v6976 = vunpack.c.l.b16 %v5558
        %v6977 = vunpack.c.l.b16 %v5562
        %v6978 = vunpack.c.l.b16 %v5565
        %v6979 = vunpack.c.l.b16 %v5569
        %v6980 = vunpack.c.l.b16 %v5572
        %v6981 = vunpack.c.l.b16 %v5576
        %v6982 = vunpack.c.l.b16 %v5579
        %v6983 = vunpack.c.l.b16 %v5583
        %v6984 = vunpack.c.l.b16 %v5586
        %v6985 = vunpack.c.l.b16 %v5590
        %v6986 = vunpack.c.l.b16 %v5593
        %v6987 = vpack.c.b16 %v6956, %v6955
        %v6988 = vpack.c.b16 %v6958, %v6957
        %v6989 = vpack.c.b16 %v6960, %v6959
        %v6990 = vpack.c.b16 %v6962, %v6961
        %v6991 = vpack.c.b16 %v6964, %v6963
        %v6992 = vpack.c.b16 %v6966, %v6965
        %v6993 = vpack.c.b16 %v6968, %v6967
        %v6994 = vpack.c.b16 %v6970, %v6969
        %v6995 = vpack.c.b16 %v6972, %v6971
        %v6996 = vpack.c.b16 %v6974, %v6973
        %v6997 = vpack.c.b16 %v6976, %v6975
        %v6998 = vpack.c.b16 %v6978, %v6977
        %v6999 = vpack.c.b16 %v6980, %v6979
        %v7000 = vpack.c.b16 %v6982, %v6981
        %v7001 = vpack.c.b16 %v6984, %v6983
        %v7002 = vpack.c.b16 %v6986, %v6985
        %v7019 = vunpack.c.l.b16 %v5594
        %v7020 = vunpack.c.l.b16 %v5595
        %v7021 = vunpack.c.l.b16 %v5596
        %v7022 = vunpack.c.l.b16 %v5597
        %v7023 = vunpack.c.l.b16 %v5598
        %v7024 = vunpack.c.l.b16 %v5599
        %v7025 = vunpack.c.l.b16 %v5600
        %v7026 = vunpack.c.l.b16 %v5601
        %v7027 = vunpack.c.l.b16 %v5602
        %v7028 = vunpack.c.l.b16 %v5603
        %v7029 = vunpack.c.l.b16 %v5604
        %v7030 = vunpack.c.l.b16 %v5605
        %v7031 = vunpack.c.l.b16 %v5606
        %v7032 = vunpack.c.l.b16 %v5607
        %v7033 = vunpack.c.l.b16 %v5608
        %v7034 = vunpack.c.l.b16 %v5609
        %v7035 = vunpack.c.l.b16 %v5610
        %v7036 = vunpack.c.l.b16 %v5611
        %v7037 = vunpack.c.l.b16 %v5612
        %v7038 = vunpack.c.l.b16 %v5613
        %v7039 = vunpack.c.l.b16 %v5614
        %v7040 = vunpack.c.l.b16 %v5615
        %v7041 = vunpack.c.l.b16 %v5616
        %v7042 = vunpack.c.l.b16 %v5617
        %v7043 = vunpack.c.l.b16 %v5618
        %v7044 = vunpack.c.l.b16 %v5619
        %v7045 = vunpack.c.l.b16 %v5620
        %v7046 = vunpack.c.l.b16 %v5621
        %v7047 = vunpack.c.l.b16 %v5622
        %v7048 = vunpack.c.l.b16 %v5623
        %v7049 = vunpack.c.l.b16 %v5624
        %v7050 = vunpack.c.l.b16 %v5625
        %v7051 = vpack.c.b16 %v7020, %v7019
        %v7052 = vpack.c.b16 %v7022, %v7021
        %v7053 = vpack.c.b16 %v7024, %v7023
        %v7054 = vpack.c.b16 %v7026, %v7025
        %v7055 = vpack.c.b16 %v7028, %v7027
        %v7056 = vpack.c.b16 %v7030, %v7029
        %v7057 = vpack.c.b16 %v7032, %v7031
        %v7058 = vpack.c.b16 %v7034, %v7033
        %v7059 = vpack.c.b16 %v7036, %v7035
        %v7060 = vpack.c.b16 %v7038, %v7037
        %v7061 = vpack.c.b16 %v7040, %v7039
        %v7062 = vpack.c.b16 %v7042, %v7041
        %v7063 = vpack.c.b16 %v7044, %v7043
        %v7064 = vpack.c.b16 %v7046, %v7045
        %v7065 = vpack.c.b16 %v7048, %v7047
        %v7066 = vpack.c.b16 %v7050, %v7049
        %7067 = vrot.lane.b32.xlu0 %v7051, 64
        %v7068 = vpop.permute.xlu0 %7067
        %7069 = vrot.lane.b32.xlu0 %v7052, 64
        %v7070 = vpop.permute.xlu0 %7069
        %7071 = vrot.lane.b32.xlu0 %v7053, 64
        %v7072 = vpop.permute.xlu0 %7071
        %7073 = vrot.lane.b32.xlu0 %v7054, 64
        %v7074 = vpop.permute.xlu0 %7073
        %7075 = vrot.lane.b32.xlu0 %v7055, 64
        %v7076 = vpop.permute.xlu0 %7075
        %7077 = vrot.lane.b32.xlu0 %v7056, 64
        %v7078 = vpop.permute.xlu0 %7077
        %7079 = vrot.lane.b32.xlu0 %v7057, 64
        %v7080 = vpop.permute.xlu0 %7079
        %7081 = vrot.lane.b32.xlu0 %v7058, 64
        %v7082 = vpop.permute.xlu0 %7081
        %7083 = vrot.lane.b32.xlu0 %v7059, 64
        %v7084 = vpop.permute.xlu0 %7083
        %7085 = vrot.lane.b32.xlu0 %v7060, 64
        %v7086 = vpop.permute.xlu0 %7085
        %7087 = vrot.lane.b32.xlu0 %v7061, 64
        %v7088 = vpop.permute.xlu0 %7087
        %7089 = vrot.lane.b32.xlu0 %v7062, 64
        %v7090 = vpop.permute.xlu0 %7089
        %7091 = vrot.lane.b32.xlu0 %v7063, 64
        %v7092 = vpop.permute.xlu0 %7091
        %7093 = vrot.lane.b32.xlu0 %v7064, 64
        %v7094 = vpop.permute.xlu0 %7093
        %7095 = vrot.lane.b32.xlu0 %v7065, 64
        %v7096 = vpop.permute.xlu0 %7095
        %7097 = vrot.lane.b32.xlu0 %v7066, 64
        %v7098 = vpop.permute.xlu0 %7097
        %v7099 = vunpack.c.l.b16 %v5655
        %v7100 = vunpack.c.l.b16 %v5665
        %v7101 = vunpack.c.l.b16 %v5679
        %v7102 = vunpack.c.l.b16 %v5689
        %v7103 = vunpack.c.l.b16 %v5703
        %v7104 = vunpack.c.l.b16 %v5713
        %v7105 = vunpack.c.l.b16 %v5727
        %v7106 = vunpack.c.l.b16 %v5737
        %v7107 = vunpack.c.l.b16 %v5751
        %v7108 = vunpack.c.l.b16 %v5761
        %v7109 = vunpack.c.l.b16 %v5775
        %v7110 = vunpack.c.l.b16 %v5785
        %v7111 = vunpack.c.l.b16 %v5799
        %v7112 = vunpack.c.l.b16 %v5809
        %v7113 = vunpack.c.l.b16 %v5823
        %v7114 = vunpack.c.l.b16 %v5833
        %v7115 = vunpack.c.l.b16 %v5847
        %v7116 = vunpack.c.l.b16 %v5857
        %v7117 = vunpack.c.l.b16 %v5871
        %v7118 = vunpack.c.l.b16 %v5881
        %v7119 = vunpack.c.l.b16 %v5895
        %v7120 = vunpack.c.l.b16 %v5905
        %v7121 = vunpack.c.l.b16 %v5919
        %v7122 = vunpack.c.l.b16 %v5929
        %v7123 = vunpack.c.l.b16 %v5943
        %v7124 = vunpack.c.l.b16 %v5953
        %v7125 = vunpack.c.l.b16 %v5967
        %v7126 = vunpack.c.l.b16 %v5977
        %v7127 = vunpack.c.l.b16 %v5991
        %v7128 = vunpack.c.l.b16 %v6001
        %v7129 = vunpack.c.l.b16 %v6015
        %v7130 = vunpack.c.l.b16 %v6025
        %v7131 = vpack.c.b16 %v7100, %v7099
        %v7132 = vpack.c.b16 %v7102, %v7101
        %v7133 = vpack.c.b16 %v7104, %v7103
        %v7134 = vpack.c.b16 %v7106, %v7105
        %v7135 = vpack.c.b16 %v7108, %v7107
        %v7136 = vpack.c.b16 %v7110, %v7109
        %v7137 = vpack.c.b16 %v7112, %v7111
        %v7138 = vpack.c.b16 %v7114, %v7113
        %v7139 = vpack.c.b16 %v7116, %v7115
        %v7140 = vpack.c.b16 %v7118, %v7117
        %v7141 = vpack.c.b16 %v7120, %v7119
        %v7142 = vpack.c.b16 %v7122, %v7121
        %v7143 = vpack.c.b16 %v7124, %v7123
        %v7144 = vpack.c.b16 %v7126, %v7125
        %v7145 = vpack.c.b16 %v7128, %v7127
        %v7146 = vpack.c.b16 %v7130, %v7129
        %v7147 = vunpack.c.l.b16 %v6093
        %v7148 = vunpack.c.l.b16 %v6096
        %v7149 = vunpack.c.l.b16 %v6100
        %v7150 = vunpack.c.l.b16 %v6103
        %v7151 = vunpack.c.l.b16 %v6107
        %v7152 = vunpack.c.l.b16 %v6110
        %v7153 = vunpack.c.l.b16 %v6114
        %v7154 = vunpack.c.l.b16 %v6117
        %v7155 = vunpack.c.l.b16 %v6121
        %v7156 = vunpack.c.l.b16 %v6124
        %v7157 = vunpack.c.l.b16 %v6128
        %v7158 = vunpack.c.l.b16 %v6131
        %v7159 = vunpack.c.l.b16 %v6135
        %v7160 = vunpack.c.l.b16 %v6138
        %v7161 = vunpack.c.l.b16 %v6142
        %v7162 = vunpack.c.l.b16 %v6145
        %v7163 = vunpack.c.l.b16 %v6149
        %v7164 = vunpack.c.l.b16 %v6152
        %v7165 = vunpack.c.l.b16 %v6156
        %v7166 = vunpack.c.l.b16 %v6159
        %v7167 = vunpack.c.l.b16 %v6163
        %v7168 = vunpack.c.l.b16 %v6166
        %v7169 = vunpack.c.l.b16 %v6170
        %v7170 = vunpack.c.l.b16 %v6173
        %v7171 = vunpack.c.l.b16 %v6177
        %v7172 = vunpack.c.l.b16 %v6180
        %v7173 = vunpack.c.l.b16 %v6184
        %v7174 = vunpack.c.l.b16 %v6187
        %v7175 = vunpack.c.l.b16 %v6191
        %v7176 = vunpack.c.l.b16 %v6194
        %v7177 = vunpack.c.l.b16 %v6198
        %v7178 = vunpack.c.l.b16 %v6201
        %v7179 = vpack.c.b16 %v7148, %v7147
        %v7180 = vpack.c.b16 %v7150, %v7149
        %v7181 = vpack.c.b16 %v7152, %v7151
        %v7182 = vpack.c.b16 %v7154, %v7153
        %v7183 = vpack.c.b16 %v7156, %v7155
        %v7184 = vpack.c.b16 %v7158, %v7157
        %v7185 = vpack.c.b16 %v7160, %v7159
        %v7186 = vpack.c.b16 %v7162, %v7161
        %v7187 = vpack.c.b16 %v7164, %v7163
        %v7188 = vpack.c.b16 %v7166, %v7165
        %v7189 = vpack.c.b16 %v7168, %v7167
        %v7190 = vpack.c.b16 %v7170, %v7169
        %v7191 = vpack.c.b16 %v7172, %v7171
        %v7192 = vpack.c.b16 %v7174, %v7173
        %v7193 = vpack.c.b16 %v7176, %v7175
        %v7194 = vpack.c.b16 %v7178, %v7177
        %7195 = vrot.lane.b32.xlu0 %v7179, 64
        %v7196 = vpop.permute.xlu0 %7195
        %7197 = vrot.lane.b32.xlu0 %v7180, 64
        %v7198 = vpop.permute.xlu0 %7197
        %7199 = vrot.lane.b32.xlu0 %v7181, 64
        %v7200 = vpop.permute.xlu0 %7199
        %7201 = vrot.lane.b32.xlu0 %v7182, 64
        %v7202 = vpop.permute.xlu0 %7201
        %7203 = vrot.lane.b32.xlu0 %v7183, 64
        %v7204 = vpop.permute.xlu0 %7203
        %7205 = vrot.lane.b32.xlu0 %v7184, 64
        %v7206 = vpop.permute.xlu0 %7205
        %7207 = vrot.lane.b32.xlu0 %v7185, 64
        %v7208 = vpop.permute.xlu0 %7207
        %7209 = vrot.lane.b32.xlu0 %v7186, 64
        %v7210 = vpop.permute.xlu0 %7209
        %7211 = vrot.lane.b32.xlu0 %v7187, 64
        %v7212 = vpop.permute.xlu0 %7211
        %7213 = vrot.lane.b32.xlu0 %v7188, 64
        %v7214 = vpop.permute.xlu0 %7213
        %7215 = vrot.lane.b32.xlu0 %v7189, 64
        %v7216 = vpop.permute.xlu0 %7215
        %7217 = vrot.lane.b32.xlu0 %v7190, 64
        %v7218 = vpop.permute.xlu0 %7217
        %7219 = vrot.lane.b32.xlu0 %v7191, 64
        %v7220 = vpop.permute.xlu0 %7219
        %7221 = vrot.lane.b32.xlu0 %v7192, 64
        %v7222 = vpop.permute.xlu0 %7221
        %7223 = vrot.lane.b32.xlu0 %v7193, 64
        %v7224 = vpop.permute.xlu0 %7223
        %7225 = vrot.lane.b32.xlu0 %v7194, 64
        %v7226 = vpop.permute.xlu0 %7225
        %v7243 = vunpack.c.l.b16 %v6203
        %v7244 = vunpack.c.l.b16 %v6204
        %v7245 = vunpack.c.l.b16 %v6205
        %v7246 = vunpack.c.l.b16 %v6206
        %v7247 = vunpack.c.l.b16 %v6207
        %v7248 = vunpack.c.l.b16 %v6208
        %v7249 = vunpack.c.l.b16 %v6209
        %v7250 = vunpack.c.l.b16 %v6210
        %v7251 = vunpack.c.l.b16 %v6211
        %v7252 = vunpack.c.l.b16 %v6212
        %v7253 = vunpack.c.l.b16 %v6213
        %v7254 = vunpack.c.l.b16 %v6214
        %v7255 = vunpack.c.l.b16 %v6215
        %v7256 = vunpack.c.l.b16 %v6216
        %v7257 = vunpack.c.l.b16 %v6217
        %v7258 = vunpack.c.l.b16 %v6218
        %v7259 = vunpack.c.l.b16 %v6219
        %v7260 = vunpack.c.l.b16 %v6220
        %v7261 = vunpack.c.l.b16 %v6221
        %v7262 = vunpack.c.l.b16 %v6222
        %v7263 = vunpack.c.l.b16 %v6223
        %v7264 = vunpack.c.l.b16 %v6224
        %v7265 = vunpack.c.l.b16 %v6225
        %v7266 = vunpack.c.l.b16 %v6226
        %v7267 = vunpack.c.l.b16 %v6227
        %v7268 = vunpack.c.l.b16 %v6228
        %v7269 = vunpack.c.l.b16 %v6229
        %v7270 = vunpack.c.l.b16 %v6230
        %v7271 = vunpack.c.l.b16 %v6231
        %v7272 = vunpack.c.l.b16 %v6232
        %v7273 = vunpack.c.l.b16 %v6233
        %v7274 = vunpack.c.l.b16 %v6234
        %v7275 = vpack.c.b16 %v7244, %v7243
        %v7276 = vpack.c.b16 %v7246, %v7245
        %v7277 = vpack.c.b16 %v7248, %v7247
        %v7278 = vpack.c.b16 %v7250, %v7249
        %v7279 = vpack.c.b16 %v7252, %v7251
        %v7280 = vpack.c.b16 %v7254, %v7253
        %v7281 = vpack.c.b16 %v7256, %v7255
        %v7282 = vpack.c.b16 %v7258, %v7257
        %v7283 = vpack.c.b16 %v7260, %v7259
        %v7284 = vpack.c.b16 %v7262, %v7261
        %v7285 = vpack.c.b16 %v7264, %v7263
        %v7286 = vpack.c.b16 %v7266, %v7265
        %v7287 = vpack.c.b16 %v7268, %v7267
        %v7288 = vpack.c.b16 %v7270, %v7269
        %v7289 = vpack.c.b16 %v7272, %v7271
        %v7290 = vpack.c.b16 %v7274, %v7273
        %v7291 = vunpack.c.l.b16 %v6264
        %v7292 = vunpack.c.l.b16 %v6274
        %v7293 = vunpack.c.l.b16 %v6288
        %v7294 = vunpack.c.l.b16 %v6298
        %v7295 = vunpack.c.l.b16 %v6312
        %v7296 = vunpack.c.l.b16 %v6322
        %v7297 = vunpack.c.l.b16 %v6336
        %v7298 = vunpack.c.l.b16 %v6346
        %v7299 = vunpack.c.l.b16 %v6360
        %v7300 = vunpack.c.l.b16 %v6370
        %v7301 = vunpack.c.l.b16 %v6384
        %v7302 = vunpack.c.l.b16 %v6394
        %v7303 = vunpack.c.l.b16 %v6408
        %v7304 = vunpack.c.l.b16 %v6418
        %v7305 = vunpack.c.l.b16 %v6432
        %v7306 = vunpack.c.l.b16 %v6442
        %v7307 = vunpack.c.l.b16 %v6456
        %v7308 = vunpack.c.l.b16 %v6466
        %v7309 = vunpack.c.l.b16 %v6480
        %v7310 = vunpack.c.l.b16 %v6490
        %v7311 = vunpack.c.l.b16 %v6504
        %v7312 = vunpack.c.l.b16 %v6514
        %v7313 = vunpack.c.l.b16 %v6528
        %v7314 = vunpack.c.l.b16 %v6538
        %v7315 = vunpack.c.l.b16 %v6552
        %v7316 = vunpack.c.l.b16 %v6562
        %v7317 = vunpack.c.l.b16 %v6576
        %v7318 = vunpack.c.l.b16 %v6586
        %v7319 = vunpack.c.l.b16 %v6600
        %v7320 = vunpack.c.l.b16 %v6610
        %v7321 = vunpack.c.l.b16 %v6624
        %v7322 = vunpack.c.l.b16 %v6634
        %v7323 = vpack.c.b16 %v7292, %v7291
        %v7324 = vpack.c.b16 %v7294, %v7293
        %v7325 = vpack.c.b16 %v7296, %v7295
        %v7326 = vpack.c.b16 %v7298, %v7297
        %v7327 = vpack.c.b16 %v7300, %v7299
        %v7328 = vpack.c.b16 %v7302, %v7301
        %v7329 = vpack.c.b16 %v7304, %v7303
        %v7330 = vpack.c.b16 %v7306, %v7305
        %v7331 = vpack.c.b16 %v7308, %v7307
        %v7332 = vpack.c.b16 %v7310, %v7309
        %v7333 = vpack.c.b16 %v7312, %v7311
        %v7334 = vpack.c.b16 %v7314, %v7313
        %v7335 = vpack.c.b16 %v7316, %v7315
        %v7336 = vpack.c.b16 %v7318, %v7317
        %v7337 = vpack.c.b16 %v7320, %v7319
        %v7338 = vpack.c.b16 %v7322, %v7321
        %7339 = vrot.lane.b32.xlu0 %v7323, 64
        %v7340 = vpop.permute.xlu0 %7339
        %7341 = vrot.lane.b32.xlu0 %v7324, 64
        %v7342 = vpop.permute.xlu0 %7341
        %7343 = vrot.lane.b32.xlu0 %v7325, 64
        %v7344 = vpop.permute.xlu0 %7343
        %7345 = vrot.lane.b32.xlu0 %v7326, 64
        %v7346 = vpop.permute.xlu0 %7345
        %7347 = vrot.lane.b32.xlu0 %v7327, 64
        %v7348 = vpop.permute.xlu0 %7347
        %7349 = vrot.lane.b32.xlu0 %v7328, 64
        %v7350 = vpop.permute.xlu0 %7349
        %7351 = vrot.lane.b32.xlu0 %v7329, 64
        %v7352 = vpop.permute.xlu0 %7351
        %7353 = vrot.lane.b32.xlu0 %v7330, 64
        %v7354 = vpop.permute.xlu0 %7353
        %7355 = vrot.lane.b32.xlu0 %v7331, 64
        %v7356 = vpop.permute.xlu0 %7355
        %7357 = vrot.lane.b32.xlu0 %v7332, 64
        %v7358 = vpop.permute.xlu0 %7357
        %7359 = vrot.lane.b32.xlu0 %v7333, 64
        %v7360 = vpop.permute.xlu0 %7359
        %7361 = vrot.lane.b32.xlu0 %v7334, 64
        %v7362 = vpop.permute.xlu0 %7361
        %7363 = vrot.lane.b32.xlu0 %v7335, 64
        %v7364 = vpop.permute.xlu0 %7363
        %7365 = vrot.lane.b32.xlu0 %v7336, 64
        %v7366 = vpop.permute.xlu0 %7365
        %7367 = vrot.lane.b32.xlu0 %v7337, 64
        %v7368 = vpop.permute.xlu0 %7367
        %7369 = vrot.lane.b32.xlu0 %v7338, 64
        %v7370 = vpop.permute.xlu0 %7369
        %v7371 = vunpack.c.l.b16 %v6702
        %v7372 = vunpack.c.l.b16 %v6705
        %v7373 = vunpack.c.l.b16 %v6709
        %v7374 = vunpack.c.l.b16 %v6712
        %v7375 = vunpack.c.l.b16 %v6716
        %v7376 = vunpack.c.l.b16 %v6719
        %v7377 = vunpack.c.l.b16 %v6723
        %v7378 = vunpack.c.l.b16 %v6726
        %v7379 = vunpack.c.l.b16 %v6730
        %v7380 = vunpack.c.l.b16 %v6733
        %v7381 = vunpack.c.l.b16 %v6737
        %v7382 = vunpack.c.l.b16 %v6740
        %v7383 = vunpack.c.l.b16 %v6744
        %v7384 = vunpack.c.l.b16 %v6747
        %v7385 = vunpack.c.l.b16 %v6751
        %v7386 = vunpack.c.l.b16 %v6754
        %v7387 = vunpack.c.l.b16 %v6758
        %v7388 = vunpack.c.l.b16 %v6761
        %v7389 = vunpack.c.l.b16 %v6765
        %v7390 = vunpack.c.l.b16 %v6768
        %v7391 = vunpack.c.l.b16 %v6772
        %v7392 = vunpack.c.l.b16 %v6775
        %v7393 = vunpack.c.l.b16 %v6779
        %v7394 = vunpack.c.l.b16 %v6782
        %v7395 = vunpack.c.l.b16 %v6786
        %v7396 = vunpack.c.l.b16 %v6789
        %v7397 = vunpack.c.l.b16 %v6793
        %v7398 = vunpack.c.l.b16 %v6796
        %v7399 = vunpack.c.l.b16 %v6800
        %v7400 = vunpack.c.l.b16 %v6803
        %v7401 = vunpack.c.l.b16 %v6807
        %v7402 = vunpack.c.l.b16 %v6810
        %v7403 = vpack.c.b16 %v7372, %v7371
        %v7404 = vpack.c.b16 %v7374, %v7373
        %v7405 = vpack.c.b16 %v7376, %v7375
        %v7406 = vpack.c.b16 %v7378, %v7377
        %v7407 = vpack.c.b16 %v7380, %v7379
        %v7408 = vpack.c.b16 %v7382, %v7381
        %v7409 = vpack.c.b16 %v7384, %v7383
        %v7410 = vpack.c.b16 %v7386, %v7385
        %v7411 = vpack.c.b16 %v7388, %v7387
        %v7412 = vpack.c.b16 %v7390, %v7389
        %v7413 = vpack.c.b16 %v7392, %v7391
        %v7414 = vpack.c.b16 %v7394, %v7393
        %v7415 = vpack.c.b16 %v7396, %v7395
        %v7416 = vpack.c.b16 %v7398, %v7397
        %v7417 = vpack.c.b16 %v7400, %v7399
        %v7418 = vpack.c.b16 %v7402, %v7401
        %v7421 = vsel %vm3288, %v6859, %v6924
        %v7425 = vsel %vm3288, %v6860, %v6926
        %v7429 = vsel %vm3288, %v6861, %v6928
        %v7433 = vsel %vm3288, %v6862, %v6930
        %v7437 = vsel %vm3288, %v6863, %v6932
        %v7441 = vsel %vm3288, %v6864, %v6934
        %v7445 = vsel %vm3288, %v6865, %v6936
        %v7449 = vsel %vm3288, %v6866, %v6938
        %v7453 = vsel %vm3288, %v6867, %v6940
        %v7457 = vsel %vm3288, %v6868, %v6942
        %v7461 = vsel %vm3288, %v6869, %v6944
        %v7465 = vsel %vm3288, %v6870, %v6946
        %v7469 = vsel %vm3288, %v6871, %v6948
        %v7473 = vsel %vm3288, %v6872, %v6950
        %v7477 = vsel %vm3288, %v6873, %v6952
        %v7481 = vsel %vm3288, %v6874, %v6954
        %v7485 = vsel %vm3288, %v6987, %v7068
        %v7489 = vsel %vm3288, %v6988, %v7070
        %v7493 = vsel %vm3288, %v6989, %v7072
        %v7497 = vsel %vm3288, %v6990, %v7074
        %v7501 = vsel %vm3288, %v6991, %v7076
        %v7505 = vsel %vm3288, %v6992, %v7078
        %v7509 = vsel %vm3288, %v6993, %v7080
        %v7513 = vsel %vm3288, %v6994, %v7082
        %v7517 = vsel %vm3288, %v6995, %v7084
        %v7521 = vsel %vm3288, %v6996, %v7086
        %v7525 = vsel %vm3288, %v6997, %v7088
        %v7529 = vsel %vm3288, %v6998, %v7090
        %v7533 = vsel %vm3288, %v6999, %v7092
        %v7537 = vsel %vm3288, %v7000, %v7094
        %v7541 = vsel %vm3288, %v7001, %v7096
        %v7545 = vsel %vm3288, %v7002, %v7098
        %v7549 = vsel %vm3288, %v7131, %v7196
        %v7553 = vsel %vm3288, %v7132, %v7198
        %v7557 = vsel %vm3288, %v7133, %v7200
        %v7561 = vsel %vm3288, %v7134, %v7202
        %v7565 = vsel %vm3288, %v7135, %v7204
        %v7569 = vsel %vm3288, %v7136, %v7206
        %v7573 = vsel %vm3288, %v7137, %v7208
        %v7577 = vsel %vm3288, %v7138, %v7210
        %v7581 = vsel %vm3288, %v7139, %v7212
        %v7585 = vsel %vm3288, %v7140, %v7214
        %v7589 = vsel %vm3288, %v7141, %v7216
        %v7593 = vsel %vm3288, %v7142, %v7218
        %v7597 = vsel %vm3288, %v7143, %v7220
        %v7601 = vsel %vm3288, %v7144, %v7222
        %v7605 = vsel %vm3288, %v7145, %v7224
        %v7609 = vsel %vm3288, %v7146, %v7226
        %v7613 = vsel %vm3288, %v7275, %v7340
        %v7617 = vsel %vm3288, %v7276, %v7342
        %v7621 = vsel %vm3288, %v7277, %v7344
        %v7625 = vsel %vm3288, %v7278, %v7346
        %v7629 = vsel %vm3288, %v7279, %v7348
        %v7633 = vsel %vm3288, %v7280, %v7350
        %v7637 = vsel %vm3288, %v7281, %v7352
        %v7641 = vsel %vm3288, %v7282, %v7354
        %v7645 = vsel %vm3288, %v7283, %v7356
        %v7649 = vsel %vm3288, %v7284, %v7358
        %v7653 = vsel %vm3288, %v7285, %v7360
        %v7657 = vsel %vm3288, %v7286, %v7362
        %v7661 = vsel %vm3288, %v7287, %v7364
        %v7665 = vsel %vm3288, %v7288, %v7366
        %v7669 = vsel %vm3288, %v7289, %v7368
        %v7673 = vsel %vm3288, %v7290, %v7370
        %v7675 = vld [vmem:[%s3] sm:$0xf]
        %v7676 = vld [vmem:[%s3 + $0x4] sm:$0xf]
        %v7677 = vld [vmem:[%s3 + $0x8] sm:$0xf]
        %v7678 = vld [vmem:[%s3 + $0xc] sm:$0xf]
        %v7679 = vld [vmem:[%s3 + $0x10] sm:$0xf]
        %v7680 = vld [vmem:[%s3 + $0x14] sm:$0xf]
        %v7681 = vld [vmem:[%s3 + $0x18] sm:$0xf]
        %v7682 = vld [vmem:[%s3 + $0x1c] sm:$0xf]
        %v7683 = vld [vmem:[%s3 + $0x20] sm:$0xf]
        %v7684 = vld [vmem:[%s3 + $0x24] sm:$0xf]
        %v7685 = vld [vmem:[%s3 + $0x28] sm:$0xf]
        %v7686 = vld [vmem:[%s3 + $0x2c] sm:$0xf]
        %v7687 = vld [vmem:[%s3 + $0x30] sm:$0xf]
        %v7688 = vld [vmem:[%s3 + $0x34] sm:$0xf]
        %v7689 = vld [vmem:[%s3 + $0x38] sm:$0xf]
        %v7690 = vld [vmem:[%s3 + $0x3c] sm:$0xf]
        %v7691 = vld [vmem:[%s3 + $0x40] sm:$0xf]
        %v7692 = vld [vmem:[%s3 + $0x44] sm:$0xf]
        %v7693 = vld [vmem:[%s3 + $0x48] sm:$0xf]
        %v7694 = vld [vmem:[%s3 + $0x4c] sm:$0xf]
        %v7695 = vld [vmem:[%s3 + $0x50] sm:$0xf]
        %v7696 = vld [vmem:[%s3 + $0x54] sm:$0xf]
        %v7697 = vld [vmem:[%s3 + $0x58] sm:$0xf]
        %v7698 = vld [vmem:[%s3 + $0x5c] sm:$0xf]
        %v7699 = vld [vmem:[%s3 + $0x60] sm:$0xf]
        %v7700 = vld [vmem:[%s3 + $0x64] sm:$0xf]
        %v7701 = vld [vmem:[%s3 + $0x68] sm:$0xf]
        %v7702 = vld [vmem:[%s3 + $0x6c] sm:$0xf]
        %v7703 = vld [vmem:[%s3 + $0x70] sm:$0xf]
        %v7704 = vld [vmem:[%s3 + $0x74] sm:$0xf]
        %v7705 = vld [vmem:[%s3 + $0x78] sm:$0xf]
        %v7706 = vld [vmem:[%s3 + $0x7c] sm:$0xf]
        %v7707 = vld [vmem:[%s3 + $0x80] sm:$0xf]
        %v7708 = vld [vmem:[%s3 + $0x84] sm:$0xf]
        %v7709 = vld [vmem:[%s3 + $0x88] sm:$0xf]
        %v7710 = vld [vmem:[%s3 + $0x8c] sm:$0xf]
        %v7711 = vld [vmem:[%s3 + $0x90] sm:$0xf]
        %v7712 = vld [vmem:[%s3 + $0x94] sm:$0xf]
        %v7713 = vld [vmem:[%s3 + $0x98] sm:$0xf]
        %v7714 = vld [vmem:[%s3 + $0x9c] sm:$0xf]
        %v7715 = vld [vmem:[%s3 + $0xa0] sm:$0xf]
        %v7716 = vld [vmem:[%s3 + $0xa4] sm:$0xf]
        %v7717 = vld [vmem:[%s3 + $0xa8] sm:$0xf]
        %v7718 = vld [vmem:[%s3 + $0xac] sm:$0xf]
        %v7719 = vld [vmem:[%s3 + $0xb0] sm:$0xf]
        %v7720 = vld [vmem:[%s3 + $0xb4] sm:$0xf]
        %v7721 = vld [vmem:[%s3 + $0xb8] sm:$0xf]
        %v7722 = vld [vmem:[%s3 + $0xbc] sm:$0xf]
        %v7723 = vld [vmem:[%s3 + $0xc0] sm:$0xf]
        %v7724 = vld [vmem:[%s3 + $0xc4] sm:$0xf]
        %v7725 = vld [vmem:[%s3 + $0xc8] sm:$0xf]
        %v7726 = vld [vmem:[%s3 + $0xcc] sm:$0xf]
        %v7727 = vld [vmem:[%s3 + $0xd0] sm:$0xf]
        %v7728 = vld [vmem:[%s3 + $0xd4] sm:$0xf]
        %v7729 = vld [vmem:[%s3 + $0xd8] sm:$0xf]
        %v7730 = vld [vmem:[%s3 + $0xdc] sm:$0xf]
        %v7731 = vld [vmem:[%s3 + $0xe0] sm:$0xf]
        %v7732 = vld [vmem:[%s3 + $0xe4] sm:$0xf]
        %v7733 = vld [vmem:[%s3 + $0xe8] sm:$0xf]
        %v7734 = vld [vmem:[%s3 + $0xec] sm:$0xf]
        %v7735 = vld [vmem:[%s3 + $0xf0] sm:$0xf]
        %v7736 = vld [vmem:[%s3 + $0xf4] sm:$0xf]
        %v7737 = vld [vmem:[%s3 + $0xf8] sm:$0xf]
        %v7738 = vld [vmem:[%s3 + $0xfc] sm:$0xf]
        %v7739 = vld [vmem:[%s3 + $0x100] sm:$0xf]
        %v7740 = vld [vmem:[%s3 + $0x104] sm:$0xf]
        %v7741 = vld [vmem:[%s3 + $0x108] sm:$0xf]
        %v7742 = vld [vmem:[%s3 + $0x10c] sm:$0xf]
        %v7743 = vld [vmem:[%s3 + $0x110] sm:$0xf]
        %v7744 = vld [vmem:[%s3 + $0x114] sm:$0xf]
        %v7745 = vld [vmem:[%s3 + $0x118] sm:$0xf]
        %v7746 = vld [vmem:[%s3 + $0x11c] sm:$0xf]
        %v7747 = vld [vmem:[%s4] sm:$0x1]
        %v7749 = vlaneseq
        %v7750 = vshrl.u32 %v7749, 7
        %v7751 = vsub.s32 0, %v7750
        %v7752 = vrot.slane %v7747, %v7751
        %v7826 = vunpack.c.l.b16 %v7675
        %v7827 = vunpack.c.l.b16 %v7676
        %v7828 = vunpack.c.l.b16 %v7677
        %v7829 = vunpack.c.l.b16 %v7678
        %v7830 = vunpack.c.l.b16 %v7679
        %v7831 = vunpack.c.l.b16 %v7680
        %v7832 = vunpack.c.l.b16 %v7681
        %v7833 = vunpack.c.l.b16 %v7682
        %v7834 = vunpack.c.l.b16 %v7683
        %v7835 = vunpack.c.l.b16 %v7684
        %v7836 = vunpack.c.l.b16 %v7685
        %v7837 = vunpack.c.l.b16 %v7686
        %v7838 = vunpack.c.l.b16 %v7687
        %v7839 = vunpack.c.l.b16 %v7688
        %v7840 = vunpack.c.l.b16 %v7689
        %v7841 = vunpack.c.l.b16 %v7690
        %v7842 = vunpack.c.l.b16 %v7691
        %v7843 = vunpack.c.l.b16 %v7692
        %v7844 = vunpack.c.l.b16 %v7693
        %v7845 = vunpack.c.l.b16 %v7694
        %v7846 = vunpack.c.l.b16 %v7695
        %v7847 = vunpack.c.l.b16 %v7696
        %v7848 = vunpack.c.l.b16 %v7697
        %v7849 = vunpack.c.l.b16 %v7698
        %v7850 = vunpack.c.l.b16 %v7699
        %v7851 = vunpack.c.l.b16 %v7700
        %v7852 = vunpack.c.l.b16 %v7701
        %v7853 = vunpack.c.l.b16 %v7702
        %v7854 = vunpack.c.l.b16 %v7703
        %v7855 = vunpack.c.l.b16 %v7704
        %v7856 = vunpack.c.l.b16 %v7705
        %v7857 = vunpack.c.l.b16 %v7706
        %v7858 = vunpack.c.l.b16 %v7707
        %v7859 = vunpack.c.l.b16 %v7708
        %v7860 = vunpack.c.l.b16 %v7709
        %v7861 = vunpack.c.l.b16 %v7710
        %v7862 = vunpack.c.l.b16 %v7711
        %v7863 = vunpack.c.l.b16 %v7712
        %v7864 = vunpack.c.l.b16 %v7713
        %v7865 = vunpack.c.l.b16 %v7714
        %v7866 = vunpack.c.l.b16 %v7715
        %v7867 = vunpack.c.l.b16 %v7716
        %v7868 = vunpack.c.l.b16 %v7717
        %v7869 = vunpack.c.l.b16 %v7718
        %v7870 = vunpack.c.l.b16 %v7719
        %v7871 = vunpack.c.l.b16 %v7720
        %v7872 = vunpack.c.l.b16 %v7721
        %v7873 = vunpack.c.l.b16 %v7722
        %v7874 = vunpack.c.l.b16 %v7723
        %v7875 = vunpack.c.l.b16 %v7724
        %v7876 = vunpack.c.l.b16 %v7725
        %v7877 = vunpack.c.l.b16 %v7726
        %v7878 = vunpack.c.l.b16 %v7727
        %v7879 = vunpack.c.l.b16 %v7728
        %v7880 = vunpack.c.l.b16 %v7729
        %v7881 = vunpack.c.l.b16 %v7730
        %v7882 = vunpack.c.l.b16 %v7731
        %v7883 = vunpack.c.l.b16 %v7732
        %v7884 = vunpack.c.l.b16 %v7733
        %v7885 = vunpack.c.l.b16 %v7734
        %v7886 = vunpack.c.l.b16 %v7735
        %v7887 = vunpack.c.l.b16 %v7736
        %v7888 = vunpack.c.l.b16 %v7737
        %v7889 = vunpack.c.l.b16 %v7738
        %v7890 = vunpack.c.l.b16 %v7739
        %v7891 = vunpack.c.l.b16 %v7740
        %v7892 = vunpack.c.l.b16 %v7741
        %v7893 = vunpack.c.l.b16 %v7742
        %v7894 = vunpack.c.l.b16 %v7743
        %v7895 = vunpack.c.l.b16 %v7744
        %v7896 = vunpack.c.l.b16 %v7745
        %v7897 = vunpack.c.l.b16 %v7746
        %v7898 = vpack.c.b16 %v7827, %v7826
        %v7899 = vpack.c.b16 %v7829, %v7828
        %v7900 = vpack.c.b16 %v7831, %v7830
        %v7901 = vpack.c.b16 %v7833, %v7832
        %v7902 = vpack.c.b16 %v7835, %v7834
        %v7903 = vpack.c.b16 %v7837, %v7836
        %v7904 = vpack.c.b16 %v7839, %v7838
        %v7905 = vpack.c.b16 %v7841, %v7840
        %v7906 = vpack.c.b16 %v7843, %v7842
        %v7907 = vpack.c.b16 %v7845, %v7844
        %v7908 = vpack.c.b16 %v7847, %v7846
        %v7909 = vpack.c.b16 %v7849, %v7848
        %v7910 = vpack.c.b16 %v7851, %v7850
        %v7911 = vpack.c.b16 %v7853, %v7852
        %v7912 = vpack.c.b16 %v7855, %v7854
        %v7913 = vpack.c.b16 %v7857, %v7856
        %v7914 = vpack.c.b16 %v7859, %v7858
        %v7915 = vpack.c.b16 %v7861, %v7860
        %v7916 = vpack.c.b16 %v7863, %v7862
        %v7917 = vpack.c.b16 %v7865, %v7864
        %v7918 = vpack.c.b16 %v7867, %v7866
        %v7919 = vpack.c.b16 %v7869, %v7868
        %v7920 = vpack.c.b16 %v7871, %v7870
        %v7921 = vpack.c.b16 %v7873, %v7872
        %v7922 = vpack.c.b16 %v7875, %v7874
        %v7923 = vpack.c.b16 %v7877, %v7876
        %v7924 = vpack.c.b16 %v7879, %v7878
        %v7925 = vpack.c.b16 %v7881, %v7880
        %v7926 = vpack.c.b16 %v7883, %v7882
        %v7927 = vpack.c.b16 %v7885, %v7884
        %v7928 = vpack.c.b16 %v7887, %v7886
        %v7929 = vpack.c.b16 %v7889, %v7888
        %v7930 = vpack.c.b16 %v7891, %v7890
        %v7931 = vpack.c.b16 %v7893, %v7892
        %v7932 = vpack.c.b16 %v7895, %v7894
        %v7933 = vpack.c.b16 %v7897, %v7896
        %v7971 = vsel %vm3288, %v7403, 0
        %v7974 = vsel %vm3288, %v7404, 0
        %v7977 = vsel %vm3288, %v7405, 0
        %v7980 = vsel %vm3288, %v7406, 0
        %v7983 = vsel %vm3288, %v7407, 0
        %v7986 = vsel %vm3288, %v7408, 0
        %v7989 = vsel %vm3288, %v7409, 0
        %v7992 = vsel %vm3288, %v7410, 0
        %v7995 = vsel %vm3288, %v7411, 0
        %v7998 = vsel %vm3288, %v7412, 0
        %v8001 = vsel %vm3288, %v7413, 0
        %v8004 = vsel %vm3288, %v7414, 0
        %v8007 = vsel %vm3288, %v7415, 0
        %v8010 = vsel %vm3288, %v7416, 0
        %v8013 = vsel %vm3288, %v7417, 0
        %v8016 = vsel %vm3288, %v7418, 0
        %8018 = vmatprep.subr.bf16.mxu0 0
        %8019 = vmatpush1.bf16.msra.mxu0 %v7898
        %8020 = vmatprep.subr.bf16.mxu0 0
        %8021 = vmatpush1.bf16.msra.mxu0 %v7899
        %8022 = vmatprep.subr.bf16.mxu0 0
        %8023 = vmatpush1.bf16.msra.mxu0 %v7900
        %8024 = vmatprep.subr.bf16.mxu0 0
        %8025 = vmatpush1.bf16.msra.mxu0 %v7901
        %8026 = vmatprep.subr.bf16.mxu0 0
        %8027 = vmatpush1.bf16.msra.mxu0 %v7902
        %8028 = vmatprep.subr.bf16.mxu0 0
        %8029 = vmatpush1.bf16.msra.mxu0 %v7903
        %8030 = vmatprep.subr.bf16.mxu0 0
        %8031 = vmatpush1.bf16.msra.mxu0 %v7904
        %8032 = vmatprep.subr.bf16.mxu0 0
        %8033 = vmatpush1.bf16.msra.mxu0 %v7905
        %8034 = vmatprep.subr.bf16.mxu0 0
        %8035 = vmatpush1.bf16.msra.mxu0 %v7906
        %8036 = vmatprep.subr.bf16.mxu0 0
        %8037 = vmatpush1.bf16.msra.mxu0 %v7907
        %8038 = vmatprep.subr.bf16.mxu0 0
        %8039 = vmatpush1.bf16.msra.mxu0 %v7908
        %8040 = vmatprep.subr.bf16.mxu0 0
        %8041 = vmatpush1.bf16.msra.mxu0 %v7909
        %8042 = vmatprep.subr.bf16.mxu0 0
        %8043 = vmatpush1.bf16.msra.mxu0 %v7910
        %8044 = vmatprep.subr.bf16.mxu0 0
        %8045 = vmatpush1.bf16.msra.mxu0 %v7911
        %8046 = vmatprep.subr.bf16.mxu0 0
        %8047 = vmatpush1.bf16.msra.mxu0 %v7912
        %8048 = vmatprep.subr.bf16.mxu0 0
        %8049 = vmatpush1.bf16.msra.mxu0 %v7913
        %8050 = vmatprep.mubr.bf16.mxu0 %v7485
        %8051 = vmatmul.mubr.bf16.gmra.mrb[0].mxu0 %v7421
        %v8052 = vpop.f32.mrb[0].mxu0
        %v8053 = vadd.f32 %v7752, %v8052
        %v8054 = vpop.f32.mrb[0].mxu0
        %v8055 = vpop.f32.mrb[0].mxu0
        %v8056 = vadd.f32 %v7752, %v8055
        %v8057 = vpop.f32.mrb[0].mxu0
        %8058 = vmatprep.mubr.bf16.mxu0 %v7489
        %8059 = vmatmul.mubr.bf16.gmra.mrb[0].mxu0 %v7425
        %v8060 = vpop.f32.mrb[0].mxu0
        %v8061 = vadd.f32 %v7752, %v8060
        %v8062 = vpop.f32.mrb[0].mxu0
        %v8063 = vpop.f32.mrb[0].mxu0
        %v8064 = vadd.f32 %v7752, %v8063
        %v8065 = vpop.f32.mrb[0].mxu0
        %8066 = vmatprep.mubr.bf16.mxu0 %v7493
        %8067 = vmatmul.mubr.bf16.gmra.mrb[0].mxu0 %v7429
        %v8068 = vpop.f32.mrb[0].mxu0
        %v8069 = vadd.f32 %v7752, %v8068
        %v8070 = vpop.f32.mrb[0].mxu0
        %v8071 = vpop.f32.mrb[0].mxu0
        %v8072 = vadd.f32 %v7752, %v8071
        %v8073 = vpop.f32.mrb[0].mxu0
        %8074 = vmatprep.mubr.bf16.mxu0 %v7497
        %8075 = vmatmul.mubr.bf16.gmra.mrb[0].mxu0 %v7433
        %v8076 = vpop.f32.mrb[0].mxu0
        %v8077 = vadd.f32 %v7752, %v8076
        %v8078 = vpop.f32.mrb[0].mxu0
        %v8079 = vpop.f32.mrb[0].mxu0
        %v8080 = vadd.f32 %v7752, %v8079
        %v8081 = vpop.f32.mrb[0].mxu0
        %8082 = vmatprep.mubr.bf16.mxu0 %v7501
        %8083 = vmatmul.mubr.bf16.gmra.mrb[0].mxu0 %v7437
        %v8084 = vpop.f32.mrb[0].mxu0
        %v8085 = vadd.f32 %v7752, %v8084
        %v8086 = vpop.f32.mrb[0].mxu0
        %v8087 = vpop.f32.mrb[0].mxu0
        %v8088 = vadd.f32 %v7752, %v8087
        %v8089 = vpop.f32.mrb[0].mxu0
        %8090 = vmatprep.mubr.bf16.mxu0 %v7505
        %8091 = vmatmul.mubr.bf16.gmra.mrb[0].mxu0 %v7441
        %v8092 = vpop.f32.mrb[0].mxu0
        %v8093 = vadd.f32 %v7752, %v8092
        %v8094 = vpop.f32.mrb[0].mxu0
        %v8095 = vpop.f32.mrb[0].mxu0
        %v8096 = vadd.f32 %v7752, %v8095
        %v8097 = vpop.f32.mrb[0].mxu0
        %8098 = vmatprep.mubr.bf16.mxu0 %v7509
        %8099 = vmatmul.mubr.bf16.gmra.mrb[0].mxu0 %v7445
        %v8100 = vpop.f32.mrb[0].mxu0
        %v8101 = vadd.f32 %v7752, %v8100
        %v8102 = vpop.f32.mrb[0].mxu0
        %v8103 = vpop.f32.mrb[0].mxu0
        %v8104 = vadd.f32 %v7752, %v8103
        %v8105 = vpop.f32.mrb[0].mxu0
        %8106 = vmatprep.mubr.bf16.mxu0 %v7513
        %8107 = vmatmul.mubr.bf16.gmra.mrb[0].mxu0 %v7449
        %v8108 = vpop.f32.mrb[0].mxu0
        %v8109 = vadd.f32 %v7752, %v8108
        %v8110 = vpop.f32.mrb[0].mxu0
        %v8111 = vpop.f32.mrb[0].mxu0
        %v8112 = vadd.f32 %v7752, %v8111
        %v8113 = vpop.f32.mrb[0].mxu0
        %8114 = vmatprep.mubr.bf16.mxu0 %v7517
        %8115 = vmatmul.mubr.bf16.gmra.mrb[0].mxu0 %v7453
        %v8116 = vpop.f32.mrb[0].mxu0
        %v8117 = vadd.f32 %v7752, %v8116
        %v8118 = vpop.f32.mrb[0].mxu0
        %v8119 = vpop.f32.mrb[0].mxu0
        %v8120 = vadd.f32 %v7752, %v8119
        %v8121 = vpop.f32.mrb[0].mxu0
        %8122 = vmatprep.mubr.bf16.mxu0 %v7521
        %8123 = vmatmul.mubr.bf16.gmra.mrb[0].mxu0 %v7457
        %v8124 = vpop.f32.mrb[0].mxu0
        %v8125 = vadd.f32 %v7752, %v8124
        %v8126 = vpop.f32.mrb[0].mxu0
        %v8127 = vpop.f32.mrb[0].mxu0
        %v8128 = vadd.f32 %v7752, %v8127
        %v8129 = vpop.f32.mrb[0].mxu0
        %8130 = vmatprep.mubr.bf16.mxu0 %v7525
        %8131 = vmatmul.mubr.bf16.gmra.mrb[0].mxu0 %v7461
        %v8132 = vpop.f32.mrb[0].mxu0
        %v8133 = vadd.f32 %v7752, %v8132
        %v8134 = vpop.f32.mrb[0].mxu0
        %v8135 = vpop.f32.mrb[0].mxu0
        %v8136 = vadd.f32 %v7752, %v8135
        %v8137 = vpop.f32.mrb[0].mxu0
        %8138 = vmatprep.mubr.bf16.mxu0 %v7529
        %8139 = vmatmul.mubr.bf16.gmra.mrb[0].mxu0 %v7465
        %v8140 = vpop.f32.mrb[0].mxu0
        %v8141 = vadd.f32 %v7752, %v8140
        %v8142 = vpop.f32.mrb[0].mxu0
        %v8143 = vpop.f32.mrb[0].mxu0
        %v8144 = vadd.f32 %v7752, %v8143
        %v8145 = vpop.f32.mrb[0].mxu0
        %8146 = vmatprep.mubr.bf16.mxu0 %v7533
        %8147 = vmatmul.mubr.bf16.gmra.mrb[0].mxu0 %v7469
        %v8148 = vpop.f32.mrb[0].mxu0
        %v8149 = vadd.f32 %v7752, %v8148
        %v8150 = vpop.f32.mrb[0].mxu0
        %v8151 = vpop.f32.mrb[0].mxu0
        %v8152 = vadd.f32 %v7752, %v8151
        %v8153 = vpop.f32.mrb[0].mxu0
        %8154 = vmatprep.mubr.bf16.mxu0 %v7537
        %8155 = vmatmul.mubr.bf16.gmra.mrb[0].mxu0 %v7473
        %v8156 = vpop.f32.mrb[0].mxu0
        %v8157 = vadd.f32 %v7752, %v8156
        %v8158 = vpop.f32.mrb[0].mxu0
        %v8159 = vpop.f32.mrb[0].mxu0
        %v8160 = vadd.f32 %v7752, %v8159
        %v8161 = vpop.f32.mrb[0].mxu0
        %8162 = vmatprep.mubr.bf16.mxu0 %v7541
        %8163 = vmatmul.mubr.bf16.gmra.mrb[0].mxu0 %v7477
        %v8164 = vpop.f32.mrb[0].mxu0
        %v8165 = vadd.f32 %v7752, %v8164
        %v8166 = vpop.f32.mrb[0].mxu0
        %v8167 = vpop.f32.mrb[0].mxu0
        %v8168 = vadd.f32 %v7752, %v8167
        %v8169 = vpop.f32.mrb[0].mxu0
        %8170 = vmatprep.mubr.bf16.mxu0 %v7545
        %8171 = vmatmul.mubr.bf16.gmra.mrb[0].mxu0 %v7481
        %v8172 = vpop.f32.mrb[0].mxu0
        %v8173 = vadd.f32 %v7752, %v8172
        %v8174 = vpop.f32.mrb[0].mxu0
        %v8175 = vpop.f32.mrb[0].mxu0
        %v8176 = vadd.f32 %v7752, %v8175
        %v8177 = vpop.f32.mrb[0].mxu0
        %8178 = vdwg.mxu0
        %8179 = vmatprep.subr.bf16.mxu0 0
        %8180 = vmatpush1.bf16.msra.mxu0 %v7914
        %8181 = vmatprep.subr.bf16.mxu0 0
        %8182 = vmatpush1.bf16.msra.mxu0 %v7915
        %8183 = vmatprep.subr.bf16.mxu0 0
        %8184 = vmatpush1.bf16.msra.mxu0 %v7916
        %8185 = vmatprep.subr.bf16.mxu0 0
        %8186 = vmatpush1.bf16.msra.mxu0 %v7917
        %8187 = vmatprep.subr.bf16.mxu0 0
        %8188 = vmatpush1.bf16.msra.mxu0 %v7918
        %8189 = vmatprep.subr.bf16.mxu0 0
        %8190 = vmatpush1.bf16.msra.mxu0 %v7919
        %8191 = vmatprep.subr.bf16.mxu0 0
        %8192 = vmatpush1.bf16.msra.mxu0 %v7920
        %8193 = vmatprep.subr.bf16.mxu0 0
        %8194 = vmatpush1.bf16.msra.mxu0 %v7921
        %8195 = vmatprep.subr.bf16.mxu0 0
        %8196 = vmatpush1.bf16.msra.mxu0 %v7922
        %8197 = vmatprep.subr.bf16.mxu0 0
        %8198 = vmatpush1.bf16.msra.mxu0 %v7923
        %8199 = vmatprep.subr.bf16.mxu0 0
        %8200 = vmatpush1.bf16.msra.mxu0 %v7924
        %8201 = vmatprep.subr.bf16.mxu0 0
        %8202 = vmatpush1.bf16.msra.mxu0 %v7925
        %8203 = vmatprep.subr.bf16.mxu0 0
        %8204 = vmatpush1.bf16.msra.mxu0 %v7926
        %8205 = vmatprep.subr.bf16.mxu0 0
        %8206 = vmatpush1.bf16.msra.mxu0 %v7927
        %8207 = vmatprep.subr.bf16.mxu0 0
        %8208 = vmatpush1.bf16.msra.mxu0 %v7928
        %8209 = vmatprep.subr.bf16.mxu0 0
        %8210 = vmatpush1.bf16.msra.mxu0 %v7929
        %8211 = vmatprep.mubr.bf16.mxu0 %v7613
        %8212 = vmatmul.mubr.bf16.gmra.mrb[0].mxu0 %v7549
        %v8213 = vpop.f32.mrb[0].mxu0
        %v8214 = vadd.f32 %v8053, %v8213
        %v8215 = vpop.f32.mrb[0].mxu0
        %v8216 = vpop.f32.mrb[0].mxu0
        %v8217 = vadd.f32 %v8056, %v8216
        %v8218 = vpop.f32.mrb[0].mxu0
        %8219 = vmatprep.mubr.bf16.mxu0 %v7617
        %8220 = vmatmul.mubr.bf16.gmra.mrb[0].mxu0 %v7553
        %v8221 = vpop.f32.mrb[0].mxu0
        %v8222 = vadd.f32 %v8061, %v8221
        %v8223 = vpop.f32.mrb[0].mxu0
        %v8224 = vpop.f32.mrb[0].mxu0
        %v8225 = vadd.f32 %v8064, %v8224
        %v8226 = vpop.f32.mrb[0].mxu0
        %8227 = vmatprep.mubr.bf16.mxu0 %v7621
        %8228 = vmatmul.mubr.bf16.gmra.mrb[0].mxu0 %v7557
        %v8229 = vpop.f32.mrb[0].mxu0
        %v8230 = vadd.f32 %v8069, %v8229
        %v8231 = vpop.f32.mrb[0].mxu0
        %v8232 = vpop.f32.mrb[0].mxu0
        %v8233 = vadd.f32 %v8072, %v8232
        %v8234 = vpop.f32.mrb[0].mxu0
        %8235 = vmatprep.mubr.bf16.mxu0 %v7625
        %8236 = vmatmul.mubr.bf16.gmra.mrb[0].mxu0 %v7561
        %v8237 = vpop.f32.mrb[0].mxu0
        %v8238 = vadd.f32 %v8077, %v8237
        %v8239 = vpop.f32.mrb[0].mxu0
        %v8240 = vpop.f32.mrb[0].mxu0
        %v8241 = vadd.f32 %v8080, %v8240
        %v8242 = vpop.f32.mrb[0].mxu0
        %8243 = vmatprep.mubr.bf16.mxu0 %v7629
        %8244 = vmatmul.mubr.bf16.gmra.mrb[0].mxu0 %v7565
        %v8245 = vpop.f32.mrb[0].mxu0
        %v8246 = vadd.f32 %v8085, %v8245
        %v8247 = vpop.f32.mrb[0].mxu0
        %v8248 = vpop.f32.mrb[0].mxu0
        %v8249 = vadd.f32 %v8088, %v8248
        %v8250 = vpop.f32.mrb[0].mxu0
        %8251 = vmatprep.mubr.bf16.mxu0 %v7633
        %8252 = vmatmul.mubr.bf16.gmra.mrb[0].mxu0 %v7569
        %v8253 = vpop.f32.mrb[0].mxu0
        %v8254 = vadd.f32 %v8093, %v8253
        %v8255 = vpop.f32.mrb[0].mxu0
        %v8256 = vpop.f32.mrb[0].mxu0
        %v8257 = vadd.f32 %v8096, %v8256
        %v8258 = vpop.f32.mrb[0].mxu0
        %8259 = vmatprep.mubr.bf16.mxu0 %v7637
        %8260 = vmatmul.mubr.bf16.gmra.mrb[0].mxu0 %v7573
        %v8261 = vpop.f32.mrb[0].mxu0
        %v8262 = vadd.f32 %v8101, %v8261
        %v8263 = vpop.f32.mrb[0].mxu0
        %v8264 = vpop.f32.mrb[0].mxu0
        %v8265 = vadd.f32 %v8104, %v8264
        %v8266 = vpop.f32.mrb[0].mxu0
        %8267 = vmatprep.mubr.bf16.mxu0 %v7641
        %8268 = vmatmul.mubr.bf16.gmra.mrb[0].mxu0 %v7577
        %v8269 = vpop.f32.mrb[0].mxu0
        %v8270 = vadd.f32 %v8109, %v8269
        %v8271 = vpop.f32.mrb[0].mxu0
        %v8272 = vpop.f32.mrb[0].mxu0
        %v8273 = vadd.f32 %v8112, %v8272
        %v8274 = vpop.f32.mrb[0].mxu0
        %8275 = vmatprep.mubr.bf16.mxu0 %v7645
        %8276 = vmatmul.mubr.bf16.gmra.mrb[0].mxu0 %v7581
        %v8277 = vpop.f32.mrb[0].mxu0
        %v8278 = vadd.f32 %v8117, %v8277
        %v8279 = vpop.f32.mrb[0].mxu0
        %v8280 = vpop.f32.mrb[0].mxu0
        %v8281 = vadd.f32 %v8120, %v8280
        %v8282 = vpop.f32.mrb[0].mxu0
        %8283 = vmatprep.mubr.bf16.mxu0 %v7649
        %8284 = vmatmul.mubr.bf16.gmra.mrb[0].mxu0 %v7585
        %v8285 = vpop.f32.mrb[0].mxu0
        %v8286 = vadd.f32 %v8125, %v8285
        %v8287 = vpop.f32.mrb[0].mxu0
        %v8288 = vpop.f32.mrb[0].mxu0
        %v8289 = vadd.f32 %v8128, %v8288
        %v8290 = vpop.f32.mrb[0].mxu0
        %8291 = vmatprep.mubr.bf16.mxu0 %v7653
        %8292 = vmatmul.mubr.bf16.gmra.mrb[0].mxu0 %v7589
        %v8293 = vpop.f32.mrb[0].mxu0
        %v8294 = vadd.f32 %v8133, %v8293
        %v8295 = vpop.f32.mrb[0].mxu0
        %v8296 = vpop.f32.mrb[0].mxu0
        %v8297 = vadd.f32 %v8136, %v8296
        %v8298 = vpop.f32.mrb[0].mxu0
        %8299 = vmatprep.mubr.bf16.mxu0 %v7657
        %8300 = vmatmul.mubr.bf16.gmra.mrb[0].mxu0 %v7593
        %v8301 = vpop.f32.mrb[0].mxu0
        %v8302 = vadd.f32 %v8141, %v8301
        %v8303 = vpop.f32.mrb[0].mxu0
        %v8304 = vpop.f32.mrb[0].mxu0
        %v8305 = vadd.f32 %v8144, %v8304
        %v8306 = vpop.f32.mrb[0].mxu0
        %8307 = vmatprep.mubr.bf16.mxu0 %v7661
        %8308 = vmatmul.mubr.bf16.gmra.mrb[0].mxu0 %v7597
        %v8309 = vpop.f32.mrb[0].mxu0
        %v8310 = vadd.f32 %v8149, %v8309
        %v8311 = vpop.f32.mrb[0].mxu0
        %v8312 = vpop.f32.mrb[0].mxu0
        %v8313 = vadd.f32 %v8152, %v8312
        %v8314 = vpop.f32.mrb[0].mxu0
        %8315 = vmatprep.mubr.bf16.mxu0 %v7665
        %8316 = vmatmul.mubr.bf16.gmra.mrb[0].mxu0 %v7601
        %v8317 = vpop.f32.mrb[0].mxu0
        %v8318 = vadd.f32 %v8157, %v8317
        %v8319 = vpop.f32.mrb[0].mxu0
        %v8320 = vpop.f32.mrb[0].mxu0
        %v8321 = vadd.f32 %v8160, %v8320
        %v8322 = vpop.f32.mrb[0].mxu0
        %8323 = vmatprep.mubr.bf16.mxu0 %v7669
        %8324 = vmatmul.mubr.bf16.gmra.mrb[0].mxu0 %v7605
        %v8325 = vpop.f32.mrb[0].mxu0
        %v8326 = vadd.f32 %v8165, %v8325
        %v8327 = vpop.f32.mrb[0].mxu0
        %v8328 = vpop.f32.mrb[0].mxu0
        %v8329 = vadd.f32 %v8168, %v8328
        %v8330 = vpop.f32.mrb[0].mxu0
        %8331 = vmatprep.mubr.bf16.mxu0 %v7673
        %8332 = vmatmul.mubr.bf16.gmra.mrb[0].mxu0 %v7609
        %v8333 = vpop.f32.mrb[0].mxu0
        %v8334 = vadd.f32 %v8173, %v8333
        %v8335 = vpop.f32.mrb[0].mxu0
        %v8336 = vpop.f32.mrb[0].mxu0
        %v8337 = vadd.f32 %v8176, %v8336
        %v8338 = vpop.f32.mrb[0].mxu0
        %8339 = vdwg.mxu0
        %8340 = vmatprep.subr.bf16.mxu0 0
        %8341 = vmatpush1.bf16.msra.mxu0 %v7930
        %8342 = vmatprep.subr.bf16.mxu0 0
        %8343 = vmatpush1.bf16.msra.mxu0 %v7931
        %8344 = vmatprep.subr.bf16.mxu0 0
        %8345 = vmatpush1.bf16.msra.mxu0 %v7932
        %8346 = vmatprep.subr.bf16.mxu0 0
        %8347 = vmatpush1.bf16.msra.mxu0 %v7933
        %8348 = vmatprep.subr.bf16.mxu0 0
        %8349 = vmatpush1.bf16.msra.mxu0 0
        %8350 = vmatprep.subr.bf16.mxu0 0
        %8351 = vmatpush1.bf16.msra.mxu0 0
        %8352 = vmatprep.subr.bf16.mxu0 0
        %8353 = vmatpush1.bf16.msra.mxu0 0
        %8354 = vmatprep.subr.bf16.mxu0 0
        %8355 = vmatpush1.bf16.msra.mxu0 0
        %8356 = vmatprep.subr.bf16.mxu0 0
        %8357 = vmatpush1.bf16.msra.mxu0 0
        %8358 = vmatprep.subr.bf16.mxu0 0
        %8359 = vmatpush1.bf16.msra.mxu0 0
        %8360 = vmatprep.subr.bf16.mxu0 0
        %8361 = vmatpush1.bf16.msra.mxu0 0
        %8362 = vmatprep.subr.bf16.mxu0 0
        %8363 = vmatpush1.bf16.msra.mxu0 0
        %8364 = vmatprep.subr.bf16.mxu0 0
        %8365 = vmatpush1.bf16.msra.mxu0 0
        %8366 = vmatprep.subr.bf16.mxu0 0
        %8367 = vmatpush1.bf16.msra.mxu0 0
        %8368 = vmatprep.subr.bf16.mxu0 0
        %8369 = vmatpush1.bf16.msra.mxu0 0
        %8370 = vmatprep.subr.bf16.mxu0 0
        %8371 = vmatpush1.bf16.msra.mxu0 0
        %8372 = vmatprep.mubr.bf16.mxu0 0
        %8373 = vmatmul.mubr.bf16.gmra.mrb[0].mxu0 %v7971
        %v8374 = vpop.f32.mrb[0].mxu0
        %v8375 = vadd.f32 %v8214, %v8374
        %v8376 = vpop.f32.mrb[0].mxu0
        %v8377 = vpop.f32.mrb[0].mxu0
        %v8378 = vadd.f32 %v8217, %v8377
        %v8379 = vpop.f32.mrb[0].mxu0
        %8380 = vmatprep.mubr.bf16.mxu0 0
        %8381 = vmatmul.mubr.bf16.gmra.mrb[0].mxu0 %v7974
        %v8382 = vpop.f32.mrb[0].mxu0
        %v8383 = vadd.f32 %v8222, %v8382
        %v8384 = vpop.f32.mrb[0].mxu0
        %v8385 = vpop.f32.mrb[0].mxu0
        %v8386 = vadd.f32 %v8225, %v8385
        %v8387 = vpop.f32.mrb[0].mxu0
        %8388 = vmatprep.mubr.bf16.mxu0 0
        %8389 = vmatmul.mubr.bf16.gmra.mrb[0].mxu0 %v7977
        %v8390 = vpop.f32.mrb[0].mxu0
        %v8391 = vadd.f32 %v8230, %v8390
        %v8392 = vpop.f32.mrb[0].mxu0
        %v8393 = vpop.f32.mrb[0].mxu0
        %v8394 = vadd.f32 %v8233, %v8393
        %v8395 = vpop.f32.mrb[0].mxu0
        %8396 = vmatprep.mubr.bf16.mxu0 0
        %8397 = vmatmul.mubr.bf16.gmra.mrb[0].mxu0 %v7980
        %v8398 = vpop.f32.mrb[0].mxu0
        %v8399 = vadd.f32 %v8238, %v8398
        %v8400 = vpop.f32.mrb[0].mxu0
        %v8401 = vpop.f32.mrb[0].mxu0
        %v8402 = vadd.f32 %v8241, %v8401
        %v8403 = vpop.f32.mrb[0].mxu0
        %8404 = vmatprep.mubr.bf16.mxu0 0
        %8405 = vmatmul.mubr.bf16.gmra.mrb[0].mxu0 %v7983
        %v8406 = vpop.f32.mrb[0].mxu0
        %v8407 = vadd.f32 %v8246, %v8406
        %v8408 = vpop.f32.mrb[0].mxu0
        %v8409 = vpop.f32.mrb[0].mxu0
        %v8410 = vadd.f32 %v8249, %v8409
        %v8411 = vpop.f32.mrb[0].mxu0
        %8412 = vmatprep.mubr.bf16.mxu0 0
        %8413 = vmatmul.mubr.bf16.gmra.mrb[0].mxu0 %v7986
        %v8414 = vpop.f32.mrb[0].mxu0
        %v8415 = vadd.f32 %v8254, %v8414
        %v8416 = vpop.f32.mrb[0].mxu0
        %v8417 = vpop.f32.mrb[0].mxu0
        %v8418 = vadd.f32 %v8257, %v8417
        %v8419 = vpop.f32.mrb[0].mxu0
        %8420 = vmatprep.mubr.bf16.mxu0 0
        %8421 = vmatmul.mubr.bf16.gmra.mrb[0].mxu0 %v7989
        %v8422 = vpop.f32.mrb[0].mxu0
        %v8423 = vadd.f32 %v8262, %v8422
        %v8424 = vpop.f32.mrb[0].mxu0
        %v8425 = vpop.f32.mrb[0].mxu0
        %v8426 = vadd.f32 %v8265, %v8425
        %v8427 = vpop.f32.mrb[0].mxu0
        %8428 = vmatprep.mubr.bf16.mxu0 0
        %8429 = vmatmul.mubr.bf16.gmra.mrb[0].mxu0 %v7992
        %v8430 = vpop.f32.mrb[0].mxu0
        %v8431 = vadd.f32 %v8270, %v8430
        %v8432 = vpop.f32.mrb[0].mxu0
        %v8433 = vpop.f32.mrb[0].mxu0
        %v8434 = vadd.f32 %v8273, %v8433
        %v8435 = vpop.f32.mrb[0].mxu0
        %8436 = vmatprep.mubr.bf16.mxu0 0
        %8437 = vmatmul.mubr.bf16.gmra.mrb[0].mxu0 %v7995
        %v8438 = vpop.f32.mrb[0].mxu0
        %v8439 = vadd.f32 %v8278, %v8438
        %v8440 = vpop.f32.mrb[0].mxu0
        %v8441 = vpop.f32.mrb[0].mxu0
        %v8442 = vadd.f32 %v8281, %v8441
        %v8443 = vpop.f32.mrb[0].mxu0
        %8444 = vmatprep.mubr.bf16.mxu0 0
        %8445 = vmatmul.mubr.bf16.gmra.mrb[0].mxu0 %v7998
        %v8446 = vpop.f32.mrb[0].mxu0
        %v8447 = vadd.f32 %v8286, %v8446
        %v8448 = vpop.f32.mrb[0].mxu0
        %v8449 = vpop.f32.mrb[0].mxu0
        %v8450 = vadd.f32 %v8289, %v8449
        %v8451 = vpop.f32.mrb[0].mxu0
        %8452 = vmatprep.mubr.bf16.mxu0 0
        %8453 = vmatmul.mubr.bf16.gmra.mrb[0].mxu0 %v8001
        %v8454 = vpop.f32.mrb[0].mxu0
        %v8455 = vadd.f32 %v8294, %v8454
        %v8456 = vpop.f32.mrb[0].mxu0
        %v8457 = vpop.f32.mrb[0].mxu0
        %v8458 = vadd.f32 %v8297, %v8457
        %v8459 = vpop.f32.mrb[0].mxu0
        %8460 = vmatprep.mubr.bf16.mxu0 0
        %8461 = vmatmul.mubr.bf16.gmra.mrb[0].mxu0 %v8004
        %v8462 = vpop.f32.mrb[0].mxu0
        %v8463 = vadd.f32 %v8302, %v8462
        %v8464 = vpop.f32.mrb[0].mxu0
        %v8465 = vpop.f32.mrb[0].mxu0
        %v8466 = vadd.f32 %v8305, %v8465
        %v8467 = vpop.f32.mrb[0].mxu0
        %8468 = vmatprep.mubr.bf16.mxu0 0
        %8469 = vmatmul.mubr.bf16.gmra.mrb[0].mxu0 %v8007
        %v8470 = vpop.f32.mrb[0].mxu0
        %v8471 = vadd.f32 %v8310, %v8470
        %v8472 = vpop.f32.mrb[0].mxu0
        %v8473 = vpop.f32.mrb[0].mxu0
        %v8474 = vadd.f32 %v8313, %v8473
        %v8475 = vpop.f32.mrb[0].mxu0
        %8476 = vmatprep.mubr.bf16.mxu0 0
        %8477 = vmatmul.mubr.bf16.gmra.mrb[0].mxu0 %v8010
        %v8478 = vpop.f32.mrb[0].mxu0
        %v8479 = vadd.f32 %v8318, %v8478
        %v8480 = vpop.f32.mrb[0].mxu0
        %v8481 = vpop.f32.mrb[0].mxu0
        %v8482 = vadd.f32 %v8321, %v8481
        %v8483 = vpop.f32.mrb[0].mxu0
        %8484 = vmatprep.mubr.bf16.mxu0 0
        %8485 = vmatmul.mubr.bf16.gmra.mrb[0].mxu0 %v8013
        %v8486 = vpop.f32.mrb[0].mxu0
        %v8487 = vadd.f32 %v8326, %v8486
        %v8488 = vpop.f32.mrb[0].mxu0
        %v8489 = vpop.f32.mrb[0].mxu0
        %v8490 = vadd.f32 %v8329, %v8489
        %v8491 = vpop.f32.mrb[0].mxu0
        %8492 = vmatprep.mubr.bf16.mxu0 0
        %8493 = vmatmul.mubr.bf16.gmra.mrb[0].mxu0 %v8016
        %v8494 = vpop.f32.mrb[0].mxu0
        %v8495 = vadd.f32 %v8334, %v8494
        %v8496 = vpop.f32.mrb[0].mxu0
        %v8497 = vpop.f32.mrb[0].mxu0
        %v8498 = vadd.f32 %v8337, %v8497
        %v8499 = vpop.f32.mrb[0].mxu0
        %8500 = vdwg.mxu0
        %v8501 = vld [vmem:[%s222] sm:$0xff]
        %v8502 = vld [vmem:[%s222 + $0x8] sm:$0xff]
        %v8503 = vld [vmem:[%s222 + $0x10] sm:$0xff]
        %v8504 = vld [vmem:[%s222 + $0x18] sm:$0xff]
        %v8505 = vld [vmem:[%s222 + $0x20] sm:$0xff]
        %v8506 = vld [vmem:[%s222 + $0x28] sm:$0xff]
        %v8507 = vld [vmem:[%s222 + $0x30] sm:$0xff]
        %v8508 = vld [vmem:[%s222 + $0x38] sm:$0xff]
        %v8509 = vld [vmem:[%s222 + $0x40] sm:$0xff]
        %v8510 = vld [vmem:[%s222 + $0x48] sm:$0xff]
        %v8511 = vld [vmem:[%s222 + $0x50] sm:$0xff]
        %v8512 = vld [vmem:[%s222 + $0x58] sm:$0xff]
        %v8513 = vld [vmem:[%s222 + $0x60] sm:$0xff]
        %v8514 = vld [vmem:[%s222 + $0x68] sm:$0xff]
        %v8515 = vld [vmem:[%s222 + $0x70] sm:$0xff]
        %v8516 = vld [vmem:[%s222 + $0x78] sm:$0xff]
        %v8517 = vld [vmem:[%s222 + $0x80] sm:$0xff]
        %v8518 = vld [vmem:[%s222 + $0x88] sm:$0xff]
        %v8519 = vld [vmem:[%s222 + $0x90] sm:$0xff]
        %v8520 = vld [vmem:[%s222 + $0x98] sm:$0xff]
        %v8521 = vld [vmem:[%s222 + $0xa0] sm:$0xff]
        %v8522 = vld [vmem:[%s222 + $0xa8] sm:$0xff]
        %v8523 = vld [vmem:[%s222 + $0xb0] sm:$0xff]
        %v8524 = vld [vmem:[%s222 + $0xb8] sm:$0xff]
        %v8525 = vld [vmem:[%s222 + $0xc0] sm:$0xff]
        %v8526 = vld [vmem:[%s222 + $0xc8] sm:$0xff]
        %v8527 = vld [vmem:[%s222 + $0xd0] sm:$0xff]
        %v8528 = vld [vmem:[%s222 + $0xd8] sm:$0xff]
        %v8529 = vld [vmem:[%s222 + $0xe0] sm:$0xff]
        %v8530 = vld [vmem:[%s222 + $0xe8] sm:$0xff]
        %v8531 = vld [vmem:[%s222 + $0xf0] sm:$0xff]
        %v8532 = vld [vmem:[%s222 + $0xf8] sm:$0xff]
        %v8533 = vadd.f32 %v8501, %v8375
        %v8534 = vadd.f32 %v8502, %v8378
        %v8535 = vadd.f32 %v8503, %v8383
        %v8536 = vadd.f32 %v8504, %v8386
        %v8537 = vadd.f32 %v8505, %v8391
        %v8538 = vadd.f32 %v8506, %v8394
        %v8539 = vadd.f32 %v8507, %v8399
        %v8540 = vadd.f32 %v8508, %v8402
        %v8541 = vadd.f32 %v8509, %v8407
        %v8542 = vadd.f32 %v8510, %v8410
        %v8543 = vadd.f32 %v8511, %v8415
        %v8544 = vadd.f32 %v8512, %v8418
        %v8545 = vadd.f32 %v8513, %v8423
        %v8546 = vadd.f32 %v8514, %v8426
        %v8547 = vadd.f32 %v8515, %v8431
        %v8548 = vadd.f32 %v8516, %v8434
        %v8549 = vadd.f32 %v8517, %v8439
        %v8550 = vadd.f32 %v8518, %v8442
        %v8551 = vadd.f32 %v8519, %v8447
        %v8552 = vadd.f32 %v8520, %v8450
        %v8553 = vadd.f32 %v8521, %v8455
        %v8554 = vadd.f32 %v8522, %v8458
        %v8555 = vadd.f32 %v8523, %v8463
        %v8556 = vadd.f32 %v8524, %v8466
        %v8557 = vadd.f32 %v8525, %v8471
        %v8558 = vadd.f32 %v8526, %v8474
        %v8559 = vadd.f32 %v8527, %v8479
        %v8560 = vadd.f32 %v8528, %v8482
        %v8561 = vadd.f32 %v8529, %v8487
        %v8562 = vadd.f32 %v8530, %v8490
        %v8563 = vadd.f32 %v8531, %v8495
        %v8564 = vadd.f32 %v8532, %v8498
        %8565 = vst.msk [vmem:[%s217] sm:$0xff] %vm3288, %v8533
        %8566 = vst.msk [vmem:[%s217 + $0x8] sm:$0xff] %vm3288, %v8534
        %8567 = vst.msk [vmem:[%s217 + $0x10] sm:$0xff] %vm3288, %v8535
        %8568 = vst.msk [vmem:[%s217 + $0x18] sm:$0xff] %vm3288, %v8536
        %8569 = vst.msk [vmem:[%s217 + $0x20] sm:$0xff] %vm3288, %v8537
        %8570 = vst.msk [vmem:[%s217 + $0x28] sm:$0xff] %vm3288, %v8538
        %8571 = vst.msk [vmem:[%s217 + $0x30] sm:$0xff] %vm3288, %v8539
        %8572 = vst.msk [vmem:[%s217 + $0x38] sm:$0xff] %vm3288, %v8540
        %8573 = vst.msk [vmem:[%s217 + $0x40] sm:$0xff] %vm3288, %v8541
        %8574 = vst.msk [vmem:[%s217 + $0x48] sm:$0xff] %vm3288, %v8542
        %8575 = vst.msk [vmem:[%s217 + $0x50] sm:$0xff] %vm3288, %v8543
        %8576 = vst.msk [vmem:[%s217 + $0x58] sm:$0xff] %vm3288, %v8544
        %8577 = vst.msk [vmem:[%s217 + $0x60] sm:$0xff] %vm3288, %v8545
        %8578 = vst.msk [vmem:[%s217 + $0x68] sm:$0xff] %vm3288, %v8546
        %8579 = vst.msk [vmem:[%s217 + $0x70] sm:$0xff] %vm3288, %v8547
        %8580 = vst.msk [vmem:[%s217 + $0x78] sm:$0xff] %vm3288, %v8548
        %8581 = vst.msk [vmem:[%s217 + $0x80] sm:$0xff] %vm3288, %v8549
        %8582 = vst.msk [vmem:[%s217 + $0x88] sm:$0xff] %vm3288, %v8550
        %8583 = vst.msk [vmem:[%s217 + $0x90] sm:$0xff] %vm3288, %v8551
        %8584 = vst.msk [vmem:[%s217 + $0x98] sm:$0xff] %vm3288, %v8552
        %8585 = vst.msk [vmem:[%s217 + $0xa0] sm:$0xff] %vm3288, %v8553
        %8586 = vst.msk [vmem:[%s217 + $0xa8] sm:$0xff] %vm3288, %v8554
        %8587 = vst.msk [vmem:[%s217 + $0xb0] sm:$0xff] %vm3288, %v8555
        %8588 = vst.msk [vmem:[%s217 + $0xb8] sm:$0xff] %vm3288, %v8556
        %8589 = vst.msk [vmem:[%s217 + $0xc0] sm:$0xff] %vm3288, %v8557
        %8590 = vst.msk [vmem:[%s217 + $0xc8] sm:$0xff] %vm3288, %v8558
        %8591 = vst.msk [vmem:[%s217 + $0xd0] sm:$0xff] %vm3288, %v8559
        %8592 = vst.msk [vmem:[%s217 + $0xd8] sm:$0xff] %vm3288, %v8560
        %8593 = vst.msk [vmem:[%s217 + $0xe0] sm:$0xff] %vm3288, %v8561
        %8594 = vst.msk [vmem:[%s217 + $0xe8] sm:$0xff] %vm3288, %v8562
        %8595 = vst.msk [vmem:[%s217 + $0xf0] sm:$0xff] %vm3288, %v8563
        %8596 = vst.msk [vmem:[%s217 + $0xf8] sm:$0xff] %vm3288, %v8564
        %s8597 = sand.u32 %s137, 1
        %s8598 = scalar_lea.sflag [#allocation5], %s8597
        %s8599 = sand.u32 %s137, 1
        %s8600 = smul.addr %s8599, 256
        %s8601 = scalar_lea.vmem [#allocation4], %s8600
        // Predicated region
        $region41: #{tpu_custom_call.1} parent=39 // pred_check
          %p8602 = pneg %p147
        $region42: #{tpu_custom_call.1} parent=39 // pred_check_branch
          %8604 = sbr.rel (%p8602) target = $region44
        $region43: #{tpu_custom_call.1} parent=39 // pred_region
          %s8606 = ssub.s32 4096, 4096
          %8607 = vsyncadd %s8598, %s8606
          %s8608 = smul.addr %s19, 32
          %s8609 = smul.addr %s8608, 128
          %s8610 = scalar_lea.hbm %s5, %s8609
          %s8611 = sshll.u32 %s8601, 4
          %s8612 = int_to_ptr.vmem [resolvable:$true] %s8611
          %8617 = dma.vmem_to_hbm [thread:$0]  %s8612, 4096, %s8610, %s8598, 128, 128, 8
        $region44: #{tpu_custom_call.1} parent=39 // pred_fallthru
          _
      $region40: #{tpu_custom_call.1} parent=5 // pred_fallthru
        _
      %p8618 = scmp.le.s32.totalorder 2, %s14
      // Predicated region
      $region45: #{tpu_custom_call.1} parent=5 // pred_check
        %p8619 = pneg %p8618
      $region46: #{tpu_custom_call.1} parent=5 // pred_check_branch
        %8621 = sbr.rel (%p8619) target = $region48
      $region47: #{tpu_custom_call.1} parent=5 // pred_region
        %s8622 = ssub.s32 %s14, 2
        // Predicated region
        $region49: #{tpu_custom_call.1} parent=47 // pred_check
          %p8623 = pneg %p153
        $region50: #{tpu_custom_call.1} parent=47 // pred_check_branch
          %8625 = sbr.rel (%p8623) target = $region52
        $region51: #{tpu_custom_call.1} parent=47 // pred_region
          %s8626 = sand.u32 %s138, 1
          %s8627 = scalar_lea.sflag [#allocation5], %s8626
          %s8628 = sand.u32 %s138, 1
          %s8629 = smul.addr %s8628, 256
          %s8630 = scalar_lea.vmem [#allocation4], %s8629
          %8631 = dma.done %s8627, 4096
        $region52: #{tpu_custom_call.1} parent=47 // pred_fallthru
          _
      $region48: #{tpu_custom_call.1} parent=5 // pred_fallthru
        _
    $region6: #{tpu_custom_call.1} parent=1 // loop_footer
      %s18 = sadd.s32 1, %s14
    $region7: #{tpu_custom_call.1} parent=1 // loop_footer_branch
      %13 = sbr.rel target = $region3
    $region8: #{tpu_custom_call.1} parent=1 // loop_exit
      _
    %8632 = vsyncpa [#allocation5], 1
    %s8633 = scalar_lea.sflag [#allocation5], 1
    %8634 = vsyncpa %s8633, 1

</llo_original>
